<compile_context>
chip_gen: v6e
topology: v6e:2x2x1
jax: 0.10.0
libtpu: 0.0.40
codegen_flags: <defaults>
</compile_context>

<pallas_src>
import functools
import math

import jax
import jax.numpy as jnp
from jax.experimental import pallas as pl
from jax.experimental.pallas import tpu as pltpu

NUM_STYLE_CLASSES = 8   # width of the (bias-free, sigmoid) style classifier
NUM_RUMOR_CLASSES = 2   # width of each rumor classifier


# ----------------------------------------------------------------------------
# In-kernel transformer layer (post-LN MHA + FFN), operating on one (S, C) slab
# ----------------------------------------------------------------------------

def _layer_forward(x, m, hmasks, eps,
                   Wqkv, bqkv, Wo, bo, ln1g, ln1b, W1, b1, W2, b2, ln2g, ln2b):
    S, C = x.shape
    dh = C // len(hmasks)
    scale = 1.0 / math.sqrt(dh)

    # packed QKV projection: single (C, 3C) bf16 matmul, f32 accumulate
    qkv = jnp.dot(x.astype(jnp.bfloat16), Wqkv,
                  preferred_element_type=jnp.float32) + bqkv        # (S, 3C)
    q = qkv[:, :C]
    k = qkv[:, C:2 * C]
    v = qkv[:, 2 * C:]

    # multi-head self-attention via lane masks (no 3-D reshape/transpose);
    # per-head contributions accumulate directly into the (S, C) slab.
    att = jnp.zeros((S, C), jnp.float32)
    for hm in hmasks:
        s = jnp.dot(q * hm, (k * hm).T, preferred_element_type=jnp.float32) * scale
        s = s - jnp.max(s, axis=-1, keepdims=True)                  # f32 softmax
        p = jnp.exp(s)
        p = p / jnp.sum(p, axis=-1, keepdims=True)
        att = att + jnp.dot(p, v * hm, preferred_element_type=jnp.float32)

    att = jnp.dot(att.astype(jnp.bfloat16), Wo,
                  preferred_element_type=jnp.float32) + bo

    # residual + LayerNorm 1 (f32)
    y = x + att
    mu = jnp.mean(y, axis=-1, keepdims=True)
    var = jnp.mean((y - mu) ** 2, axis=-1, keepdims=True)
    y = (y - mu) * jax.lax.rsqrt(var + eps) * ln1g + ln1b

    # fused FFN: W1 + ReLU + W2
    f = jnp.dot(y.astype(jnp.bfloat16), W1, preferred_element_type=jnp.float32) + b1
    f = jnp.maximum(f, 0.0)
    f = jnp.dot(f.astype(jnp.bfloat16), W2, preferred_element_type=jnp.float32) + b2

    # residual + LayerNorm 2 + padded-row re-zeroing
    z = y + f
    mu2 = jnp.mean(z, axis=-1, keepdims=True)
    var2 = jnp.mean((z - mu2) ** 2, axis=-1, keepdims=True)
    z = (z - mu2) * jax.lax.rsqrt(var2 + eps) * ln2g + ln2b
    return z * m


# ----------------------------------------------------------------------------
# Whole-model fused kernel (one batch element per grid step)
# ----------------------------------------------------------------------------

def _transe_kernel(x_ref,
                   # stacked transformer weights: layers [0, L) = encoder,
                   #                              layers [L, 2L) = decoder
                   Wqkv_ref, bqkv_ref, Wo_ref, bo_ref, ln1g_ref, ln1b_ref,
                   W1_ref, b1_ref, W2_ref, b2_ref, ln2g_ref, ln2b_ref,
                   # disentanglement / Post_Attn / packed classifier heads
                   disW_ref, disb_ref, saW_ref, sab_ref, caW_ref, cab_ref,
                   csW_ref, csb_ref, ccW_ref, ccb_ref,
                   # reconstruction fc
                   fcW_ref, fcb_ref,
                   # outputs
                   cont_ref, sty_ref, hsty_ref, hcont_ref, rec_ref,
                   *, n_head, n_layers, n_sig, eps):
    S, C = x_ref.shape
    dh = C // n_head

    x = x_ref[...]                                                   # (S, C) f32
    # torch.nonzero(x.sum(-1)) trick -> row-validity mask (1 = nonzero row)
    m = (jnp.sum(x, axis=-1, keepdims=True) != 0.0).astype(jnp.float32)   # (S, 1)

    # per-head lane masks, built once and reused across all layers
    col = jax.lax.broadcasted_iota(jnp.int32, (1, C), 1)
    hmasks = [jnp.logical_and(col >= h * dh, col < (h + 1) * dh).astype(jnp.float32)
              for h in range(n_head)]

    def layer(h_in, l):
        return _layer_forward(h_in, m, hmasks, eps,
                              Wqkv_ref[l], bqkv_ref[l], Wo_ref[l], bo_ref[l],
                              ln1g_ref[l], ln1b_ref[l], W1_ref[l], b1_ref[l],
                              W2_ref[l], b2_ref[l], ln2g_ref[l], ln2b_ref[l])

    # --- encoder stack (x is fed directly, as in the PyTorch forward) ---
    h = x
    for l in range(n_layers):
        h = layer(h, l)

    # --- disentanglement gate: sigmoid(Linear(h)); split style / content ---
    dis = jax.nn.sigmoid(
        jnp.dot(h.astype(jnp.bfloat16), disW_ref[...],
                preferred_element_type=jnp.float32) + disb_ref[...])
    sty = h * dis
    cont = h * (1.0 - dis)
    sty_ref[...] = sty
    cont_ref[...] = cont

    def post_attn(xx, w_row, b):
        # Post_Attn (root_enhance=False): score = Linear(x); zero padded rows
        # (forward-equivalent of the detach trick); masked_fill(score==0,-1e20);
        # softmax over seq; pooled = x^T @ score.  The (C,1) matmul is done as a
        # VPU lane reduction instead of an N=1 MXU matmul.
        a = jnp.sum(xx * w_row, axis=-1, keepdims=True) + b          # (S, 1)
        a = a * m
        a = jnp.where(a == 0.0, -1e20, a)
        a = a - jnp.max(a, axis=0, keepdims=True)
        e = jnp.exp(a)
        p = e / jnp.sum(e, axis=0, keepdims=True)                    # softmax over seq
        return jnp.sum(xx * p, axis=0, keepdims=True)                # (1, C)

    sty_all = post_attn(sty, saW_ref[...], sab_ref[...])
    cont_all = post_attn(cont, caW_ref[...], cab_ref[...])

    # classifier heads packed into one (C, n_sig + 2) matmul per pooled vector:
    # cols [0, n_sig) -> style classifier (sigmoid, no bias),
    # cols [n_sig, :) -> rumor classifier (linear, with bias).
    def heads(pooled, w, b):
        logits = jnp.dot(pooled.astype(jnp.bfloat16), w,
                         preferred_element_type=jnp.float32) + b
        lane = jax.lax.broadcasted_iota(jnp.int32, logits.shape, 1)
        return jnp.where(lane < n_sig, jax.nn.sigmoid(logits), logits)

    hsty_ref[...] = heads(sty_all, csW_ref[...], csb_ref[...])
    hcont_ref[...] = heads(cont_all, ccW_ref[...], ccb_ref[...])   # GRL fwd = identity

    # --- content-reconstruction decoder + fc + LeakyReLU + row mask ---
    d = cont
    for l in range(n_layers, 2 * n_layers):
        d = layer(d, l)
    r = jnp.dot(d.astype(jnp.bfloat16), fcW_ref[...],
                preferred_element_type=jnp.float32) + fcb_ref[...]
    r = jnp.where(r > 0, r, 0.01 * r)                                # LeakyReLU (0.01)
    rec_ref[...] = r * m


# ----------------------------------------------------------------------------
# Wrapper: ONE pallas_call for the whole forward pass
# ----------------------------------------------------------------------------

_WEIGHT_ORDER = [
    "Wqkv", "bqkv", "Wo", "bo", "ln1_g", "ln1_b",
    "W1", "b1", "W2", "b2", "ln2_g", "ln2_b",
    "dis_W", "dis_b", "sty_attn_W", "sty_attn_b", "cont_attn_W", "cont_attn_b",
    "cls_sty_W", "cls_sty_b", "cls_cont_W", "cls_cont_b",
    "fc_W", "fc_b",
]


def transe_stymix_forward(packed, x, n_head, n_layers):
    B, S, C = x.shape
    n_out = packed["cls_sty_W"].shape[1]
    c_rec = packed["fc_W"].shape[1]

    kernel = functools.partial(_transe_kernel, n_head=n_head, n_layers=n_layers,
                               n_sig=NUM_STYLE_CLASSES, eps=1e-5)

    def full(a):
        nd = a.ndim
        return pl.BlockSpec(a.shape, lambda b, nd=nd: (0,) * nd)

    bsd = pl.BlockSpec((None, S, C), lambda b: (b, 0, 0))
    bhead = pl.BlockSpec((None, 1, n_out), lambda b: (b, 0, 0))
    brec = pl.BlockSpec((None, S, c_rec), lambda b: (b, 0, 0))

    weights = [packed[n] for n in _WEIGHT_ORDER]

    cont, sty, hs, hc, x_rec = pl.pallas_call(
        kernel,
        out_shape=(
            jax.ShapeDtypeStruct((B, S, C), jnp.float32),          # cont
            jax.ShapeDtypeStruct((B, S, C), jnp.float32),          # sty
            jax.ShapeDtypeStruct((B, 1, n_out), jnp.float32),      # packed sty heads
            jax.ShapeDtypeStruct((B, 1, n_out), jnp.float32),      # packed cont heads
            jax.ShapeDtypeStruct((B, S, c_rec), jnp.float32),      # x_rec
        ),
        grid=(B,),
        in_specs=[bsd] + [full(w) for w in weights],
        out_specs=(bsd, bsd, bhead, bhead, brec),
        compiler_params=pltpu.CompilerParams(dimension_semantics=("parallel",)),
    )(x, *weights)

    n_sig = NUM_STYLE_CLASSES
    stypred_sty = hs[:, 0, :n_sig]
    pred_sty = hs[:, 0, n_sig:]
    stypred_cont = hc[:, 0, :n_sig]
    pred_cont = hc[:, 0, n_sig:]
    return cont, sty, stypred_cont, stypred_sty, pred_cont, pred_sty, x_rec


# ----------------------------------------------------------------------------
# Deterministic parameter init (PyTorch-like layout) + packing for the kernel
# ----------------------------------------------------------------------------

def _w(key, shape, scale=0.05):
    return jax.random.normal(key, shape, jnp.float32) * scale


def init_transformer_layer(key, d, h_hid):
    ks = jax.random.split(key, 6)
    return dict(
        Wq=_w(ks[0], (d, d)), bq=jnp.zeros((d,), jnp.float32),
        Wk=_w(ks[1], (d, d)), bk=jnp.zeros((d,), jnp.float32),
        Wv=_w(ks[2], (d, d)), bv=jnp.zeros((d,), jnp.float32),
        Wo=_w(ks[3], (d, d)), bo=jnp.zeros((d,), jnp.float32),
        ln1_g=jnp.ones((d,), jnp.float32), ln1_b=jnp.zeros((d,), jnp.float32),
        W1=_w(ks[4], (d, h_hid)), b1=jnp.zeros((h_hid,), jnp.float32),
        W2=_w(ks[5], (h_hid, d)), b2=jnp.zeros((d,), jnp.float32),
        ln2_g=jnp.ones((d,), jnp.float32), ln2_b=jnp.zeros((d,), jnp.float32),
    )


def init_params(key, c_in, c_hid, num_layers, h_hid_trans):
    keys = jax.random.split(key, 2 * num_layers + 8)
    enc = [init_transformer_layer(keys[i], c_hid, h_hid_trans) for i in range(num_layers)]
    dec = [init_transformer_layer(keys[num_layers + i], c_hid, h_hid_trans)
           for i in range(num_layers)]
    k = keys[2 * num_layers:]
    return dict(
        encoder=enc, decoder=dec,
        dis_W=_w(k[0], (c_hid, c_hid)), dis_b=jnp.zeros((c_hid,), jnp.float32),
        sty_attn_W=_w(k[1], (c_hid, 1)), sty_attn_b=jnp.zeros((1,), jnp.float32),
        cont_attn_W=_w(k[2], (c_hid, 1)), cont_attn_b=jnp.zeros((1,), jnp.float32),
        style_cls_W=_w(k[3], (c_hid, NUM_STYLE_CLASSES)),
        sty_rumor_W=_w(k[4], (c_hid, NUM_RUMOR_CLASSES)),
        sty_rumor_b=jnp.zeros((NUM_RUMOR_CLASSES,), jnp.float32),
        cont_rumor_W=_w(k[5], (c_hid, NUM_RUMOR_CLASSES)),
        cont_rumor_b=jnp.zeros((NUM_RUMOR_CLASSES,), jnp.float32),
        fc_W=_w(k[6], (c_hid, c_in)), fc_b=jnp.zeros((c_in,), jnp.float32),
    )


def pack_params(p):
    """Pack PyTorch-layout params into the fused-kernel layout: encoder+decoder
    layer weights stacked along a leading (2L) axis, QKV concatenated, bf16
    matmul weights, classifier heads packed into one (C, 10) matmul, and
    Post_Attn score weights as (1, C) row vectors for VPU reductions."""
    bf = jnp.bfloat16
    layers = p["encoder"] + p["decoder"]           # encoder first, then decoder
    d = layers[0]["Wq"].shape[0]

    def stack(fn, dtype=jnp.float32):
        return jnp.stack([fn(lp) for lp in layers]).astype(dtype)

    c = p["dis_W"].shape[0]
    zsig = jnp.zeros((NUM_STYLE_CLASSES,), jnp.float32)
    return dict(
        Wqkv=stack(lambda lp: jnp.concatenate([lp["Wq"], lp["Wk"], lp["Wv"]], axis=1), bf),
        bqkv=stack(lambda lp: jnp.concatenate([lp["bq"], lp["bk"], lp["bv"]]).reshape(1, 3 * d)),
        Wo=stack(lambda lp: lp["Wo"], bf),
        bo=stack(lambda lp: lp["bo"].reshape(1, d)),
        ln1_g=stack(lambda lp: lp["ln1_g"].reshape(1, d)),
        ln1_b=stack(lambda lp: lp["ln1_b"].reshape(1, d)),
        W1=stack(lambda lp: lp["W1"], bf),
        b1=stack(lambda lp: lp["b1"].reshape(1, -1)),
        W2=stack(lambda lp: lp["W2"], bf),
        b2=stack(lambda lp: lp["b2"].reshape(1, d)),
        ln2_g=stack(lambda lp: lp["ln2_g"].reshape(1, d)),
        ln2_b=stack(lambda lp: lp["ln2_b"].reshape(1, d)),
        dis_W=p["dis_W"].astype(bf), dis_b=p["dis_b"].reshape(1, c),
        sty_attn_W=p["sty_attn_W"].reshape(1, c),
        sty_attn_b=p["sty_attn_b"].reshape(1, 1),
        cont_attn_W=p["cont_attn_W"].reshape(1, c),
        cont_attn_b=p["cont_attn_b"].reshape(1, 1),
        cls_sty_W=jnp.concatenate([p["style_cls_W"], p["sty_rumor_W"]], axis=1).astype(bf),
        cls_sty_b=jnp.concatenate([zsig, p["sty_rumor_b"]]).reshape(1, -1),
        cls_cont_W=jnp.concatenate([p["style_cls_W"], p["cont_rumor_W"]], axis=1).astype(bf),
        cls_cont_b=jnp.concatenate([zsig, p["cont_rumor_b"]]).reshape(1, -1),
        fc_W=p["fc_W"].astype(bf), fc_b=p["fc_b"].reshape(1, -1),
    )


# ----------------------------------------------------------------------------
# Main
# ----------------------------------------------------------------------------

if __name__ == "__main__":
    # small shapes consistent with the module; c_in == c_hid since the PyTorch
    # forward feeds x directly into the (c_hid-wide) encoder.
    B, S = 2, 8
    c_in = c_hid = 32
    num_layers_trans = 2
    n_head_trans = 4
    h_hid_trans = 64

    key = jax.random.PRNGKey(0)
    kx, kp = jax.random.split(key)

    x = jax.random.normal(kx, (B, S, c_in), jnp.float32)
    # zero-pad some rows to exercise the mask_nonzero path
    x = x.at[0, 6:].set(0.0)
    x = x.at[1, 5:].set(0.0)

    params = pack_params(init_params(kp, c_in, c_hid, num_layers_trans, h_hid_trans))

    fwd = jax.jit(functools.partial(transe_stymix_forward,
                                    n_head=n_head_trans, n_layers=num_layers_trans))
    outs = fwd(params, x)
    for o in outs:
        jax.block_until_ready(o)

    cont, sty, stypred_cont, stypred_sty, pred_cont, pred_sty, x_rec = outs
    assert cont.shape == (B, S, c_hid)
    assert sty.shape == (B, S, c_hid)
    assert stypred_cont.shape == (B, NUM_STYLE_CLASSES)
    assert stypred_sty.shape == (B, NUM_STYLE_CLASSES)
    assert pred_cont.shape == (B, NUM_RUMOR_CLASSES)
    assert pred_sty.shape == (B, NUM_RUMOR_CLASSES)
    assert x_rec.shape == (B, S, c_in)
    assert all(bool(jnp.all(jnp.isfinite(o))) for o in outs)
    print("KERNEL_OK")
</pallas_src>

<mosaic_0001>
module attributes {stable_mosaic.version = 11 : i64} {
  func.func @_transe_kernel(%arg0: i32, %arg1: memref<1x8x32xf32, #tpu.memory_space<vmem>>, %arg2: memref<4x32x96xbf16, #tpu.memory_space<vmem>>, %arg3: memref<4x1x96xf32, #tpu.memory_space<vmem>>, %arg4: memref<4x32x32xbf16, #tpu.memory_space<vmem>>, %arg5: memref<4x1x32xf32, #tpu.memory_space<vmem>>, %arg6: memref<4x1x32xf32, #tpu.memory_space<vmem>>, %arg7: memref<4x1x32xf32, #tpu.memory_space<vmem>>, %arg8: memref<4x32x64xbf16, #tpu.memory_space<vmem>>, %arg9: memref<4x1x64xf32, #tpu.memory_space<vmem>>, %arg10: memref<4x64x32xbf16, #tpu.memory_space<vmem>>, %arg11: memref<4x1x32xf32, #tpu.memory_space<vmem>>, %arg12: memref<4x1x32xf32, #tpu.memory_space<vmem>>, %arg13: memref<4x1x32xf32, #tpu.memory_space<vmem>>, %arg14: memref<32x32xbf16, #tpu.memory_space<vmem>>, %arg15: memref<1x32xf32, #tpu.memory_space<vmem>>, %arg16: memref<1x32xf32, #tpu.memory_space<vmem>>, %arg17: memref<1x1xf32, #tpu.memory_space<vmem>>, %arg18: memref<1x32xf32, #tpu.memory_space<vmem>>, %arg19: memref<1x1xf32, #tpu.memory_space<vmem>>, %arg20: memref<32x10xbf16, #tpu.memory_space<vmem>>, %arg21: memref<1x10xf32, #tpu.memory_space<vmem>>, %arg22: memref<32x10xbf16, #tpu.memory_space<vmem>>, %arg23: memref<1x10xf32, #tpu.memory_space<vmem>>, %arg24: memref<32x32xbf16, #tpu.memory_space<vmem>>, %arg25: memref<1x32xf32, #tpu.memory_space<vmem>>, %arg26: memref<1x8x32xf32, #tpu.memory_space<vmem>>, %arg27: memref<1x8x32xf32, #tpu.memory_space<vmem>>, %arg28: memref<1x1x10xf32, #tpu.memory_space<vmem>>, %arg29: memref<1x1x10xf32, #tpu.memory_space<vmem>>, %arg30: memref<1x8x32xf32, #tpu.memory_space<vmem>>) attributes {dimension_semantics = [#tpu.dimension_semantics<parallel>], iteration_bounds = array<i64: 2>, scalar_prefetch = 0 : i64, scratch_operands = 0 : i64, tpu.core_type = #tpu.core_type<tc>, window_params = [{transform_indices = @transform_0, window_bounds = array<i64: 1, 8, 32>}, {pipeline_mode = #tpu.pipeline_mode<synchronous>, transform_indices = @transform_1, window_bounds = array<i64: 4, 32, 96>}, {pipeline_mode = #tpu.pipeline_mode<synchronous>, transform_indices = @transform_2, window_bounds = array<i64: 4, 1, 96>}, {pipeline_mode = #tpu.pipeline_mode<synchronous>, transform_indices = @transform_3, window_bounds = array<i64: 4, 32, 32>}, {pipeline_mode = #tpu.pipeline_mode<synchronous>, transform_indices = @transform_4, window_bounds = array<i64: 4, 1, 32>}, {pipeline_mode = #tpu.pipeline_mode<synchronous>, transform_indices = @transform_5, window_bounds = array<i64: 4, 1, 32>}, {pipeline_mode = #tpu.pipeline_mode<synchronous>, transform_indices = @transform_6, window_bounds = array<i64: 4, 1, 32>}, {pipeline_mode = #tpu.pipeline_mode<synchronous>, transform_indices = @transform_7, window_bounds = array<i64: 4, 32, 64>}, {pipeline_mode = #tpu.pipeline_mode<synchronous>, transform_indices = @transform_8, window_bounds = array<i64: 4, 1, 64>}, {pipeline_mode = #tpu.pipeline_mode<synchronous>, transform_indices = @transform_9, window_bounds = array<i64: 4, 64, 32>}, {pipeline_mode = #tpu.pipeline_mode<synchronous>, transform_indices = @transform_10, window_bounds = array<i64: 4, 1, 32>}, {pipeline_mode = #tpu.pipeline_mode<synchronous>, transform_indices = @transform_11, window_bounds = array<i64: 4, 1, 32>}, {pipeline_mode = #tpu.pipeline_mode<synchronous>, transform_indices = @transform_12, window_bounds = array<i64: 4, 1, 32>}, {pipeline_mode = #tpu.pipeline_mode<synchronous>, transform_indices = @transform_13, window_bounds = array<i64: 32, 32>}, {pipeline_mode = #tpu.pipeline_mode<synchronous>, transform_indices = @transform_14, window_bounds = array<i64: 1, 32>}, {pipeline_mode = #tpu.pipeline_mode<synchronous>, transform_indices = @transform_15, window_bounds = array<i64: 1, 32>}, {pipeline_mode = #tpu.pipeline_mode<synchronous>, transform_indices = @transform_16, window_bounds = array<i64: 1, 1>}, {pipeline_mode = #tpu.pipeline_mode<synchronous>, transform_indices = @transform_17, window_bounds = array<i64: 1, 32>}, {pipeline_mode = #tpu.pipeline_mode<synchronous>, transform_indices = @transform_18, window_bounds = array<i64: 1, 1>}, {pipeline_mode = #tpu.pipeline_mode<synchronous>, transform_indices = @transform_19, window_bounds = array<i64: 32, 10>}, {pipeline_mode = #tpu.pipeline_mode<synchronous>, transform_indices = @transform_20, window_bounds = array<i64: 1, 10>}, {pipeline_mode = #tpu.pipeline_mode<synchronous>, transform_indices = @transform_21, window_bounds = array<i64: 32, 10>}, {pipeline_mode = #tpu.pipeline_mode<synchronous>, transform_indices = @transform_22, window_bounds = array<i64: 1, 10>}, {pipeline_mode = #tpu.pipeline_mode<synchronous>, transform_indices = @transform_23, window_bounds = array<i64: 32, 32>}, {pipeline_mode = #tpu.pipeline_mode<synchronous>, transform_indices = @transform_24, window_bounds = array<i64: 1, 32>}, {transform_indices = @transform_25, window_bounds = array<i64: 1, 8, 32>}, {transform_indices = @transform_26, window_bounds = array<i64: 1, 8, 32>}, {transform_indices = @transform_27, window_bounds = array<i64: 1, 1, 10>}, {transform_indices = @transform_28, window_bounds = array<i64: 1, 1, 10>}, {transform_indices = @transform_29, window_bounds = array<i64: 1, 8, 32>}]} {
    %c0 = arith.constant 0 : index
    %c0_0 = arith.constant 0 : index
    %c0_1 = arith.constant 0 : index
    %0 = vector.load %arg1[%c0, %c0_0, %c0_1] : memref<1x8x32xf32, #tpu.memory_space<vmem>>, vector<1x8x32xf32>
    %1 = vector.shape_cast %0 : vector<1x8x32xf32> to vector<8x32xf32>
    %cst = arith.constant dense<0.000000e+00> : vector<8xf32>
    %2 = vector.multi_reduction <add>, %1, %cst [1] : vector<8x32xf32> to vector<8xf32>
    %3 = vector.shape_cast %2 : vector<8xf32> to vector<8x1xf32>
    %cst_2 = arith.constant 0.000000e+00 : f32
    %4 = vector.broadcast %cst_2 : f32 to vector<8x1xf32>
    %5 = arith.cmpf one, %3, %4 : vector<8x1xf32>
    %6 = arith.extui %5 : vector<8x1xi1> to vector<8x1xi32>
    %7 = arith.sitofp %6 : vector<8x1xi32> to vector<8x1xf32>
    %8 = tpu.iota {dimensions = array<i32: 1>} : vector<1x32xi32>
    %c0_i32 = arith.constant 0 : i32
    %9 = vector.broadcast %c0_i32 : i32 to vector<1x32xi32>
    %10 = arith.cmpi sge, %8, %9 : vector<1x32xi32>
    %c8_i32 = arith.constant 8 : i32
    %11 = vector.broadcast %c8_i32 : i32 to vector<1x32xi32>
    %12 = arith.cmpi slt, %8, %11 : vector<1x32xi32>
    %13 = arith.andi %10, %12 : vector<1x32xi1>
    %14 = arith.extui %13 : vector<1x32xi1> to vector<1x32xi32>
    %15 = arith.sitofp %14 : vector<1x32xi32> to vector<1x32xf32>
    %c8_i32_3 = arith.constant 8 : i32
    %16 = vector.broadcast %c8_i32_3 : i32 to vector<1x32xi32>
    %17 = arith.cmpi sge, %8, %16 : vector<1x32xi32>
    %c16_i32 = arith.constant 16 : i32
    %18 = vector.broadcast %c16_i32 : i32 to vector<1x32xi32>
    %19 = arith.cmpi slt, %8, %18 : vector<1x32xi32>
    %20 = arith.andi %17, %19 : vector<1x32xi1>
    %21 = arith.extui %20 : vector<1x32xi1> to vector<1x32xi32>
    %22 = arith.sitofp %21 : vector<1x32xi32> to vector<1x32xf32>
    %c16_i32_4 = arith.constant 16 : i32
    %23 = vector.broadcast %c16_i32_4 : i32 to vector<1x32xi32>
    %24 = arith.cmpi sge, %8, %23 : vector<1x32xi32>
    %c24_i32 = arith.constant 24 : i32
    %25 = vector.broadcast %c24_i32 : i32 to vector<1x32xi32>
    %26 = arith.cmpi slt, %8, %25 : vector<1x32xi32>
    %27 = arith.andi %24, %26 : vector<1x32xi1>
    %28 = arith.extui %27 : vector<1x32xi1> to vector<1x32xi32>
    %29 = arith.sitofp %28 : vector<1x32xi32> to vector<1x32xf32>
    %c24_i32_5 = arith.constant 24 : i32
    %30 = vector.broadcast %c24_i32_5 : i32 to vector<1x32xi32>
    %31 = arith.cmpi sge, %8, %30 : vector<1x32xi32>
    %c32_i32 = arith.constant 32 : i32
    %32 = vector.broadcast %c32_i32 : i32 to vector<1x32xi32>
    %33 = arith.cmpi slt, %8, %32 : vector<1x32xi32>
    %34 = arith.andi %31, %33 : vector<1x32xi1>
    %35 = arith.extui %34 : vector<1x32xi1> to vector<1x32xi32>
    %36 = arith.sitofp %35 : vector<1x32xi32> to vector<1x32xf32>
    %c0_6 = arith.constant 0 : index
    %c0_7 = arith.constant 0 : index
    %c0_8 = arith.constant 0 : index
    %37 = vector.load %arg2[%c0_6, %c0_7, %c0_8] : memref<4x32x96xbf16, #tpu.memory_space<vmem>>, vector<1x32x96xbf16>
    %38 = vector.shape_cast %37 : vector<1x32x96xbf16> to vector<32x96xbf16>
    %c0_9 = arith.constant 0 : index
    %c0_10 = arith.constant 0 : index
    %c0_11 = arith.constant 0 : index
    %39 = vector.load %arg3[%c0_9, %c0_10, %c0_11] : memref<4x1x96xf32, #tpu.memory_space<vmem>>, vector<1x1x96xf32>
    %40 = vector.shape_cast %39 : vector<1x1x96xf32> to vector<1x96xf32>
    %c0_12 = arith.constant 0 : index
    %c0_13 = arith.constant 0 : index
    %c0_14 = arith.constant 0 : index
    %41 = vector.load %arg4[%c0_12, %c0_13, %c0_14] : memref<4x32x32xbf16, #tpu.memory_space<vmem>>, vector<1x32x32xbf16>
    %42 = vector.shape_cast %41 : vector<1x32x32xbf16> to vector<32x32xbf16>
    %c0_15 = arith.constant 0 : index
    %c0_16 = arith.constant 0 : index
    %c0_17 = arith.constant 0 : index
    %43 = vector.load %arg5[%c0_15, %c0_16, %c0_17] : memref<4x1x32xf32, #tpu.memory_space<vmem>>, vector<1x1x32xf32>
    %44 = vector.shape_cast %43 : vector<1x1x32xf32> to vector<1x32xf32>
    %c0_18 = arith.constant 0 : index
    %c0_19 = arith.constant 0 : index
    %c0_20 = arith.constant 0 : index
    %45 = vector.load %arg6[%c0_18, %c0_19, %c0_20] : memref<4x1x32xf32, #tpu.memory_space<vmem>>, vector<1x1x32xf32>
    %46 = vector.shape_cast %45 : vector<1x1x32xf32> to vector<1x32xf32>
    %c0_21 = arith.constant 0 : index
    %c0_22 = arith.constant 0 : index
    %c0_23 = arith.constant 0 : index
    %47 = vector.load %arg7[%c0_21, %c0_22, %c0_23] : memref<4x1x32xf32, #tpu.memory_space<vmem>>, vector<1x1x32xf32>
    %48 = vector.shape_cast %47 : vector<1x1x32xf32> to vector<1x32xf32>
    %c0_24 = arith.constant 0 : index
    %c0_25 = arith.constant 0 : index
    %c0_26 = arith.constant 0 : index
    %49 = vector.load %arg8[%c0_24, %c0_25, %c0_26] : memref<4x32x64xbf16, #tpu.memory_space<vmem>>, vector<1x32x64xbf16>
    %50 = vector.shape_cast %49 : vector<1x32x64xbf16> to vector<32x64xbf16>
    %c0_27 = arith.constant 0 : index
    %c0_28 = arith.constant 0 : index
    %c0_29 = arith.constant 0 : index
    %51 = vector.load %arg9[%c0_27, %c0_28, %c0_29] : memref<4x1x64xf32, #tpu.memory_space<vmem>>, vector<1x1x64xf32>
    %52 = vector.shape_cast %51 : vector<1x1x64xf32> to vector<1x64xf32>
    %c0_30 = arith.constant 0 : index
    %c0_31 = arith.constant 0 : index
    %c0_32 = arith.constant 0 : index
    %53 = vector.load %arg10[%c0_30, %c0_31, %c0_32] : memref<4x64x32xbf16, #tpu.memory_space<vmem>>, vector<1x64x32xbf16>
    %54 = vector.shape_cast %53 : vector<1x64x32xbf16> to vector<64x32xbf16>
    %c0_33 = arith.constant 0 : index
    %c0_34 = arith.constant 0 : index
    %c0_35 = arith.constant 0 : index
    %55 = vector.load %arg11[%c0_33, %c0_34, %c0_35] : memref<4x1x32xf32, #tpu.memory_space<vmem>>, vector<1x1x32xf32>
    %56 = vector.shape_cast %55 : vector<1x1x32xf32> to vector<1x32xf32>
    %c0_36 = arith.constant 0 : index
    %c0_37 = arith.constant 0 : index
    %c0_38 = arith.constant 0 : index
    %57 = vector.load %arg12[%c0_36, %c0_37, %c0_38] : memref<4x1x32xf32, #tpu.memory_space<vmem>>, vector<1x1x32xf32>
    %58 = vector.shape_cast %57 : vector<1x1x32xf32> to vector<1x32xf32>
    %c0_39 = arith.constant 0 : index
    %c0_40 = arith.constant 0 : index
    %c0_41 = arith.constant 0 : index
    %59 = vector.load %arg13[%c0_39, %c0_40, %c0_41] : memref<4x1x32xf32, #tpu.memory_space<vmem>>, vector<1x1x32xf32>
    %60 = vector.shape_cast %59 : vector<1x1x32xf32> to vector<1x32xf32>
    %61 = arith.truncf %1 : vector<8x32xf32> to vector<8x32xbf16>
    %cst_42 = arith.constant dense<0.000000e+00> : vector<8x96xf32>
    %62 = tpu.matmul %61, %38, %cst_42 {dimension_numbers = #tpu.dot_dimension_numbers<[1], [0], [0], [1], [0, 0, 1, 1], [], []>} : vector<8x32xbf16>, vector<32x96xbf16>, vector<8x96xf32> -> vector<8x96xf32>
    %63 = vector.broadcast %40 : vector<1x96xf32> to vector<8x96xf32>
    %64 = arith.addf %62, %63 : vector<8x96xf32>
    %65 = vector.extract_strided_slice %64 {offsets = [0, 0], sizes = [8, 32], strides = [1, 1]} : vector<8x96xf32> to vector<8x32xf32>
    %66 = vector.extract_strided_slice %64 {offsets = [0, 32], sizes = [8, 32], strides = [1, 1]} : vector<8x96xf32> to vector<8x32xf32>
    %67 = vector.extract_strided_slice %64 {offsets = [0, 64], sizes = [8, 32], strides = [1, 1]} : vector<8x96xf32> to vector<8x32xf32>
    %cst_43 = arith.constant 0.000000e+00 : f32
    %68 = vector.broadcast %cst_43 : f32 to vector<8x32xf32>
    %69 = vector.broadcast %15 : vector<1x32xf32> to vector<8x32xf32>
    %70 = arith.mulf %65, %69 : vector<8x32xf32>
    %71 = vector.broadcast %15 : vector<1x32xf32> to vector<8x32xf32>
    %72 = arith.mulf %66, %71 : vector<8x32xf32>
    %73 = tpu.transpose %72, [1, 0] : vector<8x32xf32> -> vector<32x8xf32>
    %cst_44 = arith.constant dense<0.000000e+00> : vector<8x8xf32>
    %74 = tpu.matmul %70, %73, %cst_44 {dimension_numbers = #tpu.dot_dimension_numbers<[1], [0], [0], [1], [0, 0, 1, 1], [], []>} : vector<8x32xf32>, vector<32x8xf32>, vector<8x8xf32> -> vector<8x8xf32>
    %cst_45 = arith.constant 0.353553385 : f32
    %75 = vector.broadcast %cst_45 : f32 to vector<8x8xf32>
    %76 = arith.mulf %74, %75 : vector<8x8xf32>
    %cst_46 = arith.constant dense<0xFF800000> : vector<8xf32>
    %77 = vector.multi_reduction <maximumf>, %76, %cst_46 [1] : vector<8x8xf32> to vector<8xf32>
    %78 = vector.shape_cast %77 : vector<8xf32> to vector<8x1xf32>
    %79 = vector.broadcast %78 : vector<8x1xf32> to vector<8x8xf32>
    %80 = arith.subf %76, %79 : vector<8x8xf32>
    %81 = math.exp %80 : vector<8x8xf32>
    %cst_47 = arith.constant dense<0.000000e+00> : vector<8xf32>
    %82 = vector.multi_reduction <add>, %81, %cst_47 [1] : vector<8x8xf32> to vector<8xf32>
    %83 = vector.shape_cast %82 : vector<8xf32> to vector<8x1xf32>
    %84 = vector.broadcast %83 : vector<8x1xf32> to vector<8x8xf32>
    %85 = arith.divf %81, %84 : vector<8x8xf32>
    %86 = vector.broadcast %15 : vector<1x32xf32> to vector<8x32xf32>
    %87 = arith.mulf %67, %86 : vector<8x32xf32>
    %cst_48 = arith.constant dense<0.000000e+00> : vector<8x32xf32>
    %88 = tpu.matmul %85, %87, %cst_48 {dimension_numbers = #tpu.dot_dimension_numbers<[1], [0], [0], [1], [0, 0, 1, 1], [], []>} : vector<8x8xf32>, vector<8x32xf32>, vector<8x32xf32> -> vector<8x32xf32>
    %89 = arith.addf %68, %88 : vector<8x32xf32>
    %90 = vector.broadcast %22 : vector<1x32xf32> to vector<8x32xf32>
    %91 = arith.mulf %65, %90 : vector<8x32xf32>
    %92 = vector.broadcast %22 : vector<1x32xf32> to vector<8x32xf32>
    %93 = arith.mulf %66, %92 : vector<8x32xf32>
    %94 = tpu.transpose %93, [1, 0] : vector<8x32xf32> -> vector<32x8xf32>
    %cst_49 = arith.constant dense<0.000000e+00> : vector<8x8xf32>
    %95 = tpu.matmul %91, %94, %cst_49 {dimension_numbers = #tpu.dot_dimension_numbers<[1], [0], [0], [1], [0, 0, 1, 1], [], []>} : vector<8x32xf32>, vector<32x8xf32>, vector<8x8xf32> -> vector<8x8xf32>
    %cst_50 = arith.constant 0.353553385 : f32
    %96 = vector.broadcast %cst_50 : f32 to vector<8x8xf32>
    %97 = arith.mulf %95, %96 : vector<8x8xf32>
    %cst_51 = arith.constant dense<0xFF800000> : vector<8xf32>
    %98 = vector.multi_reduction <maximumf>, %97, %cst_51 [1] : vector<8x8xf32> to vector<8xf32>
    %99 = vector.shape_cast %98 : vector<8xf32> to vector<8x1xf32>
    %100 = vector.broadcast %99 : vector<8x1xf32> to vector<8x8xf32>
    %101 = arith.subf %97, %100 : vector<8x8xf32>
    %102 = math.exp %101 : vector<8x8xf32>
    %cst_52 = arith.constant dense<0.000000e+00> : vector<8xf32>
    %103 = vector.multi_reduction <add>, %102, %cst_52 [1] : vector<8x8xf32> to vector<8xf32>
    %104 = vector.shape_cast %103 : vector<8xf32> to vector<8x1xf32>
    %105 = vector.broadcast %104 : vector<8x1xf32> to vector<8x8xf32>
    %106 = arith.divf %102, %105 : vector<8x8xf32>
    %107 = vector.broadcast %22 : vector<1x32xf32> to vector<8x32xf32>
    %108 = arith.mulf %67, %107 : vector<8x32xf32>
    %cst_53 = arith.constant dense<0.000000e+00> : vector<8x32xf32>
    %109 = tpu.matmul %106, %108, %cst_53 {dimension_numbers = #tpu.dot_dimension_numbers<[1], [0], [0], [1], [0, 0, 1, 1], [], []>} : vector<8x8xf32>, vector<8x32xf32>, vector<8x32xf32> -> vector<8x32xf32>
    %110 = arith.addf %89, %109 : vector<8x32xf32>
    %111 = vector.broadcast %29 : vector<1x32xf32> to vector<8x32xf32>
    %112 = arith.mulf %65, %111 : vector<8x32xf32>
    %113 = vector.broadcast %29 : vector<1x32xf32> to vector<8x32xf32>
    %114 = arith.mulf %66, %113 : vector<8x32xf32>
    %115 = tpu.transpose %114, [1, 0] : vector<8x32xf32> -> vector<32x8xf32>
    %cst_54 = arith.constant dense<0.000000e+00> : vector<8x8xf32>
    %116 = tpu.matmul %112, %115, %cst_54 {dimension_numbers = #tpu.dot_dimension_numbers<[1], [0], [0], [1], [0, 0, 1, 1], [], []>} : vector<8x32xf32>, vector<32x8xf32>, vector<8x8xf32> -> vector<8x8xf32>
    %cst_55 = arith.constant 0.353553385 : f32
    %117 = vector.broadcast %cst_55 : f32 to vector<8x8xf32>
    %118 = arith.mulf %116, %117 : vector<8x8xf32>
    %cst_56 = arith.constant dense<0xFF800000> : vector<8xf32>
    %119 = vector.multi_reduction <maximumf>, %118, %cst_56 [1] : vector<8x8xf32> to vector<8xf32>
    %120 = vector.shape_cast %119 : vector<8xf32> to vector<8x1xf32>
    %121 = vector.broadcast %120 : vector<8x1xf32> to vector<8x8xf32>
    %122 = arith.subf %118, %121 : vector<8x8xf32>
    %123 = math.exp %122 : vector<8x8xf32>
    %cst_57 = arith.constant dense<0.000000e+00> : vector<8xf32>
    %124 = vector.multi_reduction <add>, %123, %cst_57 [1] : vector<8x8xf32> to vector<8xf32>
    %125 = vector.shape_cast %124 : vector<8xf32> to vector<8x1xf32>
    %126 = vector.broadcast %125 : vector<8x1xf32> to vector<8x8xf32>
    %127 = arith.divf %123, %126 : vector<8x8xf32>
    %128 = vector.broadcast %29 : vector<1x32xf32> to vector<8x32xf32>
    %129 = arith.mulf %67, %128 : vector<8x32xf32>
    %cst_58 = arith.constant dense<0.000000e+00> : vector<8x32xf32>
    %130 = tpu.matmul %127, %129, %cst_58 {dimension_numbers = #tpu.dot_dimension_numbers<[1], [0], [0], [1], [0, 0, 1, 1], [], []>} : vector<8x8xf32>, vector<8x32xf32>, vector<8x32xf32> -> vector<8x32xf32>
    %131 = arith.addf %110, %130 : vector<8x32xf32>
    %132 = vector.broadcast %36 : vector<1x32xf32> to vector<8x32xf32>
    %133 = arith.mulf %65, %132 : vector<8x32xf32>
    %134 = vector.broadcast %36 : vector<1x32xf32> to vector<8x32xf32>
    %135 = arith.mulf %66, %134 : vector<8x32xf32>
    %136 = tpu.transpose %135, [1, 0] : vector<8x32xf32> -> vector<32x8xf32>
    %cst_59 = arith.constant dense<0.000000e+00> : vector<8x8xf32>
    %137 = tpu.matmul %133, %136, %cst_59 {dimension_numbers = #tpu.dot_dimension_numbers<[1], [0], [0], [1], [0, 0, 1, 1], [], []>} : vector<8x32xf32>, vector<32x8xf32>, vector<8x8xf32> -> vector<8x8xf32>
    %cst_60 = arith.constant 0.353553385 : f32
    %138 = vector.broadcast %cst_60 : f32 to vector<8x8xf32>
    %139 = arith.mulf %137, %138 : vector<8x8xf32>
    %cst_61 = arith.constant dense<0xFF800000> : vector<8xf32>
    %140 = vector.multi_reduction <maximumf>, %139, %cst_61 [1] : vector<8x8xf32> to vector<8xf32>
    %141 = vector.shape_cast %140 : vector<8xf32> to vector<8x1xf32>
    %142 = vector.broadcast %141 : vector<8x1xf32> to vector<8x8xf32>
    %143 = arith.subf %139, %142 : vector<8x8xf32>
    %144 = math.exp %143 : vector<8x8xf32>
    %cst_62 = arith.constant dense<0.000000e+00> : vector<8xf32>
    %145 = vector.multi_reduction <add>, %144, %cst_62 [1] : vector<8x8xf32> to vector<8xf32>
    %146 = vector.shape_cast %145 : vector<8xf32> to vector<8x1xf32>
    %147 = vector.broadcast %146 : vector<8x1xf32> to vector<8x8xf32>
    %148 = arith.divf %144, %147 : vector<8x8xf32>
    %149 = vector.broadcast %36 : vector<1x32xf32> to vector<8x32xf32>
    %150 = arith.mulf %67, %149 : vector<8x32xf32>
    %cst_63 = arith.constant dense<0.000000e+00> : vector<8x32xf32>
    %151 = tpu.matmul %148, %150, %cst_63 {dimension_numbers = #tpu.dot_dimension_numbers<[1], [0], [0], [1], [0, 0, 1, 1], [], []>} : vector<8x8xf32>, vector<8x32xf32>, vector<8x32xf32> -> vector<8x32xf32>
    %152 = arith.addf %131, %151 : vector<8x32xf32>
    %153 = arith.truncf %152 : vector<8x32xf32> to vector<8x32xbf16>
    %cst_64 = arith.constant dense<0.000000e+00> : vector<8x32xf32>
    %154 = tpu.matmul %153, %42, %cst_64 {dimension_numbers = #tpu.dot_dimension_numbers<[1], [0], [0], [1], [0, 0, 1, 1], [], []>} : vector<8x32xbf16>, vector<32x32xbf16>, vector<8x32xf32> -> vector<8x32xf32>
    %155 = vector.broadcast %44 : vector<1x32xf32> to vector<8x32xf32>
    %156 = arith.addf %154, %155 : vector<8x32xf32>
    %157 = arith.addf %1, %156 : vector<8x32xf32>
    %cst_65 = arith.constant dense<0.000000e+00> : vector<8xf32>
    %158 = vector.multi_reduction <add>, %157, %cst_65 [1] : vector<8x32xf32> to vector<8xf32>
    %159 = vector.shape_cast %158 : vector<8xf32> to vector<8x1xf32>
    %cst_66 = arith.constant 3.200000e+01 : f32
    %160 = vector.broadcast %cst_66 : f32 to vector<8x1xf32>
    %161 = arith.divf %159, %160 : vector<8x1xf32>
    %162 = vector.broadcast %161 : vector<8x1xf32> to vector<8x32xf32>
    %163 = arith.subf %157, %162 : vector<8x32xf32>
    %164 = arith.mulf %163, %163 : vector<8x32xf32>
    %cst_67 = arith.constant dense<0.000000e+00> : vector<8xf32>
    %165 = vector.multi_reduction <add>, %164, %cst_67 [1] : vector<8x32xf32> to vector<8xf32>
    %166 = vector.shape_cast %165 : vector<8xf32> to vector<8x1xf32>
    %cst_68 = arith.constant 3.200000e+01 : f32
    %167 = vector.broadcast %cst_68 : f32 to vector<8x1xf32>
    %168 = arith.divf %166, %167 : vector<8x1xf32>
    %169 = vector.broadcast %161 : vector<8x1xf32> to vector<8x32xf32>
    %170 = arith.subf %157, %169 : vector<8x32xf32>
    %cst_69 = arith.constant 9.99999974E-6 : f32
    %171 = vector.broadcast %cst_69 : f32 to vector<8x1xf32>
    %172 = arith.addf %168, %171 : vector<8x1xf32>
    %173 = math.rsqrt %172 : vector<8x1xf32>
    %174 = vector.broadcast %173 : vector<8x1xf32> to vector<8x32xf32>
    %175 = arith.mulf %170, %174 : vector<8x32xf32>
    %176 = vector.broadcast %46 : vector<1x32xf32> to vector<8x32xf32>
    %177 = arith.mulf %175, %176 : vector<8x32xf32>
    %178 = vector.broadcast %48 : vector<1x32xf32> to vector<8x32xf32>
    %179 = arith.addf %177, %178 : vector<8x32xf32>
    %180 = arith.truncf %179 : vector<8x32xf32> to vector<8x32xbf16>
    %cst_70 = arith.constant dense<0.000000e+00> : vector<8x64xf32>
    %181 = tpu.matmul %180, %50, %cst_70 {dimension_numbers = #tpu.dot_dimension_numbers<[1], [0], [0], [1], [0, 0, 1, 1], [], []>} : vector<8x32xbf16>, vector<32x64xbf16>, vector<8x64xf32> -> vector<8x64xf32>
    %182 = vector.broadcast %52 : vector<1x64xf32> to vector<8x64xf32>
    %183 = arith.addf %181, %182 : vector<8x64xf32>
    %cst_71 = arith.constant 0.000000e+00 : f32
    %184 = vector.broadcast %cst_71 : f32 to vector<8x64xf32>
    %185 = arith.maximumf %183, %184 : vector<8x64xf32>
    %186 = arith.truncf %185 : vector<8x64xf32> to vector<8x64xbf16>
    %cst_72 = arith.constant dense<0.000000e+00> : vector<8x32xf32>
    %187 = tpu.matmul %186, %54, %cst_72 {dimension_numbers = #tpu.dot_dimension_numbers<[1], [0], [0], [1], [0, 0, 1, 1], [], []>} : vector<8x64xbf16>, vector<64x32xbf16>, vector<8x32xf32> -> vector<8x32xf32>
    %188 = vector.broadcast %56 : vector<1x32xf32> to vector<8x32xf32>
    %189 = arith.addf %187, %188 : vector<8x32xf32>
    %190 = arith.addf %179, %189 : vector<8x32xf32>
    %cst_73 = arith.constant dense<0.000000e+00> : vector<8xf32>
    %191 = vector.multi_reduction <add>, %190, %cst_73 [1] : vector<8x32xf32> to vector<8xf32>
    %192 = vector.shape_cast %191 : vector<8xf32> to vector<8x1xf32>
    %cst_74 = arith.constant 3.200000e+01 : f32
    %193 = vector.broadcast %cst_74 : f32 to vector<8x1xf32>
    %194 = arith.divf %192, %193 : vector<8x1xf32>
    %195 = vector.broadcast %194 : vector<8x1xf32> to vector<8x32xf32>
    %196 = arith.subf %190, %195 : vector<8x32xf32>
    %197 = arith.mulf %196, %196 : vector<8x32xf32>
    %cst_75 = arith.constant dense<0.000000e+00> : vector<8xf32>
    %198 = vector.multi_reduction <add>, %197, %cst_75 [1] : vector<8x32xf32> to vector<8xf32>
    %199 = vector.shape_cast %198 : vector<8xf32> to vector<8x1xf32>
    %cst_76 = arith.constant 3.200000e+01 : f32
    %200 = vector.broadcast %cst_76 : f32 to vector<8x1xf32>
    %201 = arith.divf %199, %200 : vector<8x1xf32>
    %202 = vector.broadcast %194 : vector<8x1xf32> to vector<8x32xf32>
    %203 = arith.subf %190, %202 : vector<8x32xf32>
    %cst_77 = arith.constant 9.99999974E-6 : f32
    %204 = vector.broadcast %cst_77 : f32 to vector<8x1xf32>
    %205 = arith.addf %201, %204 : vector<8x1xf32>
    %206 = math.rsqrt %205 : vector<8x1xf32>
    %207 = vector.broadcast %206 : vector<8x1xf32> to vector<8x32xf32>
    %208 = arith.mulf %203, %207 : vector<8x32xf32>
    %209 = vector.broadcast %58 : vector<1x32xf32> to vector<8x32xf32>
    %210 = arith.mulf %208, %209 : vector<8x32xf32>
    %211 = vector.broadcast %60 : vector<1x32xf32> to vector<8x32xf32>
    %212 = arith.addf %210, %211 : vector<8x32xf32>
    %213 = vector.broadcast %7 : vector<8x1xf32> to vector<8x32xf32>
    %214 = arith.mulf %212, %213 : vector<8x32xf32>
    %c1 = arith.constant 1 : index
    %c0_78 = arith.constant 0 : index
    %c0_79 = arith.constant 0 : index
    %215 = vector.load %arg2[%c1, %c0_78, %c0_79] : memref<4x32x96xbf16, #tpu.memory_space<vmem>>, vector<1x32x96xbf16>
    %216 = vector.shape_cast %215 : vector<1x32x96xbf16> to vector<32x96xbf16>
    %c1_80 = arith.constant 1 : index
    %c0_81 = arith.constant 0 : index
    %c0_82 = arith.constant 0 : index
    %217 = vector.load %arg3[%c1_80, %c0_81, %c0_82] : memref<4x1x96xf32, #tpu.memory_space<vmem>>, vector<1x1x96xf32>
    %218 = vector.shape_cast %217 : vector<1x1x96xf32> to vector<1x96xf32>
    %c1_83 = arith.constant 1 : index
    %c0_84 = arith.constant 0 : index
    %c0_85 = arith.constant 0 : index
    %219 = vector.load %arg4[%c1_83, %c0_84, %c0_85] : memref<4x32x32xbf16, #tpu.memory_space<vmem>>, vector<1x32x32xbf16>
    %220 = vector.shape_cast %219 : vector<1x32x32xbf16> to vector<32x32xbf16>
    %c1_86 = arith.constant 1 : index
    %c0_87 = arith.constant 0 : index
    %c0_88 = arith.constant 0 : index
    %221 = vector.load %arg5[%c1_86, %c0_87, %c0_88] : memref<4x1x32xf32, #tpu.memory_space<vmem>>, vector<1x1x32xf32>
    %222 = vector.shape_cast %221 : vector<1x1x32xf32> to vector<1x32xf32>
    %c1_89 = arith.constant 1 : index
    %c0_90 = arith.constant 0 : index
    %c0_91 = arith.constant 0 : index
    %223 = vector.load %arg6[%c1_89, %c0_90, %c0_91] : memref<4x1x32xf32, #tpu.memory_space<vmem>>, vector<1x1x32xf32>
    %224 = vector.shape_cast %223 : vector<1x1x32xf32> to vector<1x32xf32>
    %c1_92 = arith.constant 1 : index
    %c0_93 = arith.constant 0 : index
    %c0_94 = arith.constant 0 : index
    %225 = vector.load %arg7[%c1_92, %c0_93, %c0_94] : memref<4x1x32xf32, #tpu.memory_space<vmem>>, vector<1x1x32xf32>
    %226 = vector.shape_cast %225 : vector<1x1x32xf32> to vector<1x32xf32>
    %c1_95 = arith.constant 1 : index
    %c0_96 = arith.constant 0 : index
    %c0_97 = arith.constant 0 : index
    %227 = vector.load %arg8[%c1_95, %c0_96, %c0_97] : memref<4x32x64xbf16, #tpu.memory_space<vmem>>, vector<1x32x64xbf16>
    %228 = vector.shape_cast %227 : vector<1x32x64xbf16> to vector<32x64xbf16>
    %c1_98 = arith.constant 1 : index
    %c0_99 = arith.constant 0 : index
    %c0_100 = arith.constant 0 : index
    %229 = vector.load %arg9[%c1_98, %c0_99, %c0_100] : memref<4x1x64xf32, #tpu.memory_space<vmem>>, vector<1x1x64xf32>
    %230 = vector.shape_cast %229 : vector<1x1x64xf32> to vector<1x64xf32>
    %c1_101 = arith.constant 1 : index
    %c0_102 = arith.constant 0 : index
    %c0_103 = arith.constant 0 : index
    %231 = vector.load %arg10[%c1_101, %c0_102, %c0_103] : memref<4x64x32xbf16, #tpu.memory_space<vmem>>, vector<1x64x32xbf16>
    %232 = vector.shape_cast %231 : vector<1x64x32xbf16> to vector<64x32xbf16>
    %c1_104 = arith.constant 1 : index
    %c0_105 = arith.constant 0 : index
    %c0_106 = arith.constant 0 : index
    %233 = vector.load %arg11[%c1_104, %c0_105, %c0_106] : memref<4x1x32xf32, #tpu.memory_space<vmem>>, vector<1x1x32xf32>
    %234 = vector.shape_cast %233 : vector<1x1x32xf32> to vector<1x32xf32>
    %c1_107 = arith.constant 1 : index
    %c0_108 = arith.constant 0 : index
    %c0_109 = arith.constant 0 : index
    %235 = vector.load %arg12[%c1_107, %c0_108, %c0_109] : memref<4x1x32xf32, #tpu.memory_space<vmem>>, vector<1x1x32xf32>
    %236 = vector.shape_cast %235 : vector<1x1x32xf32> to vector<1x32xf32>
    %c1_110 = arith.constant 1 : index
    %c0_111 = arith.constant 0 : index
    %c0_112 = arith.constant 0 : index
    %237 = vector.load %arg13[%c1_110, %c0_111, %c0_112] : memref<4x1x32xf32, #tpu.memory_space<vmem>>, vector<1x1x32xf32>
    %238 = vector.shape_cast %237 : vector<1x1x32xf32> to vector<1x32xf32>
    %239 = arith.truncf %214 : vector<8x32xf32> to vector<8x32xbf16>
    %cst_113 = arith.constant dense<0.000000e+00> : vector<8x96xf32>
    %240 = tpu.matmul %239, %216, %cst_113 {dimension_numbers = #tpu.dot_dimension_numbers<[1], [0], [0], [1], [0, 0, 1, 1], [], []>} : vector<8x32xbf16>, vector<32x96xbf16>, vector<8x96xf32> -> vector<8x96xf32>
    %241 = vector.broadcast %218 : vector<1x96xf32> to vector<8x96xf32>
    %242 = arith.addf %240, %241 : vector<8x96xf32>
    %243 = vector.extract_strided_slice %242 {offsets = [0, 0], sizes = [8, 32], strides = [1, 1]} : vector<8x96xf32> to vector<8x32xf32>
    %244 = vector.extract_strided_slice %242 {offsets = [0, 32], sizes = [8, 32], strides = [1, 1]} : vector<8x96xf32> to vector<8x32xf32>
    %245 = vector.extract_strided_slice %242 {offsets = [0, 64], sizes = [8, 32], strides = [1, 1]} : vector<8x96xf32> to vector<8x32xf32>
    %cst_114 = arith.constant 0.000000e+00 : f32
    %246 = vector.broadcast %cst_114 : f32 to vector<8x32xf32>
    %247 = vector.broadcast %15 : vector<1x32xf32> to vector<8x32xf32>
    %248 = arith.mulf %243, %247 : vector<8x32xf32>
    %249 = vector.broadcast %15 : vector<1x32xf32> to vector<8x32xf32>
    %250 = arith.mulf %244, %249 : vector<8x32xf32>
    %251 = tpu.transpose %250, [1, 0] : vector<8x32xf32> -> vector<32x8xf32>
    %cst_115 = arith.constant dense<0.000000e+00> : vector<8x8xf32>
    %252 = tpu.matmul %248, %251, %cst_115 {dimension_numbers = #tpu.dot_dimension_numbers<[1], [0], [0], [1], [0, 0, 1, 1], [], []>} : vector<8x32xf32>, vector<32x8xf32>, vector<8x8xf32> -> vector<8x8xf32>
    %cst_116 = arith.constant 0.353553385 : f32
    %253 = vector.broadcast %cst_116 : f32 to vector<8x8xf32>
    %254 = arith.mulf %252, %253 : vector<8x8xf32>
    %cst_117 = arith.constant dense<0xFF800000> : vector<8xf32>
    %255 = vector.multi_reduction <maximumf>, %254, %cst_117 [1] : vector<8x8xf32> to vector<8xf32>
    %256 = vector.shape_cast %255 : vector<8xf32> to vector<8x1xf32>
    %257 = vector.broadcast %256 : vector<8x1xf32> to vector<8x8xf32>
    %258 = arith.subf %254, %257 : vector<8x8xf32>
    %259 = math.exp %258 : vector<8x8xf32>
    %cst_118 = arith.constant dense<0.000000e+00> : vector<8xf32>
    %260 = vector.multi_reduction <add>, %259, %cst_118 [1] : vector<8x8xf32> to vector<8xf32>
    %261 = vector.shape_cast %260 : vector<8xf32> to vector<8x1xf32>
    %262 = vector.broadcast %261 : vector<8x1xf32> to vector<8x8xf32>
    %263 = arith.divf %259, %262 : vector<8x8xf32>
    %264 = vector.broadcast %15 : vector<1x32xf32> to vector<8x32xf32>
    %265 = arith.mulf %245, %264 : vector<8x32xf32>
    %cst_119 = arith.constant dense<0.000000e+00> : vector<8x32xf32>
    %266 = tpu.matmul %263, %265, %cst_119 {dimension_numbers = #tpu.dot_dimension_numbers<[1], [0], [0], [1], [0, 0, 1, 1], [], []>} : vector<8x8xf32>, vector<8x32xf32>, vector<8x32xf32> -> vector<8x32xf32>
    %267 = arith.addf %246, %266 : vector<8x32xf32>
    %268 = vector.broadcast %22 : vector<1x32xf32> to vector<8x32xf32>
    %269 = arith.mulf %243, %268 : vector<8x32xf32>
    %270 = vector.broadcast %22 : vector<1x32xf32> to vector<8x32xf32>
    %271 = arith.mulf %244, %270 : vector<8x32xf32>
    %272 = tpu.transpose %271, [1, 0] : vector<8x32xf32> -> vector<32x8xf32>
    %cst_120 = arith.constant dense<0.000000e+00> : vector<8x8xf32>
    %273 = tpu.matmul %269, %272, %cst_120 {dimension_numbers = #tpu.dot_dimension_numbers<[1], [0], [0], [1], [0, 0, 1, 1], [], []>} : vector<8x32xf32>, vector<32x8xf32>, vector<8x8xf32> -> vector<8x8xf32>
    %cst_121 = arith.constant 0.353553385 : f32
    %274 = vector.broadcast %cst_121 : f32 to vector<8x8xf32>
    %275 = arith.mulf %273, %274 : vector<8x8xf32>
    %cst_122 = arith.constant dense<0xFF800000> : vector<8xf32>
    %276 = vector.multi_reduction <maximumf>, %275, %cst_122 [1] : vector<8x8xf32> to vector<8xf32>
    %277 = vector.shape_cast %276 : vector<8xf32> to vector<8x1xf32>
    %278 = vector.broadcast %277 : vector<8x1xf32> to vector<8x8xf32>
    %279 = arith.subf %275, %278 : vector<8x8xf32>
    %280 = math.exp %279 : vector<8x8xf32>
    %cst_123 = arith.constant dense<0.000000e+00> : vector<8xf32>
    %281 = vector.multi_reduction <add>, %280, %cst_123 [1] : vector<8x8xf32> to vector<8xf32>
    %282 = vector.shape_cast %281 : vector<8xf32> to vector<8x1xf32>
    %283 = vector.broadcast %282 : vector<8x1xf32> to vector<8x8xf32>
    %284 = arith.divf %280, %283 : vector<8x8xf32>
    %285 = vector.broadcast %22 : vector<1x32xf32> to vector<8x32xf32>
    %286 = arith.mulf %245, %285 : vector<8x32xf32>
    %cst_124 = arith.constant dense<0.000000e+00> : vector<8x32xf32>
    %287 = tpu.matmul %284, %286, %cst_124 {dimension_numbers = #tpu.dot_dimension_numbers<[1], [0], [0], [1], [0, 0, 1, 1], [], []>} : vector<8x8xf32>, vector<8x32xf32>, vector<8x32xf32> -> vector<8x32xf32>
    %288 = arith.addf %267, %287 : vector<8x32xf32>
    %289 = vector.broadcast %29 : vector<1x32xf32> to vector<8x32xf32>
    %290 = arith.mulf %243, %289 : vector<8x32xf32>
    %291 = vector.broadcast %29 : vector<1x32xf32> to vector<8x32xf32>
    %292 = arith.mulf %244, %291 : vector<8x32xf32>
    %293 = tpu.transpose %292, [1, 0] : vector<8x32xf32> -> vector<32x8xf32>
    %cst_125 = arith.constant dense<0.000000e+00> : vector<8x8xf32>
    %294 = tpu.matmul %290, %293, %cst_125 {dimension_numbers = #tpu.dot_dimension_numbers<[1], [0], [0], [1], [0, 0, 1, 1], [], []>} : vector<8x32xf32>, vector<32x8xf32>, vector<8x8xf32> -> vector<8x8xf32>
    %cst_126 = arith.constant 0.353553385 : f32
    %295 = vector.broadcast %cst_126 : f32 to vector<8x8xf32>
    %296 = arith.mulf %294, %295 : vector<8x8xf32>
    %cst_127 = arith.constant dense<0xFF800000> : vector<8xf32>
    %297 = vector.multi_reduction <maximumf>, %296, %cst_127 [1] : vector<8x8xf32> to vector<8xf32>
    %298 = vector.shape_cast %297 : vector<8xf32> to vector<8x1xf32>
    %299 = vector.broadcast %298 : vector<8x1xf32> to vector<8x8xf32>
    %300 = arith.subf %296, %299 : vector<8x8xf32>
    %301 = math.exp %300 : vector<8x8xf32>
    %cst_128 = arith.constant dense<0.000000e+00> : vector<8xf32>
    %302 = vector.multi_reduction <add>, %301, %cst_128 [1] : vector<8x8xf32> to vector<8xf32>
    %303 = vector.shape_cast %302 : vector<8xf32> to vector<8x1xf32>
    %304 = vector.broadcast %303 : vector<8x1xf32> to vector<8x8xf32>
    %305 = arith.divf %301, %304 : vector<8x8xf32>
    %306 = vector.broadcast %29 : vector<1x32xf32> to vector<8x32xf32>
    %307 = arith.mulf %245, %306 : vector<8x32xf32>
    %cst_129 = arith.constant dense<0.000000e+00> : vector<8x32xf32>
    %308 = tpu.matmul %305, %307, %cst_129 {dimension_numbers = #tpu.dot_dimension_numbers<[1], [0], [0], [1], [0, 0, 1, 1], [], []>} : vector<8x8xf32>, vector<8x32xf32>, vector<8x32xf32> -> vector<8x32xf32>
    %309 = arith.addf %288, %308 : vector<8x32xf32>
    %310 = vector.broadcast %36 : vector<1x32xf32> to vector<8x32xf32>
    %311 = arith.mulf %243, %310 : vector<8x32xf32>
    %312 = vector.broadcast %36 : vector<1x32xf32> to vector<8x32xf32>
    %313 = arith.mulf %244, %312 : vector<8x32xf32>
    %314 = tpu.transpose %313, [1, 0] : vector<8x32xf32> -> vector<32x8xf32>
    %cst_130 = arith.constant dense<0.000000e+00> : vector<8x8xf32>
    %315 = tpu.matmul %311, %314, %cst_130 {dimension_numbers = #tpu.dot_dimension_numbers<[1], [0], [0], [1], [0, 0, 1, 1], [], []>} : vector<8x32xf32>, vector<32x8xf32>, vector<8x8xf32> -> vector<8x8xf32>
    %cst_131 = arith.constant 0.353553385 : f32
    %316 = vector.broadcast %cst_131 : f32 to vector<8x8xf32>
    %317 = arith.mulf %315, %316 : vector<8x8xf32>
    %cst_132 = arith.constant dense<0xFF800000> : vector<8xf32>
    %318 = vector.multi_reduction <maximumf>, %317, %cst_132 [1] : vector<8x8xf32> to vector<8xf32>
    %319 = vector.shape_cast %318 : vector<8xf32> to vector<8x1xf32>
    %320 = vector.broadcast %319 : vector<8x1xf32> to vector<8x8xf32>
    %321 = arith.subf %317, %320 : vector<8x8xf32>
    %322 = math.exp %321 : vector<8x8xf32>
    %cst_133 = arith.constant dense<0.000000e+00> : vector<8xf32>
    %323 = vector.multi_reduction <add>, %322, %cst_133 [1] : vector<8x8xf32> to vector<8xf32>
    %324 = vector.shape_cast %323 : vector<8xf32> to vector<8x1xf32>
    %325 = vector.broadcast %324 : vector<8x1xf32> to vector<8x8xf32>
    %326 = arith.divf %322, %325 : vector<8x8xf32>
    %327 = vector.broadcast %36 : vector<1x32xf32> to vector<8x32xf32>
    %328 = arith.mulf %245, %327 : vector<8x32xf32>
    %cst_134 = arith.constant dense<0.000000e+00> : vector<8x32xf32>
    %329 = tpu.matmul %326, %328, %cst_134 {dimension_numbers = #tpu.dot_dimension_numbers<[1], [0], [0], [1], [0, 0, 1, 1], [], []>} : vector<8x8xf32>, vector<8x32xf32>, vector<8x32xf32> -> vector<8x32xf32>
    %330 = arith.addf %309, %329 : vector<8x32xf32>
    %331 = arith.truncf %330 : vector<8x32xf32> to vector<8x32xbf16>
    %cst_135 = arith.constant dense<0.000000e+00> : vector<8x32xf32>
    %332 = tpu.matmul %331, %220, %cst_135 {dimension_numbers = #tpu.dot_dimension_numbers<[1], [0], [0], [1], [0, 0, 1, 1], [], []>} : vector<8x32xbf16>, vector<32x32xbf16>, vector<8x32xf32> -> vector<8x32xf32>
    %333 = vector.broadcast %222 : vector<1x32xf32> to vector<8x32xf32>
    %334 = arith.addf %332, %333 : vector<8x32xf32>
    %335 = arith.addf %214, %334 : vector<8x32xf32>
    %cst_136 = arith.constant dense<0.000000e+00> : vector<8xf32>
    %336 = vector.multi_reduction <add>, %335, %cst_136 [1] : vector<8x32xf32> to vector<8xf32>
    %337 = vector.shape_cast %336 : vector<8xf32> to vector<8x1xf32>
    %cst_137 = arith.constant 3.200000e+01 : f32
    %338 = vector.broadcast %cst_137 : f32 to vector<8x1xf32>
    %339 = arith.divf %337, %338 : vector<8x1xf32>
    %340 = vector.broadcast %339 : vector<8x1xf32> to vector<8x32xf32>
    %341 = arith.subf %335, %340 : vector<8x32xf32>
    %342 = arith.mulf %341, %341 : vector<8x32xf32>
    %cst_138 = arith.constant dense<0.000000e+00> : vector<8xf32>
    %343 = vector.multi_reduction <add>, %342, %cst_138 [1] : vector<8x32xf32> to vector<8xf32>
    %344 = vector.shape_cast %343 : vector<8xf32> to vector<8x1xf32>
    %cst_139 = arith.constant 3.200000e+01 : f32
    %345 = vector.broadcast %cst_139 : f32 to vector<8x1xf32>
    %346 = arith.divf %344, %345 : vector<8x1xf32>
    %347 = vector.broadcast %339 : vector<8x1xf32> to vector<8x32xf32>
    %348 = arith.subf %335, %347 : vector<8x32xf32>
    %cst_140 = arith.constant 9.99999974E-6 : f32
    %349 = vector.broadcast %cst_140 : f32 to vector<8x1xf32>
    %350 = arith.addf %346, %349 : vector<8x1xf32>
    %351 = math.rsqrt %350 : vector<8x1xf32>
    %352 = vector.broadcast %351 : vector<8x1xf32> to vector<8x32xf32>
    %353 = arith.mulf %348, %352 : vector<8x32xf32>
    %354 = vector.broadcast %224 : vector<1x32xf32> to vector<8x32xf32>
    %355 = arith.mulf %353, %354 : vector<8x32xf32>
    %356 = vector.broadcast %226 : vector<1x32xf32> to vector<8x32xf32>
    %357 = arith.addf %355, %356 : vector<8x32xf32>
    %358 = arith.truncf %357 : vector<8x32xf32> to vector<8x32xbf16>
    %cst_141 = arith.constant dense<0.000000e+00> : vector<8x64xf32>
    %359 = tpu.matmul %358, %228, %cst_141 {dimension_numbers = #tpu.dot_dimension_numbers<[1], [0], [0], [1], [0, 0, 1, 1], [], []>} : vector<8x32xbf16>, vector<32x64xbf16>, vector<8x64xf32> -> vector<8x64xf32>
    %360 = vector.broadcast %230 : vector<1x64xf32> to vector<8x64xf32>
    %361 = arith.addf %359, %360 : vector<8x64xf32>
    %cst_142 = arith.constant 0.000000e+00 : f32
    %362 = vector.broadcast %cst_142 : f32 to vector<8x64xf32>
    %363 = arith.maximumf %361, %362 : vector<8x64xf32>
    %364 = arith.truncf %363 : vector<8x64xf32> to vector<8x64xbf16>
    %cst_143 = arith.constant dense<0.000000e+00> : vector<8x32xf32>
    %365 = tpu.matmul %364, %232, %cst_143 {dimension_numbers = #tpu.dot_dimension_numbers<[1], [0], [0], [1], [0, 0, 1, 1], [], []>} : vector<8x64xbf16>, vector<64x32xbf16>, vector<8x32xf32> -> vector<8x32xf32>
    %366 = vector.broadcast %234 : vector<1x32xf32> to vector<8x32xf32>
    %367 = arith.addf %365, %366 : vector<8x32xf32>
    %368 = arith.addf %357, %367 : vector<8x32xf32>
    %cst_144 = arith.constant dense<0.000000e+00> : vector<8xf32>
    %369 = vector.multi_reduction <add>, %368, %cst_144 [1] : vector<8x32xf32> to vector<8xf32>
    %370 = vector.shape_cast %369 : vector<8xf32> to vector<8x1xf32>
    %cst_145 = arith.constant 3.200000e+01 : f32
    %371 = vector.broadcast %cst_145 : f32 to vector<8x1xf32>
    %372 = arith.divf %370, %371 : vector<8x1xf32>
    %373 = vector.broadcast %372 : vector<8x1xf32> to vector<8x32xf32>
    %374 = arith.subf %368, %373 : vector<8x32xf32>
    %375 = arith.mulf %374, %374 : vector<8x32xf32>
    %cst_146 = arith.constant dense<0.000000e+00> : vector<8xf32>
    %376 = vector.multi_reduction <add>, %375, %cst_146 [1] : vector<8x32xf32> to vector<8xf32>
    %377 = vector.shape_cast %376 : vector<8xf32> to vector<8x1xf32>
    %cst_147 = arith.constant 3.200000e+01 : f32
    %378 = vector.broadcast %cst_147 : f32 to vector<8x1xf32>
    %379 = arith.divf %377, %378 : vector<8x1xf32>
    %380 = vector.broadcast %372 : vector<8x1xf32> to vector<8x32xf32>
    %381 = arith.subf %368, %380 : vector<8x32xf32>
    %cst_148 = arith.constant 9.99999974E-6 : f32
    %382 = vector.broadcast %cst_148 : f32 to vector<8x1xf32>
    %383 = arith.addf %379, %382 : vector<8x1xf32>
    %384 = math.rsqrt %383 : vector<8x1xf32>
    %385 = vector.broadcast %384 : vector<8x1xf32> to vector<8x32xf32>
    %386 = arith.mulf %381, %385 : vector<8x32xf32>
    %387 = vector.broadcast %236 : vector<1x32xf32> to vector<8x32xf32>
    %388 = arith.mulf %386, %387 : vector<8x32xf32>
    %389 = vector.broadcast %238 : vector<1x32xf32> to vector<8x32xf32>
    %390 = arith.addf %388, %389 : vector<8x32xf32>
    %391 = vector.broadcast %7 : vector<8x1xf32> to vector<8x32xf32>
    %392 = arith.mulf %390, %391 : vector<8x32xf32>
    %393 = arith.truncf %392 : vector<8x32xf32> to vector<8x32xbf16>
    %c0_149 = arith.constant 0 : index
    %c0_150 = arith.constant 0 : index
    %394 = vector.load %arg14[%c0_149, %c0_150] : memref<32x32xbf16, #tpu.memory_space<vmem>>, vector<32x32xbf16>
    %cst_151 = arith.constant dense<0.000000e+00> : vector<8x32xf32>
    %395 = tpu.matmul %393, %394, %cst_151 {dimension_numbers = #tpu.dot_dimension_numbers<[1], [0], [0], [1], [0, 0, 1, 1], [], []>} : vector<8x32xbf16>, vector<32x32xbf16>, vector<8x32xf32> -> vector<8x32xf32>
    %c0_152 = arith.constant 0 : index
    %c0_153 = arith.constant 0 : index
    %396 = vector.load %arg15[%c0_152, %c0_153] : memref<1x32xf32, #tpu.memory_space<vmem>>, vector<1x32xf32>
    %397 = vector.broadcast %396 : vector<1x32xf32> to vector<8x32xf32>
    %398 = arith.addf %395, %397 : vector<8x32xf32>
    %399 = arith.negf %398 : vector<8x32xf32>
    %400 = math.exp %399 : vector<8x32xf32>
    %cst_154 = arith.constant 1.000000e+00 : f32
    %401 = vector.broadcast %cst_154 : f32 to vector<8x32xf32>
    %402 = arith.addf %401, %400 : vector<8x32xf32>
    %403 = arith.divf %401, %402 : vector<8x32xf32>
    %404 = arith.mulf %392, %403 : vector<8x32xf32>
    %cst_155 = arith.constant 1.000000e+00 : f32
    %405 = vector.broadcast %cst_155 : f32 to vector<8x32xf32>
    %406 = arith.subf %405, %403 : vector<8x32xf32>
    %407 = arith.mulf %392, %406 : vector<8x32xf32>
    %c0_156 = arith.constant 0 : index
    %c0_157 = arith.constant 0 : index
    %c0_158 = arith.constant 0 : index
    %408 = vector.load %arg27[%c0_156, %c0_157, %c0_158] : memref<1x8x32xf32, #tpu.memory_space<vmem>>, vector<1x8x32xf32>
    %409 = vector.shape_cast %408 : vector<1x8x32xf32> to vector<8x32xf32>
    %410 = vector.shape_cast %404 : vector<8x32xf32> to vector<1x8x32xf32>
    tpu.vector_store %arg27[%c0_156, %c0_157, %c0_158], %410 {strides = array<i32>} : memref<1x8x32xf32, #tpu.memory_space<vmem>>, vector<1x8x32xf32>,
    %c0_159 = arith.constant 0 : index
    %c0_160 = arith.constant 0 : index
    %c0_161 = arith.constant 0 : index
    %411 = vector.load %arg26[%c0_159, %c0_160, %c0_161] : memref<1x8x32xf32, #tpu.memory_space<vmem>>, vector<1x8x32xf32>
    %412 = vector.shape_cast %411 : vector<1x8x32xf32> to vector<8x32xf32>
    %413 = vector.shape_cast %407 : vector<8x32xf32> to vector<1x8x32xf32>
    tpu.vector_store %arg26[%c0_159, %c0_160, %c0_161], %413 {strides = array<i32>} : memref<1x8x32xf32, #tpu.memory_space<vmem>>, vector<1x8x32xf32>,
    %c0_162 = arith.constant 0 : index
    %c0_163 = arith.constant 0 : index
    %414 = vector.load %arg16[%c0_162, %c0_163] : memref<1x32xf32, #tpu.memory_space<vmem>>, vector<1x32xf32>
    %c0_164 = arith.constant 0 : index
    %c0_165 = arith.constant 0 : index
    %415 = vector.load %arg17[%c0_164, %c0_165] : memref<1x1xf32, #tpu.memory_space<vmem>>, vector<1x1xf32>
    %416 = vector.broadcast %414 : vector<1x32xf32> to vector<8x32xf32>
    %417 = arith.mulf %404, %416 : vector<8x32xf32>
    %cst_166 = arith.constant dense<0.000000e+00> : vector<8xf32>
    %418 = vector.multi_reduction <add>, %417, %cst_166 [1] : vector<8x32xf32> to vector<8xf32>
    %419 = vector.shape_cast %418 : vector<8xf32> to vector<8x1xf32>
    %420 = vector.broadcast %415 : vector<1x1xf32> to vector<8x1xf32>
    %421 = arith.addf %419, %420 : vector<8x1xf32>
    %422 = arith.mulf %421, %7 : vector<8x1xf32>
    %cst_167 = arith.constant 0.000000e+00 : f32
    %423 = vector.broadcast %cst_167 : f32 to vector<8x1xf32>
    %424 = arith.cmpf oeq, %422, %423 : vector<8x1xf32>
    %cst_168 = arith.constant -1.000000e+20 : f32
    %425 = vector.broadcast %cst_168 : f32 to vector<8x1xf32>
    %426 = arith.select %424, %425, %422 : vector<8x1xi1>, vector<8x1xf32>
    %cst_169 = arith.constant dense<0xFF800000> : vector<1xf32>
    %427 = vector.multi_reduction <maximumf>, %426, %cst_169 [0] : vector<8x1xf32> to vector<1xf32>
    %428 = vector.shape_cast %427 : vector<1xf32> to vector<1x1xf32>
    %429 = vector.broadcast %428 : vector<1x1xf32> to vector<8x1xf32>
    %430 = arith.subf %426, %429 : vector<8x1xf32>
    %431 = math.exp %430 : vector<8x1xf32>
    %cst_170 = arith.constant dense<0.000000e+00> : vector<1xf32>
    %432 = vector.multi_reduction <add>, %431, %cst_170 [0] : vector<8x1xf32> to vector<1xf32>
    %433 = vector.shape_cast %432 : vector<1xf32> to vector<1x1xf32>
    %434 = vector.broadcast %433 : vector<1x1xf32> to vector<8x1xf32>
    %435 = arith.divf %431, %434 : vector<8x1xf32>
    %436 = vector.broadcast %435 : vector<8x1xf32> to vector<8x32xf32>
    %437 = arith.mulf %404, %436 : vector<8x32xf32>
    %cst_171 = arith.constant dense<0.000000e+00> : vector<32xf32>
    %438 = vector.multi_reduction <add>, %437, %cst_171 [0] : vector<8x32xf32> to vector<32xf32>
    %439 = vector.shape_cast %438 : vector<32xf32> to vector<1x32xf32>
    %c0_172 = arith.constant 0 : index
    %c0_173 = arith.constant 0 : index
    %440 = vector.load %arg18[%c0_172, %c0_173] : memref<1x32xf32, #tpu.memory_space<vmem>>, vector<1x32xf32>
    %c0_174 = arith.constant 0 : index
    %c0_175 = arith.constant 0 : index
    %441 = vector.load %arg19[%c0_174, %c0_175] : memref<1x1xf32, #tpu.memory_space<vmem>>, vector<1x1xf32>
    %442 = vector.broadcast %440 : vector<1x32xf32> to vector<8x32xf32>
    %443 = arith.mulf %407, %442 : vector<8x32xf32>
    %cst_176 = arith.constant dense<0.000000e+00> : vector<8xf32>
    %444 = vector.multi_reduction <add>, %443, %cst_176 [1] : vector<8x32xf32> to vector<8xf32>
    %445 = vector.shape_cast %444 : vector<8xf32> to vector<8x1xf32>
    %446 = vector.broadcast %441 : vector<1x1xf32> to vector<8x1xf32>
    %447 = arith.addf %445, %446 : vector<8x1xf32>
    %448 = arith.mulf %447, %7 : vector<8x1xf32>
    %cst_177 = arith.constant 0.000000e+00 : f32
    %449 = vector.broadcast %cst_177 : f32 to vector<8x1xf32>
    %450 = arith.cmpf oeq, %448, %449 : vector<8x1xf32>
    %cst_178 = arith.constant -1.000000e+20 : f32
    %451 = vector.broadcast %cst_178 : f32 to vector<8x1xf32>
    %452 = arith.select %450, %451, %448 : vector<8x1xi1>, vector<8x1xf32>
    %cst_179 = arith.constant dense<0xFF800000> : vector<1xf32>
    %453 = vector.multi_reduction <maximumf>, %452, %cst_179 [0] : vector<8x1xf32> to vector<1xf32>
    %454 = vector.shape_cast %453 : vector<1xf32> to vector<1x1xf32>
    %455 = vector.broadcast %454 : vector<1x1xf32> to vector<8x1xf32>
    %456 = arith.subf %452, %455 : vector<8x1xf32>
    %457 = math.exp %456 : vector<8x1xf32>
    %cst_180 = arith.constant dense<0.000000e+00> : vector<1xf32>
    %458 = vector.multi_reduction <add>, %457, %cst_180 [0] : vector<8x1xf32> to vector<1xf32>
    %459 = vector.shape_cast %458 : vector<1xf32> to vector<1x1xf32>
    %460 = vector.broadcast %459 : vector<1x1xf32> to vector<8x1xf32>
    %461 = arith.divf %457, %460 : vector<8x1xf32>
    %462 = vector.broadcast %461 : vector<8x1xf32> to vector<8x32xf32>
    %463 = arith.mulf %407, %462 : vector<8x32xf32>
    %cst_181 = arith.constant dense<0.000000e+00> : vector<32xf32>
    %464 = vector.multi_reduction <add>, %463, %cst_181 [0] : vector<8x32xf32> to vector<32xf32>
    %465 = vector.shape_cast %464 : vector<32xf32> to vector<1x32xf32>
    %c0_182 = arith.constant 0 : index
    %c0_183 = arith.constant 0 : index
    %466 = vector.load %arg20[%c0_182, %c0_183] : memref<32x10xbf16, #tpu.memory_space<vmem>>, vector<32x10xbf16>
    %c0_184 = arith.constant 0 : index
    %c0_185 = arith.constant 0 : index
    %467 = vector.load %arg21[%c0_184, %c0_185] : memref<1x10xf32, #tpu.memory_space<vmem>>, vector<1x10xf32>
    %468 = arith.truncf %439 : vector<1x32xf32> to vector<1x32xbf16>
    %cst_186 = arith.constant dense<0.000000e+00> : vector<1x10xf32>
    %469 = tpu.matmul %468, %466, %cst_186 {dimension_numbers = #tpu.dot_dimension_numbers<[1], [0], [0], [1], [0, 0, 1, 1], [], []>} : vector<1x32xbf16>, vector<32x10xbf16>, vector<1x10xf32> -> vector<1x10xf32>
    %470 = arith.addf %469, %467 : vector<1x10xf32>
    %471 = tpu.iota {dimensions = array<i32: 1>} : vector<1x10xi32>
    %c8_i32_187 = arith.constant 8 : i32
    %472 = vector.broadcast %c8_i32_187 : i32 to vector<1x10xi32>
    %473 = arith.cmpi slt, %471, %472 : vector<1x10xi32>
    %474 = arith.negf %470 : vector<1x10xf32>
    %475 = math.exp %474 : vector<1x10xf32>
    %cst_188 = arith.constant 1.000000e+00 : f32
    %476 = vector.broadcast %cst_188 : f32 to vector<1x10xf32>
    %477 = arith.addf %476, %475 : vector<1x10xf32>
    %478 = arith.divf %476, %477 : vector<1x10xf32>
    %479 = arith.select %473, %478, %470 : vector<1x10xi1>, vector<1x10xf32>
    %c0_189 = arith.constant 0 : index
    %c0_190 = arith.constant 0 : index
    %c0_191 = arith.constant 0 : index
    %480 = vector.load %arg28[%c0_189, %c0_190, %c0_191] : memref<1x1x10xf32, #tpu.memory_space<vmem>>, vector<1x1x10xf32>
    %481 = vector.shape_cast %480 : vector<1x1x10xf32> to vector<1x10xf32>
    %482 = vector.shape_cast %479 : vector<1x10xf32> to vector<1x1x10xf32>
    tpu.vector_store %arg28[%c0_189, %c0_190, %c0_191], %482 {strides = array<i32>} : memref<1x1x10xf32, #tpu.memory_space<vmem>>, vector<1x1x10xf32>,
    %c0_192 = arith.constant 0 : index
    %c0_193 = arith.constant 0 : index
    %483 = vector.load %arg22[%c0_192, %c0_193] : memref<32x10xbf16, #tpu.memory_space<vmem>>, vector<32x10xbf16>
    %c0_194 = arith.constant 0 : index
    %c0_195 = arith.constant 0 : index
    %484 = vector.load %arg23[%c0_194, %c0_195] : memref<1x10xf32, #tpu.memory_space<vmem>>, vector<1x10xf32>
    %485 = arith.truncf %465 : vector<1x32xf32> to vector<1x32xbf16>
    %cst_196 = arith.constant dense<0.000000e+00> : vector<1x10xf32>
    %486 = tpu.matmul %485, %483, %cst_196 {dimension_numbers = #tpu.dot_dimension_numbers<[1], [0], [0], [1], [0, 0, 1, 1], [], []>} : vector<1x32xbf16>, vector<32x10xbf16>, vector<1x10xf32> -> vector<1x10xf32>
    %487 = arith.addf %486, %484 : vector<1x10xf32>
    %488 = tpu.iota {dimensions = array<i32: 1>} : vector<1x10xi32>
    %c8_i32_197 = arith.constant 8 : i32
    %489 = vector.broadcast %c8_i32_197 : i32 to vector<1x10xi32>
    %490 = arith.cmpi slt, %488, %489 : vector<1x10xi32>
    %491 = arith.negf %487 : vector<1x10xf32>
    %492 = math.exp %491 : vector<1x10xf32>
    %cst_198 = arith.constant 1.000000e+00 : f32
    %493 = vector.broadcast %cst_198 : f32 to vector<1x10xf32>
    %494 = arith.addf %493, %492 : vector<1x10xf32>
    %495 = arith.divf %493, %494 : vector<1x10xf32>
    %496 = arith.select %490, %495, %487 : vector<1x10xi1>, vector<1x10xf32>
    %c0_199 = arith.constant 0 : index
    %c0_200 = arith.constant 0 : index
    %c0_201 = arith.constant 0 : index
    %497 = vector.load %arg29[%c0_199, %c0_200, %c0_201] : memref<1x1x10xf32, #tpu.memory_space<vmem>>, vector<1x1x10xf32>
    %498 = vector.shape_cast %497 : vector<1x1x10xf32> to vector<1x10xf32>
    %499 = vector.shape_cast %496 : vector<1x10xf32> to vector<1x1x10xf32>
    tpu.vector_store %arg29[%c0_199, %c0_200, %c0_201], %499 {strides = array<i32>} : memref<1x1x10xf32, #tpu.memory_space<vmem>>, vector<1x1x10xf32>,
    %c2 = arith.constant 2 : index
    %c0_202 = arith.constant 0 : index
    %c0_203 = arith.constant 0 : index
    %500 = vector.load %arg2[%c2, %c0_202, %c0_203] : memref<4x32x96xbf16, #tpu.memory_space<vmem>>, vector<1x32x96xbf16>
    %501 = vector.shape_cast %500 : vector<1x32x96xbf16> to vector<32x96xbf16>
    %c2_204 = arith.constant 2 : index
    %c0_205 = arith.constant 0 : index
    %c0_206 = arith.constant 0 : index
    %502 = vector.load %arg3[%c2_204, %c0_205, %c0_206] : memref<4x1x96xf32, #tpu.memory_space<vmem>>, vector<1x1x96xf32>
    %503 = vector.shape_cast %502 : vector<1x1x96xf32> to vector<1x96xf32>
    %c2_207 = arith.constant 2 : index
    %c0_208 = arith.constant 0 : index
    %c0_209 = arith.constant 0 : index
    %504 = vector.load %arg4[%c2_207, %c0_208, %c0_209] : memref<4x32x32xbf16, #tpu.memory_space<vmem>>, vector<1x32x32xbf16>
    %505 = vector.shape_cast %504 : vector<1x32x32xbf16> to vector<32x32xbf16>
    %c2_210 = arith.constant 2 : index
    %c0_211 = arith.constant 0 : index
    %c0_212 = arith.constant 0 : index
    %506 = vector.load %arg5[%c2_210, %c0_211, %c0_212] : memref<4x1x32xf32, #tpu.memory_space<vmem>>, vector<1x1x32xf32>
    %507 = vector.shape_cast %506 : vector<1x1x32xf32> to vector<1x32xf32>
    %c2_213 = arith.constant 2 : index
    %c0_214 = arith.constant 0 : index
    %c0_215 = arith.constant 0 : index
    %508 = vector.load %arg6[%c2_213, %c0_214, %c0_215] : memref<4x1x32xf32, #tpu.memory_space<vmem>>, vector<1x1x32xf32>
    %509 = vector.shape_cast %508 : vector<1x1x32xf32> to vector<1x32xf32>
    %c2_216 = arith.constant 2 : index
    %c0_217 = arith.constant 0 : index
    %c0_218 = arith.constant 0 : index
    %510 = vector.load %arg7[%c2_216, %c0_217, %c0_218] : memref<4x1x32xf32, #tpu.memory_space<vmem>>, vector<1x1x32xf32>
    %511 = vector.shape_cast %510 : vector<1x1x32xf32> to vector<1x32xf32>
    %c2_219 = arith.constant 2 : index
    %c0_220 = arith.constant 0 : index
    %c0_221 = arith.constant 0 : index
    %512 = vector.load %arg8[%c2_219, %c0_220, %c0_221] : memref<4x32x64xbf16, #tpu.memory_space<vmem>>, vector<1x32x64xbf16>
    %513 = vector.shape_cast %512 : vector<1x32x64xbf16> to vector<32x64xbf16>
    %c2_222 = arith.constant 2 : index
    %c0_223 = arith.constant 0 : index
    %c0_224 = arith.constant 0 : index
    %514 = vector.load %arg9[%c2_222, %c0_223, %c0_224] : memref<4x1x64xf32, #tpu.memory_space<vmem>>, vector<1x1x64xf32>
    %515 = vector.shape_cast %514 : vector<1x1x64xf32> to vector<1x64xf32>
    %c2_225 = arith.constant 2 : index
    %c0_226 = arith.constant 0 : index
    %c0_227 = arith.constant 0 : index
    %516 = vector.load %arg10[%c2_225, %c0_226, %c0_227] : memref<4x64x32xbf16, #tpu.memory_space<vmem>>, vector<1x64x32xbf16>
    %517 = vector.shape_cast %516 : vector<1x64x32xbf16> to vector<64x32xbf16>
    %c2_228 = arith.constant 2 : index
    %c0_229 = arith.constant 0 : index
    %c0_230 = arith.constant 0 : index
    %518 = vector.load %arg11[%c2_228, %c0_229, %c0_230] : memref<4x1x32xf32, #tpu.memory_space<vmem>>, vector<1x1x32xf32>
    %519 = vector.shape_cast %518 : vector<1x1x32xf32> to vector<1x32xf32>
    %c2_231 = arith.constant 2 : index
    %c0_232 = arith.constant 0 : index
    %c0_233 = arith.constant 0 : index
    %520 = vector.load %arg12[%c2_231, %c0_232, %c0_233] : memref<4x1x32xf32, #tpu.memory_space<vmem>>, vector<1x1x32xf32>
    %521 = vector.shape_cast %520 : vector<1x1x32xf32> to vector<1x32xf32>
    %c2_234 = arith.constant 2 : index
    %c0_235 = arith.constant 0 : index
    %c0_236 = arith.constant 0 : index
    %522 = vector.load %arg13[%c2_234, %c0_235, %c0_236] : memref<4x1x32xf32, #tpu.memory_space<vmem>>, vector<1x1x32xf32>
    %523 = vector.shape_cast %522 : vector<1x1x32xf32> to vector<1x32xf32>
    %524 = arith.truncf %407 : vector<8x32xf32> to vector<8x32xbf16>
    %cst_237 = arith.constant dense<0.000000e+00> : vector<8x96xf32>
    %525 = tpu.matmul %524, %501, %cst_237 {dimension_numbers = #tpu.dot_dimension_numbers<[1], [0], [0], [1], [0, 0, 1, 1], [], []>} : vector<8x32xbf16>, vector<32x96xbf16>, vector<8x96xf32> -> vector<8x96xf32>
    %526 = vector.broadcast %503 : vector<1x96xf32> to vector<8x96xf32>
    %527 = arith.addf %525, %526 : vector<8x96xf32>
    %528 = vector.extract_strided_slice %527 {offsets = [0, 0], sizes = [8, 32], strides = [1, 1]} : vector<8x96xf32> to vector<8x32xf32>
    %529 = vector.extract_strided_slice %527 {offsets = [0, 32], sizes = [8, 32], strides = [1, 1]} : vector<8x96xf32> to vector<8x32xf32>
    %530 = vector.extract_strided_slice %527 {offsets = [0, 64], sizes = [8, 32], strides = [1, 1]} : vector<8x96xf32> to vector<8x32xf32>
    %cst_238 = arith.constant 0.000000e+00 : f32
    %531 = vector.broadcast %cst_238 : f32 to vector<8x32xf32>
    %532 = vector.broadcast %15 : vector<1x32xf32> to vector<8x32xf32>
    %533 = arith.mulf %528, %532 : vector<8x32xf32>
    %534 = vector.broadcast %15 : vector<1x32xf32> to vector<8x32xf32>
    %535 = arith.mulf %529, %534 : vector<8x32xf32>
    %536 = tpu.transpose %535, [1, 0] : vector<8x32xf32> -> vector<32x8xf32>
    %cst_239 = arith.constant dense<0.000000e+00> : vector<8x8xf32>
    %537 = tpu.matmul %533, %536, %cst_239 {dimension_numbers = #tpu.dot_dimension_numbers<[1], [0], [0], [1], [0, 0, 1, 1], [], []>} : vector<8x32xf32>, vector<32x8xf32>, vector<8x8xf32> -> vector<8x8xf32>
    %cst_240 = arith.constant 0.353553385 : f32
    %538 = vector.broadcast %cst_240 : f32 to vector<8x8xf32>
    %539 = arith.mulf %537, %538 : vector<8x8xf32>
    %cst_241 = arith.constant dense<0xFF800000> : vector<8xf32>
    %540 = vector.multi_reduction <maximumf>, %539, %cst_241 [1] : vector<8x8xf32> to vector<8xf32>
    %541 = vector.shape_cast %540 : vector<8xf32> to vector<8x1xf32>
    %542 = vector.broadcast %541 : vector<8x1xf32> to vector<8x8xf32>
    %543 = arith.subf %539, %542 : vector<8x8xf32>
    %544 = math.exp %543 : vector<8x8xf32>
    %cst_242 = arith.constant dense<0.000000e+00> : vector<8xf32>
    %545 = vector.multi_reduction <add>, %544, %cst_242 [1] : vector<8x8xf32> to vector<8xf32>
    %546 = vector.shape_cast %545 : vector<8xf32> to vector<8x1xf32>
    %547 = vector.broadcast %546 : vector<8x1xf32> to vector<8x8xf32>
    %548 = arith.divf %544, %547 : vector<8x8xf32>
    %549 = vector.broadcast %15 : vector<1x32xf32> to vector<8x32xf32>
    %550 = arith.mulf %530, %549 : vector<8x32xf32>
    %cst_243 = arith.constant dense<0.000000e+00> : vector<8x32xf32>
    %551 = tpu.matmul %548, %550, %cst_243 {dimension_numbers = #tpu.dot_dimension_numbers<[1], [0], [0], [1], [0, 0, 1, 1], [], []>} : vector<8x8xf32>, vector<8x32xf32>, vector<8x32xf32> -> vector<8x32xf32>
    %552 = arith.addf %531, %551 : vector<8x32xf32>
    %553 = vector.broadcast %22 : vector<1x32xf32> to vector<8x32xf32>
    %554 = arith.mulf %528, %553 : vector<8x32xf32>
    %555 = vector.broadcast %22 : vector<1x32xf32> to vector<8x32xf32>
    %556 = arith.mulf %529, %555 : vector<8x32xf32>
    %557 = tpu.transpose %556, [1, 0] : vector<8x32xf32> -> vector<32x8xf32>
    %cst_244 = arith.constant dense<0.000000e+00> : vector<8x8xf32>
    %558 = tpu.matmul %554, %557, %cst_244 {dimension_numbers = #tpu.dot_dimension_numbers<[1], [0], [0], [1], [0, 0, 1, 1], [], []>} : vector<8x32xf32>, vector<32x8xf32>, vector<8x8xf32> -> vector<8x8xf32>
    %cst_245 = arith.constant 0.353553385 : f32
    %559 = vector.broadcast %cst_245 : f32 to vector<8x8xf32>
    %560 = arith.mulf %558, %559 : vector<8x8xf32>
    %cst_246 = arith.constant dense<0xFF800000> : vector<8xf32>
    %561 = vector.multi_reduction <maximumf>, %560, %cst_246 [1] : vector<8x8xf32> to vector<8xf32>
    %562 = vector.shape_cast %561 : vector<8xf32> to vector<8x1xf32>
    %563 = vector.broadcast %562 : vector<8x1xf32> to vector<8x8xf32>
    %564 = arith.subf %560, %563 : vector<8x8xf32>
    %565 = math.exp %564 : vector<8x8xf32>
    %cst_247 = arith.constant dense<0.000000e+00> : vector<8xf32>
    %566 = vector.multi_reduction <add>, %565, %cst_247 [1] : vector<8x8xf32> to vector<8xf32>
    %567 = vector.shape_cast %566 : vector<8xf32> to vector<8x1xf32>
    %568 = vector.broadcast %567 : vector<8x1xf32> to vector<8x8xf32>
    %569 = arith.divf %565, %568 : vector<8x8xf32>
    %570 = vector.broadcast %22 : vector<1x32xf32> to vector<8x32xf32>
    %571 = arith.mulf %530, %570 : vector<8x32xf32>
    %cst_248 = arith.constant dense<0.000000e+00> : vector<8x32xf32>
    %572 = tpu.matmul %569, %571, %cst_248 {dimension_numbers = #tpu.dot_dimension_numbers<[1], [0], [0], [1], [0, 0, 1, 1], [], []>} : vector<8x8xf32>, vector<8x32xf32>, vector<8x32xf32> -> vector<8x32xf32>
    %573 = arith.addf %552, %572 : vector<8x32xf32>
    %574 = vector.broadcast %29 : vector<1x32xf32> to vector<8x32xf32>
    %575 = arith.mulf %528, %574 : vector<8x32xf32>
    %576 = vector.broadcast %29 : vector<1x32xf32> to vector<8x32xf32>
    %577 = arith.mulf %529, %576 : vector<8x32xf32>
    %578 = tpu.transpose %577, [1, 0] : vector<8x32xf32> -> vector<32x8xf32>
    %cst_249 = arith.constant dense<0.000000e+00> : vector<8x8xf32>
    %579 = tpu.matmul %575, %578, %cst_249 {dimension_numbers = #tpu.dot_dimension_numbers<[1], [0], [0], [1], [0, 0, 1, 1], [], []>} : vector<8x32xf32>, vector<32x8xf32>, vector<8x8xf32> -> vector<8x8xf32>
    %cst_250 = arith.constant 0.353553385 : f32
    %580 = vector.broadcast %cst_250 : f32 to vector<8x8xf32>
    %581 = arith.mulf %579, %580 : vector<8x8xf32>
    %cst_251 = arith.constant dense<0xFF800000> : vector<8xf32>
    %582 = vector.multi_reduction <maximumf>, %581, %cst_251 [1] : vector<8x8xf32> to vector<8xf32>
    %583 = vector.shape_cast %582 : vector<8xf32> to vector<8x1xf32>
    %584 = vector.broadcast %583 : vector<8x1xf32> to vector<8x8xf32>
    %585 = arith.subf %581, %584 : vector<8x8xf32>
    %586 = math.exp %585 : vector<8x8xf32>
    %cst_252 = arith.constant dense<0.000000e+00> : vector<8xf32>
    %587 = vector.multi_reduction <add>, %586, %cst_252 [1] : vector<8x8xf32> to vector<8xf32>
    %588 = vector.shape_cast %587 : vector<8xf32> to vector<8x1xf32>
    %589 = vector.broadcast %588 : vector<8x1xf32> to vector<8x8xf32>
    %590 = arith.divf %586, %589 : vector<8x8xf32>
    %591 = vector.broadcast %29 : vector<1x32xf32> to vector<8x32xf32>
    %592 = arith.mulf %530, %591 : vector<8x32xf32>
    %cst_253 = arith.constant dense<0.000000e+00> : vector<8x32xf32>
    %593 = tpu.matmul %590, %592, %cst_253 {dimension_numbers = #tpu.dot_dimension_numbers<[1], [0], [0], [1], [0, 0, 1, 1], [], []>} : vector<8x8xf32>, vector<8x32xf32>, vector<8x32xf32> -> vector<8x32xf32>
    %594 = arith.addf %573, %593 : vector<8x32xf32>
    %595 = vector.broadcast %36 : vector<1x32xf32> to vector<8x32xf32>
    %596 = arith.mulf %528, %595 : vector<8x32xf32>
    %597 = vector.broadcast %36 : vector<1x32xf32> to vector<8x32xf32>
    %598 = arith.mulf %529, %597 : vector<8x32xf32>
    %599 = tpu.transpose %598, [1, 0] : vector<8x32xf32> -> vector<32x8xf32>
    %cst_254 = arith.constant dense<0.000000e+00> : vector<8x8xf32>
    %600 = tpu.matmul %596, %599, %cst_254 {dimension_numbers = #tpu.dot_dimension_numbers<[1], [0], [0], [1], [0, 0, 1, 1], [], []>} : vector<8x32xf32>, vector<32x8xf32>, vector<8x8xf32> -> vector<8x8xf32>
    %cst_255 = arith.constant 0.353553385 : f32
    %601 = vector.broadcast %cst_255 : f32 to vector<8x8xf32>
    %602 = arith.mulf %600, %601 : vector<8x8xf32>
    %cst_256 = arith.constant dense<0xFF800000> : vector<8xf32>
    %603 = vector.multi_reduction <maximumf>, %602, %cst_256 [1] : vector<8x8xf32> to vector<8xf32>
    %604 = vector.shape_cast %603 : vector<8xf32> to vector<8x1xf32>
    %605 = vector.broadcast %604 : vector<8x1xf32> to vector<8x8xf32>
    %606 = arith.subf %602, %605 : vector<8x8xf32>
    %607 = math.exp %606 : vector<8x8xf32>
    %cst_257 = arith.constant dense<0.000000e+00> : vector<8xf32>
    %608 = vector.multi_reduction <add>, %607, %cst_257 [1] : vector<8x8xf32> to vector<8xf32>
    %609 = vector.shape_cast %608 : vector<8xf32> to vector<8x1xf32>
    %610 = vector.broadcast %609 : vector<8x1xf32> to vector<8x8xf32>
    %611 = arith.divf %607, %610 : vector<8x8xf32>
    %612 = vector.broadcast %36 : vector<1x32xf32> to vector<8x32xf32>
    %613 = arith.mulf %530, %612 : vector<8x32xf32>
    %cst_258 = arith.constant dense<0.000000e+00> : vector<8x32xf32>
    %614 = tpu.matmul %611, %613, %cst_258 {dimension_numbers = #tpu.dot_dimension_numbers<[1], [0], [0], [1], [0, 0, 1, 1], [], []>} : vector<8x8xf32>, vector<8x32xf32>, vector<8x32xf32> -> vector<8x32xf32>
    %615 = arith.addf %594, %614 : vector<8x32xf32>
    %616 = arith.truncf %615 : vector<8x32xf32> to vector<8x32xbf16>
    %cst_259 = arith.constant dense<0.000000e+00> : vector<8x32xf32>
    %617 = tpu.matmul %616, %505, %cst_259 {dimension_numbers = #tpu.dot_dimension_numbers<[1], [0], [0], [1], [0, 0, 1, 1], [], []>} : vector<8x32xbf16>, vector<32x32xbf16>, vector<8x32xf32> -> vector<8x32xf32>
    %618 = vector.broadcast %507 : vector<1x32xf32> to vector<8x32xf32>
    %619 = arith.addf %617, %618 : vector<8x32xf32>
    %620 = arith.addf %407, %619 : vector<8x32xf32>
    %cst_260 = arith.constant dense<0.000000e+00> : vector<8xf32>
    %621 = vector.multi_reduction <add>, %620, %cst_260 [1] : vector<8x32xf32> to vector<8xf32>
    %622 = vector.shape_cast %621 : vector<8xf32> to vector<8x1xf32>
    %cst_261 = arith.constant 3.200000e+01 : f32
    %623 = vector.broadcast %cst_261 : f32 to vector<8x1xf32>
    %624 = arith.divf %622, %623 : vector<8x1xf32>
    %625 = vector.broadcast %624 : vector<8x1xf32> to vector<8x32xf32>
    %626 = arith.subf %620, %625 : vector<8x32xf32>
    %627 = arith.mulf %626, %626 : vector<8x32xf32>
    %cst_262 = arith.constant dense<0.000000e+00> : vector<8xf32>
    %628 = vector.multi_reduction <add>, %627, %cst_262 [1] : vector<8x32xf32> to vector<8xf32>
    %629 = vector.shape_cast %628 : vector<8xf32> to vector<8x1xf32>
    %cst_263 = arith.constant 3.200000e+01 : f32
    %630 = vector.broadcast %cst_263 : f32 to vector<8x1xf32>
    %631 = arith.divf %629, %630 : vector<8x1xf32>
    %632 = vector.broadcast %624 : vector<8x1xf32> to vector<8x32xf32>
    %633 = arith.subf %620, %632 : vector<8x32xf32>
    %cst_264 = arith.constant 9.99999974E-6 : f32
    %634 = vector.broadcast %cst_264 : f32 to vector<8x1xf32>
    %635 = arith.addf %631, %634 : vector<8x1xf32>
    %636 = math.rsqrt %635 : vector<8x1xf32>
    %637 = vector.broadcast %636 : vector<8x1xf32> to vector<8x32xf32>
    %638 = arith.mulf %633, %637 : vector<8x32xf32>
    %639 = vector.broadcast %509 : vector<1x32xf32> to vector<8x32xf32>
    %640 = arith.mulf %638, %639 : vector<8x32xf32>
    %641 = vector.broadcast %511 : vector<1x32xf32> to vector<8x32xf32>
    %642 = arith.addf %640, %641 : vector<8x32xf32>
    %643 = arith.truncf %642 : vector<8x32xf32> to vector<8x32xbf16>
    %cst_265 = arith.constant dense<0.000000e+00> : vector<8x64xf32>
    %644 = tpu.matmul %643, %513, %cst_265 {dimension_numbers = #tpu.dot_dimension_numbers<[1], [0], [0], [1], [0, 0, 1, 1], [], []>} : vector<8x32xbf16>, vector<32x64xbf16>, vector<8x64xf32> -> vector<8x64xf32>
    %645 = vector.broadcast %515 : vector<1x64xf32> to vector<8x64xf32>
    %646 = arith.addf %644, %645 : vector<8x64xf32>
    %cst_266 = arith.constant 0.000000e+00 : f32
    %647 = vector.broadcast %cst_266 : f32 to vector<8x64xf32>
    %648 = arith.maximumf %646, %647 : vector<8x64xf32>
    %649 = arith.truncf %648 : vector<8x64xf32> to vector<8x64xbf16>
    %cst_267 = arith.constant dense<0.000000e+00> : vector<8x32xf32>
    %650 = tpu.matmul %649, %517, %cst_267 {dimension_numbers = #tpu.dot_dimension_numbers<[1], [0], [0], [1], [0, 0, 1, 1], [], []>} : vector<8x64xbf16>, vector<64x32xbf16>, vector<8x32xf32> -> vector<8x32xf32>
    %651 = vector.broadcast %519 : vector<1x32xf32> to vector<8x32xf32>
    %652 = arith.addf %650, %651 : vector<8x32xf32>
    %653 = arith.addf %642, %652 : vector<8x32xf32>
    %cst_268 = arith.constant dense<0.000000e+00> : vector<8xf32>
    %654 = vector.multi_reduction <add>, %653, %cst_268 [1] : vector<8x32xf32> to vector<8xf32>
    %655 = vector.shape_cast %654 : vector<8xf32> to vector<8x1xf32>
    %cst_269 = arith.constant 3.200000e+01 : f32
    %656 = vector.broadcast %cst_269 : f32 to vector<8x1xf32>
    %657 = arith.divf %655, %656 : vector<8x1xf32>
    %658 = vector.broadcast %657 : vector<8x1xf32> to vector<8x32xf32>
    %659 = arith.subf %653, %658 : vector<8x32xf32>
    %660 = arith.mulf %659, %659 : vector<8x32xf32>
    %cst_270 = arith.constant dense<0.000000e+00> : vector<8xf32>
    %661 = vector.multi_reduction <add>, %660, %cst_270 [1] : vector<8x32xf32> to vector<8xf32>
    %662 = vector.shape_cast %661 : vector<8xf32> to vector<8x1xf32>
    %cst_271 = arith.constant 3.200000e+01 : f32
    %663 = vector.broadcast %cst_271 : f32 to vector<8x1xf32>
    %664 = arith.divf %662, %663 : vector<8x1xf32>
    %665 = vector.broadcast %657 : vector<8x1xf32> to vector<8x32xf32>
    %666 = arith.subf %653, %665 : vector<8x32xf32>
    %cst_272 = arith.constant 9.99999974E-6 : f32
    %667 = vector.broadcast %cst_272 : f32 to vector<8x1xf32>
    %668 = arith.addf %664, %667 : vector<8x1xf32>
    %669 = math.rsqrt %668 : vector<8x1xf32>
    %670 = vector.broadcast %669 : vector<8x1xf32> to vector<8x32xf32>
    %671 = arith.mulf %666, %670 : vector<8x32xf32>
    %672 = vector.broadcast %521 : vector<1x32xf32> to vector<8x32xf32>
    %673 = arith.mulf %671, %672 : vector<8x32xf32>
    %674 = vector.broadcast %523 : vector<1x32xf32> to vector<8x32xf32>
    %675 = arith.addf %673, %674 : vector<8x32xf32>
    %676 = vector.broadcast %7 : vector<8x1xf32> to vector<8x32xf32>
    %677 = arith.mulf %675, %676 : vector<8x32xf32>
    %c3 = arith.constant 3 : index
    %c0_273 = arith.constant 0 : index
    %c0_274 = arith.constant 0 : index
    %678 = vector.load %arg2[%c3, %c0_273, %c0_274] : memref<4x32x96xbf16, #tpu.memory_space<vmem>>, vector<1x32x96xbf16>
    %679 = vector.shape_cast %678 : vector<1x32x96xbf16> to vector<32x96xbf16>
    %c3_275 = arith.constant 3 : index
    %c0_276 = arith.constant 0 : index
    %c0_277 = arith.constant 0 : index
    %680 = vector.load %arg3[%c3_275, %c0_276, %c0_277] : memref<4x1x96xf32, #tpu.memory_space<vmem>>, vector<1x1x96xf32>
    %681 = vector.shape_cast %680 : vector<1x1x96xf32> to vector<1x96xf32>
    %c3_278 = arith.constant 3 : index
    %c0_279 = arith.constant 0 : index
    %c0_280 = arith.constant 0 : index
    %682 = vector.load %arg4[%c3_278, %c0_279, %c0_280] : memref<4x32x32xbf16, #tpu.memory_space<vmem>>, vector<1x32x32xbf16>
    %683 = vector.shape_cast %682 : vector<1x32x32xbf16> to vector<32x32xbf16>
    %c3_281 = arith.constant 3 : index
    %c0_282 = arith.constant 0 : index
    %c0_283 = arith.constant 0 : index
    %684 = vector.load %arg5[%c3_281, %c0_282, %c0_283] : memref<4x1x32xf32, #tpu.memory_space<vmem>>, vector<1x1x32xf32>
    %685 = vector.shape_cast %684 : vector<1x1x32xf32> to vector<1x32xf32>
    %c3_284 = arith.constant 3 : index
    %c0_285 = arith.constant 0 : index
    %c0_286 = arith.constant 0 : index
    %686 = vector.load %arg6[%c3_284, %c0_285, %c0_286] : memref<4x1x32xf32, #tpu.memory_space<vmem>>, vector<1x1x32xf32>
    %687 = vector.shape_cast %686 : vector<1x1x32xf32> to vector<1x32xf32>
    %c3_287 = arith.constant 3 : index
    %c0_288 = arith.constant 0 : index
    %c0_289 = arith.constant 0 : index
    %688 = vector.load %arg7[%c3_287, %c0_288, %c0_289] : memref<4x1x32xf32, #tpu.memory_space<vmem>>, vector<1x1x32xf32>
    %689 = vector.shape_cast %688 : vector<1x1x32xf32> to vector<1x32xf32>
    %c3_290 = arith.constant 3 : index
    %c0_291 = arith.constant 0 : index
    %c0_292 = arith.constant 0 : index
    %690 = vector.load %arg8[%c3_290, %c0_291, %c0_292] : memref<4x32x64xbf16, #tpu.memory_space<vmem>>, vector<1x32x64xbf16>
    %691 = vector.shape_cast %690 : vector<1x32x64xbf16> to vector<32x64xbf16>
    %c3_293 = arith.constant 3 : index
    %c0_294 = arith.constant 0 : index
    %c0_295 = arith.constant 0 : index
    %692 = vector.load %arg9[%c3_293, %c0_294, %c0_295] : memref<4x1x64xf32, #tpu.memory_space<vmem>>, vector<1x1x64xf32>
    %693 = vector.shape_cast %692 : vector<1x1x64xf32> to vector<1x64xf32>
    %c3_296 = arith.constant 3 : index
    %c0_297 = arith.constant 0 : index
    %c0_298 = arith.constant 0 : index
    %694 = vector.load %arg10[%c3_296, %c0_297, %c0_298] : memref<4x64x32xbf16, #tpu.memory_space<vmem>>, vector<1x64x32xbf16>
    %695 = vector.shape_cast %694 : vector<1x64x32xbf16> to vector<64x32xbf16>
    %c3_299 = arith.constant 3 : index
    %c0_300 = arith.constant 0 : index
    %c0_301 = arith.constant 0 : index
    %696 = vector.load %arg11[%c3_299, %c0_300, %c0_301] : memref<4x1x32xf32, #tpu.memory_space<vmem>>, vector<1x1x32xf32>
    %697 = vector.shape_cast %696 : vector<1x1x32xf32> to vector<1x32xf32>
    %c3_302 = arith.constant 3 : index
    %c0_303 = arith.constant 0 : index
    %c0_304 = arith.constant 0 : index
    %698 = vector.load %arg12[%c3_302, %c0_303, %c0_304] : memref<4x1x32xf32, #tpu.memory_space<vmem>>, vector<1x1x32xf32>
    %699 = vector.shape_cast %698 : vector<1x1x32xf32> to vector<1x32xf32>
    %c3_305 = arith.constant 3 : index
    %c0_306 = arith.constant 0 : index
    %c0_307 = arith.constant 0 : index
    %700 = vector.load %arg13[%c3_305, %c0_306, %c0_307] : memref<4x1x32xf32, #tpu.memory_space<vmem>>, vector<1x1x32xf32>
    %701 = vector.shape_cast %700 : vector<1x1x32xf32> to vector<1x32xf32>
    %702 = arith.truncf %677 : vector<8x32xf32> to vector<8x32xbf16>
    %cst_308 = arith.constant dense<0.000000e+00> : vector<8x96xf32>
    %703 = tpu.matmul %702, %679, %cst_308 {dimension_numbers = #tpu.dot_dimension_numbers<[1], [0], [0], [1], [0, 0, 1, 1], [], []>} : vector<8x32xbf16>, vector<32x96xbf16>, vector<8x96xf32> -> vector<8x96xf32>
    %704 = vector.broadcast %681 : vector<1x96xf32> to vector<8x96xf32>
    %705 = arith.addf %703, %704 : vector<8x96xf32>
    %706 = vector.extract_strided_slice %705 {offsets = [0, 0], sizes = [8, 32], strides = [1, 1]} : vector<8x96xf32> to vector<8x32xf32>
    %707 = vector.extract_strided_slice %705 {offsets = [0, 32], sizes = [8, 32], strides = [1, 1]} : vector<8x96xf32> to vector<8x32xf32>
    %708 = vector.extract_strided_slice %705 {offsets = [0, 64], sizes = [8, 32], strides = [1, 1]} : vector<8x96xf32> to vector<8x32xf32>
    %cst_309 = arith.constant 0.000000e+00 : f32
    %709 = vector.broadcast %cst_309 : f32 to vector<8x32xf32>
    %710 = vector.broadcast %15 : vector<1x32xf32> to vector<8x32xf32>
    %711 = arith.mulf %706, %710 : vector<8x32xf32>
    %712 = vector.broadcast %15 : vector<1x32xf32> to vector<8x32xf32>
    %713 = arith.mulf %707, %712 : vector<8x32xf32>
    %714 = tpu.transpose %713, [1, 0] : vector<8x32xf32> -> vector<32x8xf32>
    %cst_310 = arith.constant dense<0.000000e+00> : vector<8x8xf32>
    %715 = tpu.matmul %711, %714, %cst_310 {dimension_numbers = #tpu.dot_dimension_numbers<[1], [0], [0], [1], [0, 0, 1, 1], [], []>} : vector<8x32xf32>, vector<32x8xf32>, vector<8x8xf32> -> vector<8x8xf32>
    %cst_311 = arith.constant 0.353553385 : f32
    %716 = vector.broadcast %cst_311 : f32 to vector<8x8xf32>
    %717 = arith.mulf %715, %716 : vector<8x8xf32>
    %cst_312 = arith.constant dense<0xFF800000> : vector<8xf32>
    %718 = vector.multi_reduction <maximumf>, %717, %cst_312 [1] : vector<8x8xf32> to vector<8xf32>
    %719 = vector.shape_cast %718 : vector<8xf32> to vector<8x1xf32>
    %720 = vector.broadcast %719 : vector<8x1xf32> to vector<8x8xf32>
    %721 = arith.subf %717, %720 : vector<8x8xf32>
    %722 = math.exp %721 : vector<8x8xf32>
    %cst_313 = arith.constant dense<0.000000e+00> : vector<8xf32>
    %723 = vector.multi_reduction <add>, %722, %cst_313 [1] : vector<8x8xf32> to vector<8xf32>
    %724 = vector.shape_cast %723 : vector<8xf32> to vector<8x1xf32>
    %725 = vector.broadcast %724 : vector<8x1xf32> to vector<8x8xf32>
    %726 = arith.divf %722, %725 : vector<8x8xf32>
    %727 = vector.broadcast %15 : vector<1x32xf32> to vector<8x32xf32>
    %728 = arith.mulf %708, %727 : vector<8x32xf32>
    %cst_314 = arith.constant dense<0.000000e+00> : vector<8x32xf32>
    %729 = tpu.matmul %726, %728, %cst_314 {dimension_numbers = #tpu.dot_dimension_numbers<[1], [0], [0], [1], [0, 0, 1, 1], [], []>} : vector<8x8xf32>, vector<8x32xf32>, vector<8x32xf32> -> vector<8x32xf32>
    %730 = arith.addf %709, %729 : vector<8x32xf32>
    %731 = vector.broadcast %22 : vector<1x32xf32> to vector<8x32xf32>
    %732 = arith.mulf %706, %731 : vector<8x32xf32>
    %733 = vector.broadcast %22 : vector<1x32xf32> to vector<8x32xf32>
    %734 = arith.mulf %707, %733 : vector<8x32xf32>
    %735 = tpu.transpose %734, [1, 0] : vector<8x32xf32> -> vector<32x8xf32>
    %cst_315 = arith.constant dense<0.000000e+00> : vector<8x8xf32>
    %736 = tpu.matmul %732, %735, %cst_315 {dimension_numbers = #tpu.dot_dimension_numbers<[1], [0], [0], [1], [0, 0, 1, 1], [], []>} : vector<8x32xf32>, vector<32x8xf32>, vector<8x8xf32> -> vector<8x8xf32>
    %cst_316 = arith.constant 0.353553385 : f32
    %737 = vector.broadcast %cst_316 : f32 to vector<8x8xf32>
    %738 = arith.mulf %736, %737 : vector<8x8xf32>
    %cst_317 = arith.constant dense<0xFF800000> : vector<8xf32>
    %739 = vector.multi_reduction <maximumf>, %738, %cst_317 [1] : vector<8x8xf32> to vector<8xf32>
    %740 = vector.shape_cast %739 : vector<8xf32> to vector<8x1xf32>
    %741 = vector.broadcast %740 : vector<8x1xf32> to vector<8x8xf32>
    %742 = arith.subf %738, %741 : vector<8x8xf32>
    %743 = math.exp %742 : vector<8x8xf32>
    %cst_318 = arith.constant dense<0.000000e+00> : vector<8xf32>
    %744 = vector.multi_reduction <add>, %743, %cst_318 [1] : vector<8x8xf32> to vector<8xf32>
    %745 = vector.shape_cast %744 : vector<8xf32> to vector<8x1xf32>
    %746 = vector.broadcast %745 : vector<8x1xf32> to vector<8x8xf32>
    %747 = arith.divf %743, %746 : vector<8x8xf32>
    %748 = vector.broadcast %22 : vector<1x32xf32> to vector<8x32xf32>
    %749 = arith.mulf %708, %748 : vector<8x32xf32>
    %cst_319 = arith.constant dense<0.000000e+00> : vector<8x32xf32>
    %750 = tpu.matmul %747, %749, %cst_319 {dimension_numbers = #tpu.dot_dimension_numbers<[1], [0], [0], [1], [0, 0, 1, 1], [], []>} : vector<8x8xf32>, vector<8x32xf32>, vector<8x32xf32> -> vector<8x32xf32>
    %751 = arith.addf %730, %750 : vector<8x32xf32>
    %752 = vector.broadcast %29 : vector<1x32xf32> to vector<8x32xf32>
    %753 = arith.mulf %706, %752 : vector<8x32xf32>
    %754 = vector.broadcast %29 : vector<1x32xf32> to vector<8x32xf32>
    %755 = arith.mulf %707, %754 : vector<8x32xf32>
    %756 = tpu.transpose %755, [1, 0] : vector<8x32xf32> -> vector<32x8xf32>
    %cst_320 = arith.constant dense<0.000000e+00> : vector<8x8xf32>
    %757 = tpu.matmul %753, %756, %cst_320 {dimension_numbers = #tpu.dot_dimension_numbers<[1], [0], [0], [1], [0, 0, 1, 1], [], []>} : vector<8x32xf32>, vector<32x8xf32>, vector<8x8xf32> -> vector<8x8xf32>
    %cst_321 = arith.constant 0.353553385 : f32
    %758 = vector.broadcast %cst_321 : f32 to vector<8x8xf32>
    %759 = arith.mulf %757, %758 : vector<8x8xf32>
    %cst_322 = arith.constant dense<0xFF800000> : vector<8xf32>
    %760 = vector.multi_reduction <maximumf>, %759, %cst_322 [1] : vector<8x8xf32> to vector<8xf32>
    %761 = vector.shape_cast %760 : vector<8xf32> to vector<8x1xf32>
    %762 = vector.broadcast %761 : vector<8x1xf32> to vector<8x8xf32>
    %763 = arith.subf %759, %762 : vector<8x8xf32>
    %764 = math.exp %763 : vector<8x8xf32>
    %cst_323 = arith.constant dense<0.000000e+00> : vector<8xf32>
    %765 = vector.multi_reduction <add>, %764, %cst_323 [1] : vector<8x8xf32> to vector<8xf32>
    %766 = vector.shape_cast %765 : vector<8xf32> to vector<8x1xf32>
    %767 = vector.broadcast %766 : vector<8x1xf32> to vector<8x8xf32>
    %768 = arith.divf %764, %767 : vector<8x8xf32>
    %769 = vector.broadcast %29 : vector<1x32xf32> to vector<8x32xf32>
    %770 = arith.mulf %708, %769 : vector<8x32xf32>
    %cst_324 = arith.constant dense<0.000000e+00> : vector<8x32xf32>
    %771 = tpu.matmul %768, %770, %cst_324 {dimension_numbers = #tpu.dot_dimension_numbers<[1], [0], [0], [1], [0, 0, 1, 1], [], []>} : vector<8x8xf32>, vector<8x32xf32>, vector<8x32xf32> -> vector<8x32xf32>
    %772 = arith.addf %751, %771 : vector<8x32xf32>
    %773 = vector.broadcast %36 : vector<1x32xf32> to vector<8x32xf32>
    %774 = arith.mulf %706, %773 : vector<8x32xf32>
    %775 = vector.broadcast %36 : vector<1x32xf32> to vector<8x32xf32>
    %776 = arith.mulf %707, %775 : vector<8x32xf32>
    %777 = tpu.transpose %776, [1, 0] : vector<8x32xf32> -> vector<32x8xf32>
    %cst_325 = arith.constant dense<0.000000e+00> : vector<8x8xf32>
    %778 = tpu.matmul %774, %777, %cst_325 {dimension_numbers = #tpu.dot_dimension_numbers<[1], [0], [0], [1], [0, 0, 1, 1], [], []>} : vector<8x32xf32>, vector<32x8xf32>, vector<8x8xf32> -> vector<8x8xf32>
    %cst_326 = arith.constant 0.353553385 : f32
    %779 = vector.broadcast %cst_326 : f32 to vector<8x8xf32>
    %780 = arith.mulf %778, %779 : vector<8x8xf32>
    %cst_327 = arith.constant dense<0xFF800000> : vector<8xf32>
    %781 = vector.multi_reduction <maximumf>, %780, %cst_327 [1] : vector<8x8xf32> to vector<8xf32>
    %782 = vector.shape_cast %781 : vector<8xf32> to vector<8x1xf32>
    %783 = vector.broadcast %782 : vector<8x1xf32> to vector<8x8xf32>
    %784 = arith.subf %780, %783 : vector<8x8xf32>
    %785 = math.exp %784 : vector<8x8xf32>
    %cst_328 = arith.constant dense<0.000000e+00> : vector<8xf32>
    %786 = vector.multi_reduction <add>, %785, %cst_328 [1] : vector<8x8xf32> to vector<8xf32>
    %787 = vector.shape_cast %786 : vector<8xf32> to vector<8x1xf32>
    %788 = vector.broadcast %787 : vector<8x1xf32> to vector<8x8xf32>
    %789 = arith.divf %785, %788 : vector<8x8xf32>
    %790 = vector.broadcast %36 : vector<1x32xf32> to vector<8x32xf32>
    %791 = arith.mulf %708, %790 : vector<8x32xf32>
    %cst_329 = arith.constant dense<0.000000e+00> : vector<8x32xf32>
    %792 = tpu.matmul %789, %791, %cst_329 {dimension_numbers = #tpu.dot_dimension_numbers<[1], [0], [0], [1], [0, 0, 1, 1], [], []>} : vector<8x8xf32>, vector<8x32xf32>, vector<8x32xf32> -> vector<8x32xf32>
    %793 = arith.addf %772, %792 : vector<8x32xf32>
    %794 = arith.truncf %793 : vector<8x32xf32> to vector<8x32xbf16>
    %cst_330 = arith.constant dense<0.000000e+00> : vector<8x32xf32>
    %795 = tpu.matmul %794, %683, %cst_330 {dimension_numbers = #tpu.dot_dimension_numbers<[1], [0], [0], [1], [0, 0, 1, 1], [], []>} : vector<8x32xbf16>, vector<32x32xbf16>, vector<8x32xf32> -> vector<8x32xf32>
    %796 = vector.broadcast %685 : vector<1x32xf32> to vector<8x32xf32>
    %797 = arith.addf %795, %796 : vector<8x32xf32>
    %798 = arith.addf %677, %797 : vector<8x32xf32>
    %cst_331 = arith.constant dense<0.000000e+00> : vector<8xf32>
    %799 = vector.multi_reduction <add>, %798, %cst_331 [1] : vector<8x32xf32> to vector<8xf32>
    %800 = vector.shape_cast %799 : vector<8xf32> to vector<8x1xf32>
    %cst_332 = arith.constant 3.200000e+01 : f32
    %801 = vector.broadcast %cst_332 : f32 to vector<8x1xf32>
    %802 = arith.divf %800, %801 : vector<8x1xf32>
    %803 = vector.broadcast %802 : vector<8x1xf32> to vector<8x32xf32>
    %804 = arith.subf %798, %803 : vector<8x32xf32>
    %805 = arith.mulf %804, %804 : vector<8x32xf32>
    %cst_333 = arith.constant dense<0.000000e+00> : vector<8xf32>
    %806 = vector.multi_reduction <add>, %805, %cst_333 [1] : vector<8x32xf32> to vector<8xf32>
    %807 = vector.shape_cast %806 : vector<8xf32> to vector<8x1xf32>
    %cst_334 = arith.constant 3.200000e+01 : f32
    %808 = vector.broadcast %cst_334 : f32 to vector<8x1xf32>
    %809 = arith.divf %807, %808 : vector<8x1xf32>
    %810 = vector.broadcast %802 : vector<8x1xf32> to vector<8x32xf32>
    %811 = arith.subf %798, %810 : vector<8x32xf32>
    %cst_335 = arith.constant 9.99999974E-6 : f32
    %812 = vector.broadcast %cst_335 : f32 to vector<8x1xf32>
    %813 = arith.addf %809, %812 : vector<8x1xf32>
    %814 = math.rsqrt %813 : vector<8x1xf32>
    %815 = vector.broadcast %814 : vector<8x1xf32> to vector<8x32xf32>
    %816 = arith.mulf %811, %815 : vector<8x32xf32>
    %817 = vector.broadcast %687 : vector<1x32xf32> to vector<8x32xf32>
    %818 = arith.mulf %816, %817 : vector<8x32xf32>
    %819 = vector.broadcast %689 : vector<1x32xf32> to vector<8x32xf32>
    %820 = arith.addf %818, %819 : vector<8x32xf32>
    %821 = arith.truncf %820 : vector<8x32xf32> to vector<8x32xbf16>
    %cst_336 = arith.constant dense<0.000000e+00> : vector<8x64xf32>
    %822 = tpu.matmul %821, %691, %cst_336 {dimension_numbers = #tpu.dot_dimension_numbers<[1], [0], [0], [1], [0, 0, 1, 1], [], []>} : vector<8x32xbf16>, vector<32x64xbf16>, vector<8x64xf32> -> vector<8x64xf32>
    %823 = vector.broadcast %693 : vector<1x64xf32> to vector<8x64xf32>
    %824 = arith.addf %822, %823 : vector<8x64xf32>
    %cst_337 = arith.constant 0.000000e+00 : f32
    %825 = vector.broadcast %cst_337 : f32 to vector<8x64xf32>
    %826 = arith.maximumf %824, %825 : vector<8x64xf32>
    %827 = arith.truncf %826 : vector<8x64xf32> to vector<8x64xbf16>
    %cst_338 = arith.constant dense<0.000000e+00> : vector<8x32xf32>
    %828 = tpu.matmul %827, %695, %cst_338 {dimension_numbers = #tpu.dot_dimension_numbers<[1], [0], [0], [1], [0, 0, 1, 1], [], []>} : vector<8x64xbf16>, vector<64x32xbf16>, vector<8x32xf32> -> vector<8x32xf32>
    %829 = vector.broadcast %697 : vector<1x32xf32> to vector<8x32xf32>
    %830 = arith.addf %828, %829 : vector<8x32xf32>
    %831 = arith.addf %820, %830 : vector<8x32xf32>
    %cst_339 = arith.constant dense<0.000000e+00> : vector<8xf32>
    %832 = vector.multi_reduction <add>, %831, %cst_339 [1] : vector<8x32xf32> to vector<8xf32>
    %833 = vector.shape_cast %832 : vector<8xf32> to vector<8x1xf32>
    %cst_340 = arith.constant 3.200000e+01 : f32
    %834 = vector.broadcast %cst_340 : f32 to vector<8x1xf32>
    %835 = arith.divf %833, %834 : vector<8x1xf32>
    %836 = vector.broadcast %835 : vector<8x1xf32> to vector<8x32xf32>
    %837 = arith.subf %831, %836 : vector<8x32xf32>
    %838 = arith.mulf %837, %837 : vector<8x32xf32>
    %cst_341 = arith.constant dense<0.000000e+00> : vector<8xf32>
    %839 = vector.multi_reduction <add>, %838, %cst_341 [1] : vector<8x32xf32> to vector<8xf32>
    %840 = vector.shape_cast %839 : vector<8xf32> to vector<8x1xf32>
    %cst_342 = arith.constant 3.200000e+01 : f32
    %841 = vector.broadcast %cst_342 : f32 to vector<8x1xf32>
    %842 = arith.divf %840, %841 : vector<8x1xf32>
    %843 = vector.broadcast %835 : vector<8x1xf32> to vector<8x32xf32>
    %844 = arith.subf %831, %843 : vector<8x32xf32>
    %cst_343 = arith.constant 9.99999974E-6 : f32
    %845 = vector.broadcast %cst_343 : f32 to vector<8x1xf32>
    %846 = arith.addf %842, %845 : vector<8x1xf32>
    %847 = math.rsqrt %846 : vector<8x1xf32>
    %848 = vector.broadcast %847 : vector<8x1xf32> to vector<8x32xf32>
    %849 = arith.mulf %844, %848 : vector<8x32xf32>
    %850 = vector.broadcast %699 : vector<1x32xf32> to vector<8x32xf32>
    %851 = arith.mulf %849, %850 : vector<8x32xf32>
    %852 = vector.broadcast %701 : vector<1x32xf32> to vector<8x32xf32>
    %853 = arith.addf %851, %852 : vector<8x32xf32>
    %854 = vector.broadcast %7 : vector<8x1xf32> to vector<8x32xf32>
    %855 = arith.mulf %853, %854 : vector<8x32xf32>
    %856 = arith.truncf %855 : vector<8x32xf32> to vector<8x32xbf16>
    %c0_344 = arith.constant 0 : index
    %c0_345 = arith.constant 0 : index
    %857 = vector.load %arg24[%c0_344, %c0_345] : memref<32x32xbf16, #tpu.memory_space<vmem>>, vector<32x32xbf16>
    %cst_346 = arith.constant dense<0.000000e+00> : vector<8x32xf32>
    %858 = tpu.matmul %856, %857, %cst_346 {dimension_numbers = #tpu.dot_dimension_numbers<[1], [0], [0], [1], [0, 0, 1, 1], [], []>} : vector<8x32xbf16>, vector<32x32xbf16>, vector<8x32xf32> -> vector<8x32xf32>
    %c0_347 = arith.constant 0 : index
    %c0_348 = arith.constant 0 : index
    %859 = vector.load %arg25[%c0_347, %c0_348] : memref<1x32xf32, #tpu.memory_space<vmem>>, vector<1x32xf32>
    %860 = vector.broadcast %859 : vector<1x32xf32> to vector<8x32xf32>
    %861 = arith.addf %858, %860 : vector<8x32xf32>
    %cst_349 = arith.constant 0.000000e+00 : f32
    %862 = vector.broadcast %cst_349 : f32 to vector<8x32xf32>
    %863 = arith.cmpf ogt, %861, %862 : vector<8x32xf32>
    %cst_350 = arith.constant 0.00999999977 : f32
    %864 = vector.broadcast %cst_350 : f32 to vector<8x32xf32>
    %865 = arith.mulf %864, %861 : vector<8x32xf32>
    %866 = arith.select %863, %861, %865 : vector<8x32xi1>, vector<8x32xf32>
    %867 = vector.broadcast %7 : vector<8x1xf32> to vector<8x32xf32>
    %868 = arith.mulf %866, %867 : vector<8x32xf32>
    %c0_351 = arith.constant 0 : index
    %c0_352 = arith.constant 0 : index
    %c0_353 = arith.constant 0 : index
    %869 = vector.load %arg30[%c0_351, %c0_352, %c0_353] : memref<1x8x32xf32, #tpu.memory_space<vmem>>, vector<1x8x32xf32>
    %870 = vector.shape_cast %869 : vector<1x8x32xf32> to vector<8x32xf32>
    %871 = vector.shape_cast %868 : vector<8x32xf32> to vector<1x8x32xf32>
    tpu.vector_store %arg30[%c0_351, %c0_352, %c0_353], %871 {strides = array<i32>} : memref<1x8x32xf32, #tpu.memory_space<vmem>>, vector<1x8x32xf32>,
    return
  }
  func.func @transform_0(%arg0: i32) -> (i32, i32, i32) {
    %c0_i32 = arith.constant 0 : i32
    %c0_i32_0 = arith.constant 0 : i32
    %c0_i32_1 = arith.constant 0 : i32
    return %arg0, %c0_i32, %c0_i32_0 : i32, i32, i32
  }
  func.func @transform_1(%arg0: i32) -> (i32, i32, i32) {
    %c0_i32 = arith.constant 0 : i32
    %c0_i32_0 = arith.constant 0 : i32
    %c0_i32_1 = arith.constant 0 : i32
    %c0_i32_2 = arith.constant 0 : i32
    return %c0_i32, %c0_i32_0, %c0_i32_1 : i32, i32, i32
  }
  func.func @transform_2(%arg0: i32) -> (i32, i32, i32) {
    %c0_i32 = arith.constant 0 : i32
    %c0_i32_0 = arith.constant 0 : i32
    %c0_i32_1 = arith.constant 0 : i32
    %c0_i32_2 = arith.constant 0 : i32
    return %c0_i32, %c0_i32_0, %c0_i32_1 : i32, i32, i32
  }
  func.func @transform_3(%arg0: i32) -> (i32, i32, i32) {
    %c0_i32 = arith.constant 0 : i32
    %c0_i32_0 = arith.constant 0 : i32
    %c0_i32_1 = arith.constant 0 : i32
    %c0_i32_2 = arith.constant 0 : i32
    return %c0_i32, %c0_i32_0, %c0_i32_1 : i32, i32, i32
  }
  func.func @transform_4(%arg0: i32) -> (i32, i32, i32) {
    %c0_i32 = arith.constant 0 : i32
    %c0_i32_0 = arith.constant 0 : i32
    %c0_i32_1 = arith.constant 0 : i32
    %c0_i32_2 = arith.constant 0 : i32
    return %c0_i32, %c0_i32_0, %c0_i32_1 : i32, i32, i32
  }
  func.func @transform_5(%arg0: i32) -> (i32, i32, i32) {
    %c0_i32 = arith.constant 0 : i32
    %c0_i32_0 = arith.constant 0 : i32
    %c0_i32_1 = arith.constant 0 : i32
    %c0_i32_2 = arith.constant 0 : i32
    return %c0_i32, %c0_i32_0, %c0_i32_1 : i32, i32, i32
  }
  func.func @transform_6(%arg0: i32) -> (i32, i32, i32) {
    %c0_i32 = arith.constant 0 : i32
    %c0_i32_0 = arith.constant 0 : i32
    %c0_i32_1 = arith.constant 0 : i32
    %c0_i32_2 = arith.constant 0 : i32
    return %c0_i32, %c0_i32_0, %c0_i32_1 : i32, i32, i32
  }
  func.func @transform_7(%arg0: i32) -> (i32, i32, i32) {
    %c0_i32 = arith.constant 0 : i32
    %c0_i32_0 = arith.constant 0 : i32
    %c0_i32_1 = arith.constant 0 : i32
    %c0_i32_2 = arith.constant 0 : i32
    return %c0_i32, %c0_i32_0, %c0_i32_1 : i32, i32, i32
  }
  func.func @transform_8(%arg0: i32) -> (i32, i32, i32) {
    %c0_i32 = arith.constant 0 : i32
    %c0_i32_0 = arith.constant 0 : i32
    %c0_i32_1 = arith.constant 0 : i32
    %c0_i32_2 = arith.constant 0 : i32
    return %c0_i32, %c0_i32_0, %c0_i32_1 : i32, i32, i32
  }
  func.func @transform_9(%arg0: i32) -> (i32, i32, i32) {
    %c0_i32 = arith.constant 0 : i32
    %c0_i32_0 = arith.constant 0 : i32
    %c0_i32_1 = arith.constant 0 : i32
    %c0_i32_2 = arith.constant 0 : i32
    return %c0_i32, %c0_i32_0, %c0_i32_1 : i32, i32, i32
  }
  func.func @transform_10(%arg0: i32) -> (i32, i32, i32) {
    %c0_i32 = arith.constant 0 : i32
    %c0_i32_0 = arith.constant 0 : i32
    %c0_i32_1 = arith.constant 0 : i32
    %c0_i32_2 = arith.constant 0 : i32
    return %c0_i32, %c0_i32_0, %c0_i32_1 : i32, i32, i32
  }
  func.func @transform_11(%arg0: i32) -> (i32, i32, i32) {
    %c0_i32 = arith.constant 0 : i32
    %c0_i32_0 = arith.constant 0 : i32
    %c0_i32_1 = arith.constant 0 : i32
    %c0_i32_2 = arith.constant 0 : i32
    return %c0_i32, %c0_i32_0, %c0_i32_1 : i32, i32, i32
  }
  func.func @transform_12(%arg0: i32) -> (i32, i32, i32) {
    %c0_i32 = arith.constant 0 : i32
    %c0_i32_0 = arith.constant 0 : i32
    %c0_i32_1 = arith.constant 0 : i32
    %c0_i32_2 = arith.constant 0 : i32
    return %c0_i32, %c0_i32_0, %c0_i32_1 : i32, i32, i32
  }
  func.func @transform_13(%arg0: i32) -> (i32, i32) {
    %c0_i32 = arith.constant 0 : i32
    %c0_i32_0 = arith.constant 0 : i32
    %c0_i32_1 = arith.constant 0 : i32
    return %c0_i32, %c0_i32_0 : i32, i32
  }
  func.func @transform_14(%arg0: i32) -> (i32, i32) {
    %c0_i32 = arith.constant 0 : i32
    %c0_i32_0 = arith.constant 0 : i32
    %c0_i32_1 = arith.constant 0 : i32
    return %c0_i32, %c0_i32_0 : i32, i32
  }
  func.func @transform_15(%arg0: i32) -> (i32, i32) {
    %c0_i32 = arith.constant 0 : i32
    %c0_i32_0 = arith.constant 0 : i32
    %c0_i32_1 = arith.constant 0 : i32
    return %c0_i32, %c0_i32_0 : i32, i32
  }
  func.func @transform_16(%arg0: i32) -> (i32, i32) {
    %c0_i32 = arith.constant 0 : i32
    %c0_i32_0 = arith.constant 0 : i32
    %c0_i32_1 = arith.constant 0 : i32
    return %c0_i32, %c0_i32_0 : i32, i32
  }
  func.func @transform_17(%arg0: i32) -> (i32, i32) {
    %c0_i32 = arith.constant 0 : i32
    %c0_i32_0 = arith.constant 0 : i32
    %c0_i32_1 = arith.constant 0 : i32
    return %c0_i32, %c0_i32_0 : i32, i32
  }
  func.func @transform_18(%arg0: i32) -> (i32, i32) {
    %c0_i32 = arith.constant 0 : i32
    %c0_i32_0 = arith.constant 0 : i32
    %c0_i32_1 = arith.constant 0 : i32
    return %c0_i32, %c0_i32_0 : i32, i32
  }
  func.func @transform_19(%arg0: i32) -> (i32, i32) {
    %c0_i32 = arith.constant 0 : i32
    %c0_i32_0 = arith.constant 0 : i32
    %c0_i32_1 = arith.constant 0 : i32
    return %c0_i32, %c0_i32_0 : i32, i32
  }
  func.func @transform_20(%arg0: i32) -> (i32, i32) {
    %c0_i32 = arith.constant 0 : i32
    %c0_i32_0 = arith.constant 0 : i32
    %c0_i32_1 = arith.constant 0 : i32
    return %c0_i32, %c0_i32_0 : i32, i32
  }
  func.func @transform_21(%arg0: i32) -> (i32, i32) {
    %c0_i32 = arith.constant 0 : i32
    %c0_i32_0 = arith.constant 0 : i32
    %c0_i32_1 = arith.constant 0 : i32
    return %c0_i32, %c0_i32_0 : i32, i32
  }
  func.func @transform_22(%arg0: i32) -> (i32, i32) {
    %c0_i32 = arith.constant 0 : i32
    %c0_i32_0 = arith.constant 0 : i32
    %c0_i32_1 = arith.constant 0 : i32
    return %c0_i32, %c0_i32_0 : i32, i32
  }
  func.func @transform_23(%arg0: i32) -> (i32, i32) {
    %c0_i32 = arith.constant 0 : i32
    %c0_i32_0 = arith.constant 0 : i32
    %c0_i32_1 = arith.constant 0 : i32
    return %c0_i32, %c0_i32_0 : i32, i32
  }
  func.func @transform_24(%arg0: i32) -> (i32, i32) {
    %c0_i32 = arith.constant 0 : i32
    %c0_i32_0 = arith.constant 0 : i32
    %c0_i32_1 = arith.constant 0 : i32
    return %c0_i32, %c0_i32_0 : i32, i32
  }
  func.func @transform_25(%arg0: i32) -> (i32, i32, i32) {
    %c0_i32 = arith.constant 0 : i32
    %c0_i32_0 = arith.constant 0 : i32
    %c0_i32_1 = arith.constant 0 : i32
    return %arg0, %c0_i32, %c0_i32_0 : i32, i32, i32
  }
  func.func @transform_26(%arg0: i32) -> (i32, i32, i32) {
    %c0_i32 = arith.constant 0 : i32
    %c0_i32_0 = arith.constant 0 : i32
    %c0_i32_1 = arith.constant 0 : i32
    return %arg0, %c0_i32, %c0_i32_0 : i32, i32, i32
  }
  func.func @transform_27(%arg0: i32) -> (i32, i32, i32) {
    %c0_i32 = arith.constant 0 : i32
    %c0_i32_0 = arith.constant 0 : i32
    %c0_i32_1 = arith.constant 0 : i32
    return %arg0, %c0_i32, %c0_i32_0 : i32, i32, i32
  }
  func.func @transform_28(%arg0: i32) -> (i32, i32, i32) {
    %c0_i32 = arith.constant 0 : i32
    %c0_i32_0 = arith.constant 0 : i32
    %c0_i32_1 = arith.constant 0 : i32
    return %arg0, %c0_i32, %c0_i32_0 : i32, i32, i32
  }
  func.func @transform_29(%arg0: i32) -> (i32, i32, i32) {
    %c0_i32 = arith.constant 0 : i32
    %c0_i32_0 = arith.constant 0 : i32
    %c0_i32_1 = arith.constant 0 : i32
    return %arg0, %c0_i32, %c0_i32_0 : i32, i32, i32
  }
}

</mosaic_0001>

<llo_original>
// kernel: transe_stymix_forward.1
$region0: #{transe_stymix_forward.1}
  #allocation0 [shape = 'u32[]', space=smem, size = 0x4, offset = 0x4, fixed_abs, tag = 'smem constant byte address 0x4 - core index']
  #allocation1 [shape = 'u32[144,128]{1,0:T(1,128)}', space=vmem, size = 0x12000, scoped, tag = 'internal scratch']
  #allocation2 [shape = 'f32[1,1]{1,0:T(1,128)S(1)}', space=vmem, size = 0x200, scoped, tag = 'scoped memory for transe_stymix_forward.1']
  #allocation3 [shape = 'f32[1,1]{1,0:T(1,128)S(1)}', space=vmem, size = 0x200, scoped, tag = 'scoped memory for transe_stymix_forward.1']
  %s0 = inlined_call_operand.smem [shape: u32[30], index: -1, kind: input, shape index: {}]
  %s1 = sld [smem:[%s0]]
  %s2 = scalar_lea.smem %s0, 1
  %s3 = sld [smem:[%s2]]
  %s4 = scalar_lea.smem %s0, 2
  %s5 = sld [smem:[%s4]]
  %s6 = scalar_lea.smem %s0, 3
  %s7 = sld [smem:[%s6]]
  %s8 = scalar_lea.smem %s0, 4
  %s9 = sld [smem:[%s8]]
  %s10 = scalar_lea.smem %s0, 5
  %s11 = sld [smem:[%s10]]
  %s12 = scalar_lea.smem %s0, 6
  %s13 = sld [smem:[%s12]]
  %s14 = scalar_lea.smem %s0, 7
  %s15 = sld [smem:[%s14]]
  %s16 = scalar_lea.smem %s0, 8
  %s17 = sld [smem:[%s16]]
  %s18 = scalar_lea.smem %s0, 9
  %s19 = sld [smem:[%s18]]
  %s20 = scalar_lea.smem %s0, 10
  %s21 = sld [smem:[%s20]]
  %s22 = scalar_lea.smem %s0, 11
  %s23 = sld [smem:[%s22]]
  %s24 = scalar_lea.smem %s0, 12
  %s25 = sld [smem:[%s24]]
  %s26 = scalar_lea.smem %s0, 13
  %s27 = sld [smem:[%s26]]
  %s28 = scalar_lea.smem %s0, 14
  %s29 = sld [smem:[%s28]]
  %s30 = scalar_lea.smem %s0, 15
  %s31 = sld [smem:[%s30]]
  %s32 = scalar_lea.smem %s0, 16
  %s33 = sld [smem:[%s32]]
  %s34 = scalar_lea.smem %s0, 17
  %s35 = sld [smem:[%s34]]
  %s36 = scalar_lea.smem %s0, 18
  %s37 = sld [smem:[%s36]]
  %s38 = scalar_lea.smem %s0, 19
  %s39 = sld [smem:[%s38]]
  %s40 = scalar_lea.smem %s0, 20
  %s41 = sld [smem:[%s40]]
  %s42 = scalar_lea.smem %s0, 21
  %s43 = sld [smem:[%s42]]
  %s44 = scalar_lea.smem %s0, 22
  %s45 = sld [smem:[%s44]]
  %s46 = scalar_lea.smem %s0, 23
  %s47 = sld [smem:[%s46]]
  %s48 = scalar_lea.smem %s0, 24
  %s49 = sld [smem:[%s48]]
  %s50 = scalar_lea.smem %s0, 25
  %s51 = sld [smem:[%s50]]
  %s52 = scalar_lea.smem %s0, 26
  %s53 = sld [smem:[%s52]]
  %s54 = scalar_lea.smem %s0, 27
  %s55 = sld [smem:[%s54]]
  %s56 = scalar_lea.smem %s0, 28
  %s57 = sld [smem:[%s56]]
  %s58 = scalar_lea.smem %s0, 29
  %s59 = sld [smem:[%s58]]
  %60 = xla_tuple %s51, %s53, %s55, %s57, %s59
  %s61 = sld [smem:[#allocation0]]
  $region197: #{transe_stymix_forward.1} parent=0
    _
  %s63 = ssub.s32 1, %s61
  %s64 = scalar_select 0, %s63, %s61
  %v65 = vstv %s33
  %66 = vst [vmem:[#allocation2] sm:$0x1] %v65
  %v67 = vstv %s37
  %68 = vst [vmem:[#allocation3] sm:$0x1] %v67
  $region1: #{transe_stymix_forward.1} parent=0
    #allocation4 [shape = 'u8[2048]{0}', space=vmem, size = 0x800, scoped, tag = 'input window, operand 2, single buffered']
    #allocation5 [shape = 's32[2]{0}', space=sflag, size = 0x8, scoped, tag = 'scoped memory for transe_stymix_forward.1']
    #allocation6 [shape = 's32[2]{0}', space=sflag, size = 0x8, scoped, tag = 'scoped memory for transe_stymix_forward.1']
    #allocation7 [shape = 'u8[2048]{0}', space=vmem, size = 0x800, scoped, tag = 'input window, operand 4, single buffered']
    #allocation8 [shape = 's32[1]{0}', space=sflag, size = 0x4, scoped, tag = 'scoped memory for transe_stymix_forward.1']
    #allocation9 [shape = 'u8[2048]{0}', space=vmem, size = 0x800, scoped, tag = 'input window, operand 8, single buffered']
    #allocation10 [shape = 'u8[2048]{0}', space=vmem, size = 0x800, scoped, tag = 'input window, operand 10, single buffered']
    #allocation11 [shape = 's32[1]{0}', space=sflag, size = 0x4, scoped, tag = 'scoped memory for transe_stymix_forward.1']
    #allocation12 [shape = 'u8[512]{0}', space=vmem, size = 0x400, scoped, tag = 'input window, operand 17, single buffered']
    #allocation13 [shape = 'u8[512]{0}', space=vmem, size = 0x400, scoped, tag = 'input window, operand 20, single buffered']
    #allocation14 [shape = 's32[1]{0}', space=sflag, size = 0x4, scoped, tag = 'scoped memory for transe_stymix_forward.1']
    #allocation15 [shape = 'u8[512]{0}', space=vmem, size = 0x400, scoped, tag = 'input window, operand 22, single buffered']
    #allocation16 [shape = 'u8[512]{0}', space=vmem, size = 0x400, scoped, tag = 'input window, operand 24, single buffered']
    #allocation17 [shape = 's32[1]{0}', space=sflag, size = 0x4, scoped, tag = 'scoped memory for transe_stymix_forward.1']
    #allocation18 [shape = 'u8[8192]{0}', space=vmem, size = 0x2000, scoped, tag = 'output window, operand 0']
    #allocation19 [shape = 'u8[8192]{0}', space=vmem, size = 0x2000, scoped, tag = 'output window, operand 1']
    #allocation20 [shape = 's32[2]{0}', space=sflag, size = 0x8, scoped, tag = 'scoped memory for transe_stymix_forward.1']
    #allocation21 [shape = 'u8[8192]{0}', space=vmem, size = 0x2000, scoped, tag = 'output window, operand 4']
    %69 = vsyncpa [#allocation5], 0
    %70 = vsyncpa [#allocation8], 0
    %71 = vsyncpa [#allocation11], 0
    %72 = vsyncpa [#allocation14], 0
    %73 = vsyncpa [#allocation17], 0
    %74 = vsyncpa [#allocation6], 0
    %s75 = scalar_lea.sflag [#allocation6], 1
    %76 = vsyncpa %s75, 0
    %77 = vsyncpa [#allocation20], 0
    %s78 = scalar_lea.sflag [#allocation20], 1
    %79 = vsyncpa %s78, 0
    loop: start=0, step=1, limit=4
    $region2: #{transe_stymix_forward.1} parent=1 // loop_pre_header
      _
    $region3: #{transe_stymix_forward.1} parent=1 // loop_header
      %s81 = sphi 0, %s85
      %p82 = scmp.ge.s32.totalorder %s81, 4
      %s91 = sphi 0, %s93
      %s94 = sphi 0, %s91
      %s95 = sphi 0, %s94
      %s111 = sphi 0, %s95
      %s115 = sphi 0, %s115
      %s117 = sphi 0, %s115
      %s118 = sphi 0, %s117
      %s132 = sphi 0, %s118
      %s136 = sphi 0, %s136
      %s138 = sphi 0, %s136
      %s139 = sphi 0, %s138
      %s153 = sphi 0, %s139
      %s157 = sphi 0, %s157
      %s159 = sphi 0, %s157
      %s160 = sphi 0, %s159
      %s174 = sphi 0, %s160
      %s178 = sphi 0, %s178
      %s180 = sphi 0, %s178
      %s181 = sphi 0, %s180
      %s195 = sphi 0, %s181
      %s199 = sphi 0, %s199
      %s201 = sphi 0, %s199
      %s202 = sphi 0, %s201
      %s216 = sphi 0, %s202
      %s220 = sphi 0, %s220
      %s222 = sphi 0, %s220
      %s223 = sphi 0, %s222
      %s237 = sphi 0, %s223
      %s241 = sphi 0, %s241
      %s243 = sphi 0, %s241
      %s244 = sphi 0, %s243
      %s258 = sphi 0, %s244
      %s262 = sphi 0, %s262
      %s264 = sphi 0, %s262
      %s265 = sphi 0, %s264
      %s279 = sphi 0, %s265
      %s283 = sphi 0, %s283
      %s285 = sphi 0, %s283
      %s286 = sphi 0, %s285
      %s300 = sphi 0, %s286
      %s304 = sphi 0, %s304
      %s306 = sphi 0, %s304
      %s307 = sphi 0, %s306
      %s321 = sphi 0, %s307
      %s325 = sphi 0, %s325
      %s327 = sphi 0, %s325
      %s328 = sphi 0, %s327
      %s342 = sphi 0, %s328
      %s346 = sphi 0, %s346
      %s348 = sphi 0, %s346
      %s349 = sphi 0, %s348
      %s363 = sphi 0, %s349
      %s367 = sphi 0, %s367
      %s369 = sphi 0, %s367
      %s370 = sphi 0, %s369
      %s384 = sphi 0, %s370
      %s388 = sphi 0, %s388
      %s390 = sphi 0, %s388
      %s391 = sphi 0, %s390
      %s405 = sphi 0, %s391
      %s409 = sphi 0, %s409
      %s411 = sphi 0, %s409
      %s412 = sphi 0, %s411
      %s426 = sphi 0, %s412
      %s430 = sphi 0, %s430
      %s432 = sphi 0, %s430
      %s433 = sphi 0, %s432
      %s447 = sphi 0, %s433
      %s451 = sphi 0, %s451
      %s453 = sphi 0, %s451
      %s454 = sphi 0, %s453
      %s468 = sphi 0, %s454
      %s472 = sphi 0, %s472
      %s474 = sphi 0, %s472
      %s475 = sphi 0, %s474
      %s489 = sphi 0, %s475
      %s493 = sphi 0, %s493
      %s495 = sphi 0, %s493
      %s496 = sphi 0, %s495
      %s510 = sphi 0, %s496
      %s514 = sphi 0, %s514
      %s516 = sphi 0, %s514
      %s517 = sphi 0, %s516
      %s531 = sphi 0, %s517
      %s535 = sphi 0, %s535
      %s537 = sphi 0, %s535
      %s538 = sphi 0, %s537
      %s552 = sphi 0, %s538
      %s556 = sphi 0, %s556
      %s558 = sphi 0, %s556
      %s559 = sphi 0, %s558
      %s573 = sphi 0, %s559
      %s577 = sphi 0, %s577
      %s579 = sphi 0, %s577
      %s580 = sphi 0, %s579
      %s594 = sphi 0, %s580
      %s598 = sphi 0, %s598
      %s600 = sphi 0, %s598
      %s601 = sphi 0, %s600
      %s615 = sphi 0, %s601
      %s621 = sphi 0, %s623
      %s624 = sphi 0, %s621
      %s625 = sphi 0, %s624
      %s641 = sphi 0, %s625
      %s647 = sphi 0, %s649
      %s650 = sphi 0, %s647
      %s651 = sphi 0, %s650
      %s667 = sphi 0, %s651
      %s673 = sphi 0, %s675
      %s676 = sphi 0, %s673
      %s677 = sphi 0, %s676
      %s693 = sphi 0, %s677
      %s699 = sphi 0, %s701
      %s702 = sphi 0, %s699
      %s703 = sphi 0, %s702
      %s719 = sphi 0, %s703
      %s725 = sphi 0, %s727
      %s728 = sphi 0, %s725
      %s729 = sphi 0, %s728
      %s745 = sphi 0, %s729
    $region4: #{transe_stymix_forward.1} parent=1 // loop_header_branch
      %84 = sbr.rel (%p82) target = $region8
    $region5: #{transe_stymix_forward.1} parent=1 // loop_body
      %s86 = ssub.s32 %s81, 1
      %s87 = ssub.s32 %s81, 2
      %s88 = sadd.s32 %s81, 1
      %s89 = ssub.s32 %s81, %s88
      %p90 = scmp.eq.s32.totalorder %s89, 0
      %s92 = sadd.s32 %s91, 1
      %s93 = scalar_select %p90, %s91, %s92
      %p96 = pneg %p90
      %p97 = scmp.eq.s32.totalorder %s81, 1
      %p98 = por %p96, %p97
      %p99 = scmp.ne.s32.totalorder %s91, %s94
      %p100 = scmp.eq.s32.totalorder %s81, 0
      %p101 = por %p99, %p100
      %p102 = scmp.ne.s32.totalorder %s91, %s94
      %p103 = scmp.eq.s32.totalorder %s86, 1
      %p104 = por %p102, %p103
      %p105 = scmp.ne.s32.totalorder %s94, %s95
      %p106 = scmp.eq.s32.totalorder %s86, 0
      %p107 = por %p105, %p106
      %p108 = scmp.ne.s32.totalorder %s94, %s95
      %p109 = scmp.eq.s32.totalorder %s87, 1
      %p110 = por %p108, %p109
      %p112 = scmp.ne.s32.totalorder %s95, %s111
      %p113 = scmp.eq.s32.totalorder %s87, 0
      %p114 = por %p112, %p113
      %s116 = sadd.s32 %s115, 1
      %p119 = scmp.eq.s32.totalorder %s81, 1
      %p120 = scmp.ne.s32.totalorder %s115, %s117
      %p121 = scmp.eq.s32.totalorder %s81, 0
      %p122 = por %p120, %p121
      %p123 = scmp.ne.s32.totalorder %s115, %s117
      %p124 = scmp.eq.s32.totalorder %s86, 1
      %p125 = por %p123, %p124
      %p126 = scmp.ne.s32.totalorder %s117, %s118
      %p127 = scmp.eq.s32.totalorder %s86, 0
      %p128 = por %p126, %p127
      %p129 = scmp.ne.s32.totalorder %s117, %s118
      %p130 = scmp.eq.s32.totalorder %s87, 1
      %p131 = por %p129, %p130
      %p133 = scmp.ne.s32.totalorder %s118, %s132
      %p134 = scmp.eq.s32.totalorder %s87, 0
      %p135 = por %p133, %p134
      %s137 = sadd.s32 %s136, 1
      %p140 = scmp.eq.s32.totalorder %s81, 1
      %p141 = scmp.ne.s32.totalorder %s136, %s138
      %p142 = scmp.eq.s32.totalorder %s81, 0
      %p143 = por %p141, %p142
      %p144 = scmp.ne.s32.totalorder %s136, %s138
      %p145 = scmp.eq.s32.totalorder %s86, 1
      %p146 = por %p144, %p145
      %p147 = scmp.ne.s32.totalorder %s138, %s139
      %p148 = scmp.eq.s32.totalorder %s86, 0
      %p149 = por %p147, %p148
      %p150 = scmp.ne.s32.totalorder %s138, %s139
      %p151 = scmp.eq.s32.totalorder %s87, 1
      %p152 = por %p150, %p151
      %p154 = scmp.ne.s32.totalorder %s139, %s153
      %p155 = scmp.eq.s32.totalorder %s87, 0
      %p156 = por %p154, %p155
      %s158 = sadd.s32 %s157, 1
      %p161 = scmp.eq.s32.totalorder %s81, 1
      %p162 = scmp.ne.s32.totalorder %s157, %s159
      %p163 = scmp.eq.s32.totalorder %s81, 0
      %p164 = por %p162, %p163
      %p165 = scmp.ne.s32.totalorder %s157, %s159
      %p166 = scmp.eq.s32.totalorder %s86, 1
      %p167 = por %p165, %p166
      %p168 = scmp.ne.s32.totalorder %s159, %s160
      %p169 = scmp.eq.s32.totalorder %s86, 0
      %p170 = por %p168, %p169
      %p171 = scmp.ne.s32.totalorder %s159, %s160
      %p172 = scmp.eq.s32.totalorder %s87, 1
      %p173 = por %p171, %p172
      %p175 = scmp.ne.s32.totalorder %s160, %s174
      %p176 = scmp.eq.s32.totalorder %s87, 0
      %p177 = por %p175, %p176
      %s179 = sadd.s32 %s178, 1
      %p182 = scmp.eq.s32.totalorder %s81, 1
      %p183 = scmp.ne.s32.totalorder %s178, %s180
      %p184 = scmp.eq.s32.totalorder %s81, 0
      %p185 = por %p183, %p184
      %p186 = scmp.ne.s32.totalorder %s178, %s180
      %p187 = scmp.eq.s32.totalorder %s86, 1
      %p188 = por %p186, %p187
      %p189 = scmp.ne.s32.totalorder %s180, %s181
      %p190 = scmp.eq.s32.totalorder %s86, 0
      %p191 = por %p189, %p190
      %p192 = scmp.ne.s32.totalorder %s180, %s181
      %p193 = scmp.eq.s32.totalorder %s87, 1
      %p194 = por %p192, %p193
      %p196 = scmp.ne.s32.totalorder %s181, %s195
      %p197 = scmp.eq.s32.totalorder %s87, 0
      %p198 = por %p196, %p197
      %s200 = sadd.s32 %s199, 1
      %p203 = scmp.eq.s32.totalorder %s81, 1
      %p204 = scmp.ne.s32.totalorder %s199, %s201
      %p205 = scmp.eq.s32.totalorder %s81, 0
      %p206 = por %p204, %p205
      %p207 = scmp.ne.s32.totalorder %s199, %s201
      %p208 = scmp.eq.s32.totalorder %s86, 1
      %p209 = por %p207, %p208
      %p210 = scmp.ne.s32.totalorder %s201, %s202
      %p211 = scmp.eq.s32.totalorder %s86, 0
      %p212 = por %p210, %p211
      %p213 = scmp.ne.s32.totalorder %s201, %s202
      %p214 = scmp.eq.s32.totalorder %s87, 1
      %p215 = por %p213, %p214
      %p217 = scmp.ne.s32.totalorder %s202, %s216
      %p218 = scmp.eq.s32.totalorder %s87, 0
      %p219 = por %p217, %p218
      %s221 = sadd.s32 %s220, 1
      %p224 = scmp.eq.s32.totalorder %s81, 1
      %p225 = scmp.ne.s32.totalorder %s220, %s222
      %p226 = scmp.eq.s32.totalorder %s81, 0
      %p227 = por %p225, %p226
      %p228 = scmp.ne.s32.totalorder %s220, %s222
      %p229 = scmp.eq.s32.totalorder %s86, 1
      %p230 = por %p228, %p229
      %p231 = scmp.ne.s32.totalorder %s222, %s223
      %p232 = scmp.eq.s32.totalorder %s86, 0
      %p233 = por %p231, %p232
      %p234 = scmp.ne.s32.totalorder %s222, %s223
      %p235 = scmp.eq.s32.totalorder %s87, 1
      %p236 = por %p234, %p235
      %p238 = scmp.ne.s32.totalorder %s223, %s237
      %p239 = scmp.eq.s32.totalorder %s87, 0
      %p240 = por %p238, %p239
      %s242 = sadd.s32 %s241, 1
      %p245 = scmp.eq.s32.totalorder %s81, 1
      %p246 = scmp.ne.s32.totalorder %s241, %s243
      %p247 = scmp.eq.s32.totalorder %s81, 0
      %p248 = por %p246, %p247
      %p249 = scmp.ne.s32.totalorder %s241, %s243
      %p250 = scmp.eq.s32.totalorder %s86, 1
      %p251 = por %p249, %p250
      %p252 = scmp.ne.s32.totalorder %s243, %s244
      %p253 = scmp.eq.s32.totalorder %s86, 0
      %p254 = por %p252, %p253
      %p255 = scmp.ne.s32.totalorder %s243, %s244
      %p256 = scmp.eq.s32.totalorder %s87, 1
      %p257 = por %p255, %p256
      %p259 = scmp.ne.s32.totalorder %s244, %s258
      %p260 = scmp.eq.s32.totalorder %s87, 0
      %p261 = por %p259, %p260
      %s263 = sadd.s32 %s262, 1
      %p266 = scmp.eq.s32.totalorder %s81, 1
      %p267 = scmp.ne.s32.totalorder %s262, %s264
      %p268 = scmp.eq.s32.totalorder %s81, 0
      %p269 = por %p267, %p268
      %p270 = scmp.ne.s32.totalorder %s262, %s264
      %p271 = scmp.eq.s32.totalorder %s86, 1
      %p272 = por %p270, %p271
      %p273 = scmp.ne.s32.totalorder %s264, %s265
      %p274 = scmp.eq.s32.totalorder %s86, 0
      %p275 = por %p273, %p274
      %p276 = scmp.ne.s32.totalorder %s264, %s265
      %p277 = scmp.eq.s32.totalorder %s87, 1
      %p278 = por %p276, %p277
      %p280 = scmp.ne.s32.totalorder %s265, %s279
      %p281 = scmp.eq.s32.totalorder %s87, 0
      %p282 = por %p280, %p281
      %s284 = sadd.s32 %s283, 1
      %p287 = scmp.eq.s32.totalorder %s81, 1
      %p288 = scmp.ne.s32.totalorder %s283, %s285
      %p289 = scmp.eq.s32.totalorder %s81, 0
      %p290 = por %p288, %p289
      %p291 = scmp.ne.s32.totalorder %s283, %s285
      %p292 = scmp.eq.s32.totalorder %s86, 1
      %p293 = por %p291, %p292
      %p294 = scmp.ne.s32.totalorder %s285, %s286
      %p295 = scmp.eq.s32.totalorder %s86, 0
      %p296 = por %p294, %p295
      %p297 = scmp.ne.s32.totalorder %s285, %s286
      %p298 = scmp.eq.s32.totalorder %s87, 1
      %p299 = por %p297, %p298
      %p301 = scmp.ne.s32.totalorder %s286, %s300
      %p302 = scmp.eq.s32.totalorder %s87, 0
      %p303 = por %p301, %p302
      %s305 = sadd.s32 %s304, 1
      %p308 = scmp.eq.s32.totalorder %s81, 1
      %p309 = scmp.ne.s32.totalorder %s304, %s306
      %p310 = scmp.eq.s32.totalorder %s81, 0
      %p311 = por %p309, %p310
      %p312 = scmp.ne.s32.totalorder %s304, %s306
      %p313 = scmp.eq.s32.totalorder %s86, 1
      %p314 = por %p312, %p313
      %p315 = scmp.ne.s32.totalorder %s306, %s307
      %p316 = scmp.eq.s32.totalorder %s86, 0
      %p317 = por %p315, %p316
      %p318 = scmp.ne.s32.totalorder %s306, %s307
      %p319 = scmp.eq.s32.totalorder %s87, 1
      %p320 = por %p318, %p319
      %p322 = scmp.ne.s32.totalorder %s307, %s321
      %p323 = scmp.eq.s32.totalorder %s87, 0
      %p324 = por %p322, %p323
      %s326 = sadd.s32 %s325, 1
      %p329 = scmp.eq.s32.totalorder %s81, 1
      %p330 = scmp.ne.s32.totalorder %s325, %s327
      %p331 = scmp.eq.s32.totalorder %s81, 0
      %p332 = por %p330, %p331
      %p333 = scmp.ne.s32.totalorder %s325, %s327
      %p334 = scmp.eq.s32.totalorder %s86, 1
      %p335 = por %p333, %p334
      %p336 = scmp.ne.s32.totalorder %s327, %s328
      %p337 = scmp.eq.s32.totalorder %s86, 0
      %p338 = por %p336, %p337
      %p339 = scmp.ne.s32.totalorder %s327, %s328
      %p340 = scmp.eq.s32.totalorder %s87, 1
      %p341 = por %p339, %p340
      %p343 = scmp.ne.s32.totalorder %s328, %s342
      %p344 = scmp.eq.s32.totalorder %s87, 0
      %p345 = por %p343, %p344
      %s347 = sadd.s32 %s346, 1
      %p350 = scmp.eq.s32.totalorder %s81, 1
      %p351 = scmp.ne.s32.totalorder %s346, %s348
      %p352 = scmp.eq.s32.totalorder %s81, 0
      %p353 = por %p351, %p352
      %p354 = scmp.ne.s32.totalorder %s346, %s348
      %p355 = scmp.eq.s32.totalorder %s86, 1
      %p356 = por %p354, %p355
      %p357 = scmp.ne.s32.totalorder %s348, %s349
      %p358 = scmp.eq.s32.totalorder %s86, 0
      %p359 = por %p357, %p358
      %p360 = scmp.ne.s32.totalorder %s348, %s349
      %p361 = scmp.eq.s32.totalorder %s87, 1
      %p362 = por %p360, %p361
      %p364 = scmp.ne.s32.totalorder %s349, %s363
      %p365 = scmp.eq.s32.totalorder %s87, 0
      %p366 = por %p364, %p365
      %s368 = sadd.s32 %s367, 1
      %p371 = scmp.eq.s32.totalorder %s81, 1
      %p372 = scmp.ne.s32.totalorder %s367, %s369
      %p373 = scmp.eq.s32.totalorder %s81, 0
      %p374 = por %p372, %p373
      %p375 = scmp.ne.s32.totalorder %s367, %s369
      %p376 = scmp.eq.s32.totalorder %s86, 1
      %p377 = por %p375, %p376
      %p378 = scmp.ne.s32.totalorder %s369, %s370
      %p379 = scmp.eq.s32.totalorder %s86, 0
      %p380 = por %p378, %p379
      %p381 = scmp.ne.s32.totalorder %s369, %s370
      %p382 = scmp.eq.s32.totalorder %s87, 1
      %p383 = por %p381, %p382
      %p385 = scmp.ne.s32.totalorder %s370, %s384
      %p386 = scmp.eq.s32.totalorder %s87, 0
      %p387 = por %p385, %p386
      %s389 = sadd.s32 %s388, 1
      %p392 = scmp.eq.s32.totalorder %s81, 1
      %p393 = scmp.ne.s32.totalorder %s388, %s390
      %p394 = scmp.eq.s32.totalorder %s81, 0
      %p395 = por %p393, %p394
      %p396 = scmp.ne.s32.totalorder %s388, %s390
      %p397 = scmp.eq.s32.totalorder %s86, 1
      %p398 = por %p396, %p397
      %p399 = scmp.ne.s32.totalorder %s390, %s391
      %p400 = scmp.eq.s32.totalorder %s86, 0
      %p401 = por %p399, %p400
      %p402 = scmp.ne.s32.totalorder %s390, %s391
      %p403 = scmp.eq.s32.totalorder %s87, 1
      %p404 = por %p402, %p403
      %p406 = scmp.ne.s32.totalorder %s391, %s405
      %p407 = scmp.eq.s32.totalorder %s87, 0
      %p408 = por %p406, %p407
      %s410 = sadd.s32 %s409, 1
      %p413 = scmp.eq.s32.totalorder %s81, 1
      %p414 = scmp.ne.s32.totalorder %s409, %s411
      %p415 = scmp.eq.s32.totalorder %s81, 0
      %p416 = por %p414, %p415
      %p417 = scmp.ne.s32.totalorder %s409, %s411
      %p418 = scmp.eq.s32.totalorder %s86, 1
      %p419 = por %p417, %p418
      %p420 = scmp.ne.s32.totalorder %s411, %s412
      %p421 = scmp.eq.s32.totalorder %s86, 0
      %p422 = por %p420, %p421
      %p423 = scmp.ne.s32.totalorder %s411, %s412
      %p424 = scmp.eq.s32.totalorder %s87, 1
      %p425 = por %p423, %p424
      %p427 = scmp.ne.s32.totalorder %s412, %s426
      %p428 = scmp.eq.s32.totalorder %s87, 0
      %p429 = por %p427, %p428
      %s431 = sadd.s32 %s430, 1
      %p434 = scmp.eq.s32.totalorder %s81, 1
      %p435 = scmp.ne.s32.totalorder %s430, %s432
      %p436 = scmp.eq.s32.totalorder %s81, 0
      %p437 = por %p435, %p436
      %p438 = scmp.ne.s32.totalorder %s430, %s432
      %p439 = scmp.eq.s32.totalorder %s86, 1
      %p440 = por %p438, %p439
      %p441 = scmp.ne.s32.totalorder %s432, %s433
      %p442 = scmp.eq.s32.totalorder %s86, 0
      %p443 = por %p441, %p442
      %p444 = scmp.ne.s32.totalorder %s432, %s433
      %p445 = scmp.eq.s32.totalorder %s87, 1
      %p446 = por %p444, %p445
      %p448 = scmp.ne.s32.totalorder %s433, %s447
      %p449 = scmp.eq.s32.totalorder %s87, 0
      %p450 = por %p448, %p449
      %s452 = sadd.s32 %s451, 1
      %p455 = scmp.eq.s32.totalorder %s81, 1
      %p456 = scmp.ne.s32.totalorder %s451, %s453
      %p457 = scmp.eq.s32.totalorder %s81, 0
      %p458 = por %p456, %p457
      %p459 = scmp.ne.s32.totalorder %s451, %s453
      %p460 = scmp.eq.s32.totalorder %s86, 1
      %p461 = por %p459, %p460
      %p462 = scmp.ne.s32.totalorder %s453, %s454
      %p463 = scmp.eq.s32.totalorder %s86, 0
      %p464 = por %p462, %p463
      %p465 = scmp.ne.s32.totalorder %s453, %s454
      %p466 = scmp.eq.s32.totalorder %s87, 1
      %p467 = por %p465, %p466
      %p469 = scmp.ne.s32.totalorder %s454, %s468
      %p470 = scmp.eq.s32.totalorder %s87, 0
      %p471 = por %p469, %p470
      %s473 = sadd.s32 %s472, 1
      %p476 = scmp.eq.s32.totalorder %s81, 1
      %p477 = scmp.ne.s32.totalorder %s472, %s474
      %p478 = scmp.eq.s32.totalorder %s81, 0
      %p479 = por %p477, %p478
      %p480 = scmp.ne.s32.totalorder %s472, %s474
      %p481 = scmp.eq.s32.totalorder %s86, 1
      %p482 = por %p480, %p481
      %p483 = scmp.ne.s32.totalorder %s474, %s475
      %p484 = scmp.eq.s32.totalorder %s86, 0
      %p485 = por %p483, %p484
      %p486 = scmp.ne.s32.totalorder %s474, %s475
      %p487 = scmp.eq.s32.totalorder %s87, 1
      %p488 = por %p486, %p487
      %p490 = scmp.ne.s32.totalorder %s475, %s489
      %p491 = scmp.eq.s32.totalorder %s87, 0
      %p492 = por %p490, %p491
      %s494 = sadd.s32 %s493, 1
      %p497 = scmp.eq.s32.totalorder %s81, 1
      %p498 = scmp.ne.s32.totalorder %s493, %s495
      %p499 = scmp.eq.s32.totalorder %s81, 0
      %p500 = por %p498, %p499
      %p501 = scmp.ne.s32.totalorder %s493, %s495
      %p502 = scmp.eq.s32.totalorder %s86, 1
      %p503 = por %p501, %p502
      %p504 = scmp.ne.s32.totalorder %s495, %s496
      %p505 = scmp.eq.s32.totalorder %s86, 0
      %p506 = por %p504, %p505
      %p507 = scmp.ne.s32.totalorder %s495, %s496
      %p508 = scmp.eq.s32.totalorder %s87, 1
      %p509 = por %p507, %p508
      %p511 = scmp.ne.s32.totalorder %s496, %s510
      %p512 = scmp.eq.s32.totalorder %s87, 0
      %p513 = por %p511, %p512
      %s515 = sadd.s32 %s514, 1
      %p518 = scmp.eq.s32.totalorder %s81, 1
      %p519 = scmp.ne.s32.totalorder %s514, %s516
      %p520 = scmp.eq.s32.totalorder %s81, 0
      %p521 = por %p519, %p520
      %p522 = scmp.ne.s32.totalorder %s514, %s516
      %p523 = scmp.eq.s32.totalorder %s86, 1
      %p524 = por %p522, %p523
      %p525 = scmp.ne.s32.totalorder %s516, %s517
      %p526 = scmp.eq.s32.totalorder %s86, 0
      %p527 = por %p525, %p526
      %p528 = scmp.ne.s32.totalorder %s516, %s517
      %p529 = scmp.eq.s32.totalorder %s87, 1
      %p530 = por %p528, %p529
      %p532 = scmp.ne.s32.totalorder %s517, %s531
      %p533 = scmp.eq.s32.totalorder %s87, 0
      %p534 = por %p532, %p533
      %s536 = sadd.s32 %s535, 1
      %p539 = scmp.eq.s32.totalorder %s81, 1
      %p540 = scmp.ne.s32.totalorder %s535, %s537
      %p541 = scmp.eq.s32.totalorder %s81, 0
      %p542 = por %p540, %p541
      %p543 = scmp.ne.s32.totalorder %s535, %s537
      %p544 = scmp.eq.s32.totalorder %s86, 1
      %p545 = por %p543, %p544
      %p546 = scmp.ne.s32.totalorder %s537, %s538
      %p547 = scmp.eq.s32.totalorder %s86, 0
      %p548 = por %p546, %p547
      %p549 = scmp.ne.s32.totalorder %s537, %s538
      %p550 = scmp.eq.s32.totalorder %s87, 1
      %p551 = por %p549, %p550
      %p553 = scmp.ne.s32.totalorder %s538, %s552
      %p554 = scmp.eq.s32.totalorder %s87, 0
      %p555 = por %p553, %p554
      %s557 = sadd.s32 %s556, 1
      %p560 = scmp.eq.s32.totalorder %s81, 1
      %p561 = scmp.ne.s32.totalorder %s556, %s558
      %p562 = scmp.eq.s32.totalorder %s81, 0
      %p563 = por %p561, %p562
      %p564 = scmp.ne.s32.totalorder %s556, %s558
      %p565 = scmp.eq.s32.totalorder %s86, 1
      %p566 = por %p564, %p565
      %p567 = scmp.ne.s32.totalorder %s558, %s559
      %p568 = scmp.eq.s32.totalorder %s86, 0
      %p569 = por %p567, %p568
      %p570 = scmp.ne.s32.totalorder %s558, %s559
      %p571 = scmp.eq.s32.totalorder %s87, 1
      %p572 = por %p570, %p571
      %p574 = scmp.ne.s32.totalorder %s559, %s573
      %p575 = scmp.eq.s32.totalorder %s87, 0
      %p576 = por %p574, %p575
      %s578 = sadd.s32 %s577, 1
      %p581 = scmp.eq.s32.totalorder %s81, 1
      %p582 = scmp.ne.s32.totalorder %s577, %s579
      %p583 = scmp.eq.s32.totalorder %s81, 0
      %p584 = por %p582, %p583
      %p585 = scmp.ne.s32.totalorder %s577, %s579
      %p586 = scmp.eq.s32.totalorder %s86, 1
      %p587 = por %p585, %p586
      %p588 = scmp.ne.s32.totalorder %s579, %s580
      %p589 = scmp.eq.s32.totalorder %s86, 0
      %p590 = por %p588, %p589
      %p591 = scmp.ne.s32.totalorder %s579, %s580
      %p592 = scmp.eq.s32.totalorder %s87, 1
      %p593 = por %p591, %p592
      %p595 = scmp.ne.s32.totalorder %s580, %s594
      %p596 = scmp.eq.s32.totalorder %s87, 0
      %p597 = por %p595, %p596
      %s599 = sadd.s32 %s598, 1
      %p602 = scmp.eq.s32.totalorder %s81, 1
      %p603 = scmp.ne.s32.totalorder %s598, %s600
      %p604 = scmp.eq.s32.totalorder %s81, 0
      %p605 = por %p603, %p604
      %p606 = scmp.ne.s32.totalorder %s598, %s600
      %p607 = scmp.eq.s32.totalorder %s86, 1
      %p608 = por %p606, %p607
      %p609 = scmp.ne.s32.totalorder %s600, %s601
      %p610 = scmp.eq.s32.totalorder %s86, 0
      %p611 = por %p609, %p610
      %p612 = scmp.ne.s32.totalorder %s600, %s601
      %p613 = scmp.eq.s32.totalorder %s87, 1
      %p614 = por %p612, %p613
      %p616 = scmp.ne.s32.totalorder %s601, %s615
      %p617 = scmp.eq.s32.totalorder %s87, 0
      %p618 = por %p616, %p617
      %s619 = ssub.s32 %s81, %s88
      %p620 = scmp.eq.s32.totalorder %s619, 0
      %s622 = sadd.s32 %s621, 1
      %s623 = scalar_select %p620, %s621, %s622
      %p626 = pneg %p620
      %p627 = scmp.eq.s32.totalorder %s81, 1
      %p628 = por %p626, %p627
      %p629 = scmp.ne.s32.totalorder %s621, %s624
      %p630 = scmp.eq.s32.totalorder %s81, 0
      %p631 = por %p629, %p630
      %p632 = scmp.ne.s32.totalorder %s621, %s624
      %p633 = scmp.eq.s32.totalorder %s86, 1
      %p634 = por %p632, %p633
      %p635 = scmp.ne.s32.totalorder %s624, %s625
      %p636 = scmp.eq.s32.totalorder %s86, 0
      %p637 = por %p635, %p636
      %p638 = scmp.ne.s32.totalorder %s624, %s625
      %p639 = scmp.eq.s32.totalorder %s87, 1
      %p640 = por %p638, %p639
      %p642 = scmp.ne.s32.totalorder %s625, %s641
      %p643 = scmp.eq.s32.totalorder %s87, 0
      %p644 = por %p642, %p643
      %s645 = ssub.s32 %s81, %s88
      %p646 = scmp.eq.s32.totalorder %s645, 0
      %s648 = sadd.s32 %s647, 1
      %s649 = scalar_select %p646, %s647, %s648
      %p652 = pneg %p646
      %p653 = scmp.eq.s32.totalorder %s81, 1
      %p654 = por %p652, %p653
      %p655 = scmp.ne.s32.totalorder %s647, %s650
      %p656 = scmp.eq.s32.totalorder %s81, 0
      %p657 = por %p655, %p656
      %p658 = scmp.ne.s32.totalorder %s647, %s650
      %p659 = scmp.eq.s32.totalorder %s86, 1
      %p660 = por %p658, %p659
      %p661 = scmp.ne.s32.totalorder %s650, %s651
      %p662 = scmp.eq.s32.totalorder %s86, 0
      %p663 = por %p661, %p662
      %p664 = scmp.ne.s32.totalorder %s650, %s651
      %p665 = scmp.eq.s32.totalorder %s87, 1
      %p666 = por %p664, %p665
      %p668 = scmp.ne.s32.totalorder %s651, %s667
      %p669 = scmp.eq.s32.totalorder %s87, 0
      %p670 = por %p668, %p669
      %s671 = ssub.s32 %s81, %s88
      %p672 = scmp.eq.s32.totalorder %s671, 0
      %s674 = sadd.s32 %s673, 1
      %s675 = scalar_select %p672, %s673, %s674
      %p678 = pneg %p672
      %p679 = scmp.eq.s32.totalorder %s81, 1
      %p680 = por %p678, %p679
      %p681 = scmp.ne.s32.totalorder %s673, %s676
      %p682 = scmp.eq.s32.totalorder %s81, 0
      %p683 = por %p681, %p682
      %p684 = scmp.ne.s32.totalorder %s673, %s676
      %p685 = scmp.eq.s32.totalorder %s86, 1
      %p686 = por %p684, %p685
      %p687 = scmp.ne.s32.totalorder %s676, %s677
      %p688 = scmp.eq.s32.totalorder %s86, 0
      %p689 = por %p687, %p688
      %p690 = scmp.ne.s32.totalorder %s676, %s677
      %p691 = scmp.eq.s32.totalorder %s87, 1
      %p692 = por %p690, %p691
      %p694 = scmp.ne.s32.totalorder %s677, %s693
      %p695 = scmp.eq.s32.totalorder %s87, 0
      %p696 = por %p694, %p695
      %s697 = ssub.s32 %s81, %s88
      %p698 = scmp.eq.s32.totalorder %s697, 0
      %s700 = sadd.s32 %s699, 1
      %s701 = scalar_select %p698, %s699, %s700
      %p704 = pneg %p698
      %p705 = scmp.eq.s32.totalorder %s81, 1
      %p706 = por %p704, %p705
      %p707 = scmp.ne.s32.totalorder %s699, %s702
      %p708 = scmp.eq.s32.totalorder %s81, 0
      %p709 = por %p707, %p708
      %p710 = scmp.ne.s32.totalorder %s699, %s702
      %p711 = scmp.eq.s32.totalorder %s86, 1
      %p712 = por %p710, %p711
      %p713 = scmp.ne.s32.totalorder %s702, %s703
      %p714 = scmp.eq.s32.totalorder %s86, 0
      %p715 = por %p713, %p714
      %p716 = scmp.ne.s32.totalorder %s702, %s703
      %p717 = scmp.eq.s32.totalorder %s87, 1
      %p718 = por %p716, %p717
      %p720 = scmp.ne.s32.totalorder %s703, %s719
      %p721 = scmp.eq.s32.totalorder %s87, 0
      %p722 = por %p720, %p721
      %s723 = ssub.s32 %s81, %s88
      %p724 = scmp.eq.s32.totalorder %s723, 0
      %s726 = sadd.s32 %s725, 1
      %s727 = scalar_select %p724, %s725, %s726
      %p730 = pneg %p724
      %p731 = scmp.eq.s32.totalorder %s81, 1
      %p732 = por %p730, %p731
      %p733 = scmp.ne.s32.totalorder %s725, %s728
      %p734 = scmp.eq.s32.totalorder %s81, 0
      %p735 = por %p733, %p734
      %p736 = scmp.ne.s32.totalorder %s725, %s728
      %p737 = scmp.eq.s32.totalorder %s86, 1
      %p738 = por %p736, %p737
      %p739 = scmp.ne.s32.totalorder %s728, %s729
      %p740 = scmp.eq.s32.totalorder %s86, 0
      %p741 = por %p739, %p740
      %p742 = scmp.ne.s32.totalorder %s728, %s729
      %p743 = scmp.eq.s32.totalorder %s87, 1
      %p744 = por %p742, %p743
      %p746 = scmp.ne.s32.totalorder %s729, %s745
      %p747 = scmp.eq.s32.totalorder %s87, 0
      %p748 = por %p746, %p747
      %p749 = scmp.le.s32.totalorder 1, %s81
      %p750 = scmp.lt.s32.totalorder %s81, 3
      %p751 = pnand %p749, %p750
      %p752 = pneg %p751
      // Predicated region
      $region9: #{transe_stymix_forward.1} parent=5 // pred_check
        _
      $region10: #{transe_stymix_forward.1} parent=5 // pred_check_branch
        %754 = sbr.rel (%p751) target = $region12
      $region11: #{transe_stymix_forward.1} parent=5 // pred_region
        %s755 = ssub.s32 %s81, 1
        // Predicated region
        $region13: #{transe_stymix_forward.1} parent=11 // pred_check
          %p756 = pneg %p128
        $region14: #{transe_stymix_forward.1} parent=11 // pred_check_branch
          %758 = sbr.rel (%p756) target = $region16
        $region15: #{transe_stymix_forward.1} parent=11 // pred_region
          _
        $region16: #{transe_stymix_forward.1} parent=11 // pred_fallthru
          _
        // Predicated region
        $region17: #{transe_stymix_forward.1} parent=11 // pred_check
          %p759 = pneg %p149
        $region18: #{transe_stymix_forward.1} parent=11 // pred_check_branch
          %761 = sbr.rel (%p759) target = $region20
        $region19: #{transe_stymix_forward.1} parent=11 // pred_region
          %s763 = ssub.s32 64, 64
          %764 = vsyncadd [#allocation5], %s763
          %s765 = sshll.u32 [#allocation4], 4
          %s766 = int_to_ptr.vmem [resolvable:$true] %s765
          %771 = dma.hbm_to_vmem [thread:$0]  %s5, 64, %s766, [#allocation5], 16, 16, 1
        $region20: #{transe_stymix_forward.1} parent=11 // pred_fallthru
          _
        // Predicated region
        $region21: #{transe_stymix_forward.1} parent=11 // pred_check
          %p772 = pneg %p170
        $region22: #{transe_stymix_forward.1} parent=11 // pred_check_branch
          %774 = sbr.rel (%p772) target = $region24
        $region23: #{transe_stymix_forward.1} parent=11 // pred_region
          _
        $region24: #{transe_stymix_forward.1} parent=11 // pred_fallthru
          _
        // Predicated region
        $region25: #{transe_stymix_forward.1} parent=11 // pred_check
          %p775 = pneg %p191
        $region26: #{transe_stymix_forward.1} parent=11 // pred_check_branch
          %777 = sbr.rel (%p775) target = $region28
        $region27: #{transe_stymix_forward.1} parent=11 // pred_region
          %s779 = ssub.s32 64, 64
          %780 = vsyncadd [#allocation8], %s779
          %s781 = sshll.u32 [#allocation7], 4
          %s782 = int_to_ptr.vmem [resolvable:$true] %s781
          %787 = dma.hbm_to_vmem [thread:$0]  %s9, 64, %s782, [#allocation8], 16, 16, 1
        $region28: #{transe_stymix_forward.1} parent=11 // pred_fallthru
          _
        // Predicated region
        $region29: #{transe_stymix_forward.1} parent=11 // pred_check
          %p788 = pneg %p212
        $region30: #{transe_stymix_forward.1} parent=11 // pred_check_branch
          %790 = sbr.rel (%p788) target = $region32
        $region31: #{transe_stymix_forward.1} parent=11 // pred_region
          _
        $region32: #{transe_stymix_forward.1} parent=11 // pred_fallthru
          _
        // Predicated region
        $region33: #{transe_stymix_forward.1} parent=11 // pred_check
          %p791 = pneg %p233
        $region34: #{transe_stymix_forward.1} parent=11 // pred_check_branch
          %793 = sbr.rel (%p791) target = $region36
        $region35: #{transe_stymix_forward.1} parent=11 // pred_region
          _
        $region36: #{transe_stymix_forward.1} parent=11 // pred_fallthru
          _
        // Predicated region
        $region37: #{transe_stymix_forward.1} parent=11 // pred_check
          %p794 = pneg %p254
        $region38: #{transe_stymix_forward.1} parent=11 // pred_check_branch
          %796 = sbr.rel (%p794) target = $region40
        $region39: #{transe_stymix_forward.1} parent=11 // pred_region
          _
        $region40: #{transe_stymix_forward.1} parent=11 // pred_fallthru
          _
        // Predicated region
        $region41: #{transe_stymix_forward.1} parent=11 // pred_check
          %p797 = pneg %p275
        $region42: #{transe_stymix_forward.1} parent=11 // pred_check_branch
          %799 = sbr.rel (%p797) target = $region44
        $region43: #{transe_stymix_forward.1} parent=11 // pred_region
          %s801 = ssub.s32 64, 64
          %802 = vsyncadd [#allocation8], %s801
          %s803 = sshll.u32 [#allocation9], 4
          %s804 = int_to_ptr.vmem [resolvable:$true] %s803
          %809 = dma.hbm_to_vmem [thread:$0]  %s17, 64, %s804, [#allocation8], 16, 16, 1
        $region44: #{transe_stymix_forward.1} parent=11 // pred_fallthru
          _
        // Predicated region
        $region45: #{transe_stymix_forward.1} parent=11 // pred_check
          %p810 = pneg %p296
        $region46: #{transe_stymix_forward.1} parent=11 // pred_check_branch
          %812 = sbr.rel (%p810) target = $region48
        $region47: #{transe_stymix_forward.1} parent=11 // pred_region
          _
        $region48: #{transe_stymix_forward.1} parent=11 // pred_fallthru
          _
        // Predicated region
        $region49: #{transe_stymix_forward.1} parent=11 // pred_check
          %p813 = pneg %p317
        $region50: #{transe_stymix_forward.1} parent=11 // pred_check_branch
          %815 = sbr.rel (%p813) target = $region52
        $region51: #{transe_stymix_forward.1} parent=11 // pred_region
          %s817 = ssub.s32 64, 64
          %818 = vsyncadd [#allocation11], %s817
          %s819 = sshll.u32 [#allocation10], 4
          %s820 = int_to_ptr.vmem [resolvable:$true] %s819
          %825 = dma.hbm_to_vmem [thread:$0]  %s21, 64, %s820, [#allocation11], 16, 16, 1
        $region52: #{transe_stymix_forward.1} parent=11 // pred_fallthru
          _
        // Predicated region
        $region53: #{transe_stymix_forward.1} parent=11 // pred_check
          %p826 = pneg %p338
        $region54: #{transe_stymix_forward.1} parent=11 // pred_check_branch
          %828 = sbr.rel (%p826) target = $region56
        $region55: #{transe_stymix_forward.1} parent=11 // pred_region
          _
        $region56: #{transe_stymix_forward.1} parent=11 // pred_fallthru
          _
        // Predicated region
        $region57: #{transe_stymix_forward.1} parent=11 // pred_check
          %p829 = pneg %p359
        $region58: #{transe_stymix_forward.1} parent=11 // pred_check_branch
          %831 = sbr.rel (%p829) target = $region60
        $region59: #{transe_stymix_forward.1} parent=11 // pred_region
          _
        $region60: #{transe_stymix_forward.1} parent=11 // pred_fallthru
          _
        // Predicated region
        $region61: #{transe_stymix_forward.1} parent=11 // pred_check
          %p832 = pneg %p380
        $region62: #{transe_stymix_forward.1} parent=11 // pred_check_branch
          %834 = sbr.rel (%p832) target = $region64
        $region63: #{transe_stymix_forward.1} parent=11 // pred_region
          _
        $region64: #{transe_stymix_forward.1} parent=11 // pred_fallthru
          _
        // Predicated region
        $region65: #{transe_stymix_forward.1} parent=11 // pred_check
          %p835 = pneg %p401
        $region66: #{transe_stymix_forward.1} parent=11 // pred_check_branch
          %837 = sbr.rel (%p835) target = $region68
        $region67: #{transe_stymix_forward.1} parent=11 // pred_region
          _
        $region68: #{transe_stymix_forward.1} parent=11 // pred_fallthru
          _
        // Predicated region
        $region69: #{transe_stymix_forward.1} parent=11 // pred_check
          %p838 = pneg %p422
        $region70: #{transe_stymix_forward.1} parent=11 // pred_check_branch
          %840 = sbr.rel (%p838) target = $region72
        $region71: #{transe_stymix_forward.1} parent=11 // pred_region
          _
        $region72: #{transe_stymix_forward.1} parent=11 // pred_fallthru
          _
        // Predicated region
        $region73: #{transe_stymix_forward.1} parent=11 // pred_check
          %p841 = pneg %p443
        $region74: #{transe_stymix_forward.1} parent=11 // pred_check_branch
          %843 = sbr.rel (%p841) target = $region76
        $region75: #{transe_stymix_forward.1} parent=11 // pred_region
          _
        $region76: #{transe_stymix_forward.1} parent=11 // pred_fallthru
          _
        // Predicated region
        $region77: #{transe_stymix_forward.1} parent=11 // pred_check
          %p844 = pneg %p464
        $region78: #{transe_stymix_forward.1} parent=11 // pred_check_branch
          %846 = sbr.rel (%p844) target = $region80
        $region79: #{transe_stymix_forward.1} parent=11 // pred_region
          %s848 = ssub.s32 16, 16
          %849 = vsyncadd [#allocation11], %s848
          %s851 = sshll.u32 [#allocation12], 4
          %s852 = int_to_ptr.vmem [resolvable:$true] %s851
          %854 = dma.hbm_to_vmem [thread:$0]  %s35, 16, %s852, [#allocation11]
        $region80: #{transe_stymix_forward.1} parent=11 // pred_fallthru
          _
        // Predicated region
        $region81: #{transe_stymix_forward.1} parent=11 // pred_check
          %p855 = pneg %p485
        $region82: #{transe_stymix_forward.1} parent=11 // pred_check_branch
          %857 = sbr.rel (%p855) target = $region84
        $region83: #{transe_stymix_forward.1} parent=11 // pred_region
          _
        $region84: #{transe_stymix_forward.1} parent=11 // pred_fallthru
          _
        // Predicated region
        $region85: #{transe_stymix_forward.1} parent=11 // pred_check
          %p858 = pneg %p506
        $region86: #{transe_stymix_forward.1} parent=11 // pred_check_branch
          %860 = sbr.rel (%p858) target = $region88
        $region87: #{transe_stymix_forward.1} parent=11 // pred_region
          _
        $region88: #{transe_stymix_forward.1} parent=11 // pred_fallthru
          _
        // Predicated region
        $region89: #{transe_stymix_forward.1} parent=11 // pred_check
          %p861 = pneg %p527
        $region90: #{transe_stymix_forward.1} parent=11 // pred_check_branch
          %863 = sbr.rel (%p861) target = $region92
        $region91: #{transe_stymix_forward.1} parent=11 // pred_region
          %s865 = ssub.s32 16, 16
          %866 = vsyncadd [#allocation14], %s865
          %s868 = sshll.u32 [#allocation13], 4
          %s869 = int_to_ptr.vmem [resolvable:$true] %s868
          %871 = dma.hbm_to_vmem [thread:$0]  %s41, 16, %s869, [#allocation14]
        $region92: #{transe_stymix_forward.1} parent=11 // pred_fallthru
          _
        // Predicated region
        $region93: #{transe_stymix_forward.1} parent=11 // pred_check
          %p872 = pneg %p548
        $region94: #{transe_stymix_forward.1} parent=11 // pred_check_branch
          %874 = sbr.rel (%p872) target = $region96
        $region95: #{transe_stymix_forward.1} parent=11 // pred_region
          _
        $region96: #{transe_stymix_forward.1} parent=11 // pred_fallthru
          _
        // Predicated region
        $region97: #{transe_stymix_forward.1} parent=11 // pred_check
          %p875 = pneg %p569
        $region98: #{transe_stymix_forward.1} parent=11 // pred_check_branch
          %877 = sbr.rel (%p875) target = $region100
        $region99: #{transe_stymix_forward.1} parent=11 // pred_region
          %s879 = ssub.s32 16, 16
          %880 = vsyncadd [#allocation14], %s879
          %s882 = sshll.u32 [#allocation15], 4
          %s883 = int_to_ptr.vmem [resolvable:$true] %s882
          %885 = dma.hbm_to_vmem [thread:$0]  %s45, 16, %s883, [#allocation14]
        $region100: #{transe_stymix_forward.1} parent=11 // pred_fallthru
          _
        // Predicated region
        $region101: #{transe_stymix_forward.1} parent=11 // pred_check
          %p886 = pneg %p590
        $region102: #{transe_stymix_forward.1} parent=11 // pred_check_branch
          %888 = sbr.rel (%p886) target = $region104
        $region103: #{transe_stymix_forward.1} parent=11 // pred_region
          _
        $region104: #{transe_stymix_forward.1} parent=11 // pred_fallthru
          _
        // Predicated region
        $region105: #{transe_stymix_forward.1} parent=11 // pred_check
          %p889 = pneg %p611
        $region106: #{transe_stymix_forward.1} parent=11 // pred_check_branch
          %891 = sbr.rel (%p889) target = $region108
        $region107: #{transe_stymix_forward.1} parent=11 // pred_region
          %s893 = ssub.s32 16, 16
          %894 = vsyncadd [#allocation17], %s893
          %s896 = sshll.u32 [#allocation16], 4
          %s897 = int_to_ptr.vmem [resolvable:$true] %s896
          %899 = dma.hbm_to_vmem [thread:$0]  %s49, 16, %s897, [#allocation17]
        $region108: #{transe_stymix_forward.1} parent=11 // pred_fallthru
          _
      $region12: #{transe_stymix_forward.1} parent=5 // pred_fallthru
        _
      %p900 = scmp.lt.s32.totalorder %s81, 2
      // Predicated region
      $region109: #{transe_stymix_forward.1} parent=5 // pred_check
        %p901 = pneg %p900
      $region110: #{transe_stymix_forward.1} parent=5 // pred_check_branch
        %903 = sbr.rel (%p901) target = $region112
      $region111: #{transe_stymix_forward.1} parent=5 // pred_region
        // Predicated region
        $region113: #{transe_stymix_forward.1} parent=111 // pred_check
          %p904 = pneg %p101
        $region114: #{transe_stymix_forward.1} parent=111 // pred_check_branch
          %906 = sbr.rel (%p904) target = $region116
        $region115: #{transe_stymix_forward.1} parent=111 // pred_region
          %p907 = scmp.lt.s32.totalorder %s81, 1
          %s908 = scalar_select %p907, %s81, 1
          %s909 = smul.addr %s908, 8
          %s910 = scalar_lea.vmem %s1, %s909
        $region116: #{transe_stymix_forward.1} parent=111 // pred_fallthru
          _
      $region112: #{transe_stymix_forward.1} parent=5 // pred_fallthru
        _
      %p911 = scmp.le.s32.totalorder 1, %s81
      %p912 = scmp.lt.s32.totalorder %s81, 3
      %p913 = pnand %p911, %p912
      %p914 = pneg %p913
      // Predicated region
      $region117: #{transe_stymix_forward.1} parent=5 // pred_check
        _
      $region118: #{transe_stymix_forward.1} parent=5 // pred_check_branch
        %916 = sbr.rel (%p913) target = $region120
      $region119: #{transe_stymix_forward.1} parent=5 // pred_region
        %s917 = ssub.s32 %s81, 1
        // Predicated region
        $region121: #{transe_stymix_forward.1} parent=119 // pred_check
          %p918 = pneg %p149
        $region122: #{transe_stymix_forward.1} parent=119 // pred_check_branch
          %920 = sbr.rel (%p918) target = $region124
        $region123: #{transe_stymix_forward.1} parent=119 // pred_region
          %921 = dma.done [#allocation5], 64
        $region124: #{transe_stymix_forward.1} parent=119 // pred_fallthru
          _
        // Predicated region
        $region125: #{transe_stymix_forward.1} parent=119 // pred_check
          %p922 = pneg %p191
        $region126: #{transe_stymix_forward.1} parent=119 // pred_check_branch
          %924 = sbr.rel (%p922) target = $region128
        $region127: #{transe_stymix_forward.1} parent=119 // pred_region
          %925 = dma.done [#allocation8], 64
        $region128: #{transe_stymix_forward.1} parent=119 // pred_fallthru
          _
        // Predicated region
        $region129: #{transe_stymix_forward.1} parent=119 // pred_check
          %p926 = pneg %p275
        $region130: #{transe_stymix_forward.1} parent=119 // pred_check_branch
          %928 = sbr.rel (%p926) target = $region132
        $region131: #{transe_stymix_forward.1} parent=119 // pred_region
          %929 = dma.done [#allocation8], 64
        $region132: #{transe_stymix_forward.1} parent=119 // pred_fallthru
          _
        // Predicated region
        $region133: #{transe_stymix_forward.1} parent=119 // pred_check
          %p930 = pneg %p317
        $region134: #{transe_stymix_forward.1} parent=119 // pred_check_branch
          %932 = sbr.rel (%p930) target = $region136
        $region135: #{transe_stymix_forward.1} parent=119 // pred_region
          %933 = dma.done [#allocation11], 64
        $region136: #{transe_stymix_forward.1} parent=119 // pred_fallthru
          _
        // Predicated region
        $region137: #{transe_stymix_forward.1} parent=119 // pred_check
          %p934 = pneg %p464
        $region138: #{transe_stymix_forward.1} parent=119 // pred_check_branch
          %936 = sbr.rel (%p934) target = $region140
        $region139: #{transe_stymix_forward.1} parent=119 // pred_region
          %937 = dma.done [#allocation11], 16
        $region140: #{transe_stymix_forward.1} parent=119 // pred_fallthru
          _
        // Predicated region
        $region141: #{transe_stymix_forward.1} parent=119 // pred_check
          %p938 = pneg %p527
        $region142: #{transe_stymix_forward.1} parent=119 // pred_check_branch
          %940 = sbr.rel (%p938) target = $region144
        $region143: #{transe_stymix_forward.1} parent=119 // pred_region
          %941 = dma.done [#allocation14], 16
        $region144: #{transe_stymix_forward.1} parent=119 // pred_fallthru
          _
        // Predicated region
        $region145: #{transe_stymix_forward.1} parent=119 // pred_check
          %p942 = pneg %p569
        $region146: #{transe_stymix_forward.1} parent=119 // pred_check_branch
          %944 = sbr.rel (%p942) target = $region148
        $region147: #{transe_stymix_forward.1} parent=119 // pred_region
          %945 = dma.done [#allocation14], 16
        $region148: #{transe_stymix_forward.1} parent=119 // pred_fallthru
          _
        // Predicated region
        $region149: #{transe_stymix_forward.1} parent=119 // pred_check
          %p946 = pneg %p611
        $region150: #{transe_stymix_forward.1} parent=119 // pred_check_branch
          %948 = sbr.rel (%p946) target = $region152
        $region151: #{transe_stymix_forward.1} parent=119 // pred_region
          %949 = dma.done [#allocation17], 16
        $region152: #{transe_stymix_forward.1} parent=119 // pred_fallthru
          _
        %p950 = scmp.lt.s32.totalorder %s86, 1
        %s951 = scalar_select %p950, %s86, 1
        %s952 = smul.addr %s951, 8
        %s953 = scalar_lea.vmem %s1, %s952
        %p954 = pneg %p107
        %p955 = pneg %p104
        %p956 = pneg %p128
        %p957 = pneg %p125
        %p958 = pneg %p149
        %p959 = pneg %p146
        %p960 = pneg %p170
        %p961 = pneg %p167
        %p962 = pneg %p191
        %p963 = pneg %p188
        %p964 = pneg %p212
        %p965 = pneg %p209
        %p966 = pneg %p233
        %p967 = pneg %p230
        %p968 = pneg %p254
        %p969 = pneg %p251
        %p970 = pneg %p275
        %p971 = pneg %p272
        %p972 = pneg %p296
        %p973 = pneg %p293
        %p974 = pneg %p317
        %p975 = pneg %p314
        %p976 = pneg %p338
        %p977 = pneg %p335
        %p978 = pneg %p359
        %p979 = pneg %p356
        %p980 = pneg %p380
        %p981 = pneg %p377
        %p982 = pneg %p401
        %p983 = pneg %p398
        %p984 = pneg %p422
        %p985 = pneg %p419
        %p986 = pneg %p443
        %p987 = pneg %p440
        %p988 = pneg %p464
        %p989 = pneg %p461
        %p990 = pneg %p485
        %p991 = pneg %p482
        %p992 = pneg %p506
        %p993 = pneg %p503
        %p994 = pneg %p527
        %p995 = pneg %p524
        %p996 = pneg %p548
        %p997 = pneg %p545
        %p998 = pneg %p569
        %p999 = pneg %p566
        %p1000 = pneg %p590
        %p1001 = pneg %p587
        %p1002 = pneg %p611
        %p1003 = pneg %p608
        %p1004 = pneg %p637
        %p1005 = pneg %p634
        %s1006 = sand.u32 %s624, 1
        %s1007 = scalar_lea.sflag [#allocation6], %s1006
        %s1008 = sand.u32 %s624, 1
        %s1009 = smul.addr %s1008, 8
        %s1010 = scalar_lea.vmem [#allocation18], %s1009
        %p1011 = pneg %p663
        %p1012 = pneg %p660
        %s1013 = sand.u32 %s86, 1
        %s1014 = scalar_lea.sflag [#allocation20], %s1013
        %s1015 = sand.u32 %s650, 1
        %s1016 = smul.addr %s1015, 8
        %s1017 = scalar_lea.vmem [#allocation19], %s1016
        %p1018 = pneg %p689
        %p1019 = pneg %p686
        %p1020 = scmp.lt.s32.totalorder %s86, 1
        %s1021 = scalar_select %p1020, %s86, 1
        %s1022 = scalar_lea.vmem %s55, %s1021
        %p1023 = pneg %p715
        %p1024 = pneg %p712
        %p1025 = scmp.lt.s32.totalorder %s86, 1
        %s1026 = scalar_select %p1025, %s86, 1
        %s1027 = scalar_lea.vmem %s57, %s1026
        %p1028 = pneg %p741
        %p1029 = pneg %p738
        %s1030 = sand.u32 %s86, 1
        %s1031 = scalar_lea.sflag [#allocation20], %s1030
        %s1032 = sand.u32 %s728, 1
        %s1033 = smul.addr %s1032, 8
        %s1034 = scalar_lea.vmem [#allocation21], %s1033
        %p1035 = scmp.lt.s32.totalorder %s86, 1
        %s1036 = scalar_select %p1035, %s86, 1
        %s1037 = smul.addr %s1036, 8
        %s1038 = scalar_lea.vmem %s1, %s1037
        %p1039 = scmp.lt.s32.totalorder %s86, 1
        %s1040 = scalar_select %p1039, %s86, 1
        %s1041 = scalar_lea.vmem %s55, %s1040
        %p1042 = scmp.lt.s32.totalorder %s86, 1
        %s1043 = scalar_select %p1042, %s86, 1
        %s1044 = scalar_lea.vmem %s57, %s1043
        %v1046 = vld [vmem:[%s1038] sm:$0xff]
        %vm1047 = vcmask 261120
        %v1048 = vsel %vm1047, %v1046, 0.0
        %1049 = vadd.xlane.f32.xlu0 %v1048
        %v1050 = vpop.xlane.xlu0 %1049
        %vm1051 = vcmp.ne.f32.partialorder %v1050, 0.0
        %v1052 = vsel %vm1051, 1, 0
        %v1053 = vcvt.s32.f32 %v1052
        %v1054 = vlaneseq
        %v1055 = vand.u32 %v1054, 127
        %vm1056 = vcmp.ge.s32.totalorder %v1055, 0
        %vm1057 = vcmp.lt.s32.totalorder %v1055, 8
        %vm1058 = vmand %vm1056, %vm1057
        %v1059 = vsel %vm1058, 1, 0
        %v1060 = vcvt.s32.f32 %v1059
        %vm1061 = vcmp.ge.s32.totalorder %v1055, 8
        %vm1062 = vcmp.lt.s32.totalorder %v1055, 16
        %vm1063 = vmand %vm1061, %vm1062
        %v1064 = vsel %vm1063, 1, 0
        %v1065 = vcvt.s32.f32 %v1064
        %vm1066 = vcmp.ge.s32.totalorder %v1055, 16
        %vm1067 = vcmp.lt.s32.totalorder %v1055, 24
        %vm1068 = vmand %vm1066, %vm1067
        %v1069 = vsel %vm1068, 1, 0
        %v1070 = vcvt.s32.f32 %v1069
        %vm1071 = vcmp.ge.s32.totalorder %v1055, 24
        %vm1072 = vcmp.lt.s32.totalorder %v1055, 32
        %vm1073 = vmand %vm1071, %vm1072
        %v1074 = vsel %vm1073, 1, 0
        %v1075 = vcvt.s32.f32 %v1074
        %v1076 = vld [vmem:[%s3] sm:$0xf]
        %v1077 = vld [vmem:[%s3 + $0x4] sm:$0xf]
        %v1078 = vld [vmem:[%s3 + $0x8] sm:$0xf]
        %v1079 = vld [vmem:[%s3 + $0xc] sm:$0xf]
        %v1080 = vld [vmem:[#allocation4] sm:$0x1]
        %v1081 = vld [vmem:[%s7] sm:$0xf]
        %v1082 = vld [vmem:[%s7 + $0x4] sm:$0xf]
        %v1083 = vld [vmem:[%s7 + $0x8] sm:$0xf]
        %v1084 = vld [vmem:[%s7 + $0xc] sm:$0xf]
        %v1085 = vld [vmem:[#allocation7] sm:$0x1]
        %v1086 = vld [vmem:[%s11] sm:$0x1]
        %v1087 = vld [vmem:[%s13] sm:$0x1]
        %v1088 = vld [vmem:[%s15] sm:$0xf]
        %v1089 = vld [vmem:[%s15 + $0x4] sm:$0xf]
        %v1090 = vld [vmem:[%s15 + $0x8] sm:$0xf]
        %v1091 = vld [vmem:[%s15 + $0xc] sm:$0xf]
        %v1092 = vld [vmem:[#allocation9] sm:$0x1]
        %v1093 = vld [vmem:[%s19] sm:$0xf]
        %v1094 = vld [vmem:[%s19 + $0x4] sm:$0xf]
        %v1095 = vld [vmem:[%s19 + $0x8] sm:$0xf]
        %v1096 = vld [vmem:[%s19 + $0xc] sm:$0xf]
        %v1097 = vld [vmem:[%s19 + $0x10] sm:$0xf]
        %v1098 = vld [vmem:[%s19 + $0x14] sm:$0xf]
        %v1099 = vld [vmem:[%s19 + $0x18] sm:$0xf]
        %v1100 = vld [vmem:[%s19 + $0x1c] sm:$0xf]
        %v1101 = vld [vmem:[#allocation10] sm:$0x1]
        %v1102 = vld [vmem:[%s23] sm:$0x1]
        %v1103 = vld [vmem:[%s25] sm:$0x1]
        %v1104 = vpack.c.bf16 %v1046, %v1046
        %v1106 = vlaneseq
        %v1107 = vshrl.u32 %v1106, 7
        %v1108 = vsub.s32 0, %v1107
        %v1109 = vrot.slane %v1080, %v1108
        %v1115 = vunpack.c.l.b16 %v1076
        %v1116 = vunpack.c.l.b16 %v1077
        %v1117 = vunpack.c.l.b16 %v1078
        %v1118 = vunpack.c.l.b16 %v1079
        %v1119 = vpack.c.b16 %v1116, %v1115
        %v1120 = vpack.c.b16 %v1118, %v1117
        %v1124 = vsel %vm1047, %v1104, 0
        %1126 = vmatprep.subr.bf16.mxu0 0
        %1127 = vmatpush1.bf16.msra.mxu0 0
        %1128 = vmatprep.subr.bf16.mxu0 0
        %1129 = vmatpush1.bf16.msra.mxu0 0
        %1130 = vmatprep.subr.bf16.mxu0 0
        %1131 = vmatpush1.bf16.msra.mxu0 0
        %1132 = vmatprep.subr.bf16.mxu0 0
        %1133 = vmatpush1.bf16.msra.mxu0 0
        %1134 = vmatprep.subr.bf16.mxu0 0
        %1135 = vmatpush1.bf16.msra.mxu0 0
        %1136 = vmatprep.subr.bf16.mxu0 0
        %1137 = vmatpush1.bf16.msra.mxu0 0
        %1138 = vmatprep.subr.bf16.mxu0 0
        %1139 = vmatpush1.bf16.msra.mxu0 %v1120
        %1140 = vmatprep.subr.bf16.mxu0 0
        %1141 = vmatpush1.bf16.msra.mxu0 %v1119
        %1142 = vmatprep.subr.bf16.mxu0 0
        %1143 = vmatpush2.bf16.msra.mxu0 0
        %1144 = vmatprep.subr.bf16.mxu0 0
        %1145 = vmatpush2.bf16.msra.mxu0 0
        %1146 = vmatprep.subr.bf16.mxu0 0
        %1147 = vmatpush2.bf16.msra.mxu0 0
        %1148 = vmatprep.subr.bf16.mxu0 0
        %1149 = vmatpush2.bf16.msra.mxu0 0
        %1150 = vmatprep.subr.bf16.mxu0 0
        %1151 = vmatpush2.bf16.msra.mxu0 0
        %1152 = vmatprep.subr.bf16.mxu0 0
        %1153 = vmatpush2.bf16.msra.mxu0 0
        %1154 = vmatprep.subr.bf16.mxu0 0
        %1155 = vmatpush2.bf16.msra.mxu0 0
        %1156 = vmatprep.subr.bf16.mxu0 0
        %1157 = vmatpush2.bf16.msra.mxu0 0
        %1158 = vmatprep.mubr.bf16.mxu0 0
        %1159 = vmatmul.mubr.bf16.gmra.mxu0 %v1124
        %v1160 = vpop.f32.mrf.mxu0
        %v1161 = vadd.f32 %v1109, %v1160
        %v1162 = vpop.f32.mrf.mxu0
        %v1163 = vpop.f32.mrf.mxu0
        %v1164 = vpop.f32.mrf.mxu0
        %1165 = vdwg.mxu0
        %v1166 = vmul.f32 %v1161, %v1060
        %1168 = vrot.lane.b32.xlu0 %v1060, 32
        %v1169 = vpop.permute.xlu0 %1168
        %v1171 = vmul.f32 %v1161, %v1169
        %1173 = vrot.lane.b32.xlu0 %v1171, 96
        %v1174 = vpop.permute.xlu0 %1173
        %v1176 = vsel %vm1047, %v1166, 0
        %v1178 = vsel %vm1047, %v1174, 0
        %1180 = vmatprep.subr.mxu0 0.0
        %1181 = vmatpush1.xpose.msra.mxu0 0.0
        %1182 = vmatprep.subr.mxu0 0.0
        %1183 = vmatpush1.xpose.msra.mxu0 0.0
        %1184 = vmatprep.subr.mxu0 0.0
        %1185 = vmatpush1.xpose.msra.mxu0 0.0
        %1186 = vmatprep.subr.mxu0 0.0
        %1187 = vmatpush1.xpose.msra.mxu0 0.0
        %1188 = vmatprep.subr.mxu0 0.0
        %1189 = vmatpush1.xpose.msra.mxu0 0.0
        %1190 = vmatprep.subr.mxu0 0.0
        %1191 = vmatpush1.xpose.msra.mxu0 0.0
        %1192 = vmatprep.subr.mxu0 0.0
        %1193 = vmatpush1.xpose.msra.mxu0 0.0
        %1194 = vmatprep.subr.mxu0 0.0
        %1195 = vmatpush1.xpose.msra.mxu0 0.0
        %1196 = vmatprep.subr.mxu0 0.0
        %1197 = vmatpush1.xpose.msra.mxu0 0.0
        %1198 = vmatprep.subr.mxu0 0.0
        %1199 = vmatpush1.xpose.msra.mxu0 0.0
        %1200 = vmatprep.subr.mxu0 0.0
        %1201 = vmatpush1.xpose.msra.mxu0 0.0
        %1202 = vmatprep.subr.mxu0 0.0
        %1203 = vmatpush1.xpose.msra.mxu0 0.0
        %1204 = vmatprep.subr.mxu0 0.0
        %1205 = vmatpush1.xpose.msra.mxu0 0.0
        %1206 = vmatprep.subr.mxu0 0.0
        %1207 = vmatpush1.xpose.msra.mxu0 0.0
        %1208 = vmatprep.subr.mxu0 0.0
        %1209 = vmatpush1.xpose.msra.mxu0 0.0
        %1210 = vmatprep.subr.mxu0 0.0
        %1211 = vmatpush1.xpose.msra.mxu0 %v1178
        %1212 = vmatprep.subr.mxu0 0.0
        %1213 = vmatpush2.xpose.msra.mxu0 0.0
        %1214 = vmatprep.subr.mxu0 0.0
        %1215 = vmatpush2.xpose.msra.mxu0 0.0
        %1216 = vmatprep.subr.mxu0 0.0
        %1217 = vmatpush2.xpose.msra.mxu0 0.0
        %1218 = vmatprep.subr.mxu0 0.0
        %1219 = vmatpush2.xpose.msra.mxu0 0.0
        %1220 = vmatprep.subr.mxu0 0.0
        %1221 = vmatpush2.xpose.msra.mxu0 0.0
        %1222 = vmatprep.subr.mxu0 0.0
        %1223 = vmatpush2.xpose.msra.mxu0 0.0
        %1224 = vmatprep.subr.mxu0 0.0
        %1225 = vmatpush2.xpose.msra.mxu0 0.0
        %1226 = vmatprep.subr.mxu0 0.0
        %1227 = vmatpush2.xpose.msra.mxu0 0.0
        %1228 = vmatprep.subr.mxu0 0.0
        %1229 = vmatpush2.xpose.msra.mxu0 0.0
        %1230 = vmatprep.subr.mxu0 0.0
        %1231 = vmatpush2.xpose.msra.mxu0 0.0
        %1232 = vmatprep.subr.mxu0 0.0
        %1233 = vmatpush2.xpose.msra.mxu0 0.0
        %1234 = vmatprep.subr.mxu0 0.0
        %1235 = vmatpush2.xpose.msra.mxu0 0.0
        %1236 = vmatprep.subr.mxu0 0.0
        %1237 = vmatpush2.xpose.msra.mxu0 0.0
        %1238 = vmatprep.subr.mxu0 0.0
        %1239 = vmatpush2.xpose.msra.mxu0 0.0
        %1240 = vmatprep.subr.mxu0 0.0
        %1241 = vmatpush2.xpose.msra.mxu0 0.0
        %1242 = vmatprep.subr.mxu0 0.0
        %1243 = vmatpush2.xpose.msra.mxu0 0.0
        %1244 = vmatprep.mubr.f32.mxu0 0.0
        %1245 = vmatmul.mubr.f32.gmra.mxu0 %v1176
        %v1246 = vpop.f32.mrf.mxu0
        %v1247 = vadd.f32 0.0, %v1246
        %v1248 = vpop.f32.mrf.mxu0
        %1249 = vdwg.mxu0
        %v1250 = vmul.f32 %v1247, 0.35355338
        %vm1251 = vcmask 64512
        %v1252 = vsel %vm1251, %v1250, -inf
        %1253 = vmax.xlane.f32.xlu0 %v1252
        %v1254 = vpop.xlane.xlu0 %1253
        %v1255 = vsub.f32 %v1250, %v1254
        %v1256 = vmul.f32 %v1255, 1.442695
        %v1257 = vpow.pop %v1256
        %v1258 = vsel %vm1251, %v1257, 0.0
        %1259 = vadd.xlane.f32.xlu0 %v1258
        %v1260 = vpop.xlane.xlu0 %1259
        %v1261 = vrcp.pop %v1260
        %v1262 = vmul.f32 %v1257, %v1261
        %1263 = vrot.lane.b32.xlu0 %v1060, 64
        %v1264 = vpop.permute.xlu0 %1263
        %v1266 = vmul.f32 %v1161, %v1264
        %v1267 = vmul.f32 %v1161, %v1065
        %1269 = vrot.lane.b32.xlu0 %v1065, 32
        %v1270 = vpop.permute.xlu0 %1269
        %v1272 = vmul.f32 %v1161, %v1270
        %1274 = vrot.lane.b32.xlu0 %v1272, 96
        %v1275 = vpop.permute.xlu0 %1274
        %v1277 = vsel %vm1047, %v1267, 0
        %v1279 = vsel %vm1047, %v1275, 0
        %1281 = vmatprep.subr.mxu0 0.0
        %1282 = vmatpush1.xpose.msra.mxu0 0.0
        %1283 = vmatprep.subr.mxu0 0.0
        %1284 = vmatpush1.xpose.msra.mxu0 0.0
        %1285 = vmatprep.subr.mxu0 0.0
        %1286 = vmatpush1.xpose.msra.mxu0 0.0
        %1287 = vmatprep.subr.mxu0 0.0
        %1288 = vmatpush1.xpose.msra.mxu0 0.0
        %1289 = vmatprep.subr.mxu0 0.0
        %1290 = vmatpush1.xpose.msra.mxu0 0.0
        %1291 = vmatprep.subr.mxu0 0.0
        %1292 = vmatpush1.xpose.msra.mxu0 0.0
        %1293 = vmatprep.subr.mxu0 0.0
        %1294 = vmatpush1.xpose.msra.mxu0 0.0
        %1295 = vmatprep.subr.mxu0 0.0
        %1296 = vmatpush1.xpose.msra.mxu0 0.0
        %1297 = vmatprep.subr.mxu0 0.0
        %1298 = vmatpush1.xpose.msra.mxu0 0.0
        %1299 = vmatprep.subr.mxu0 0.0
        %1300 = vmatpush1.xpose.msra.mxu0 0.0
        %1301 = vmatprep.subr.mxu0 0.0
        %1302 = vmatpush1.xpose.msra.mxu0 0.0
        %1303 = vmatprep.subr.mxu0 0.0
        %1304 = vmatpush1.xpose.msra.mxu0 0.0
        %1305 = vmatprep.subr.mxu0 0.0
        %1306 = vmatpush1.xpose.msra.mxu0 0.0
        %1307 = vmatprep.subr.mxu0 0.0
        %1308 = vmatpush1.xpose.msra.mxu0 0.0
        %1309 = vmatprep.subr.mxu0 0.0
        %1310 = vmatpush1.xpose.msra.mxu0 0.0
        %1311 = vmatprep.subr.mxu0 0.0
        %1312 = vmatpush1.xpose.msra.mxu0 %v1279
        %1313 = vmatprep.subr.mxu0 0.0
        %1314 = vmatpush2.xpose.msra.mxu0 0.0
        %1315 = vmatprep.subr.mxu0 0.0
        %1316 = vmatpush2.xpose.msra.mxu0 0.0
        %1317 = vmatprep.subr.mxu0 0.0
        %1318 = vmatpush2.xpose.msra.mxu0 0.0
        %1319 = vmatprep.subr.mxu0 0.0
        %1320 = vmatpush2.xpose.msra.mxu0 0.0
        %1321 = vmatprep.subr.mxu0 0.0
        %1322 = vmatpush2.xpose.msra.mxu0 0.0
        %1323 = vmatprep.subr.mxu0 0.0
        %1324 = vmatpush2.xpose.msra.mxu0 0.0
        %1325 = vmatprep.subr.mxu0 0.0
        %1326 = vmatpush2.xpose.msra.mxu0 0.0
        %1327 = vmatprep.subr.mxu0 0.0
        %1328 = vmatpush2.xpose.msra.mxu0 0.0
        %1329 = vmatprep.subr.mxu0 0.0
        %1330 = vmatpush2.xpose.msra.mxu0 0.0
        %1331 = vmatprep.subr.mxu0 0.0
        %1332 = vmatpush2.xpose.msra.mxu0 0.0
        %1333 = vmatprep.subr.mxu0 0.0
        %1334 = vmatpush2.xpose.msra.mxu0 0.0
        %1335 = vmatprep.subr.mxu0 0.0
        %1336 = vmatpush2.xpose.msra.mxu0 0.0
        %1337 = vmatprep.subr.mxu0 0.0
        %1338 = vmatpush2.xpose.msra.mxu0 0.0
        %1339 = vmatprep.subr.mxu0 0.0
        %1340 = vmatpush2.xpose.msra.mxu0 0.0
        %1341 = vmatprep.subr.mxu0 0.0
        %1342 = vmatpush2.xpose.msra.mxu0 0.0
        %1343 = vmatprep.subr.mxu0 0.0
        %1344 = vmatpush2.xpose.msra.mxu0 0.0
        %1345 = vmatprep.mubr.f32.mxu0 0.0
        %1346 = vmatmul.mubr.f32.gmra.mxu0 %v1277
        %v1347 = vpop.f32.mrf.mxu0
        %v1348 = vadd.f32 0.0, %v1347
        %v1349 = vpop.f32.mrf.mxu0
        %1350 = vdwg.mxu0
        %v1351 = vmul.f32 %v1348, 0.35355338
        %v1352 = vsel %vm1251, %v1351, -inf
        %1353 = vmax.xlane.f32.xlu0 %v1352
        %v1354 = vpop.xlane.xlu0 %1353
        %v1355 = vsub.f32 %v1351, %v1354
        %v1356 = vmul.f32 %v1355, 1.442695
        %v1357 = vpow.pop %v1356
        %v1358 = vsel %vm1251, %v1357, 0.0
        %1359 = vadd.xlane.f32.xlu0 %v1358
        %v1360 = vpop.xlane.xlu0 %1359
        %v1361 = vrcp.pop %v1360
        %v1362 = vmul.f32 %v1357, %v1361
        %1363 = vrot.lane.b32.xlu0 %v1065, 64
        %v1364 = vpop.permute.xlu0 %1363
        %v1366 = vmul.f32 %v1161, %v1364
        %1368 = vrot.lane.b32.xlu0 %v1366, 64
        %v1369 = vpop.permute.xlu0 %1368
        %v1372 = vsel %vm1251, %v1362, 0
        %1374 = vmatprep.subr.mxu0 0.0
        %1375 = vmatpush1.msra.mxu0 0.0
        %1376 = vmatprep.subr.mxu0 0.0
        %1377 = vmatpush1.msra.mxu0 0.0
        %1378 = vmatprep.subr.mxu0 0.0
        %1379 = vmatpush1.msra.mxu0 0.0
        %1380 = vmatprep.subr.mxu0 0.0
        %1381 = vmatpush1.msra.mxu0 0.0
        %1382 = vmatprep.subr.mxu0 0.0
        %1383 = vmatpush1.msra.mxu0 0.0
        %1384 = vmatprep.subr.mxu0 0.0
        %1385 = vmatpush1.msra.mxu0 0.0
        %1386 = vmatprep.subr.mxu0 0.0
        %1387 = vmatpush1.msra.mxu0 0.0
        %1388 = vmatprep.subr.mxu0 0.0
        %1389 = vmatpush1.msra.mxu0 0.0
        %1390 = vmatprep.subr.mxu0 0.0
        %1391 = vmatpush1.msra.mxu0 0.0
        %1392 = vmatprep.subr.mxu0 0.0
        %1393 = vmatpush1.msra.mxu0 0.0
        %1394 = vmatprep.subr.mxu0 0.0
        %1395 = vmatpush1.msra.mxu0 0.0
        %1396 = vmatprep.subr.mxu0 0.0
        %1397 = vmatpush1.msra.mxu0 0.0
        %1398 = vmatprep.subr.mxu0 0.0
        %1399 = vmatpush1.msra.mxu0 0.0
        %1400 = vmatprep.subr.mxu0 0.0
        %1401 = vmatpush1.msra.mxu0 0.0
        %1402 = vmatprep.subr.mxu0 0.0
        %1403 = vmatpush1.msra.mxu0 0.0
        %1404 = vmatprep.subr.mxu0 0.0
        %1405 = vmatpush1.msra.mxu0 %v1369
        %1406 = vmatprep.subr.mxu0 0.0
        %1407 = vmatpush2.msra.mxu0 0.0
        %1408 = vmatprep.subr.mxu0 0.0
        %1409 = vmatpush2.msra.mxu0 0.0
        %1410 = vmatprep.subr.mxu0 0.0
        %1411 = vmatpush2.msra.mxu0 0.0
        %1412 = vmatprep.subr.mxu0 0.0
        %1413 = vmatpush2.msra.mxu0 0.0
        %1414 = vmatprep.subr.mxu0 0.0
        %1415 = vmatpush2.msra.mxu0 0.0
        %1416 = vmatprep.subr.mxu0 0.0
        %1417 = vmatpush2.msra.mxu0 0.0
        %1418 = vmatprep.subr.mxu0 0.0
        %1419 = vmatpush2.msra.mxu0 0.0
        %1420 = vmatprep.subr.mxu0 0.0
        %1421 = vmatpush2.msra.mxu0 0.0
        %1422 = vmatprep.subr.mxu0 0.0
        %1423 = vmatpush2.msra.mxu0 0.0
        %1424 = vmatprep.subr.mxu0 0.0
        %1425 = vmatpush2.msra.mxu0 0.0
        %1426 = vmatprep.subr.mxu0 0.0
        %1427 = vmatpush2.msra.mxu0 0.0
        %1428 = vmatprep.subr.mxu0 0.0
        %1429 = vmatpush2.msra.mxu0 0.0
        %1430 = vmatprep.subr.mxu0 0.0
        %1431 = vmatpush2.msra.mxu0 0.0
        %1432 = vmatprep.subr.mxu0 0.0
        %1433 = vmatpush2.msra.mxu0 0.0
        %1434 = vmatprep.subr.mxu0 0.0
        %1435 = vmatpush2.msra.mxu0 0.0
        %1436 = vmatprep.subr.mxu0 0.0
        %1437 = vmatpush2.msra.mxu0 0.0
        %1438 = vmatprep.mubr.f32.mxu0 0.0
        %1439 = vmatmul.mubr.f32.gmra.mxu0 %v1372
        %v1440 = vpop.f32.mrf.mxu0
        %v1441 = vadd.f32 0.0, %v1440
        %v1442 = vpop.f32.mrf.mxu0
        %1443 = vdwg.mxu0
        %1445 = vrot.lane.b32.xlu0 %v1266, 64
        %v1446 = vpop.permute.xlu0 %1445
        %v1449 = vsel %vm1251, %v1262, 0
        %1451 = vmatprep.subr.mxu0 0.0
        %1452 = vmatpush1.msra.mxu0 0.0
        %1453 = vmatprep.subr.mxu0 0.0
        %1454 = vmatpush1.msra.mxu0 0.0
        %1455 = vmatprep.subr.mxu0 0.0
        %1456 = vmatpush1.msra.mxu0 0.0
        %1457 = vmatprep.subr.mxu0 0.0
        %1458 = vmatpush1.msra.mxu0 0.0
        %1459 = vmatprep.subr.mxu0 0.0
        %1460 = vmatpush1.msra.mxu0 0.0
        %1461 = vmatprep.subr.mxu0 0.0
        %1462 = vmatpush1.msra.mxu0 0.0
        %1463 = vmatprep.subr.mxu0 0.0
        %1464 = vmatpush1.msra.mxu0 0.0
        %1465 = vmatprep.subr.mxu0 0.0
        %1466 = vmatpush1.msra.mxu0 0.0
        %1467 = vmatprep.subr.mxu0 0.0
        %1468 = vmatpush1.msra.mxu0 0.0
        %1469 = vmatprep.subr.mxu0 0.0
        %1470 = vmatpush1.msra.mxu0 0.0
        %1471 = vmatprep.subr.mxu0 0.0
        %1472 = vmatpush1.msra.mxu0 0.0
        %1473 = vmatprep.subr.mxu0 0.0
        %1474 = vmatpush1.msra.mxu0 0.0
        %1475 = vmatprep.subr.mxu0 0.0
        %1476 = vmatpush1.msra.mxu0 0.0
        %1477 = vmatprep.subr.mxu0 0.0
        %1478 = vmatpush1.msra.mxu0 0.0
        %1479 = vmatprep.subr.mxu0 0.0
        %1480 = vmatpush1.msra.mxu0 0.0
        %1481 = vmatprep.subr.mxu0 0.0
        %1482 = vmatpush1.msra.mxu0 %v1446
        %1483 = vmatprep.subr.mxu0 0.0
        %1484 = vmatpush2.msra.mxu0 0.0
        %1485 = vmatprep.subr.mxu0 0.0
        %1486 = vmatpush2.msra.mxu0 0.0
        %1487 = vmatprep.subr.mxu0 0.0
        %1488 = vmatpush2.msra.mxu0 0.0
        %1489 = vmatprep.subr.mxu0 0.0
        %1490 = vmatpush2.msra.mxu0 0.0
        %1491 = vmatprep.subr.mxu0 0.0
        %1492 = vmatpush2.msra.mxu0 0.0
        %1493 = vmatprep.subr.mxu0 0.0
        %1494 = vmatpush2.msra.mxu0 0.0
        %1495 = vmatprep.subr.mxu0 0.0
        %1496 = vmatpush2.msra.mxu0 0.0
        %1497 = vmatprep.subr.mxu0 0.0
        %1498 = vmatpush2.msra.mxu0 0.0
        %1499 = vmatprep.subr.mxu0 0.0
        %1500 = vmatpush2.msra.mxu0 0.0
        %1501 = vmatprep.subr.mxu0 0.0
        %1502 = vmatpush2.msra.mxu0 0.0
        %1503 = vmatprep.subr.mxu0 0.0
        %1504 = vmatpush2.msra.mxu0 0.0
        %1505 = vmatprep.subr.mxu0 0.0
        %1506 = vmatpush2.msra.mxu0 0.0
        %1507 = vmatprep.subr.mxu0 0.0
        %1508 = vmatpush2.msra.mxu0 0.0
        %1509 = vmatprep.subr.mxu0 0.0
        %1510 = vmatpush2.msra.mxu0 0.0
        %1511 = vmatprep.subr.mxu0 0.0
        %1512 = vmatpush2.msra.mxu0 0.0
        %1513 = vmatprep.subr.mxu0 0.0
        %1514 = vmatpush2.msra.mxu0 0.0
        %1515 = vmatprep.mubr.f32.mxu0 0.0
        %1516 = vmatmul.mubr.f32.gmra.mxu0 %v1449
        %v1517 = vpop.f32.mrf.mxu0
        %v1518 = vadd.f32 %v1441, %v1517
        %v1519 = vpop.f32.mrf.mxu0
        %1520 = vdwg.mxu0
        %v1521 = vmul.f32 %v1161, %v1070
        %1523 = vrot.lane.b32.xlu0 %v1070, 32
        %v1524 = vpop.permute.xlu0 %1523
        %v1526 = vmul.f32 %v1161, %v1524
        %1528 = vrot.lane.b32.xlu0 %v1526, 96
        %v1529 = vpop.permute.xlu0 %1528
        %v1531 = vsel %vm1047, %v1521, 0
        %v1533 = vsel %vm1047, %v1529, 0
        %1535 = vmatprep.subr.mxu0 0.0
        %1536 = vmatpush1.xpose.msra.mxu0 0.0
        %1537 = vmatprep.subr.mxu0 0.0
        %1538 = vmatpush1.xpose.msra.mxu0 0.0
        %1539 = vmatprep.subr.mxu0 0.0
        %1540 = vmatpush1.xpose.msra.mxu0 0.0
        %1541 = vmatprep.subr.mxu0 0.0
        %1542 = vmatpush1.xpose.msra.mxu0 0.0
        %1543 = vmatprep.subr.mxu0 0.0
        %1544 = vmatpush1.xpose.msra.mxu0 0.0
        %1545 = vmatprep.subr.mxu0 0.0
        %1546 = vmatpush1.xpose.msra.mxu0 0.0
        %1547 = vmatprep.subr.mxu0 0.0
        %1548 = vmatpush1.xpose.msra.mxu0 0.0
        %1549 = vmatprep.subr.mxu0 0.0
        %1550 = vmatpush1.xpose.msra.mxu0 0.0
        %1551 = vmatprep.subr.mxu0 0.0
        %1552 = vmatpush1.xpose.msra.mxu0 0.0
        %1553 = vmatprep.subr.mxu0 0.0
        %1554 = vmatpush1.xpose.msra.mxu0 0.0
        %1555 = vmatprep.subr.mxu0 0.0
        %1556 = vmatpush1.xpose.msra.mxu0 0.0
        %1557 = vmatprep.subr.mxu0 0.0
        %1558 = vmatpush1.xpose.msra.mxu0 0.0
        %1559 = vmatprep.subr.mxu0 0.0
        %1560 = vmatpush1.xpose.msra.mxu0 0.0
        %1561 = vmatprep.subr.mxu0 0.0
        %1562 = vmatpush1.xpose.msra.mxu0 0.0
        %1563 = vmatprep.subr.mxu0 0.0
        %1564 = vmatpush1.xpose.msra.mxu0 0.0
        %1565 = vmatprep.subr.mxu0 0.0
        %1566 = vmatpush1.xpose.msra.mxu0 %v1533
        %1567 = vmatprep.subr.mxu0 0.0
        %1568 = vmatpush2.xpose.msra.mxu0 0.0
        %1569 = vmatprep.subr.mxu0 0.0
        %1570 = vmatpush2.xpose.msra.mxu0 0.0
        %1571 = vmatprep.subr.mxu0 0.0
        %1572 = vmatpush2.xpose.msra.mxu0 0.0
        %1573 = vmatprep.subr.mxu0 0.0
        %1574 = vmatpush2.xpose.msra.mxu0 0.0
        %1575 = vmatprep.subr.mxu0 0.0
        %1576 = vmatpush2.xpose.msra.mxu0 0.0
        %1577 = vmatprep.subr.mxu0 0.0
        %1578 = vmatpush2.xpose.msra.mxu0 0.0
        %1579 = vmatprep.subr.mxu0 0.0
        %1580 = vmatpush2.xpose.msra.mxu0 0.0
        %1581 = vmatprep.subr.mxu0 0.0
        %1582 = vmatpush2.xpose.msra.mxu0 0.0
        %1583 = vmatprep.subr.mxu0 0.0
        %1584 = vmatpush2.xpose.msra.mxu0 0.0
        %1585 = vmatprep.subr.mxu0 0.0
        %1586 = vmatpush2.xpose.msra.mxu0 0.0
        %1587 = vmatprep.subr.mxu0 0.0
        %1588 = vmatpush2.xpose.msra.mxu0 0.0
        %1589 = vmatprep.subr.mxu0 0.0
        %1590 = vmatpush2.xpose.msra.mxu0 0.0
        %1591 = vmatprep.subr.mxu0 0.0
        %1592 = vmatpush2.xpose.msra.mxu0 0.0
        %1593 = vmatprep.subr.mxu0 0.0
        %1594 = vmatpush2.xpose.msra.mxu0 0.0
        %1595 = vmatprep.subr.mxu0 0.0
        %1596 = vmatpush2.xpose.msra.mxu0 0.0
        %1597 = vmatprep.subr.mxu0 0.0
        %1598 = vmatpush2.xpose.msra.mxu0 0.0
        %1599 = vmatprep.mubr.f32.mxu0 0.0
        %1600 = vmatmul.mubr.f32.gmra.mxu0 %v1531
        %v1601 = vpop.f32.mrf.mxu0
        %v1602 = vadd.f32 0.0, %v1601
        %v1603 = vpop.f32.mrf.mxu0
        %1604 = vdwg.mxu0
        %v1605 = vmul.f32 %v1602, 0.35355338
        %v1606 = vsel %vm1251, %v1605, -inf
        %1607 = vmax.xlane.f32.xlu0 %v1606
        %v1608 = vpop.xlane.xlu0 %1607
        %v1609 = vsub.f32 %v1605, %v1608
        %v1610 = vmul.f32 %v1609, 1.442695
        %v1611 = vpow.pop %v1610
        %v1612 = vsel %vm1251, %v1611, 0.0
        %1613 = vadd.xlane.f32.xlu0 %v1612
        %v1614 = vpop.xlane.xlu0 %1613
        %v1615 = vrcp.pop %v1614
        %v1616 = vmul.f32 %v1611, %v1615
        %1617 = vrot.lane.b32.xlu0 %v1070, 64
        %v1618 = vpop.permute.xlu0 %1617
        %v1620 = vmul.f32 %v1161, %v1618
        %1622 = vrot.lane.b32.xlu0 %v1620, 64
        %v1623 = vpop.permute.xlu0 %1622
        %v1626 = vsel %vm1251, %v1616, 0
        %1628 = vmatprep.subr.mxu0 0.0
        %1629 = vmatpush1.msra.mxu0 0.0
        %1630 = vmatprep.subr.mxu0 0.0
        %1631 = vmatpush1.msra.mxu0 0.0
        %1632 = vmatprep.subr.mxu0 0.0
        %1633 = vmatpush1.msra.mxu0 0.0
        %1634 = vmatprep.subr.mxu0 0.0
        %1635 = vmatpush1.msra.mxu0 0.0
        %1636 = vmatprep.subr.mxu0 0.0
        %1637 = vmatpush1.msra.mxu0 0.0
        %1638 = vmatprep.subr.mxu0 0.0
        %1639 = vmatpush1.msra.mxu0 0.0
        %1640 = vmatprep.subr.mxu0 0.0
        %1641 = vmatpush1.msra.mxu0 0.0
        %1642 = vmatprep.subr.mxu0 0.0
        %1643 = vmatpush1.msra.mxu0 0.0
        %1644 = vmatprep.subr.mxu0 0.0
        %1645 = vmatpush1.msra.mxu0 0.0
        %1646 = vmatprep.subr.mxu0 0.0
        %1647 = vmatpush1.msra.mxu0 0.0
        %1648 = vmatprep.subr.mxu0 0.0
        %1649 = vmatpush1.msra.mxu0 0.0
        %1650 = vmatprep.subr.mxu0 0.0
        %1651 = vmatpush1.msra.mxu0 0.0
        %1652 = vmatprep.subr.mxu0 0.0
        %1653 = vmatpush1.msra.mxu0 0.0
        %1654 = vmatprep.subr.mxu0 0.0
        %1655 = vmatpush1.msra.mxu0 0.0
        %1656 = vmatprep.subr.mxu0 0.0
        %1657 = vmatpush1.msra.mxu0 0.0
        %1658 = vmatprep.subr.mxu0 0.0
        %1659 = vmatpush1.msra.mxu0 %v1623
        %1660 = vmatprep.subr.mxu0 0.0
        %1661 = vmatpush2.msra.mxu0 0.0
        %1662 = vmatprep.subr.mxu0 0.0
        %1663 = vmatpush2.msra.mxu0 0.0
        %1664 = vmatprep.subr.mxu0 0.0
        %1665 = vmatpush2.msra.mxu0 0.0
        %1666 = vmatprep.subr.mxu0 0.0
        %1667 = vmatpush2.msra.mxu0 0.0
        %1668 = vmatprep.subr.mxu0 0.0
        %1669 = vmatpush2.msra.mxu0 0.0
        %1670 = vmatprep.subr.mxu0 0.0
        %1671 = vmatpush2.msra.mxu0 0.0
        %1672 = vmatprep.subr.mxu0 0.0
        %1673 = vmatpush2.msra.mxu0 0.0
        %1674 = vmatprep.subr.mxu0 0.0
        %1675 = vmatpush2.msra.mxu0 0.0
        %1676 = vmatprep.subr.mxu0 0.0
        %1677 = vmatpush2.msra.mxu0 0.0
        %1678 = vmatprep.subr.mxu0 0.0
        %1679 = vmatpush2.msra.mxu0 0.0
        %1680 = vmatprep.subr.mxu0 0.0
        %1681 = vmatpush2.msra.mxu0 0.0
        %1682 = vmatprep.subr.mxu0 0.0
        %1683 = vmatpush2.msra.mxu0 0.0
        %1684 = vmatprep.subr.mxu0 0.0
        %1685 = vmatpush2.msra.mxu0 0.0
        %1686 = vmatprep.subr.mxu0 0.0
        %1687 = vmatpush2.msra.mxu0 0.0
        %1688 = vmatprep.subr.mxu0 0.0
        %1689 = vmatpush2.msra.mxu0 0.0
        %1690 = vmatprep.subr.mxu0 0.0
        %1691 = vmatpush2.msra.mxu0 0.0
        %1692 = vmatprep.mubr.f32.mxu0 0.0
        %1693 = vmatmul.mubr.f32.gmra.mxu0 %v1626
        %v1694 = vpop.f32.mrf.mxu0
        %v1695 = vadd.f32 0.0, %v1694
        %v1696 = vpop.f32.mrf.mxu0
        %1697 = vdwg.mxu0
        %v1698 = vadd.f32 %v1518, %v1695
        %v1699 = vmul.f32 %v1161, %v1075
        %1701 = vrot.lane.b32.xlu0 %v1075, 32
        %v1702 = vpop.permute.xlu0 %1701
        %v1704 = vmul.f32 %v1161, %v1702
        %1706 = vrot.lane.b32.xlu0 %v1704, 96
        %v1707 = vpop.permute.xlu0 %1706
        %v1709 = vsel %vm1047, %v1699, 0
        %v1711 = vsel %vm1047, %v1707, 0
        %1713 = vmatprep.subr.mxu0 0.0
        %1714 = vmatpush1.xpose.msra.mxu0 0.0
        %1715 = vmatprep.subr.mxu0 0.0
        %1716 = vmatpush1.xpose.msra.mxu0 0.0
        %1717 = vmatprep.subr.mxu0 0.0
        %1718 = vmatpush1.xpose.msra.mxu0 0.0
        %1719 = vmatprep.subr.mxu0 0.0
        %1720 = vmatpush1.xpose.msra.mxu0 0.0
        %1721 = vmatprep.subr.mxu0 0.0
        %1722 = vmatpush1.xpose.msra.mxu0 0.0
        %1723 = vmatprep.subr.mxu0 0.0
        %1724 = vmatpush1.xpose.msra.mxu0 0.0
        %1725 = vmatprep.subr.mxu0 0.0
        %1726 = vmatpush1.xpose.msra.mxu0 0.0
        %1727 = vmatprep.subr.mxu0 0.0
        %1728 = vmatpush1.xpose.msra.mxu0 0.0
        %1729 = vmatprep.subr.mxu0 0.0
        %1730 = vmatpush1.xpose.msra.mxu0 0.0
        %1731 = vmatprep.subr.mxu0 0.0
        %1732 = vmatpush1.xpose.msra.mxu0 0.0
        %1733 = vmatprep.subr.mxu0 0.0
        %1734 = vmatpush1.xpose.msra.mxu0 0.0
        %1735 = vmatprep.subr.mxu0 0.0
        %1736 = vmatpush1.xpose.msra.mxu0 0.0
        %1737 = vmatprep.subr.mxu0 0.0
        %1738 = vmatpush1.xpose.msra.mxu0 0.0
        %1739 = vmatprep.subr.mxu0 0.0
        %1740 = vmatpush1.xpose.msra.mxu0 0.0
        %1741 = vmatprep.subr.mxu0 0.0
        %1742 = vmatpush1.xpose.msra.mxu0 0.0
        %1743 = vmatprep.subr.mxu0 0.0
        %1744 = vmatpush1.xpose.msra.mxu0 %v1711
        %1745 = vmatprep.subr.mxu0 0.0
        %1746 = vmatpush2.xpose.msra.mxu0 0.0
        %1747 = vmatprep.subr.mxu0 0.0
        %1748 = vmatpush2.xpose.msra.mxu0 0.0
        %1749 = vmatprep.subr.mxu0 0.0
        %1750 = vmatpush2.xpose.msra.mxu0 0.0
        %1751 = vmatprep.subr.mxu0 0.0
        %1752 = vmatpush2.xpose.msra.mxu0 0.0
        %1753 = vmatprep.subr.mxu0 0.0
        %1754 = vmatpush2.xpose.msra.mxu0 0.0
        %1755 = vmatprep.subr.mxu0 0.0
        %1756 = vmatpush2.xpose.msra.mxu0 0.0
        %1757 = vmatprep.subr.mxu0 0.0
        %1758 = vmatpush2.xpose.msra.mxu0 0.0
        %1759 = vmatprep.subr.mxu0 0.0
        %1760 = vmatpush2.xpose.msra.mxu0 0.0
        %1761 = vmatprep.subr.mxu0 0.0
        %1762 = vmatpush2.xpose.msra.mxu0 0.0
        %1763 = vmatprep.subr.mxu0 0.0
        %1764 = vmatpush2.xpose.msra.mxu0 0.0
        %1765 = vmatprep.subr.mxu0 0.0
        %1766 = vmatpush2.xpose.msra.mxu0 0.0
        %1767 = vmatprep.subr.mxu0 0.0
        %1768 = vmatpush2.xpose.msra.mxu0 0.0
        %1769 = vmatprep.subr.mxu0 0.0
        %1770 = vmatpush2.xpose.msra.mxu0 0.0
        %1771 = vmatprep.subr.mxu0 0.0
        %1772 = vmatpush2.xpose.msra.mxu0 0.0
        %1773 = vmatprep.subr.mxu0 0.0
        %1774 = vmatpush2.xpose.msra.mxu0 0.0
        %1775 = vmatprep.subr.mxu0 0.0
        %1776 = vmatpush2.xpose.msra.mxu0 0.0
        %1777 = vmatprep.mubr.f32.mxu0 0.0
        %1778 = vmatmul.mubr.f32.gmra.mxu0 %v1709
        %v1779 = vpop.f32.mrf.mxu0
        %v1780 = vadd.f32 0.0, %v1779
        %v1781 = vpop.f32.mrf.mxu0
        %1782 = vdwg.mxu0
        %v1783 = vmul.f32 %v1780, 0.35355338
        %v1784 = vsel %vm1251, %v1783, -inf
        %1785 = vmax.xlane.f32.xlu0 %v1784
        %v1786 = vpop.xlane.xlu0 %1785
        %v1787 = vsub.f32 %v1783, %v1786
        %v1788 = vmul.f32 %v1787, 1.442695
        %v1789 = vpow.pop %v1788
        %v1790 = vsel %vm1251, %v1789, 0.0
        %1791 = vadd.xlane.f32.xlu0 %v1790
        %v1792 = vpop.xlane.xlu0 %1791
        %v1793 = vrcp.pop %v1792
        %v1794 = vmul.f32 %v1789, %v1793
        %1795 = vrot.lane.b32.xlu0 %v1075, 64
        %v1796 = vpop.permute.xlu0 %1795
        %v1798 = vmul.f32 %v1161, %v1796
        %1800 = vrot.lane.b32.xlu0 %v1798, 64
        %v1801 = vpop.permute.xlu0 %1800
        %v1804 = vsel %vm1251, %v1794, 0
        %1806 = vmatprep.subr.mxu0 0.0
        %1807 = vmatpush1.msra.mxu0 0.0
        %1808 = vmatprep.subr.mxu0 0.0
        %1809 = vmatpush1.msra.mxu0 0.0
        %1810 = vmatprep.subr.mxu0 0.0
        %1811 = vmatpush1.msra.mxu0 0.0
        %1812 = vmatprep.subr.mxu0 0.0
        %1813 = vmatpush1.msra.mxu0 0.0
        %1814 = vmatprep.subr.mxu0 0.0
        %1815 = vmatpush1.msra.mxu0 0.0
        %1816 = vmatprep.subr.mxu0 0.0
        %1817 = vmatpush1.msra.mxu0 0.0
        %1818 = vmatprep.subr.mxu0 0.0
        %1819 = vmatpush1.msra.mxu0 0.0
        %1820 = vmatprep.subr.mxu0 0.0
        %1821 = vmatpush1.msra.mxu0 0.0
        %1822 = vmatprep.subr.mxu0 0.0
        %1823 = vmatpush1.msra.mxu0 0.0
        %1824 = vmatprep.subr.mxu0 0.0
        %1825 = vmatpush1.msra.mxu0 0.0
        %1826 = vmatprep.subr.mxu0 0.0
        %1827 = vmatpush1.msra.mxu0 0.0
        %1828 = vmatprep.subr.mxu0 0.0
        %1829 = vmatpush1.msra.mxu0 0.0
        %1830 = vmatprep.subr.mxu0 0.0
        %1831 = vmatpush1.msra.mxu0 0.0
        %1832 = vmatprep.subr.mxu0 0.0
        %1833 = vmatpush1.msra.mxu0 0.0
        %1834 = vmatprep.subr.mxu0 0.0
        %1835 = vmatpush1.msra.mxu0 0.0
        %1836 = vmatprep.subr.mxu0 0.0
        %1837 = vmatpush1.msra.mxu0 %v1801
        %1838 = vmatprep.subr.mxu0 0.0
        %1839 = vmatpush2.msra.mxu0 0.0
        %1840 = vmatprep.subr.mxu0 0.0
        %1841 = vmatpush2.msra.mxu0 0.0
        %1842 = vmatprep.subr.mxu0 0.0
        %1843 = vmatpush2.msra.mxu0 0.0
        %1844 = vmatprep.subr.mxu0 0.0
        %1845 = vmatpush2.msra.mxu0 0.0
        %1846 = vmatprep.subr.mxu0 0.0
        %1847 = vmatpush2.msra.mxu0 0.0
        %1848 = vmatprep.subr.mxu0 0.0
        %1849 = vmatpush2.msra.mxu0 0.0
        %1850 = vmatprep.subr.mxu0 0.0
        %1851 = vmatpush2.msra.mxu0 0.0
        %1852 = vmatprep.subr.mxu0 0.0
        %1853 = vmatpush2.msra.mxu0 0.0
        %1854 = vmatprep.subr.mxu0 0.0
        %1855 = vmatpush2.msra.mxu0 0.0
        %1856 = vmatprep.subr.mxu0 0.0
        %1857 = vmatpush2.msra.mxu0 0.0
        %1858 = vmatprep.subr.mxu0 0.0
        %1859 = vmatpush2.msra.mxu0 0.0
        %1860 = vmatprep.subr.mxu0 0.0
        %1861 = vmatpush2.msra.mxu0 0.0
        %1862 = vmatprep.subr.mxu0 0.0
        %1863 = vmatpush2.msra.mxu0 0.0
        %1864 = vmatprep.subr.mxu0 0.0
        %1865 = vmatpush2.msra.mxu0 0.0
        %1866 = vmatprep.subr.mxu0 0.0
        %1867 = vmatpush2.msra.mxu0 0.0
        %1868 = vmatprep.subr.mxu0 0.0
        %1869 = vmatpush2.msra.mxu0 0.0
        %1870 = vmatprep.mubr.f32.mxu0 0.0
        %1871 = vmatmul.mubr.f32.gmra.mxu0 %v1804
        %v1872 = vpop.f32.mrf.mxu0
        %v1873 = vadd.f32 0.0, %v1872
        %v1874 = vpop.f32.mrf.mxu0
        %1875 = vdwg.mxu0
        %v1876 = vadd.f32 %v1698, %v1873
        %v1877 = vpack.c.bf16 %v1876, %v1876
        %v1879 = vlaneseq
        %v1880 = vshrl.u32 %v1879, 7
        %v1881 = vsub.s32 0, %v1880
        %v1882 = vrot.slane %v1085, %v1881
        %v1888 = vunpack.c.l.b16 %v1081
        %v1889 = vunpack.c.l.b16 %v1082
        %v1890 = vunpack.c.l.b16 %v1083
        %v1891 = vunpack.c.l.b16 %v1084
        %v1892 = vpack.c.b16 %v1889, %v1888
        %v1893 = vpack.c.b16 %v1891, %v1890
        %v1897 = vsel %vm1047, %v1877, 0
        %1899 = vmatprep.subr.bf16.mxu0 0
        %1900 = vmatpush1.bf16.msra.mxu0 0
        %1901 = vmatprep.subr.bf16.mxu0 0
        %1902 = vmatpush1.bf16.msra.mxu0 0
        %1903 = vmatprep.subr.bf16.mxu0 0
        %1904 = vmatpush1.bf16.msra.mxu0 0
        %1905 = vmatprep.subr.bf16.mxu0 0
        %1906 = vmatpush1.bf16.msra.mxu0 0
        %1907 = vmatprep.subr.bf16.mxu0 0
        %1908 = vmatpush1.bf16.msra.mxu0 0
        %1909 = vmatprep.subr.bf16.mxu0 0
        %1910 = vmatpush1.bf16.msra.mxu0 0
        %1911 = vmatprep.subr.bf16.mxu0 0
        %1912 = vmatpush1.bf16.msra.mxu0 %v1893
        %1913 = vmatprep.subr.bf16.mxu0 0
        %1914 = vmatpush1.bf16.msra.mxu0 %v1892
        %1915 = vmatprep.subr.bf16.mxu0 0
        %1916 = vmatpush2.bf16.msra.mxu0 0
        %1917 = vmatprep.subr.bf16.mxu0 0
        %1918 = vmatpush2.bf16.msra.mxu0 0
        %1919 = vmatprep.subr.bf16.mxu0 0
        %1920 = vmatpush2.bf16.msra.mxu0 0
        %1921 = vmatprep.subr.bf16.mxu0 0
        %1922 = vmatpush2.bf16.msra.mxu0 0
        %1923 = vmatprep.subr.bf16.mxu0 0
        %1924 = vmatpush2.bf16.msra.mxu0 0
        %1925 = vmatprep.subr.bf16.mxu0 0
        %1926 = vmatpush2.bf16.msra.mxu0 0
        %1927 = vmatprep.subr.bf16.mxu0 0
        %1928 = vmatpush2.bf16.msra.mxu0 0
        %1929 = vmatprep.subr.bf16.mxu0 0
        %1930 = vmatpush2.bf16.msra.mxu0 0
        %1931 = vmatprep.mubr.bf16.mxu0 0
        %1932 = vmatmul.mubr.bf16.gmra.mxu0 %v1897
        %v1933 = vpop.f32.mrf.mxu0
        %v1934 = vadd.f32 %v1882, %v1933
        %v1935 = vpop.f32.mrf.mxu0
        %v1936 = vpop.f32.mrf.mxu0
        %v1937 = vpop.f32.mrf.mxu0
        %1938 = vdwg.mxu0
        %v1939 = vadd.f32 %v1046, %v1934
        %v1940 = vsel %vm1047, %v1939, 0.0
        %1941 = vadd.xlane.f32.xlu0 %v1940
        %v1942 = vpop.xlane.xlu0 %1941
        %v1943 = vrcp.pop 32.0
        %v1944 = vmul.f32 %v1942, %v1943
        %v1945 = vsub.f32 %v1939, %v1944
        %v1946 = vmul.f32 %v1945, %v1945
        %v1947 = vsel %vm1047, %v1946, 0.0
        %1948 = vadd.xlane.f32.xlu0 %v1947
        %v1949 = vpop.xlane.xlu0 %1948
        %v1950 = vmul.f32 %v1949, %v1943
        %v1951 = vadd.f32 %v1950, 1e-05
        %v1952 = vrsqrt.pop %v1951
        %v1953 = vmul.f32 %v1945, %v1952
        %v1955 = vlaneseq
        %v1956 = vshrl.u32 %v1955, 7
        %v1957 = vsub.s32 0, %v1956
        %v1958 = vrot.slane %v1086, %v1957
        %v1960 = vmul.f32 %v1953, %v1958
        %v1962 = vlaneseq
        %v1963 = vshrl.u32 %v1962, 7
        %v1964 = vsub.s32 0, %v1963
        %v1965 = vrot.slane %v1087, %v1964
        %v1967 = vadd.f32 %v1960, %v1965
        %v1968 = vpack.c.bf16 %v1967, %v1967
        %v1970 = vlaneseq
        %v1971 = vshrl.u32 %v1970, 7
        %v1972 = vsub.s32 0, %v1971
        %v1973 = vrot.slane %v1092, %v1972
        %v1979 = vunpack.c.l.b16 %v1088
        %v1980 = vunpack.c.l.b16 %v1089
        %v1981 = vunpack.c.l.b16 %v1090
        %v1982 = vunpack.c.l.b16 %v1091
        %v1983 = vpack.c.b16 %v1980, %v1979
        %v1984 = vpack.c.b16 %v1982, %v1981
        %v1988 = vsel %vm1047, %v1968, 0
        %1990 = vmatprep.subr.bf16.mxu0 0
        %1991 = vmatpush1.bf16.msra.mxu0 0
        %1992 = vmatprep.subr.bf16.mxu0 0
        %1993 = vmatpush1.bf16.msra.mxu0 0
        %1994 = vmatprep.subr.bf16.mxu0 0
        %1995 = vmatpush1.bf16.msra.mxu0 0
        %1996 = vmatprep.subr.bf16.mxu0 0
        %1997 = vmatpush1.bf16.msra.mxu0 0
        %1998 = vmatprep.subr.bf16.mxu0 0
        %1999 = vmatpush1.bf16.msra.mxu0 0
        %2000 = vmatprep.subr.bf16.mxu0 0
        %2001 = vmatpush1.bf16.msra.mxu0 0
        %2002 = vmatprep.subr.bf16.mxu0 0
        %2003 = vmatpush1.bf16.msra.mxu0 %v1984
        %2004 = vmatprep.subr.bf16.mxu0 0
        %2005 = vmatpush1.bf16.msra.mxu0 %v1983
        %2006 = vmatprep.subr.bf16.mxu0 0
        %2007 = vmatpush2.bf16.msra.mxu0 0
        %2008 = vmatprep.subr.bf16.mxu0 0
        %2009 = vmatpush2.bf16.msra.mxu0 0
        %2010 = vmatprep.subr.bf16.mxu0 0
        %2011 = vmatpush2.bf16.msra.mxu0 0
        %2012 = vmatprep.subr.bf16.mxu0 0
        %2013 = vmatpush2.bf16.msra.mxu0 0
        %2014 = vmatprep.subr.bf16.mxu0 0
        %2015 = vmatpush2.bf16.msra.mxu0 0
        %2016 = vmatprep.subr.bf16.mxu0 0
        %2017 = vmatpush2.bf16.msra.mxu0 0
        %2018 = vmatprep.subr.bf16.mxu0 0
        %2019 = vmatpush2.bf16.msra.mxu0 0
        %2020 = vmatprep.subr.bf16.mxu0 0
        %2021 = vmatpush2.bf16.msra.mxu0 0
        %2022 = vmatprep.mubr.bf16.mxu0 0
        %2023 = vmatmul.mubr.bf16.gmra.mxu0 %v1988
        %v2024 = vpop.f32.mrf.mxu0
        %v2025 = vadd.f32 %v1973, %v2024
        %v2026 = vpop.f32.mrf.mxu0
        %v2027 = vpop.f32.mrf.mxu0
        %v2028 = vpop.f32.mrf.mxu0
        %2029 = vdwg.mxu0
        %v2030 = vmax.f32 %v2025, 0.0
        %v2031 = vpack.c.bf16 %v2030, %v2030
        %v2033 = vlaneseq
        %v2034 = vshrl.u32 %v2033, 7
        %v2035 = vsub.s32 0, %v2034
        %v2036 = vrot.slane %v1101, %v2035
        %v2046 = vunpack.c.l.b16 %v1093
        %v2047 = vunpack.c.l.b16 %v1094
        %v2048 = vunpack.c.l.b16 %v1095
        %v2049 = vunpack.c.l.b16 %v1096
        %v2050 = vunpack.c.l.b16 %v1097
        %v2051 = vunpack.c.l.b16 %v1098
        %v2052 = vunpack.c.l.b16 %v1099
        %v2053 = vunpack.c.l.b16 %v1100
        %v2054 = vpack.c.b16 %v2047, %v2046
        %v2055 = vpack.c.b16 %v2049, %v2048
        %v2056 = vpack.c.b16 %v2051, %v2050
        %v2057 = vpack.c.b16 %v2053, %v2052
        %vm2062 = vcmask 523264
        %v2064 = vsel %vm2062, %v2031, 0
        %2066 = vmatprep.subr.bf16.mxu0 0
        %2067 = vmatpush1.bf16.msra.mxu0 0
        %2068 = vmatprep.subr.bf16.mxu0 0
        %2069 = vmatpush1.bf16.msra.mxu0 0
        %2070 = vmatprep.subr.bf16.mxu0 0
        %2071 = vmatpush1.bf16.msra.mxu0 0
        %2072 = vmatprep.subr.bf16.mxu0 0
        %2073 = vmatpush1.bf16.msra.mxu0 0
        %2074 = vmatprep.subr.bf16.mxu0 0
        %2075 = vmatpush1.bf16.msra.mxu0 %v2057
        %2076 = vmatprep.subr.bf16.mxu0 0
        %2077 = vmatpush1.bf16.msra.mxu0 %v2056
        %2078 = vmatprep.subr.bf16.mxu0 0
        %2079 = vmatpush1.bf16.msra.mxu0 %v2055
        %2080 = vmatprep.subr.bf16.mxu0 0
        %2081 = vmatpush1.bf16.msra.mxu0 %v2054
        %2082 = vmatprep.subr.bf16.mxu0 0
        %2083 = vmatpush2.bf16.msra.mxu0 0
        %2084 = vmatprep.subr.bf16.mxu0 0
        %2085 = vmatpush2.bf16.msra.mxu0 0
        %2086 = vmatprep.subr.bf16.mxu0 0
        %2087 = vmatpush2.bf16.msra.mxu0 0
        %2088 = vmatprep.subr.bf16.mxu0 0
        %2089 = vmatpush2.bf16.msra.mxu0 0
        %2090 = vmatprep.subr.bf16.mxu0 0
        %2091 = vmatpush2.bf16.msra.mxu0 0
        %2092 = vmatprep.subr.bf16.mxu0 0
        %2093 = vmatpush2.bf16.msra.mxu0 0
        %2094 = vmatprep.subr.bf16.mxu0 0
        %2095 = vmatpush2.bf16.msra.mxu0 0
        %2096 = vmatprep.subr.bf16.mxu0 0
        %2097 = vmatpush2.bf16.msra.mxu0 0
        %2098 = vmatprep.mubr.bf16.mxu0 0
        %2099 = vmatmul.mubr.bf16.gmra.mxu0 %v2064
        %v2100 = vpop.f32.mrf.mxu0
        %v2101 = vadd.f32 %v2036, %v2100
        %v2102 = vpop.f32.mrf.mxu0
        %v2103 = vpop.f32.mrf.mxu0
        %v2104 = vpop.f32.mrf.mxu0
        %2105 = vdwg.mxu0
        %v2106 = vadd.f32 %v1967, %v2101
        %v2107 = vsel %vm1047, %v2106, 0.0
        %2108 = vadd.xlane.f32.xlu0 %v2107
        %v2109 = vpop.xlane.xlu0 %2108
        %v2110 = vmul.f32 %v2109, %v1943
        %v2111 = vsub.f32 %v2106, %v2110
        %v2112 = vmul.f32 %v2111, %v2111
        %v2113 = vsel %vm1047, %v2112, 0.0
        %2114 = vadd.xlane.f32.xlu0 %v2113
        %v2115 = vpop.xlane.xlu0 %2114
        %v2116 = vmul.f32 %v2115, %v1943
        %v2117 = vadd.f32 %v2116, 1e-05
        %v2118 = vrsqrt.pop %v2117
        %v2119 = vmul.f32 %v2111, %v2118
        %v2121 = vlaneseq
        %v2122 = vshrl.u32 %v2121, 7
        %v2123 = vsub.s32 0, %v2122
        %v2124 = vrot.slane %v1102, %v2123
        %v2126 = vmul.f32 %v2119, %v2124
        %v2128 = vlaneseq
        %v2129 = vshrl.u32 %v2128, 7
        %v2130 = vsub.s32 0, %v2129
        %v2131 = vrot.slane %v1103, %v2130
        %v2133 = vadd.f32 %v2126, %v2131
        %v2134 = vmul.f32 %v2133, %v1053
        %s2135 = scalar_lea.vmem %s3, 16
        %v2136 = vld [vmem:[%s2135] sm:$0xf]
        %v2137 = vld [vmem:[%s2135 + $0x4] sm:$0xf]
        %v2138 = vld [vmem:[%s2135 + $0x8] sm:$0xf]
        %v2139 = vld [vmem:[%s2135 + $0xc] sm:$0xf]
        %s2140 = scalar_lea.vmem [#allocation4], 1
        %v2141 = vld [vmem:[%s2140] sm:$0x1]
        %s2142 = scalar_lea.vmem %s7, 16
        %v2143 = vld [vmem:[%s2142] sm:$0xf]
        %v2144 = vld [vmem:[%s2142 + $0x4] sm:$0xf]
        %v2145 = vld [vmem:[%s2142 + $0x8] sm:$0xf]
        %v2146 = vld [vmem:[%s2142 + $0xc] sm:$0xf]
        %s2147 = scalar_lea.vmem [#allocation7], 1
        %v2148 = vld [vmem:[%s2147] sm:$0x1]
        %s2149 = scalar_lea.vmem %s11, 1
        %v2150 = vld [vmem:[%s2149] sm:$0x1]
        %s2151 = scalar_lea.vmem %s13, 1
        %v2152 = vld [vmem:[%s2151] sm:$0x1]
        %s2153 = scalar_lea.vmem %s15, 16
        %v2154 = vld [vmem:[%s2153] sm:$0xf]
        %v2155 = vld [vmem:[%s2153 + $0x4] sm:$0xf]
        %v2156 = vld [vmem:[%s2153 + $0x8] sm:$0xf]
        %v2157 = vld [vmem:[%s2153 + $0xc] sm:$0xf]
        %s2158 = scalar_lea.vmem [#allocation9], 1
        %v2159 = vld [vmem:[%s2158] sm:$0x1]
        %s2160 = scalar_lea.vmem %s19, 32
        %v2161 = vld [vmem:[%s2160] sm:$0xf]
        %v2162 = vld [vmem:[%s2160 + $0x4] sm:$0xf]
        %v2163 = vld [vmem:[%s2160 + $0x8] sm:$0xf]
        %v2164 = vld [vmem:[%s2160 + $0xc] sm:$0xf]
        %v2165 = vld [vmem:[%s2160 + $0x10] sm:$0xf]
        %v2166 = vld [vmem:[%s2160 + $0x14] sm:$0xf]
        %v2167 = vld [vmem:[%s2160 + $0x18] sm:$0xf]
        %v2168 = vld [vmem:[%s2160 + $0x1c] sm:$0xf]
        %s2169 = scalar_lea.vmem [#allocation10], 1
        %v2170 = vld [vmem:[%s2169] sm:$0x1]
        %s2171 = scalar_lea.vmem %s23, 1
        %v2172 = vld [vmem:[%s2171] sm:$0x1]
        %s2173 = scalar_lea.vmem %s25, 1
        %v2174 = vld [vmem:[%s2173] sm:$0x1]
        %v2175 = vpack.c.bf16 %v2134, %v2134
        %v2177 = vlaneseq
        %v2178 = vshrl.u32 %v2177, 7
        %v2179 = vsub.s32 0, %v2178
        %v2180 = vrot.slane %v2141, %v2179
        %v2186 = vunpack.c.l.b16 %v2136
        %v2187 = vunpack.c.l.b16 %v2137
        %v2188 = vunpack.c.l.b16 %v2138
        %v2189 = vunpack.c.l.b16 %v2139
        %v2190 = vpack.c.b16 %v2187, %v2186
        %v2191 = vpack.c.b16 %v2189, %v2188
        %v2195 = vsel %vm1047, %v2175, 0
        %2197 = vmatprep.subr.bf16.mxu0 0
        %2198 = vmatpush1.bf16.msra.mxu0 0
        %2199 = vmatprep.subr.bf16.mxu0 0
        %2200 = vmatpush1.bf16.msra.mxu0 0
        %2201 = vmatprep.subr.bf16.mxu0 0
        %2202 = vmatpush1.bf16.msra.mxu0 0
        %2203 = vmatprep.subr.bf16.mxu0 0
        %2204 = vmatpush1.bf16.msra.mxu0 0
        %2205 = vmatprep.subr.bf16.mxu0 0
        %2206 = vmatpush1.bf16.msra.mxu0 0
        %2207 = vmatprep.subr.bf16.mxu0 0
        %2208 = vmatpush1.bf16.msra.mxu0 0
        %2209 = vmatprep.subr.bf16.mxu0 0
        %2210 = vmatpush1.bf16.msra.mxu0 %v2191
        %2211 = vmatprep.subr.bf16.mxu0 0
        %2212 = vmatpush1.bf16.msra.mxu0 %v2190
        %2213 = vmatprep.subr.bf16.mxu0 0
        %2214 = vmatpush2.bf16.msra.mxu0 0
        %2215 = vmatprep.subr.bf16.mxu0 0
        %2216 = vmatpush2.bf16.msra.mxu0 0
        %2217 = vmatprep.subr.bf16.mxu0 0
        %2218 = vmatpush2.bf16.msra.mxu0 0
        %2219 = vmatprep.subr.bf16.mxu0 0
        %2220 = vmatpush2.bf16.msra.mxu0 0
        %2221 = vmatprep.subr.bf16.mxu0 0
        %2222 = vmatpush2.bf16.msra.mxu0 0
        %2223 = vmatprep.subr.bf16.mxu0 0
        %2224 = vmatpush2.bf16.msra.mxu0 0
        %2225 = vmatprep.subr.bf16.mxu0 0
        %2226 = vmatpush2.bf16.msra.mxu0 0
        %2227 = vmatprep.subr.bf16.mxu0 0
        %2228 = vmatpush2.bf16.msra.mxu0 0
        %2229 = vmatprep.mubr.bf16.mxu0 0
        %2230 = vmatmul.mubr.bf16.gmra.mxu0 %v2195
        %v2231 = vpop.f32.mrf.mxu0
        %v2232 = vadd.f32 %v2180, %v2231
        %v2233 = vpop.f32.mrf.mxu0
        %v2234 = vpop.f32.mrf.mxu0
        %v2235 = vpop.f32.mrf.mxu0
        %2236 = vdwg.mxu0
        %v2237 = vmul.f32 %v2232, %v1060
        %v2238 = vmul.f32 %v2232, %v1169
        %2240 = vrot.lane.b32.xlu0 %v2238, 96
        %v2241 = vpop.permute.xlu0 %2240
        %v2243 = vsel %vm1047, %v2237, 0
        %v2245 = vsel %vm1047, %v2241, 0
        %2247 = vmatprep.subr.mxu0 0.0
        %2248 = vmatpush1.xpose.msra.mxu0 0.0
        %2249 = vmatprep.subr.mxu0 0.0
        %2250 = vmatpush1.xpose.msra.mxu0 0.0
        %2251 = vmatprep.subr.mxu0 0.0
        %2252 = vmatpush1.xpose.msra.mxu0 0.0
        %2253 = vmatprep.subr.mxu0 0.0
        %2254 = vmatpush1.xpose.msra.mxu0 0.0
        %2255 = vmatprep.subr.mxu0 0.0
        %2256 = vmatpush1.xpose.msra.mxu0 0.0
        %2257 = vmatprep.subr.mxu0 0.0
        %2258 = vmatpush1.xpose.msra.mxu0 0.0
        %2259 = vmatprep.subr.mxu0 0.0
        %2260 = vmatpush1.xpose.msra.mxu0 0.0
        %2261 = vmatprep.subr.mxu0 0.0
        %2262 = vmatpush1.xpose.msra.mxu0 0.0
        %2263 = vmatprep.subr.mxu0 0.0
        %2264 = vmatpush1.xpose.msra.mxu0 0.0
        %2265 = vmatprep.subr.mxu0 0.0
        %2266 = vmatpush1.xpose.msra.mxu0 0.0
        %2267 = vmatprep.subr.mxu0 0.0
        %2268 = vmatpush1.xpose.msra.mxu0 0.0
        %2269 = vmatprep.subr.mxu0 0.0
        %2270 = vmatpush1.xpose.msra.mxu0 0.0
        %2271 = vmatprep.subr.mxu0 0.0
        %2272 = vmatpush1.xpose.msra.mxu0 0.0
        %2273 = vmatprep.subr.mxu0 0.0
        %2274 = vmatpush1.xpose.msra.mxu0 0.0
        %2275 = vmatprep.subr.mxu0 0.0
        %2276 = vmatpush1.xpose.msra.mxu0 0.0
        %2277 = vmatprep.subr.mxu0 0.0
        %2278 = vmatpush1.xpose.msra.mxu0 %v2245
        %2279 = vmatprep.subr.mxu0 0.0
        %2280 = vmatpush2.xpose.msra.mxu0 0.0
        %2281 = vmatprep.subr.mxu0 0.0
        %2282 = vmatpush2.xpose.msra.mxu0 0.0
        %2283 = vmatprep.subr.mxu0 0.0
        %2284 = vmatpush2.xpose.msra.mxu0 0.0
        %2285 = vmatprep.subr.mxu0 0.0
        %2286 = vmatpush2.xpose.msra.mxu0 0.0
        %2287 = vmatprep.subr.mxu0 0.0
        %2288 = vmatpush2.xpose.msra.mxu0 0.0
        %2289 = vmatprep.subr.mxu0 0.0
        %2290 = vmatpush2.xpose.msra.mxu0 0.0
        %2291 = vmatprep.subr.mxu0 0.0
        %2292 = vmatpush2.xpose.msra.mxu0 0.0
        %2293 = vmatprep.subr.mxu0 0.0
        %2294 = vmatpush2.xpose.msra.mxu0 0.0
        %2295 = vmatprep.subr.mxu0 0.0
        %2296 = vmatpush2.xpose.msra.mxu0 0.0
        %2297 = vmatprep.subr.mxu0 0.0
        %2298 = vmatpush2.xpose.msra.mxu0 0.0
        %2299 = vmatprep.subr.mxu0 0.0
        %2300 = vmatpush2.xpose.msra.mxu0 0.0
        %2301 = vmatprep.subr.mxu0 0.0
        %2302 = vmatpush2.xpose.msra.mxu0 0.0
        %2303 = vmatprep.subr.mxu0 0.0
        %2304 = vmatpush2.xpose.msra.mxu0 0.0
        %2305 = vmatprep.subr.mxu0 0.0
        %2306 = vmatpush2.xpose.msra.mxu0 0.0
        %2307 = vmatprep.subr.mxu0 0.0
        %2308 = vmatpush2.xpose.msra.mxu0 0.0
        %2309 = vmatprep.subr.mxu0 0.0
        %2310 = vmatpush2.xpose.msra.mxu0 0.0
        %2311 = vmatprep.mubr.f32.mxu0 0.0
        %2312 = vmatmul.mubr.f32.gmra.mxu0 %v2243
        %v2313 = vpop.f32.mrf.mxu0
        %v2314 = vadd.f32 0.0, %v2313
        %v2315 = vpop.f32.mrf.mxu0
        %2316 = vdwg.mxu0
        %v2317 = vmul.f32 %v2314, 0.35355338
        %v2318 = vsel %vm1251, %v2317, -inf
        %2319 = vmax.xlane.f32.xlu0 %v2318
        %v2320 = vpop.xlane.xlu0 %2319
        %v2321 = vsub.f32 %v2317, %v2320
        %v2322 = vmul.f32 %v2321, 1.442695
        %v2323 = vpow.pop %v2322
        %v2324 = vsel %vm1251, %v2323, 0.0
        %2325 = vadd.xlane.f32.xlu0 %v2324
        %v2326 = vpop.xlane.xlu0 %2325
        %v2327 = vrcp.pop %v2326
        %v2328 = vmul.f32 %v2323, %v2327
        %v2329 = vmul.f32 %v2232, %v1264
        %v2330 = vmul.f32 %v2232, %v1065
        %v2331 = vmul.f32 %v2232, %v1270
        %2333 = vrot.lane.b32.xlu0 %v2331, 96
        %v2334 = vpop.permute.xlu0 %2333
        %v2336 = vsel %vm1047, %v2330, 0
        %v2338 = vsel %vm1047, %v2334, 0
        %2340 = vmatprep.subr.mxu0 0.0
        %2341 = vmatpush1.xpose.msra.mxu0 0.0
        %2342 = vmatprep.subr.mxu0 0.0
        %2343 = vmatpush1.xpose.msra.mxu0 0.0
        %2344 = vmatprep.subr.mxu0 0.0
        %2345 = vmatpush1.xpose.msra.mxu0 0.0
        %2346 = vmatprep.subr.mxu0 0.0
        %2347 = vmatpush1.xpose.msra.mxu0 0.0
        %2348 = vmatprep.subr.mxu0 0.0
        %2349 = vmatpush1.xpose.msra.mxu0 0.0
        %2350 = vmatprep.subr.mxu0 0.0
        %2351 = vmatpush1.xpose.msra.mxu0 0.0
        %2352 = vmatprep.subr.mxu0 0.0
        %2353 = vmatpush1.xpose.msra.mxu0 0.0
        %2354 = vmatprep.subr.mxu0 0.0
        %2355 = vmatpush1.xpose.msra.mxu0 0.0
        %2356 = vmatprep.subr.mxu0 0.0
        %2357 = vmatpush1.xpose.msra.mxu0 0.0
        %2358 = vmatprep.subr.mxu0 0.0
        %2359 = vmatpush1.xpose.msra.mxu0 0.0
        %2360 = vmatprep.subr.mxu0 0.0
        %2361 = vmatpush1.xpose.msra.mxu0 0.0
        %2362 = vmatprep.subr.mxu0 0.0
        %2363 = vmatpush1.xpose.msra.mxu0 0.0
        %2364 = vmatprep.subr.mxu0 0.0
        %2365 = vmatpush1.xpose.msra.mxu0 0.0
        %2366 = vmatprep.subr.mxu0 0.0
        %2367 = vmatpush1.xpose.msra.mxu0 0.0
        %2368 = vmatprep.subr.mxu0 0.0
        %2369 = vmatpush1.xpose.msra.mxu0 0.0
        %2370 = vmatprep.subr.mxu0 0.0
        %2371 = vmatpush1.xpose.msra.mxu0 %v2338
        %2372 = vmatprep.subr.mxu0 0.0
        %2373 = vmatpush2.xpose.msra.mxu0 0.0
        %2374 = vmatprep.subr.mxu0 0.0
        %2375 = vmatpush2.xpose.msra.mxu0 0.0
        %2376 = vmatprep.subr.mxu0 0.0
        %2377 = vmatpush2.xpose.msra.mxu0 0.0
        %2378 = vmatprep.subr.mxu0 0.0
        %2379 = vmatpush2.xpose.msra.mxu0 0.0
        %2380 = vmatprep.subr.mxu0 0.0
        %2381 = vmatpush2.xpose.msra.mxu0 0.0
        %2382 = vmatprep.subr.mxu0 0.0
        %2383 = vmatpush2.xpose.msra.mxu0 0.0
        %2384 = vmatprep.subr.mxu0 0.0
        %2385 = vmatpush2.xpose.msra.mxu0 0.0
        %2386 = vmatprep.subr.mxu0 0.0
        %2387 = vmatpush2.xpose.msra.mxu0 0.0
        %2388 = vmatprep.subr.mxu0 0.0
        %2389 = vmatpush2.xpose.msra.mxu0 0.0
        %2390 = vmatprep.subr.mxu0 0.0
        %2391 = vmatpush2.xpose.msra.mxu0 0.0
        %2392 = vmatprep.subr.mxu0 0.0
        %2393 = vmatpush2.xpose.msra.mxu0 0.0
        %2394 = vmatprep.subr.mxu0 0.0
        %2395 = vmatpush2.xpose.msra.mxu0 0.0
        %2396 = vmatprep.subr.mxu0 0.0
        %2397 = vmatpush2.xpose.msra.mxu0 0.0
        %2398 = vmatprep.subr.mxu0 0.0
        %2399 = vmatpush2.xpose.msra.mxu0 0.0
        %2400 = vmatprep.subr.mxu0 0.0
        %2401 = vmatpush2.xpose.msra.mxu0 0.0
        %2402 = vmatprep.subr.mxu0 0.0
        %2403 = vmatpush2.xpose.msra.mxu0 0.0
        %2404 = vmatprep.mubr.f32.mxu0 0.0
        %2405 = vmatmul.mubr.f32.gmra.mxu0 %v2336
        %v2406 = vpop.f32.mrf.mxu0
        %v2407 = vadd.f32 0.0, %v2406
        %v2408 = vpop.f32.mrf.mxu0
        %2409 = vdwg.mxu0
        %v2410 = vmul.f32 %v2407, 0.35355338
        %v2411 = vsel %vm1251, %v2410, -inf
        %2412 = vmax.xlane.f32.xlu0 %v2411
        %v2413 = vpop.xlane.xlu0 %2412
        %v2414 = vsub.f32 %v2410, %v2413
        %v2415 = vmul.f32 %v2414, 1.442695
        %v2416 = vpow.pop %v2415
        %v2417 = vsel %vm1251, %v2416, 0.0
        %2418 = vadd.xlane.f32.xlu0 %v2417
        %v2419 = vpop.xlane.xlu0 %2418
        %v2420 = vrcp.pop %v2419
        %v2421 = vmul.f32 %v2416, %v2420
        %v2422 = vmul.f32 %v2232, %v1364
        %2424 = vrot.lane.b32.xlu0 %v2422, 64
        %v2425 = vpop.permute.xlu0 %2424
        %v2428 = vsel %vm1251, %v2421, 0
        %2430 = vmatprep.subr.mxu0 0.0
        %2431 = vmatpush1.msra.mxu0 0.0
        %2432 = vmatprep.subr.mxu0 0.0
        %2433 = vmatpush1.msra.mxu0 0.0
        %2434 = vmatprep.subr.mxu0 0.0
        %2435 = vmatpush1.msra.mxu0 0.0
        %2436 = vmatprep.subr.mxu0 0.0
        %2437 = vmatpush1.msra.mxu0 0.0
        %2438 = vmatprep.subr.mxu0 0.0
        %2439 = vmatpush1.msra.mxu0 0.0
        %2440 = vmatprep.subr.mxu0 0.0
        %2441 = vmatpush1.msra.mxu0 0.0
        %2442 = vmatprep.subr.mxu0 0.0
        %2443 = vmatpush1.msra.mxu0 0.0
        %2444 = vmatprep.subr.mxu0 0.0
        %2445 = vmatpush1.msra.mxu0 0.0
        %2446 = vmatprep.subr.mxu0 0.0
        %2447 = vmatpush1.msra.mxu0 0.0
        %2448 = vmatprep.subr.mxu0 0.0
        %2449 = vmatpush1.msra.mxu0 0.0
        %2450 = vmatprep.subr.mxu0 0.0
        %2451 = vmatpush1.msra.mxu0 0.0
        %2452 = vmatprep.subr.mxu0 0.0
        %2453 = vmatpush1.msra.mxu0 0.0
        %2454 = vmatprep.subr.mxu0 0.0
        %2455 = vmatpush1.msra.mxu0 0.0
        %2456 = vmatprep.subr.mxu0 0.0
        %2457 = vmatpush1.msra.mxu0 0.0
        %2458 = vmatprep.subr.mxu0 0.0
        %2459 = vmatpush1.msra.mxu0 0.0
        %2460 = vmatprep.subr.mxu0 0.0
        %2461 = vmatpush1.msra.mxu0 %v2425
        %2462 = vmatprep.subr.mxu0 0.0
        %2463 = vmatpush2.msra.mxu0 0.0
        %2464 = vmatprep.subr.mxu0 0.0
        %2465 = vmatpush2.msra.mxu0 0.0
        %2466 = vmatprep.subr.mxu0 0.0
        %2467 = vmatpush2.msra.mxu0 0.0
        %2468 = vmatprep.subr.mxu0 0.0
        %2469 = vmatpush2.msra.mxu0 0.0
        %2470 = vmatprep.subr.mxu0 0.0
        %2471 = vmatpush2.msra.mxu0 0.0
        %2472 = vmatprep.subr.mxu0 0.0
        %2473 = vmatpush2.msra.mxu0 0.0
        %2474 = vmatprep.subr.mxu0 0.0
        %2475 = vmatpush2.msra.mxu0 0.0
        %2476 = vmatprep.subr.mxu0 0.0
        %2477 = vmatpush2.msra.mxu0 0.0
        %2478 = vmatprep.subr.mxu0 0.0
        %2479 = vmatpush2.msra.mxu0 0.0
        %2480 = vmatprep.subr.mxu0 0.0
        %2481 = vmatpush2.msra.mxu0 0.0
        %2482 = vmatprep.subr.mxu0 0.0
        %2483 = vmatpush2.msra.mxu0 0.0
        %2484 = vmatprep.subr.mxu0 0.0
        %2485 = vmatpush2.msra.mxu0 0.0
        %2486 = vmatprep.subr.mxu0 0.0
        %2487 = vmatpush2.msra.mxu0 0.0
        %2488 = vmatprep.subr.mxu0 0.0
        %2489 = vmatpush2.msra.mxu0 0.0
        %2490 = vmatprep.subr.mxu0 0.0
        %2491 = vmatpush2.msra.mxu0 0.0
        %2492 = vmatprep.subr.mxu0 0.0
        %2493 = vmatpush2.msra.mxu0 0.0
        %2494 = vmatprep.mubr.f32.mxu0 0.0
        %2495 = vmatmul.mubr.f32.gmra.mxu0 %v2428
        %v2496 = vpop.f32.mrf.mxu0
        %v2497 = vadd.f32 0.0, %v2496
        %v2498 = vpop.f32.mrf.mxu0
        %2499 = vdwg.mxu0
        %2501 = vrot.lane.b32.xlu0 %v2329, 64
        %v2502 = vpop.permute.xlu0 %2501
        %v2505 = vsel %vm1251, %v2328, 0
        %2507 = vmatprep.subr.mxu0 0.0
        %2508 = vmatpush1.msra.mxu0 0.0
        %2509 = vmatprep.subr.mxu0 0.0
        %2510 = vmatpush1.msra.mxu0 0.0
        %2511 = vmatprep.subr.mxu0 0.0
        %2512 = vmatpush1.msra.mxu0 0.0
        %2513 = vmatprep.subr.mxu0 0.0
        %2514 = vmatpush1.msra.mxu0 0.0
        %2515 = vmatprep.subr.mxu0 0.0
        %2516 = vmatpush1.msra.mxu0 0.0
        %2517 = vmatprep.subr.mxu0 0.0
        %2518 = vmatpush1.msra.mxu0 0.0
        %2519 = vmatprep.subr.mxu0 0.0
        %2520 = vmatpush1.msra.mxu0 0.0
        %2521 = vmatprep.subr.mxu0 0.0
        %2522 = vmatpush1.msra.mxu0 0.0
        %2523 = vmatprep.subr.mxu0 0.0
        %2524 = vmatpush1.msra.mxu0 0.0
        %2525 = vmatprep.subr.mxu0 0.0
        %2526 = vmatpush1.msra.mxu0 0.0
        %2527 = vmatprep.subr.mxu0 0.0
        %2528 = vmatpush1.msra.mxu0 0.0
        %2529 = vmatprep.subr.mxu0 0.0
        %2530 = vmatpush1.msra.mxu0 0.0
        %2531 = vmatprep.subr.mxu0 0.0
        %2532 = vmatpush1.msra.mxu0 0.0
        %2533 = vmatprep.subr.mxu0 0.0
        %2534 = vmatpush1.msra.mxu0 0.0
        %2535 = vmatprep.subr.mxu0 0.0
        %2536 = vmatpush1.msra.mxu0 0.0
        %2537 = vmatprep.subr.mxu0 0.0
        %2538 = vmatpush1.msra.mxu0 %v2502
        %2539 = vmatprep.subr.mxu0 0.0
        %2540 = vmatpush2.msra.mxu0 0.0
        %2541 = vmatprep.subr.mxu0 0.0
        %2542 = vmatpush2.msra.mxu0 0.0
        %2543 = vmatprep.subr.mxu0 0.0
        %2544 = vmatpush2.msra.mxu0 0.0
        %2545 = vmatprep.subr.mxu0 0.0
        %2546 = vmatpush2.msra.mxu0 0.0
        %2547 = vmatprep.subr.mxu0 0.0
        %2548 = vmatpush2.msra.mxu0 0.0
        %2549 = vmatprep.subr.mxu0 0.0
        %2550 = vmatpush2.msra.mxu0 0.0
        %2551 = vmatprep.subr.mxu0 0.0
        %2552 = vmatpush2.msra.mxu0 0.0
        %2553 = vmatprep.subr.mxu0 0.0
        %2554 = vmatpush2.msra.mxu0 0.0
        %2555 = vmatprep.subr.mxu0 0.0
        %2556 = vmatpush2.msra.mxu0 0.0
        %2557 = vmatprep.subr.mxu0 0.0
        %2558 = vmatpush2.msra.mxu0 0.0
        %2559 = vmatprep.subr.mxu0 0.0
        %2560 = vmatpush2.msra.mxu0 0.0
        %2561 = vmatprep.subr.mxu0 0.0
        %2562 = vmatpush2.msra.mxu0 0.0
        %2563 = vmatprep.subr.mxu0 0.0
        %2564 = vmatpush2.msra.mxu0 0.0
        %2565 = vmatprep.subr.mxu0 0.0
        %2566 = vmatpush2.msra.mxu0 0.0
        %2567 = vmatprep.subr.mxu0 0.0
        %2568 = vmatpush2.msra.mxu0 0.0
        %2569 = vmatprep.subr.mxu0 0.0
        %2570 = vmatpush2.msra.mxu0 0.0
        %2571 = vmatprep.mubr.f32.mxu0 0.0
        %2572 = vmatmul.mubr.f32.gmra.mxu0 %v2505
        %v2573 = vpop.f32.mrf.mxu0
        %v2574 = vadd.f32 %v2497, %v2573
        %v2575 = vpop.f32.mrf.mxu0
        %2576 = vdwg.mxu0
        %v2577 = vmul.f32 %v2232, %v1070
        %v2578 = vmul.f32 %v2232, %v1524
        %2580 = vrot.lane.b32.xlu0 %v2578, 96
        %v2581 = vpop.permute.xlu0 %2580
        %v2583 = vsel %vm1047, %v2577, 0
        %v2585 = vsel %vm1047, %v2581, 0
        %2587 = vmatprep.subr.mxu0 0.0
        %2588 = vmatpush1.xpose.msra.mxu0 0.0
        %2589 = vmatprep.subr.mxu0 0.0
        %2590 = vmatpush1.xpose.msra.mxu0 0.0
        %2591 = vmatprep.subr.mxu0 0.0
        %2592 = vmatpush1.xpose.msra.mxu0 0.0
        %2593 = vmatprep.subr.mxu0 0.0
        %2594 = vmatpush1.xpose.msra.mxu0 0.0
        %2595 = vmatprep.subr.mxu0 0.0
        %2596 = vmatpush1.xpose.msra.mxu0 0.0
        %2597 = vmatprep.subr.mxu0 0.0
        %2598 = vmatpush1.xpose.msra.mxu0 0.0
        %2599 = vmatprep.subr.mxu0 0.0
        %2600 = vmatpush1.xpose.msra.mxu0 0.0
        %2601 = vmatprep.subr.mxu0 0.0
        %2602 = vmatpush1.xpose.msra.mxu0 0.0
        %2603 = vmatprep.subr.mxu0 0.0
        %2604 = vmatpush1.xpose.msra.mxu0 0.0
        %2605 = vmatprep.subr.mxu0 0.0
        %2606 = vmatpush1.xpose.msra.mxu0 0.0
        %2607 = vmatprep.subr.mxu0 0.0
        %2608 = vmatpush1.xpose.msra.mxu0 0.0
        %2609 = vmatprep.subr.mxu0 0.0
        %2610 = vmatpush1.xpose.msra.mxu0 0.0
        %2611 = vmatprep.subr.mxu0 0.0
        %2612 = vmatpush1.xpose.msra.mxu0 0.0
        %2613 = vmatprep.subr.mxu0 0.0
        %2614 = vmatpush1.xpose.msra.mxu0 0.0
        %2615 = vmatprep.subr.mxu0 0.0
        %2616 = vmatpush1.xpose.msra.mxu0 0.0
        %2617 = vmatprep.subr.mxu0 0.0
        %2618 = vmatpush1.xpose.msra.mxu0 %v2585
        %2619 = vmatprep.subr.mxu0 0.0
        %2620 = vmatpush2.xpose.msra.mxu0 0.0
        %2621 = vmatprep.subr.mxu0 0.0
        %2622 = vmatpush2.xpose.msra.mxu0 0.0
        %2623 = vmatprep.subr.mxu0 0.0
        %2624 = vmatpush2.xpose.msra.mxu0 0.0
        %2625 = vmatprep.subr.mxu0 0.0
        %2626 = vmatpush2.xpose.msra.mxu0 0.0
        %2627 = vmatprep.subr.mxu0 0.0
        %2628 = vmatpush2.xpose.msra.mxu0 0.0
        %2629 = vmatprep.subr.mxu0 0.0
        %2630 = vmatpush2.xpose.msra.mxu0 0.0
        %2631 = vmatprep.subr.mxu0 0.0
        %2632 = vmatpush2.xpose.msra.mxu0 0.0
        %2633 = vmatprep.subr.mxu0 0.0
        %2634 = vmatpush2.xpose.msra.mxu0 0.0
        %2635 = vmatprep.subr.mxu0 0.0
        %2636 = vmatpush2.xpose.msra.mxu0 0.0
        %2637 = vmatprep.subr.mxu0 0.0
        %2638 = vmatpush2.xpose.msra.mxu0 0.0
        %2639 = vmatprep.subr.mxu0 0.0
        %2640 = vmatpush2.xpose.msra.mxu0 0.0
        %2641 = vmatprep.subr.mxu0 0.0
        %2642 = vmatpush2.xpose.msra.mxu0 0.0
        %2643 = vmatprep.subr.mxu0 0.0
        %2644 = vmatpush2.xpose.msra.mxu0 0.0
        %2645 = vmatprep.subr.mxu0 0.0
        %2646 = vmatpush2.xpose.msra.mxu0 0.0
        %2647 = vmatprep.subr.mxu0 0.0
        %2648 = vmatpush2.xpose.msra.mxu0 0.0
        %2649 = vmatprep.subr.mxu0 0.0
        %2650 = vmatpush2.xpose.msra.mxu0 0.0
        %2651 = vmatprep.mubr.f32.mxu0 0.0
        %2652 = vmatmul.mubr.f32.gmra.mxu0 %v2583
        %v2653 = vpop.f32.mrf.mxu0
        %v2654 = vadd.f32 0.0, %v2653
        %v2655 = vpop.f32.mrf.mxu0
        %2656 = vdwg.mxu0
        %v2657 = vmul.f32 %v2654, 0.35355338
        %v2658 = vsel %vm1251, %v2657, -inf
        %2659 = vmax.xlane.f32.xlu0 %v2658
        %v2660 = vpop.xlane.xlu0 %2659
        %v2661 = vsub.f32 %v2657, %v2660
        %v2662 = vmul.f32 %v2661, 1.442695
        %v2663 = vpow.pop %v2662
        %v2664 = vsel %vm1251, %v2663, 0.0
        %2665 = vadd.xlane.f32.xlu0 %v2664
        %v2666 = vpop.xlane.xlu0 %2665
        %v2667 = vrcp.pop %v2666
        %v2668 = vmul.f32 %v2663, %v2667
        %v2669 = vmul.f32 %v2232, %v1618
        %2671 = vrot.lane.b32.xlu0 %v2669, 64
        %v2672 = vpop.permute.xlu0 %2671
        %v2675 = vsel %vm1251, %v2668, 0
        %2677 = vmatprep.subr.mxu0 0.0
        %2678 = vmatpush1.msra.mxu0 0.0
        %2679 = vmatprep.subr.mxu0 0.0
        %2680 = vmatpush1.msra.mxu0 0.0
        %2681 = vmatprep.subr.mxu0 0.0
        %2682 = vmatpush1.msra.mxu0 0.0
        %2683 = vmatprep.subr.mxu0 0.0
        %2684 = vmatpush1.msra.mxu0 0.0
        %2685 = vmatprep.subr.mxu0 0.0
        %2686 = vmatpush1.msra.mxu0 0.0
        %2687 = vmatprep.subr.mxu0 0.0
        %2688 = vmatpush1.msra.mxu0 0.0
        %2689 = vmatprep.subr.mxu0 0.0
        %2690 = vmatpush1.msra.mxu0 0.0
        %2691 = vmatprep.subr.mxu0 0.0
        %2692 = vmatpush1.msra.mxu0 0.0
        %2693 = vmatprep.subr.mxu0 0.0
        %2694 = vmatpush1.msra.mxu0 0.0
        %2695 = vmatprep.subr.mxu0 0.0
        %2696 = vmatpush1.msra.mxu0 0.0
        %2697 = vmatprep.subr.mxu0 0.0
        %2698 = vmatpush1.msra.mxu0 0.0
        %2699 = vmatprep.subr.mxu0 0.0
        %2700 = vmatpush1.msra.mxu0 0.0
        %2701 = vmatprep.subr.mxu0 0.0
        %2702 = vmatpush1.msra.mxu0 0.0
        %2703 = vmatprep.subr.mxu0 0.0
        %2704 = vmatpush1.msra.mxu0 0.0
        %2705 = vmatprep.subr.mxu0 0.0
        %2706 = vmatpush1.msra.mxu0 0.0
        %2707 = vmatprep.subr.mxu0 0.0
        %2708 = vmatpush1.msra.mxu0 %v2672
        %2709 = vmatprep.subr.mxu0 0.0
        %2710 = vmatpush2.msra.mxu0 0.0
        %2711 = vmatprep.subr.mxu0 0.0
        %2712 = vmatpush2.msra.mxu0 0.0
        %2713 = vmatprep.subr.mxu0 0.0
        %2714 = vmatpush2.msra.mxu0 0.0
        %2715 = vmatprep.subr.mxu0 0.0
        %2716 = vmatpush2.msra.mxu0 0.0
        %2717 = vmatprep.subr.mxu0 0.0
        %2718 = vmatpush2.msra.mxu0 0.0
        %2719 = vmatprep.subr.mxu0 0.0
        %2720 = vmatpush2.msra.mxu0 0.0
        %2721 = vmatprep.subr.mxu0 0.0
        %2722 = vmatpush2.msra.mxu0 0.0
        %2723 = vmatprep.subr.mxu0 0.0
        %2724 = vmatpush2.msra.mxu0 0.0
        %2725 = vmatprep.subr.mxu0 0.0
        %2726 = vmatpush2.msra.mxu0 0.0
        %2727 = vmatprep.subr.mxu0 0.0
        %2728 = vmatpush2.msra.mxu0 0.0
        %2729 = vmatprep.subr.mxu0 0.0
        %2730 = vmatpush2.msra.mxu0 0.0
        %2731 = vmatprep.subr.mxu0 0.0
        %2732 = vmatpush2.msra.mxu0 0.0
        %2733 = vmatprep.subr.mxu0 0.0
        %2734 = vmatpush2.msra.mxu0 0.0
        %2735 = vmatprep.subr.mxu0 0.0
        %2736 = vmatpush2.msra.mxu0 0.0
        %2737 = vmatprep.subr.mxu0 0.0
        %2738 = vmatpush2.msra.mxu0 0.0
        %2739 = vmatprep.subr.mxu0 0.0
        %2740 = vmatpush2.msra.mxu0 0.0
        %2741 = vmatprep.mubr.f32.mxu0 0.0
        %2742 = vmatmul.mubr.f32.gmra.mxu0 %v2675
        %v2743 = vpop.f32.mrf.mxu0
        %v2744 = vadd.f32 0.0, %v2743
        %v2745 = vpop.f32.mrf.mxu0
        %2746 = vdwg.mxu0
        %v2747 = vadd.f32 %v2574, %v2744
        %v2748 = vmul.f32 %v2232, %v1075
        %v2749 = vmul.f32 %v2232, %v1702
        %2751 = vrot.lane.b32.xlu0 %v2749, 96
        %v2752 = vpop.permute.xlu0 %2751
        %v2754 = vsel %vm1047, %v2748, 0
        %v2756 = vsel %vm1047, %v2752, 0
        %2758 = vmatprep.subr.mxu0 0.0
        %2759 = vmatpush1.xpose.msra.mxu0 0.0
        %2760 = vmatprep.subr.mxu0 0.0
        %2761 = vmatpush1.xpose.msra.mxu0 0.0
        %2762 = vmatprep.subr.mxu0 0.0
        %2763 = vmatpush1.xpose.msra.mxu0 0.0
        %2764 = vmatprep.subr.mxu0 0.0
        %2765 = vmatpush1.xpose.msra.mxu0 0.0
        %2766 = vmatprep.subr.mxu0 0.0
        %2767 = vmatpush1.xpose.msra.mxu0 0.0
        %2768 = vmatprep.subr.mxu0 0.0
        %2769 = vmatpush1.xpose.msra.mxu0 0.0
        %2770 = vmatprep.subr.mxu0 0.0
        %2771 = vmatpush1.xpose.msra.mxu0 0.0
        %2772 = vmatprep.subr.mxu0 0.0
        %2773 = vmatpush1.xpose.msra.mxu0 0.0
        %2774 = vmatprep.subr.mxu0 0.0
        %2775 = vmatpush1.xpose.msra.mxu0 0.0
        %2776 = vmatprep.subr.mxu0 0.0
        %2777 = vmatpush1.xpose.msra.mxu0 0.0
        %2778 = vmatprep.subr.mxu0 0.0
        %2779 = vmatpush1.xpose.msra.mxu0 0.0
        %2780 = vmatprep.subr.mxu0 0.0
        %2781 = vmatpush1.xpose.msra.mxu0 0.0
        %2782 = vmatprep.subr.mxu0 0.0
        %2783 = vmatpush1.xpose.msra.mxu0 0.0
        %2784 = vmatprep.subr.mxu0 0.0
        %2785 = vmatpush1.xpose.msra.mxu0 0.0
        %2786 = vmatprep.subr.mxu0 0.0
        %2787 = vmatpush1.xpose.msra.mxu0 0.0
        %2788 = vmatprep.subr.mxu0 0.0
        %2789 = vmatpush1.xpose.msra.mxu0 %v2756
        %2790 = vmatprep.subr.mxu0 0.0
        %2791 = vmatpush2.xpose.msra.mxu0 0.0
        %2792 = vmatprep.subr.mxu0 0.0
        %2793 = vmatpush2.xpose.msra.mxu0 0.0
        %2794 = vmatprep.subr.mxu0 0.0
        %2795 = vmatpush2.xpose.msra.mxu0 0.0
        %2796 = vmatprep.subr.mxu0 0.0
        %2797 = vmatpush2.xpose.msra.mxu0 0.0
        %2798 = vmatprep.subr.mxu0 0.0
        %2799 = vmatpush2.xpose.msra.mxu0 0.0
        %2800 = vmatprep.subr.mxu0 0.0
        %2801 = vmatpush2.xpose.msra.mxu0 0.0
        %2802 = vmatprep.subr.mxu0 0.0
        %2803 = vmatpush2.xpose.msra.mxu0 0.0
        %2804 = vmatprep.subr.mxu0 0.0
        %2805 = vmatpush2.xpose.msra.mxu0 0.0
        %2806 = vmatprep.subr.mxu0 0.0
        %2807 = vmatpush2.xpose.msra.mxu0 0.0
        %2808 = vmatprep.subr.mxu0 0.0
        %2809 = vmatpush2.xpose.msra.mxu0 0.0
        %2810 = vmatprep.subr.mxu0 0.0
        %2811 = vmatpush2.xpose.msra.mxu0 0.0
        %2812 = vmatprep.subr.mxu0 0.0
        %2813 = vmatpush2.xpose.msra.mxu0 0.0
        %2814 = vmatprep.subr.mxu0 0.0
        %2815 = vmatpush2.xpose.msra.mxu0 0.0
        %2816 = vmatprep.subr.mxu0 0.0
        %2817 = vmatpush2.xpose.msra.mxu0 0.0
        %2818 = vmatprep.subr.mxu0 0.0
        %2819 = vmatpush2.xpose.msra.mxu0 0.0
        %2820 = vmatprep.subr.mxu0 0.0
        %2821 = vmatpush2.xpose.msra.mxu0 0.0
        %2822 = vmatprep.mubr.f32.mxu0 0.0
        %2823 = vmatmul.mubr.f32.gmra.mxu0 %v2754
        %v2824 = vpop.f32.mrf.mxu0
        %v2825 = vadd.f32 0.0, %v2824
        %v2826 = vpop.f32.mrf.mxu0
        %2827 = vdwg.mxu0
        %v2828 = vmul.f32 %v2825, 0.35355338
        %v2829 = vsel %vm1251, %v2828, -inf
        %2830 = vmax.xlane.f32.xlu0 %v2829
        %v2831 = vpop.xlane.xlu0 %2830
        %v2832 = vsub.f32 %v2828, %v2831
        %v2833 = vmul.f32 %v2832, 1.442695
        %v2834 = vpow.pop %v2833
        %v2835 = vsel %vm1251, %v2834, 0.0
        %2836 = vadd.xlane.f32.xlu0 %v2835
        %v2837 = vpop.xlane.xlu0 %2836
        %v2838 = vrcp.pop %v2837
        %v2839 = vmul.f32 %v2834, %v2838
        %v2840 = vmul.f32 %v2232, %v1796
        %2842 = vrot.lane.b32.xlu0 %v2840, 64
        %v2843 = vpop.permute.xlu0 %2842
        %v2846 = vsel %vm1251, %v2839, 0
        %2848 = vmatprep.subr.mxu0 0.0
        %2849 = vmatpush1.msra.mxu0 0.0
        %2850 = vmatprep.subr.mxu0 0.0
        %2851 = vmatpush1.msra.mxu0 0.0
        %2852 = vmatprep.subr.mxu0 0.0
        %2853 = vmatpush1.msra.mxu0 0.0
        %2854 = vmatprep.subr.mxu0 0.0
        %2855 = vmatpush1.msra.mxu0 0.0
        %2856 = vmatprep.subr.mxu0 0.0
        %2857 = vmatpush1.msra.mxu0 0.0
        %2858 = vmatprep.subr.mxu0 0.0
        %2859 = vmatpush1.msra.mxu0 0.0
        %2860 = vmatprep.subr.mxu0 0.0
        %2861 = vmatpush1.msra.mxu0 0.0
        %2862 = vmatprep.subr.mxu0 0.0
        %2863 = vmatpush1.msra.mxu0 0.0
        %2864 = vmatprep.subr.mxu0 0.0
        %2865 = vmatpush1.msra.mxu0 0.0
        %2866 = vmatprep.subr.mxu0 0.0
        %2867 = vmatpush1.msra.mxu0 0.0
        %2868 = vmatprep.subr.mxu0 0.0
        %2869 = vmatpush1.msra.mxu0 0.0
        %2870 = vmatprep.subr.mxu0 0.0
        %2871 = vmatpush1.msra.mxu0 0.0
        %2872 = vmatprep.subr.mxu0 0.0
        %2873 = vmatpush1.msra.mxu0 0.0
        %2874 = vmatprep.subr.mxu0 0.0
        %2875 = vmatpush1.msra.mxu0 0.0
        %2876 = vmatprep.subr.mxu0 0.0
        %2877 = vmatpush1.msra.mxu0 0.0
        %2878 = vmatprep.subr.mxu0 0.0
        %2879 = vmatpush1.msra.mxu0 %v2843
        %2880 = vmatprep.subr.mxu0 0.0
        %2881 = vmatpush2.msra.mxu0 0.0
        %2882 = vmatprep.subr.mxu0 0.0
        %2883 = vmatpush2.msra.mxu0 0.0
        %2884 = vmatprep.subr.mxu0 0.0
        %2885 = vmatpush2.msra.mxu0 0.0
        %2886 = vmatprep.subr.mxu0 0.0
        %2887 = vmatpush2.msra.mxu0 0.0
        %2888 = vmatprep.subr.mxu0 0.0
        %2889 = vmatpush2.msra.mxu0 0.0
        %2890 = vmatprep.subr.mxu0 0.0
        %2891 = vmatpush2.msra.mxu0 0.0
        %2892 = vmatprep.subr.mxu0 0.0
        %2893 = vmatpush2.msra.mxu0 0.0
        %2894 = vmatprep.subr.mxu0 0.0
        %2895 = vmatpush2.msra.mxu0 0.0
        %2896 = vmatprep.subr.mxu0 0.0
        %2897 = vmatpush2.msra.mxu0 0.0
        %2898 = vmatprep.subr.mxu0 0.0
        %2899 = vmatpush2.msra.mxu0 0.0
        %2900 = vmatprep.subr.mxu0 0.0
        %2901 = vmatpush2.msra.mxu0 0.0
        %2902 = vmatprep.subr.mxu0 0.0
        %2903 = vmatpush2.msra.mxu0 0.0
        %2904 = vmatprep.subr.mxu0 0.0
        %2905 = vmatpush2.msra.mxu0 0.0
        %2906 = vmatprep.subr.mxu0 0.0
        %2907 = vmatpush2.msra.mxu0 0.0
        %2908 = vmatprep.subr.mxu0 0.0
        %2909 = vmatpush2.msra.mxu0 0.0
        %2910 = vmatprep.subr.mxu0 0.0
        %2911 = vmatpush2.msra.mxu0 0.0
        %2912 = vmatprep.mubr.f32.mxu0 0.0
        %2913 = vmatmul.mubr.f32.gmra.mxu0 %v2846
        %v2914 = vpop.f32.mrf.mxu0
        %v2915 = vadd.f32 0.0, %v2914
        %v2916 = vpop.f32.mrf.mxu0
        %2917 = vdwg.mxu0
        %v2918 = vadd.f32 %v2747, %v2915
        %v2919 = vpack.c.bf16 %v2918, %v2918
        %v2921 = vlaneseq
        %v2922 = vshrl.u32 %v2921, 7
        %v2923 = vsub.s32 0, %v2922
        %v2924 = vrot.slane %v2148, %v2923
        %v2930 = vunpack.c.l.b16 %v2143
        %v2931 = vunpack.c.l.b16 %v2144
        %v2932 = vunpack.c.l.b16 %v2145
        %v2933 = vunpack.c.l.b16 %v2146
        %v2934 = vpack.c.b16 %v2931, %v2930
        %v2935 = vpack.c.b16 %v2933, %v2932
        %v2939 = vsel %vm1047, %v2919, 0
        %2941 = vmatprep.subr.bf16.mxu0 0
        %2942 = vmatpush1.bf16.msra.mxu0 0
        %2943 = vmatprep.subr.bf16.mxu0 0
        %2944 = vmatpush1.bf16.msra.mxu0 0
        %2945 = vmatprep.subr.bf16.mxu0 0
        %2946 = vmatpush1.bf16.msra.mxu0 0
        %2947 = vmatprep.subr.bf16.mxu0 0
        %2948 = vmatpush1.bf16.msra.mxu0 0
        %2949 = vmatprep.subr.bf16.mxu0 0
        %2950 = vmatpush1.bf16.msra.mxu0 0
        %2951 = vmatprep.subr.bf16.mxu0 0
        %2952 = vmatpush1.bf16.msra.mxu0 0
        %2953 = vmatprep.subr.bf16.mxu0 0
        %2954 = vmatpush1.bf16.msra.mxu0 %v2935
        %2955 = vmatprep.subr.bf16.mxu0 0
        %2956 = vmatpush1.bf16.msra.mxu0 %v2934
        %2957 = vmatprep.subr.bf16.mxu0 0
        %2958 = vmatpush2.bf16.msra.mxu0 0
        %2959 = vmatprep.subr.bf16.mxu0 0
        %2960 = vmatpush2.bf16.msra.mxu0 0
        %2961 = vmatprep.subr.bf16.mxu0 0
        %2962 = vmatpush2.bf16.msra.mxu0 0
        %2963 = vmatprep.subr.bf16.mxu0 0
        %2964 = vmatpush2.bf16.msra.mxu0 0
        %2965 = vmatprep.subr.bf16.mxu0 0
        %2966 = vmatpush2.bf16.msra.mxu0 0
        %2967 = vmatprep.subr.bf16.mxu0 0
        %2968 = vmatpush2.bf16.msra.mxu0 0
        %2969 = vmatprep.subr.bf16.mxu0 0
        %2970 = vmatpush2.bf16.msra.mxu0 0
        %2971 = vmatprep.subr.bf16.mxu0 0
        %2972 = vmatpush2.bf16.msra.mxu0 0
        %2973 = vmatprep.mubr.bf16.mxu0 0
        %2974 = vmatmul.mubr.bf16.gmra.mxu0 %v2939
        %v2975 = vpop.f32.mrf.mxu0
        %v2976 = vadd.f32 %v2924, %v2975
        %v2977 = vpop.f32.mrf.mxu0
        %v2978 = vpop.f32.mrf.mxu0
        %v2979 = vpop.f32.mrf.mxu0
        %2980 = vdwg.mxu0
        %v2981 = vadd.f32 %v2134, %v2976
        %v2982 = vsel %vm1047, %v2981, 0.0
        %2983 = vadd.xlane.f32.xlu0 %v2982
        %v2984 = vpop.xlane.xlu0 %2983
        %v2985 = vmul.f32 %v2984, %v1943
        %v2986 = vsub.f32 %v2981, %v2985
        %v2987 = vmul.f32 %v2986, %v2986
        %v2988 = vsel %vm1047, %v2987, 0.0
        %2989 = vadd.xlane.f32.xlu0 %v2988
        %v2990 = vpop.xlane.xlu0 %2989
        %v2991 = vmul.f32 %v2990, %v1943
        %v2992 = vadd.f32 %v2991, 1e-05
        %v2993 = vrsqrt.pop %v2992
        %v2994 = vmul.f32 %v2986, %v2993
        %v2996 = vlaneseq
        %v2997 = vshrl.u32 %v2996, 7
        %v2998 = vsub.s32 0, %v2997
        %v2999 = vrot.slane %v2150, %v2998
        %v3001 = vmul.f32 %v2994, %v2999
        %v3003 = vlaneseq
        %v3004 = vshrl.u32 %v3003, 7
        %v3005 = vsub.s32 0, %v3004
        %v3006 = vrot.slane %v2152, %v3005
        %v3008 = vadd.f32 %v3001, %v3006
        %v3009 = vpack.c.bf16 %v3008, %v3008
        %v3011 = vlaneseq
        %v3012 = vshrl.u32 %v3011, 7
        %v3013 = vsub.s32 0, %v3012
        %v3014 = vrot.slane %v2159, %v3013
        %v3020 = vunpack.c.l.b16 %v2154
        %v3021 = vunpack.c.l.b16 %v2155
        %v3022 = vunpack.c.l.b16 %v2156
        %v3023 = vunpack.c.l.b16 %v2157
        %v3024 = vpack.c.b16 %v3021, %v3020
        %v3025 = vpack.c.b16 %v3023, %v3022
        %v3029 = vsel %vm1047, %v3009, 0
        %3031 = vmatprep.subr.bf16.mxu0 0
        %3032 = vmatpush1.bf16.msra.mxu0 0
        %3033 = vmatprep.subr.bf16.mxu0 0
        %3034 = vmatpush1.bf16.msra.mxu0 0
        %3035 = vmatprep.subr.bf16.mxu0 0
        %3036 = vmatpush1.bf16.msra.mxu0 0
        %3037 = vmatprep.subr.bf16.mxu0 0
        %3038 = vmatpush1.bf16.msra.mxu0 0
        %3039 = vmatprep.subr.bf16.mxu0 0
        %3040 = vmatpush1.bf16.msra.mxu0 0
        %3041 = vmatprep.subr.bf16.mxu0 0
        %3042 = vmatpush1.bf16.msra.mxu0 0
        %3043 = vmatprep.subr.bf16.mxu0 0
        %3044 = vmatpush1.bf16.msra.mxu0 %v3025
        %3045 = vmatprep.subr.bf16.mxu0 0
        %3046 = vmatpush1.bf16.msra.mxu0 %v3024
        %3047 = vmatprep.subr.bf16.mxu0 0
        %3048 = vmatpush2.bf16.msra.mxu0 0
        %3049 = vmatprep.subr.bf16.mxu0 0
        %3050 = vmatpush2.bf16.msra.mxu0 0
        %3051 = vmatprep.subr.bf16.mxu0 0
        %3052 = vmatpush2.bf16.msra.mxu0 0
        %3053 = vmatprep.subr.bf16.mxu0 0
        %3054 = vmatpush2.bf16.msra.mxu0 0
        %3055 = vmatprep.subr.bf16.mxu0 0
        %3056 = vmatpush2.bf16.msra.mxu0 0
        %3057 = vmatprep.subr.bf16.mxu0 0
        %3058 = vmatpush2.bf16.msra.mxu0 0
        %3059 = vmatprep.subr.bf16.mxu0 0
        %3060 = vmatpush2.bf16.msra.mxu0 0
        %3061 = vmatprep.subr.bf16.mxu0 0
        %3062 = vmatpush2.bf16.msra.mxu0 0
        %3063 = vmatprep.mubr.bf16.mxu0 0
        %3064 = vmatmul.mubr.bf16.gmra.mxu0 %v3029
        %v3065 = vpop.f32.mrf.mxu0
        %v3066 = vadd.f32 %v3014, %v3065
        %v3067 = vpop.f32.mrf.mxu0
        %v3068 = vpop.f32.mrf.mxu0
        %v3069 = vpop.f32.mrf.mxu0
        %3070 = vdwg.mxu0
        %v3071 = vmax.f32 %v3066, 0.0
        %v3072 = vpack.c.bf16 %v3071, %v3071
        %v3074 = vlaneseq
        %v3075 = vshrl.u32 %v3074, 7
        %v3076 = vsub.s32 0, %v3075
        %v3077 = vrot.slane %v2170, %v3076
        %v3087 = vunpack.c.l.b16 %v2161
        %v3088 = vunpack.c.l.b16 %v2162
        %v3089 = vunpack.c.l.b16 %v2163
        %v3090 = vunpack.c.l.b16 %v2164
        %v3091 = vunpack.c.l.b16 %v2165
        %v3092 = vunpack.c.l.b16 %v2166
        %v3093 = vunpack.c.l.b16 %v2167
        %v3094 = vunpack.c.l.b16 %v2168
        %v3095 = vpack.c.b16 %v3088, %v3087
        %v3096 = vpack.c.b16 %v3090, %v3089
        %v3097 = vpack.c.b16 %v3092, %v3091
        %v3098 = vpack.c.b16 %v3094, %v3093
        %v3104 = vsel %vm2062, %v3072, 0
        %3106 = vmatprep.subr.bf16.mxu0 0
        %3107 = vmatpush1.bf16.msra.mxu0 0
        %3108 = vmatprep.subr.bf16.mxu0 0
        %3109 = vmatpush1.bf16.msra.mxu0 0
        %3110 = vmatprep.subr.bf16.mxu0 0
        %3111 = vmatpush1.bf16.msra.mxu0 0
        %3112 = vmatprep.subr.bf16.mxu0 0
        %3113 = vmatpush1.bf16.msra.mxu0 0
        %3114 = vmatprep.subr.bf16.mxu0 0
        %3115 = vmatpush1.bf16.msra.mxu0 %v3098
        %3116 = vmatprep.subr.bf16.mxu0 0
        %3117 = vmatpush1.bf16.msra.mxu0 %v3097
        %3118 = vmatprep.subr.bf16.mxu0 0
        %3119 = vmatpush1.bf16.msra.mxu0 %v3096
        %3120 = vmatprep.subr.bf16.mxu0 0
        %3121 = vmatpush1.bf16.msra.mxu0 %v3095
        %3122 = vmatprep.subr.bf16.mxu0 0
        %3123 = vmatpush2.bf16.msra.mxu0 0
        %3124 = vmatprep.subr.bf16.mxu0 0
        %3125 = vmatpush2.bf16.msra.mxu0 0
        %3126 = vmatprep.subr.bf16.mxu0 0
        %3127 = vmatpush2.bf16.msra.mxu0 0
        %3128 = vmatprep.subr.bf16.mxu0 0
        %3129 = vmatpush2.bf16.msra.mxu0 0
        %3130 = vmatprep.subr.bf16.mxu0 0
        %3131 = vmatpush2.bf16.msra.mxu0 0
        %3132 = vmatprep.subr.bf16.mxu0 0
        %3133 = vmatpush2.bf16.msra.mxu0 0
        %3134 = vmatprep.subr.bf16.mxu0 0
        %3135 = vmatpush2.bf16.msra.mxu0 0
        %3136 = vmatprep.subr.bf16.mxu0 0
        %3137 = vmatpush2.bf16.msra.mxu0 0
        %3138 = vmatprep.mubr.bf16.mxu0 0
        %3139 = vmatmul.mubr.bf16.gmra.mxu0 %v3104
        %v3140 = vpop.f32.mrf.mxu0
        %v3141 = vadd.f32 %v3077, %v3140
        %v3142 = vpop.f32.mrf.mxu0
        %v3143 = vpop.f32.mrf.mxu0
        %v3144 = vpop.f32.mrf.mxu0
        %3145 = vdwg.mxu0
        %v3146 = vadd.f32 %v3008, %v3141
        %v3147 = vsel %vm1047, %v3146, 0.0
        %3148 = vadd.xlane.f32.xlu0 %v3147
        %v3149 = vpop.xlane.xlu0 %3148
        %v3150 = vmul.f32 %v3149, %v1943
        %v3151 = vsub.f32 %v3146, %v3150
        %v3152 = vmul.f32 %v3151, %v3151
        %v3153 = vsel %vm1047, %v3152, 0.0
        %3154 = vadd.xlane.f32.xlu0 %v3153
        %v3155 = vpop.xlane.xlu0 %3154
        %v3156 = vmul.f32 %v3155, %v1943
        %v3157 = vadd.f32 %v3156, 1e-05
        %v3158 = vrsqrt.pop %v3157
        %v3159 = vmul.f32 %v3151, %v3158
        %v3161 = vlaneseq
        %v3162 = vshrl.u32 %v3161, 7
        %v3163 = vsub.s32 0, %v3162
        %v3164 = vrot.slane %v2172, %v3163
        %v3166 = vmul.f32 %v3159, %v3164
        %v3168 = vlaneseq
        %v3169 = vshrl.u32 %v3168, 7
        %v3170 = vsub.s32 0, %v3169
        %v3171 = vrot.slane %v2174, %v3170
        %v3173 = vadd.f32 %v3166, %v3171
        %v3174 = vmul.f32 %v3173, %v1053
        %v3175 = vpack.c.bf16 %v3174, %v3174
        %v3176 = vld [vmem:[%s27] sm:$0xf]
        %v3177 = vld [vmem:[%s27 + $0x4] sm:$0xf]
        %v3178 = vld [vmem:[%s27 + $0x8] sm:$0xf]
        %v3179 = vld [vmem:[%s27 + $0xc] sm:$0xf]
        %v3180 = vld [vmem:[%s29] sm:$0x1]
        %v3182 = vlaneseq
        %v3183 = vshrl.u32 %v3182, 7
        %v3184 = vsub.s32 0, %v3183
        %v3185 = vrot.slane %v3180, %v3184
        %v3191 = vunpack.c.l.b16 %v3176
        %v3192 = vunpack.c.l.b16 %v3177
        %v3193 = vunpack.c.l.b16 %v3178
        %v3194 = vunpack.c.l.b16 %v3179
        %v3195 = vpack.c.b16 %v3192, %v3191
        %v3196 = vpack.c.b16 %v3194, %v3193
        %v3200 = vsel %vm1047, %v3175, 0
        %3202 = vmatprep.subr.bf16.mxu0 0
        %3203 = vmatpush1.bf16.msra.mxu0 0
        %3204 = vmatprep.subr.bf16.mxu0 0
        %3205 = vmatpush1.bf16.msra.mxu0 0
        %3206 = vmatprep.subr.bf16.mxu0 0
        %3207 = vmatpush1.bf16.msra.mxu0 0
        %3208 = vmatprep.subr.bf16.mxu0 0
        %3209 = vmatpush1.bf16.msra.mxu0 0
        %3210 = vmatprep.subr.bf16.mxu0 0
        %3211 = vmatpush1.bf16.msra.mxu0 0
        %3212 = vmatprep.subr.bf16.mxu0 0
        %3213 = vmatpush1.bf16.msra.mxu0 0
        %3214 = vmatprep.subr.bf16.mxu0 0
        %3215 = vmatpush1.bf16.msra.mxu0 %v3196
        %3216 = vmatprep.subr.bf16.mxu0 0
        %3217 = vmatpush1.bf16.msra.mxu0 %v3195
        %3218 = vmatprep.subr.bf16.mxu0 0
        %3219 = vmatpush2.bf16.msra.mxu0 0
        %3220 = vmatprep.subr.bf16.mxu0 0
        %3221 = vmatpush2.bf16.msra.mxu0 0
        %3222 = vmatprep.subr.bf16.mxu0 0
        %3223 = vmatpush2.bf16.msra.mxu0 0
        %3224 = vmatprep.subr.bf16.mxu0 0
        %3225 = vmatpush2.bf16.msra.mxu0 0
        %3226 = vmatprep.subr.bf16.mxu0 0
        %3227 = vmatpush2.bf16.msra.mxu0 0
        %3228 = vmatprep.subr.bf16.mxu0 0
        %3229 = vmatpush2.bf16.msra.mxu0 0
        %3230 = vmatprep.subr.bf16.mxu0 0
        %3231 = vmatpush2.bf16.msra.mxu0 0
        %3232 = vmatprep.subr.bf16.mxu0 0
        %3233 = vmatpush2.bf16.msra.mxu0 0
        %3234 = vmatprep.mubr.bf16.mxu0 0
        %3235 = vmatmul.mubr.bf16.gmra.mxu0 %v3200
        %v3236 = vpop.f32.mrf.mxu0
        %v3237 = vadd.f32 %v3185, %v3236
        %v3238 = vpop.f32.mrf.mxu0
        %v3239 = vpop.f32.mrf.mxu0
        %v3240 = vpop.f32.mrf.mxu0
        %3241 = vdwg.mxu0
        %v3242 = vxor.u32 %v3237, 2147483648
        %v3243 = vmul.f32 %v3242, 1.442695
        %v3244 = vpow.pop %v3243
        %v3245 = vadd.f32 %v3244, 1.0
        %v3246 = vrcp.pop %v3245
        %v3247 = vmul.f32 1.0, %v3246
        %v3248 = vmul.f32 %v3174, %v3247
        %v3249 = vsub.f32 1.0, %v3247
        %v3250 = vmul.f32 %v3174, %v3249
        %3251 = vst.msk [vmem:[%s1017] sm:$0xff] %vm1047, %v3248
        %3252 = vst.msk [vmem:[%s1010] sm:$0xff] %vm1047, %v3250
        %v3253 = vld [vmem:[%s31] sm:$0x1]
        %v3254 = vld [vmem:[#allocation2] sm:$0x1]
        %v3256 = vlaneseq
        %v3257 = vshrl.u32 %v3256, 7
        %v3258 = vsub.s32 0, %v3257
        %v3259 = vrot.slane %v3253, %v3258
        %v3261 = vmul.f32 %v3248, %v3259
        %v3262 = vsel %vm1047, %v3261, 0.0
        %3263 = vadd.xlane.f32.xlu0 %v3262
        %v3264 = vpop.xlane.xlu0 %3263
        %v3266 = vlaneseq
        %v3267 = vshrl.u32 %v3266, 7
        %v3268 = vsub.s32 0, %v3267
        %v3269 = vrot.slane %v3254, %v3268
        %v3271 = vadd.f32 %v3264, %v3269
        %v3272 = vmul.f32 %v3271, %v1053
        %vm3273 = vcmp.eq.f32.partialorder %v3272, 0.0
        %v3274 = vsel %vm3273, -1e+20, %v3272
        %vm3275 = vcmask 7168
        %v3276 = vsel %vm3275, %v3274, -inf
        %v3277 = vrot.slane %v3276, 4
        %v3278 = vmax.f32 %v3276, %v3277
        %v3279 = vrot.slane %v3278, 2
        %v3280 = vmax.f32 %v3278, %v3279
        %v3281 = vrot.slane %v3280, 1
        %v3282 = vmax.f32 %v3280, %v3281
        %v3283 = vsub.f32 %v3274, %v3282
        %v3284 = vmul.f32 %v3283, 1.442695
        %v3285 = vpow.pop %v3284
        %v3286 = vsel %vm3275, %v3285, 0.0
        %v3287 = vrot.slane %v3286, 4
        %v3288 = vadd.f32 %v3286, %v3287
        %v3289 = vrot.slane %v3288, 2
        %v3290 = vadd.f32 %v3288, %v3289
        %v3291 = vrot.slane %v3290, 1
        %v3292 = vadd.f32 %v3290, %v3291
        %v3293 = vrcp.pop %v3292
        %v3294 = vmul.f32 %v3285, %v3293
        %3296 = vset.pattern.permute.xlu0 0
        %3297 = vperm.xlu0 %3296, %v3294
        %v3298 = vpop.permute.xlu0 %3297
        %v3300 = vmul.f32 %v3248, %v3298
        %v3301 = vsel %vm1047, %v3300, 0.0
        %v3302 = vrot.slane %v3301, 4
        %v3303 = vadd.f32 %v3301, %v3302
        %v3304 = vrot.slane %v3303, 2
        %v3305 = vadd.f32 %v3303, %v3304
        %v3306 = vrot.slane %v3305, 1
        %v3307 = vadd.f32 %v3305, %v3306
        %v3308 = vld [vmem:[#allocation12] sm:$0x1]
        %v3309 = vld [vmem:[#allocation3] sm:$0x1]
        %v3311 = vlaneseq
        %v3312 = vshrl.u32 %v3311, 7
        %v3313 = vsub.s32 0, %v3312
        %v3314 = vrot.slane %v3308, %v3313
        %v3316 = vmul.f32 %v3250, %v3314
        %v3317 = vsel %vm1047, %v3316, 0.0
        %3318 = vadd.xlane.f32.xlu0 %v3317
        %v3319 = vpop.xlane.xlu0 %3318
        %v3321 = vlaneseq
        %v3322 = vshrl.u32 %v3321, 7
        %v3323 = vsub.s32 0, %v3322
        %v3324 = vrot.slane %v3309, %v3323
        %v3326 = vadd.f32 %v3319, %v3324
        %v3327 = vmul.f32 %v3326, %v1053
        %vm3328 = vcmp.eq.f32.partialorder %v3327, 0.0
        %v3329 = vsel %vm3328, -1e+20, %v3327
        %v3330 = vsel %vm3275, %v3329, -inf
        %v3331 = vrot.slane %v3330, 4
        %v3332 = vmax.f32 %v3330, %v3331
        %v3333 = vrot.slane %v3332, 2
        %v3334 = vmax.f32 %v3332, %v3333
        %v3335 = vrot.slane %v3334, 1
        %v3336 = vmax.f32 %v3334, %v3335
        %v3337 = vsub.f32 %v3329, %v3336
        %v3338 = vmul.f32 %v3337, 1.442695
        %v3339 = vpow.pop %v3338
        %v3340 = vsel %vm3275, %v3339, 0.0
        %v3341 = vrot.slane %v3340, 4
        %v3342 = vadd.f32 %v3340, %v3341
        %v3343 = vrot.slane %v3342, 2
        %v3344 = vadd.f32 %v3342, %v3343
        %v3345 = vrot.slane %v3344, 1
        %v3346 = vadd.f32 %v3344, %v3345
        %v3347 = vrcp.pop %v3346
        %v3348 = vmul.f32 %v3339, %v3347
        %3350 = vset.pattern.permute.xlu0 0
        %3351 = vperm.xlu0 %3350, %v3348
        %v3352 = vpop.permute.xlu0 %3351
        %v3354 = vmul.f32 %v3250, %v3352
        %v3355 = vsel %vm1047, %v3354, 0.0
        %v3356 = vrot.slane %v3355, 4
        %v3357 = vadd.f32 %v3355, %v3356
        %v3358 = vrot.slane %v3357, 2
        %v3359 = vadd.f32 %v3357, %v3358
        %v3360 = vrot.slane %v3359, 1
        %v3361 = vadd.f32 %v3359, %v3360
        %v3362 = vld [vmem:[%s39] sm:$0xf]
        %v3363 = vld [vmem:[%s39 + $0x4] sm:$0xf]
        %v3364 = vld [vmem:[%s39 + $0x8] sm:$0xf]
        %v3365 = vld [vmem:[%s39 + $0xc] sm:$0xf]
        %v3366 = vld [vmem:[#allocation13] sm:$0x1]
        %v3367 = vpack.c.bf16 %v3307, %v3307
        %v3372 = vunpack.c.l.b16 %v3362
        %v3373 = vunpack.c.l.b16 %v3363
        %v3374 = vunpack.c.l.b16 %v3364
        %v3375 = vunpack.c.l.b16 %v3365
        %v3376 = vpack.c.b16 %v3373, %v3372
        %v3377 = vpack.c.b16 %v3375, %v3374
        %v3381 = vsel %vm1047, %v3367, 0
        %3383 = vmatprep.subr.bf16.mxu0 0
        %3384 = vmatpush1.bf16.msra.mxu0 0
        %3385 = vmatprep.subr.bf16.mxu0 0
        %3386 = vmatpush1.bf16.msra.mxu0 0
        %3387 = vmatprep.subr.bf16.mxu0 0
        %3388 = vmatpush1.bf16.msra.mxu0 0
        %3389 = vmatprep.subr.bf16.mxu0 0
        %3390 = vmatpush1.bf16.msra.mxu0 0
        %3391 = vmatprep.subr.bf16.mxu0 0
        %3392 = vmatpush1.bf16.msra.mxu0 0
        %3393 = vmatprep.subr.bf16.mxu0 0
        %3394 = vmatpush1.bf16.msra.mxu0 0
        %3395 = vmatprep.subr.bf16.mxu0 0
        %3396 = vmatpush1.bf16.msra.mxu0 %v3377
        %3397 = vmatprep.subr.bf16.mxu0 0
        %3398 = vmatpush1.bf16.msra.mxu0 %v3376
        %3399 = vmatprep.subr.bf16.mxu0 0
        %3400 = vmatpush2.bf16.msra.mxu0 0
        %3401 = vmatprep.subr.bf16.mxu0 0
        %3402 = vmatpush2.bf16.msra.mxu0 0
        %3403 = vmatprep.subr.bf16.mxu0 0
        %3404 = vmatpush2.bf16.msra.mxu0 0
        %3405 = vmatprep.subr.bf16.mxu0 0
        %3406 = vmatpush2.bf16.msra.mxu0 0
        %3407 = vmatprep.subr.bf16.mxu0 0
        %3408 = vmatpush2.bf16.msra.mxu0 0
        %3409 = vmatprep.subr.bf16.mxu0 0
        %3410 = vmatpush2.bf16.msra.mxu0 0
        %3411 = vmatprep.subr.bf16.mxu0 0
        %3412 = vmatpush2.bf16.msra.mxu0 0
        %3413 = vmatprep.subr.bf16.mxu0 0
        %3414 = vmatpush2.bf16.msra.mxu0 0
        %3415 = vmatprep.mubr.bf16.mxu0 0
        %3416 = vmatmul.mubr.bf16.gmra.mxu0 %v3381
        %v3417 = vpop.f32.mrf.mxu0
        %v3418 = vadd.f32 %v3366, %v3417
        %v3419 = vpop.f32.mrf.mxu0
        %v3420 = vpop.f32.mrf.mxu0
        %v3421 = vpop.f32.mrf.mxu0
        %3422 = vdwg.mxu0
        %v3423 = vxor.u32 %v3418, 2147483648
        %v3424 = vmul.f32 %v3423, 1.442695
        %v3425 = vpow.pop %v3424
        %v3426 = vadd.f32 %v3425, 1.0
        %v3427 = vrcp.pop %v3426
        %v3428 = vmul.f32 1.0, %v3427
        %v3429 = vsel %vm1057, %v3428, %v3418
        %vm3430 = vcmask 73728
        %3431 = vst.msk [vmem:[%s1041] sm:$0x1] %vm3430, %v3429
        %v3432 = vld [vmem:[%s43] sm:$0xf]
        %v3433 = vld [vmem:[%s43 + $0x4] sm:$0xf]
        %v3434 = vld [vmem:[%s43 + $0x8] sm:$0xf]
        %v3435 = vld [vmem:[%s43 + $0xc] sm:$0xf]
        %v3436 = vld [vmem:[#allocation15] sm:$0x1]
        %v3437 = vpack.c.bf16 %v3361, %v3361
        %v3442 = vunpack.c.l.b16 %v3432
        %v3443 = vunpack.c.l.b16 %v3433
        %v3444 = vunpack.c.l.b16 %v3434
        %v3445 = vunpack.c.l.b16 %v3435
        %v3446 = vpack.c.b16 %v3443, %v3442
        %v3447 = vpack.c.b16 %v3445, %v3444
        %v3451 = vsel %vm1047, %v3437, 0
        %3453 = vmatprep.subr.bf16.mxu0 0
        %3454 = vmatpush1.bf16.msra.mxu0 0
        %3455 = vmatprep.subr.bf16.mxu0 0
        %3456 = vmatpush1.bf16.msra.mxu0 0
        %3457 = vmatprep.subr.bf16.mxu0 0
        %3458 = vmatpush1.bf16.msra.mxu0 0
        %3459 = vmatprep.subr.bf16.mxu0 0
        %3460 = vmatpush1.bf16.msra.mxu0 0
        %3461 = vmatprep.subr.bf16.mxu0 0
        %3462 = vmatpush1.bf16.msra.mxu0 0
        %3463 = vmatprep.subr.bf16.mxu0 0
        %3464 = vmatpush1.bf16.msra.mxu0 0
        %3465 = vmatprep.subr.bf16.mxu0 0
        %3466 = vmatpush1.bf16.msra.mxu0 %v3447
        %3467 = vmatprep.subr.bf16.mxu0 0
        %3468 = vmatpush1.bf16.msra.mxu0 %v3446
        %3469 = vmatprep.subr.bf16.mxu0 0
        %3470 = vmatpush2.bf16.msra.mxu0 0
        %3471 = vmatprep.subr.bf16.mxu0 0
        %3472 = vmatpush2.bf16.msra.mxu0 0
        %3473 = vmatprep.subr.bf16.mxu0 0
        %3474 = vmatpush2.bf16.msra.mxu0 0
        %3475 = vmatprep.subr.bf16.mxu0 0
        %3476 = vmatpush2.bf16.msra.mxu0 0
        %3477 = vmatprep.subr.bf16.mxu0 0
        %3478 = vmatpush2.bf16.msra.mxu0 0
        %3479 = vmatprep.subr.bf16.mxu0 0
        %3480 = vmatpush2.bf16.msra.mxu0 0
        %3481 = vmatprep.subr.bf16.mxu0 0
        %3482 = vmatpush2.bf16.msra.mxu0 0
        %3483 = vmatprep.subr.bf16.mxu0 0
        %3484 = vmatpush2.bf16.msra.mxu0 0
        %3485 = vmatprep.mubr.bf16.mxu0 0
        %3486 = vmatmul.mubr.bf16.gmra.mxu0 %v3451
        %v3487 = vpop.f32.mrf.mxu0
        %v3488 = vadd.f32 %v3436, %v3487
        %v3489 = vpop.f32.mrf.mxu0
        %v3490 = vpop.f32.mrf.mxu0
        %v3491 = vpop.f32.mrf.mxu0
        %3492 = vdwg.mxu0
        %v3493 = vxor.u32 %v3488, 2147483648
        %v3494 = vmul.f32 %v3493, 1.442695
        %v3495 = vpow.pop %v3494
        %v3496 = vadd.f32 %v3495, 1.0
        %v3497 = vrcp.pop %v3496
        %v3498 = vmul.f32 1.0, %v3497
        %v3499 = vsel %vm1057, %v3498, %v3488
        %3500 = vst.msk [vmem:[%s1044] sm:$0x1] %vm3430, %v3499
        %s3501 = scalar_lea.vmem %s3, 32
        %v3502 = vld [vmem:[%s3501] sm:$0xf]
        %v3503 = vld [vmem:[%s3501 + $0x4] sm:$0xf]
        %v3504 = vld [vmem:[%s3501 + $0x8] sm:$0xf]
        %v3505 = vld [vmem:[%s3501 + $0xc] sm:$0xf]
        %s3506 = scalar_lea.vmem [#allocation4], 2
        %v3507 = vld [vmem:[%s3506] sm:$0x1]
        %s3508 = scalar_lea.vmem %s7, 32
        %v3509 = vld [vmem:[%s3508] sm:$0xf]
        %v3510 = vld [vmem:[%s3508 + $0x4] sm:$0xf]
        %v3511 = vld [vmem:[%s3508 + $0x8] sm:$0xf]
        %v3512 = vld [vmem:[%s3508 + $0xc] sm:$0xf]
        %s3513 = scalar_lea.vmem [#allocation7], 2
        %v3514 = vld [vmem:[%s3513] sm:$0x1]
        %s3515 = scalar_lea.vmem %s11, 2
        %v3516 = vld [vmem:[%s3515] sm:$0x1]
        %s3517 = scalar_lea.vmem %s13, 2
        %v3518 = vld [vmem:[%s3517] sm:$0x1]
        %s3519 = scalar_lea.vmem %s15, 32
        %v3520 = vld [vmem:[%s3519] sm:$0xf]
        %v3521 = vld [vmem:[%s3519 + $0x4] sm:$0xf]
        %v3522 = vld [vmem:[%s3519 + $0x8] sm:$0xf]
        %v3523 = vld [vmem:[%s3519 + $0xc] sm:$0xf]
        %s3524 = scalar_lea.vmem [#allocation9], 2
        %v3525 = vld [vmem:[%s3524] sm:$0x1]
        %s3526 = scalar_lea.vmem %s19, 64
        %v3527 = vld [vmem:[%s3526] sm:$0xf]
        %v3528 = vld [vmem:[%s3526 + $0x4] sm:$0xf]
        %v3529 = vld [vmem:[%s3526 + $0x8] sm:$0xf]
        %v3530 = vld [vmem:[%s3526 + $0xc] sm:$0xf]
        %v3531 = vld [vmem:[%s3526 + $0x10] sm:$0xf]
        %v3532 = vld [vmem:[%s3526 + $0x14] sm:$0xf]
        %v3533 = vld [vmem:[%s3526 + $0x18] sm:$0xf]
        %v3534 = vld [vmem:[%s3526 + $0x1c] sm:$0xf]
        %s3535 = scalar_lea.vmem [#allocation10], 2
        %v3536 = vld [vmem:[%s3535] sm:$0x1]
        %s3537 = scalar_lea.vmem %s23, 2
        %v3538 = vld [vmem:[%s3537] sm:$0x1]
        %s3539 = scalar_lea.vmem %s25, 2
        %v3540 = vld [vmem:[%s3539] sm:$0x1]
        %v3541 = vpack.c.bf16 %v3250, %v3250
        %v3543 = vlaneseq
        %v3544 = vshrl.u32 %v3543, 7
        %v3545 = vsub.s32 0, %v3544
        %v3546 = vrot.slane %v3507, %v3545
        %v3552 = vunpack.c.l.b16 %v3502
        %v3553 = vunpack.c.l.b16 %v3503
        %v3554 = vunpack.c.l.b16 %v3504
        %v3555 = vunpack.c.l.b16 %v3505
        %v3556 = vpack.c.b16 %v3553, %v3552
        %v3557 = vpack.c.b16 %v3555, %v3554
        %v3561 = vsel %vm1047, %v3541, 0
        %3563 = vmatprep.subr.bf16.mxu0 0
        %3564 = vmatpush1.bf16.msra.mxu0 0
        %3565 = vmatprep.subr.bf16.mxu0 0
        %3566 = vmatpush1.bf16.msra.mxu0 0
        %3567 = vmatprep.subr.bf16.mxu0 0
        %3568 = vmatpush1.bf16.msra.mxu0 0
        %3569 = vmatprep.subr.bf16.mxu0 0
        %3570 = vmatpush1.bf16.msra.mxu0 0
        %3571 = vmatprep.subr.bf16.mxu0 0
        %3572 = vmatpush1.bf16.msra.mxu0 0
        %3573 = vmatprep.subr.bf16.mxu0 0
        %3574 = vmatpush1.bf16.msra.mxu0 0
        %3575 = vmatprep.subr.bf16.mxu0 0
        %3576 = vmatpush1.bf16.msra.mxu0 %v3557
        %3577 = vmatprep.subr.bf16.mxu0 0
        %3578 = vmatpush1.bf16.msra.mxu0 %v3556
        %3579 = vmatprep.subr.bf16.mxu0 0
        %3580 = vmatpush2.bf16.msra.mxu0 0
        %3581 = vmatprep.subr.bf16.mxu0 0
        %3582 = vmatpush2.bf16.msra.mxu0 0
        %3583 = vmatprep.subr.bf16.mxu0 0
        %3584 = vmatpush2.bf16.msra.mxu0 0
        %3585 = vmatprep.subr.bf16.mxu0 0
        %3586 = vmatpush2.bf16.msra.mxu0 0
        %3587 = vmatprep.subr.bf16.mxu0 0
        %3588 = vmatpush2.bf16.msra.mxu0 0
        %3589 = vmatprep.subr.bf16.mxu0 0
        %3590 = vmatpush2.bf16.msra.mxu0 0
        %3591 = vmatprep.subr.bf16.mxu0 0
        %3592 = vmatpush2.bf16.msra.mxu0 0
        %3593 = vmatprep.subr.bf16.mxu0 0
        %3594 = vmatpush2.bf16.msra.mxu0 0
        %3595 = vmatprep.mubr.bf16.mxu0 0
        %3596 = vmatmul.mubr.bf16.gmra.mxu0 %v3561
        %v3597 = vpop.f32.mrf.mxu0
        %v3598 = vadd.f32 %v3546, %v3597
        %v3599 = vpop.f32.mrf.mxu0
        %v3600 = vpop.f32.mrf.mxu0
        %v3601 = vpop.f32.mrf.mxu0
        %3602 = vdwg.mxu0
        %v3603 = vmul.f32 %v3598, %v1060
        %v3604 = vmul.f32 %v3598, %v1169
        %3606 = vrot.lane.b32.xlu0 %v3604, 96
        %v3607 = vpop.permute.xlu0 %3606
        %v3609 = vsel %vm1047, %v3603, 0
        %v3611 = vsel %vm1047, %v3607, 0
        %3613 = vmatprep.subr.mxu0 0.0
        %3614 = vmatpush1.xpose.msra.mxu0 0.0
        %3615 = vmatprep.subr.mxu0 0.0
        %3616 = vmatpush1.xpose.msra.mxu0 0.0
        %3617 = vmatprep.subr.mxu0 0.0
        %3618 = vmatpush1.xpose.msra.mxu0 0.0
        %3619 = vmatprep.subr.mxu0 0.0
        %3620 = vmatpush1.xpose.msra.mxu0 0.0
        %3621 = vmatprep.subr.mxu0 0.0
        %3622 = vmatpush1.xpose.msra.mxu0 0.0
        %3623 = vmatprep.subr.mxu0 0.0
        %3624 = vmatpush1.xpose.msra.mxu0 0.0
        %3625 = vmatprep.subr.mxu0 0.0
        %3626 = vmatpush1.xpose.msra.mxu0 0.0
        %3627 = vmatprep.subr.mxu0 0.0
        %3628 = vmatpush1.xpose.msra.mxu0 0.0
        %3629 = vmatprep.subr.mxu0 0.0
        %3630 = vmatpush1.xpose.msra.mxu0 0.0
        %3631 = vmatprep.subr.mxu0 0.0
        %3632 = vmatpush1.xpose.msra.mxu0 0.0
        %3633 = vmatprep.subr.mxu0 0.0
        %3634 = vmatpush1.xpose.msra.mxu0 0.0
        %3635 = vmatprep.subr.mxu0 0.0
        %3636 = vmatpush1.xpose.msra.mxu0 0.0
        %3637 = vmatprep.subr.mxu0 0.0
        %3638 = vmatpush1.xpose.msra.mxu0 0.0
        %3639 = vmatprep.subr.mxu0 0.0
        %3640 = vmatpush1.xpose.msra.mxu0 0.0
        %3641 = vmatprep.subr.mxu0 0.0
        %3642 = vmatpush1.xpose.msra.mxu0 0.0
        %3643 = vmatprep.subr.mxu0 0.0
        %3644 = vmatpush1.xpose.msra.mxu0 %v3611
        %3645 = vmatprep.subr.mxu0 0.0
        %3646 = vmatpush2.xpose.msra.mxu0 0.0
        %3647 = vmatprep.subr.mxu0 0.0
        %3648 = vmatpush2.xpose.msra.mxu0 0.0
        %3649 = vmatprep.subr.mxu0 0.0
        %3650 = vmatpush2.xpose.msra.mxu0 0.0
        %3651 = vmatprep.subr.mxu0 0.0
        %3652 = vmatpush2.xpose.msra.mxu0 0.0
        %3653 = vmatprep.subr.mxu0 0.0
        %3654 = vmatpush2.xpose.msra.mxu0 0.0
        %3655 = vmatprep.subr.mxu0 0.0
        %3656 = vmatpush2.xpose.msra.mxu0 0.0
        %3657 = vmatprep.subr.mxu0 0.0
        %3658 = vmatpush2.xpose.msra.mxu0 0.0
        %3659 = vmatprep.subr.mxu0 0.0
        %3660 = vmatpush2.xpose.msra.mxu0 0.0
        %3661 = vmatprep.subr.mxu0 0.0
        %3662 = vmatpush2.xpose.msra.mxu0 0.0
        %3663 = vmatprep.subr.mxu0 0.0
        %3664 = vmatpush2.xpose.msra.mxu0 0.0
        %3665 = vmatprep.subr.mxu0 0.0
        %3666 = vmatpush2.xpose.msra.mxu0 0.0
        %3667 = vmatprep.subr.mxu0 0.0
        %3668 = vmatpush2.xpose.msra.mxu0 0.0
        %3669 = vmatprep.subr.mxu0 0.0
        %3670 = vmatpush2.xpose.msra.mxu0 0.0
        %3671 = vmatprep.subr.mxu0 0.0
        %3672 = vmatpush2.xpose.msra.mxu0 0.0
        %3673 = vmatprep.subr.mxu0 0.0
        %3674 = vmatpush2.xpose.msra.mxu0 0.0
        %3675 = vmatprep.subr.mxu0 0.0
        %3676 = vmatpush2.xpose.msra.mxu0 0.0
        %3677 = vmatprep.mubr.f32.mxu0 0.0
        %3678 = vmatmul.mubr.f32.gmra.mxu0 %v3609
        %v3679 = vpop.f32.mrf.mxu0
        %v3680 = vadd.f32 0.0, %v3679
        %v3681 = vpop.f32.mrf.mxu0
        %3682 = vdwg.mxu0
        %v3683 = vmul.f32 %v3680, 0.35355338
        %v3684 = vsel %vm1251, %v3683, -inf
        %3685 = vmax.xlane.f32.xlu0 %v3684
        %v3686 = vpop.xlane.xlu0 %3685
        %v3687 = vsub.f32 %v3683, %v3686
        %v3688 = vmul.f32 %v3687, 1.442695
        %v3689 = vpow.pop %v3688
        %v3690 = vsel %vm1251, %v3689, 0.0
        %3691 = vadd.xlane.f32.xlu0 %v3690
        %v3692 = vpop.xlane.xlu0 %3691
        %v3693 = vrcp.pop %v3692
        %v3694 = vmul.f32 %v3689, %v3693
        %v3695 = vmul.f32 %v3598, %v1264
        %v3696 = vmul.f32 %v3598, %v1065
        %v3697 = vmul.f32 %v3598, %v1270
        %3699 = vrot.lane.b32.xlu0 %v3697, 96
        %v3700 = vpop.permute.xlu0 %3699
        %v3702 = vsel %vm1047, %v3696, 0
        %v3704 = vsel %vm1047, %v3700, 0
        %3706 = vmatprep.subr.mxu0 0.0
        %3707 = vmatpush1.xpose.msra.mxu0 0.0
        %3708 = vmatprep.subr.mxu0 0.0
        %3709 = vmatpush1.xpose.msra.mxu0 0.0
        %3710 = vmatprep.subr.mxu0 0.0
        %3711 = vmatpush1.xpose.msra.mxu0 0.0
        %3712 = vmatprep.subr.mxu0 0.0
        %3713 = vmatpush1.xpose.msra.mxu0 0.0
        %3714 = vmatprep.subr.mxu0 0.0
        %3715 = vmatpush1.xpose.msra.mxu0 0.0
        %3716 = vmatprep.subr.mxu0 0.0
        %3717 = vmatpush1.xpose.msra.mxu0 0.0
        %3718 = vmatprep.subr.mxu0 0.0
        %3719 = vmatpush1.xpose.msra.mxu0 0.0
        %3720 = vmatprep.subr.mxu0 0.0
        %3721 = vmatpush1.xpose.msra.mxu0 0.0
        %3722 = vmatprep.subr.mxu0 0.0
        %3723 = vmatpush1.xpose.msra.mxu0 0.0
        %3724 = vmatprep.subr.mxu0 0.0
        %3725 = vmatpush1.xpose.msra.mxu0 0.0
        %3726 = vmatprep.subr.mxu0 0.0
        %3727 = vmatpush1.xpose.msra.mxu0 0.0
        %3728 = vmatprep.subr.mxu0 0.0
        %3729 = vmatpush1.xpose.msra.mxu0 0.0
        %3730 = vmatprep.subr.mxu0 0.0
        %3731 = vmatpush1.xpose.msra.mxu0 0.0
        %3732 = vmatprep.subr.mxu0 0.0
        %3733 = vmatpush1.xpose.msra.mxu0 0.0
        %3734 = vmatprep.subr.mxu0 0.0
        %3735 = vmatpush1.xpose.msra.mxu0 0.0
        %3736 = vmatprep.subr.mxu0 0.0
        %3737 = vmatpush1.xpose.msra.mxu0 %v3704
        %3738 = vmatprep.subr.mxu0 0.0
        %3739 = vmatpush2.xpose.msra.mxu0 0.0
        %3740 = vmatprep.subr.mxu0 0.0
        %3741 = vmatpush2.xpose.msra.mxu0 0.0
        %3742 = vmatprep.subr.mxu0 0.0
        %3743 = vmatpush2.xpose.msra.mxu0 0.0
        %3744 = vmatprep.subr.mxu0 0.0
        %3745 = vmatpush2.xpose.msra.mxu0 0.0
        %3746 = vmatprep.subr.mxu0 0.0
        %3747 = vmatpush2.xpose.msra.mxu0 0.0
        %3748 = vmatprep.subr.mxu0 0.0
        %3749 = vmatpush2.xpose.msra.mxu0 0.0
        %3750 = vmatprep.subr.mxu0 0.0
        %3751 = vmatpush2.xpose.msra.mxu0 0.0
        %3752 = vmatprep.subr.mxu0 0.0
        %3753 = vmatpush2.xpose.msra.mxu0 0.0
        %3754 = vmatprep.subr.mxu0 0.0
        %3755 = vmatpush2.xpose.msra.mxu0 0.0
        %3756 = vmatprep.subr.mxu0 0.0
        %3757 = vmatpush2.xpose.msra.mxu0 0.0
        %3758 = vmatprep.subr.mxu0 0.0
        %3759 = vmatpush2.xpose.msra.mxu0 0.0
        %3760 = vmatprep.subr.mxu0 0.0
        %3761 = vmatpush2.xpose.msra.mxu0 0.0
        %3762 = vmatprep.subr.mxu0 0.0
        %3763 = vmatpush2.xpose.msra.mxu0 0.0
        %3764 = vmatprep.subr.mxu0 0.0
        %3765 = vmatpush2.xpose.msra.mxu0 0.0
        %3766 = vmatprep.subr.mxu0 0.0
        %3767 = vmatpush2.xpose.msra.mxu0 0.0
        %3768 = vmatprep.subr.mxu0 0.0
        %3769 = vmatpush2.xpose.msra.mxu0 0.0
        %3770 = vmatprep.mubr.f32.mxu0 0.0
        %3771 = vmatmul.mubr.f32.gmra.mxu0 %v3702
        %v3772 = vpop.f32.mrf.mxu0
        %v3773 = vadd.f32 0.0, %v3772
        %v3774 = vpop.f32.mrf.mxu0
        %3775 = vdwg.mxu0
        %v3776 = vmul.f32 %v3773, 0.35355338
        %v3777 = vsel %vm1251, %v3776, -inf
        %3778 = vmax.xlane.f32.xlu0 %v3777
        %v3779 = vpop.xlane.xlu0 %3778
        %v3780 = vsub.f32 %v3776, %v3779
        %v3781 = vmul.f32 %v3780, 1.442695
        %v3782 = vpow.pop %v3781
        %v3783 = vsel %vm1251, %v3782, 0.0
        %3784 = vadd.xlane.f32.xlu0 %v3783
        %v3785 = vpop.xlane.xlu0 %3784
        %v3786 = vrcp.pop %v3785
        %v3787 = vmul.f32 %v3782, %v3786
        %v3788 = vmul.f32 %v3598, %v1364
        %3790 = vrot.lane.b32.xlu0 %v3788, 64
        %v3791 = vpop.permute.xlu0 %3790
        %v3794 = vsel %vm1251, %v3787, 0
        %3796 = vmatprep.subr.mxu0 0.0
        %3797 = vmatpush1.msra.mxu0 0.0
        %3798 = vmatprep.subr.mxu0 0.0
        %3799 = vmatpush1.msra.mxu0 0.0
        %3800 = vmatprep.subr.mxu0 0.0
        %3801 = vmatpush1.msra.mxu0 0.0
        %3802 = vmatprep.subr.mxu0 0.0
        %3803 = vmatpush1.msra.mxu0 0.0
        %3804 = vmatprep.subr.mxu0 0.0
        %3805 = vmatpush1.msra.mxu0 0.0
        %3806 = vmatprep.subr.mxu0 0.0
        %3807 = vmatpush1.msra.mxu0 0.0
        %3808 = vmatprep.subr.mxu0 0.0
        %3809 = vmatpush1.msra.mxu0 0.0
        %3810 = vmatprep.subr.mxu0 0.0
        %3811 = vmatpush1.msra.mxu0 0.0
        %3812 = vmatprep.subr.mxu0 0.0
        %3813 = vmatpush1.msra.mxu0 0.0
        %3814 = vmatprep.subr.mxu0 0.0
        %3815 = vmatpush1.msra.mxu0 0.0
        %3816 = vmatprep.subr.mxu0 0.0
        %3817 = vmatpush1.msra.mxu0 0.0
        %3818 = vmatprep.subr.mxu0 0.0
        %3819 = vmatpush1.msra.mxu0 0.0
        %3820 = vmatprep.subr.mxu0 0.0
        %3821 = vmatpush1.msra.mxu0 0.0
        %3822 = vmatprep.subr.mxu0 0.0
        %3823 = vmatpush1.msra.mxu0 0.0
        %3824 = vmatprep.subr.mxu0 0.0
        %3825 = vmatpush1.msra.mxu0 0.0
        %3826 = vmatprep.subr.mxu0 0.0
        %3827 = vmatpush1.msra.mxu0 %v3791
        %3828 = vmatprep.subr.mxu0 0.0
        %3829 = vmatpush2.msra.mxu0 0.0
        %3830 = vmatprep.subr.mxu0 0.0
        %3831 = vmatpush2.msra.mxu0 0.0
        %3832 = vmatprep.subr.mxu0 0.0
        %3833 = vmatpush2.msra.mxu0 0.0
        %3834 = vmatprep.subr.mxu0 0.0
        %3835 = vmatpush2.msra.mxu0 0.0
        %3836 = vmatprep.subr.mxu0 0.0
        %3837 = vmatpush2.msra.mxu0 0.0
        %3838 = vmatprep.subr.mxu0 0.0
        %3839 = vmatpush2.msra.mxu0 0.0
        %3840 = vmatprep.subr.mxu0 0.0
        %3841 = vmatpush2.msra.mxu0 0.0
        %3842 = vmatprep.subr.mxu0 0.0
        %3843 = vmatpush2.msra.mxu0 0.0
        %3844 = vmatprep.subr.mxu0 0.0
        %3845 = vmatpush2.msra.mxu0 0.0
        %3846 = vmatprep.subr.mxu0 0.0
        %3847 = vmatpush2.msra.mxu0 0.0
        %3848 = vmatprep.subr.mxu0 0.0
        %3849 = vmatpush2.msra.mxu0 0.0
        %3850 = vmatprep.subr.mxu0 0.0
        %3851 = vmatpush2.msra.mxu0 0.0
        %3852 = vmatprep.subr.mxu0 0.0
        %3853 = vmatpush2.msra.mxu0 0.0
        %3854 = vmatprep.subr.mxu0 0.0
        %3855 = vmatpush2.msra.mxu0 0.0
        %3856 = vmatprep.subr.mxu0 0.0
        %3857 = vmatpush2.msra.mxu0 0.0
        %3858 = vmatprep.subr.mxu0 0.0
        %3859 = vmatpush2.msra.mxu0 0.0
        %3860 = vmatprep.mubr.f32.mxu0 0.0
        %3861 = vmatmul.mubr.f32.gmra.mxu0 %v3794
        %v3862 = vpop.f32.mrf.mxu0
        %v3863 = vadd.f32 0.0, %v3862
        %v3864 = vpop.f32.mrf.mxu0
        %3865 = vdwg.mxu0
        %3867 = vrot.lane.b32.xlu0 %v3695, 64
        %v3868 = vpop.permute.xlu0 %3867
        %v3871 = vsel %vm1251, %v3694, 0
        %3873 = vmatprep.subr.mxu0 0.0
        %3874 = vmatpush1.msra.mxu0 0.0
        %3875 = vmatprep.subr.mxu0 0.0
        %3876 = vmatpush1.msra.mxu0 0.0
        %3877 = vmatprep.subr.mxu0 0.0
        %3878 = vmatpush1.msra.mxu0 0.0
        %3879 = vmatprep.subr.mxu0 0.0
        %3880 = vmatpush1.msra.mxu0 0.0
        %3881 = vmatprep.subr.mxu0 0.0
        %3882 = vmatpush1.msra.mxu0 0.0
        %3883 = vmatprep.subr.mxu0 0.0
        %3884 = vmatpush1.msra.mxu0 0.0
        %3885 = vmatprep.subr.mxu0 0.0
        %3886 = vmatpush1.msra.mxu0 0.0
        %3887 = vmatprep.subr.mxu0 0.0
        %3888 = vmatpush1.msra.mxu0 0.0
        %3889 = vmatprep.subr.mxu0 0.0
        %3890 = vmatpush1.msra.mxu0 0.0
        %3891 = vmatprep.subr.mxu0 0.0
        %3892 = vmatpush1.msra.mxu0 0.0
        %3893 = vmatprep.subr.mxu0 0.0
        %3894 = vmatpush1.msra.mxu0 0.0
        %3895 = vmatprep.subr.mxu0 0.0
        %3896 = vmatpush1.msra.mxu0 0.0
        %3897 = vmatprep.subr.mxu0 0.0
        %3898 = vmatpush1.msra.mxu0 0.0
        %3899 = vmatprep.subr.mxu0 0.0
        %3900 = vmatpush1.msra.mxu0 0.0
        %3901 = vmatprep.subr.mxu0 0.0
        %3902 = vmatpush1.msra.mxu0 0.0
        %3903 = vmatprep.subr.mxu0 0.0
        %3904 = vmatpush1.msra.mxu0 %v3868
        %3905 = vmatprep.subr.mxu0 0.0
        %3906 = vmatpush2.msra.mxu0 0.0
        %3907 = vmatprep.subr.mxu0 0.0
        %3908 = vmatpush2.msra.mxu0 0.0
        %3909 = vmatprep.subr.mxu0 0.0
        %3910 = vmatpush2.msra.mxu0 0.0
        %3911 = vmatprep.subr.mxu0 0.0
        %3912 = vmatpush2.msra.mxu0 0.0
        %3913 = vmatprep.subr.mxu0 0.0
        %3914 = vmatpush2.msra.mxu0 0.0
        %3915 = vmatprep.subr.mxu0 0.0
        %3916 = vmatpush2.msra.mxu0 0.0
        %3917 = vmatprep.subr.mxu0 0.0
        %3918 = vmatpush2.msra.mxu0 0.0
        %3919 = vmatprep.subr.mxu0 0.0
        %3920 = vmatpush2.msra.mxu0 0.0
        %3921 = vmatprep.subr.mxu0 0.0
        %3922 = vmatpush2.msra.mxu0 0.0
        %3923 = vmatprep.subr.mxu0 0.0
        %3924 = vmatpush2.msra.mxu0 0.0
        %3925 = vmatprep.subr.mxu0 0.0
        %3926 = vmatpush2.msra.mxu0 0.0
        %3927 = vmatprep.subr.mxu0 0.0
        %3928 = vmatpush2.msra.mxu0 0.0
        %3929 = vmatprep.subr.mxu0 0.0
        %3930 = vmatpush2.msra.mxu0 0.0
        %3931 = vmatprep.subr.mxu0 0.0
        %3932 = vmatpush2.msra.mxu0 0.0
        %3933 = vmatprep.subr.mxu0 0.0
        %3934 = vmatpush2.msra.mxu0 0.0
        %3935 = vmatprep.subr.mxu0 0.0
        %3936 = vmatpush2.msra.mxu0 0.0
        %3937 = vmatprep.mubr.f32.mxu0 0.0
        %3938 = vmatmul.mubr.f32.gmra.mxu0 %v3871
        %v3939 = vpop.f32.mrf.mxu0
        %v3940 = vadd.f32 %v3863, %v3939
        %v3941 = vpop.f32.mrf.mxu0
        %3942 = vdwg.mxu0
        %v3943 = vmul.f32 %v3598, %v1070
        %v3944 = vmul.f32 %v3598, %v1524
        %3946 = vrot.lane.b32.xlu0 %v3944, 96
        %v3947 = vpop.permute.xlu0 %3946
        %v3949 = vsel %vm1047, %v3943, 0
        %v3951 = vsel %vm1047, %v3947, 0
        %3953 = vmatprep.subr.mxu0 0.0
        %3954 = vmatpush1.xpose.msra.mxu0 0.0
        %3955 = vmatprep.subr.mxu0 0.0
        %3956 = vmatpush1.xpose.msra.mxu0 0.0
        %3957 = vmatprep.subr.mxu0 0.0
        %3958 = vmatpush1.xpose.msra.mxu0 0.0
        %3959 = vmatprep.subr.mxu0 0.0
        %3960 = vmatpush1.xpose.msra.mxu0 0.0
        %3961 = vmatprep.subr.mxu0 0.0
        %3962 = vmatpush1.xpose.msra.mxu0 0.0
        %3963 = vmatprep.subr.mxu0 0.0
        %3964 = vmatpush1.xpose.msra.mxu0 0.0
        %3965 = vmatprep.subr.mxu0 0.0
        %3966 = vmatpush1.xpose.msra.mxu0 0.0
        %3967 = vmatprep.subr.mxu0 0.0
        %3968 = vmatpush1.xpose.msra.mxu0 0.0
        %3969 = vmatprep.subr.mxu0 0.0
        %3970 = vmatpush1.xpose.msra.mxu0 0.0
        %3971 = vmatprep.subr.mxu0 0.0
        %3972 = vmatpush1.xpose.msra.mxu0 0.0
        %3973 = vmatprep.subr.mxu0 0.0
        %3974 = vmatpush1.xpose.msra.mxu0 0.0
        %3975 = vmatprep.subr.mxu0 0.0
        %3976 = vmatpush1.xpose.msra.mxu0 0.0
        %3977 = vmatprep.subr.mxu0 0.0
        %3978 = vmatpush1.xpose.msra.mxu0 0.0
        %3979 = vmatprep.subr.mxu0 0.0
        %3980 = vmatpush1.xpose.msra.mxu0 0.0
        %3981 = vmatprep.subr.mxu0 0.0
        %3982 = vmatpush1.xpose.msra.mxu0 0.0
        %3983 = vmatprep.subr.mxu0 0.0
        %3984 = vmatpush1.xpose.msra.mxu0 %v3951
        %3985 = vmatprep.subr.mxu0 0.0
        %3986 = vmatpush2.xpose.msra.mxu0 0.0
        %3987 = vmatprep.subr.mxu0 0.0
        %3988 = vmatpush2.xpose.msra.mxu0 0.0
        %3989 = vmatprep.subr.mxu0 0.0
        %3990 = vmatpush2.xpose.msra.mxu0 0.0
        %3991 = vmatprep.subr.mxu0 0.0
        %3992 = vmatpush2.xpose.msra.mxu0 0.0
        %3993 = vmatprep.subr.mxu0 0.0
        %3994 = vmatpush2.xpose.msra.mxu0 0.0
        %3995 = vmatprep.subr.mxu0 0.0
        %3996 = vmatpush2.xpose.msra.mxu0 0.0
        %3997 = vmatprep.subr.mxu0 0.0
        %3998 = vmatpush2.xpose.msra.mxu0 0.0
        %3999 = vmatprep.subr.mxu0 0.0
        %4000 = vmatpush2.xpose.msra.mxu0 0.0
        %4001 = vmatprep.subr.mxu0 0.0
        %4002 = vmatpush2.xpose.msra.mxu0 0.0
        %4003 = vmatprep.subr.mxu0 0.0
        %4004 = vmatpush2.xpose.msra.mxu0 0.0
        %4005 = vmatprep.subr.mxu0 0.0
        %4006 = vmatpush2.xpose.msra.mxu0 0.0
        %4007 = vmatprep.subr.mxu0 0.0
        %4008 = vmatpush2.xpose.msra.mxu0 0.0
        %4009 = vmatprep.subr.mxu0 0.0
        %4010 = vmatpush2.xpose.msra.mxu0 0.0
        %4011 = vmatprep.subr.mxu0 0.0
        %4012 = vmatpush2.xpose.msra.mxu0 0.0
        %4013 = vmatprep.subr.mxu0 0.0
        %4014 = vmatpush2.xpose.msra.mxu0 0.0
        %4015 = vmatprep.subr.mxu0 0.0
        %4016 = vmatpush2.xpose.msra.mxu0 0.0
        %4017 = vmatprep.mubr.f32.mxu0 0.0
        %4018 = vmatmul.mubr.f32.gmra.mxu0 %v3949
        %v4019 = vpop.f32.mrf.mxu0
        %v4020 = vadd.f32 0.0, %v4019
        %v4021 = vpop.f32.mrf.mxu0
        %4022 = vdwg.mxu0
        %v4023 = vmul.f32 %v4020, 0.35355338
        %v4024 = vsel %vm1251, %v4023, -inf
        %4025 = vmax.xlane.f32.xlu0 %v4024
        %v4026 = vpop.xlane.xlu0 %4025
        %v4027 = vsub.f32 %v4023, %v4026
        %v4028 = vmul.f32 %v4027, 1.442695
        %v4029 = vpow.pop %v4028
        %v4030 = vsel %vm1251, %v4029, 0.0
        %4031 = vadd.xlane.f32.xlu0 %v4030
        %v4032 = vpop.xlane.xlu0 %4031
        %v4033 = vrcp.pop %v4032
        %v4034 = vmul.f32 %v4029, %v4033
        %v4035 = vmul.f32 %v3598, %v1618
        %4037 = vrot.lane.b32.xlu0 %v4035, 64
        %v4038 = vpop.permute.xlu0 %4037
        %v4041 = vsel %vm1251, %v4034, 0
        %4043 = vmatprep.subr.mxu0 0.0
        %4044 = vmatpush1.msra.mxu0 0.0
        %4045 = vmatprep.subr.mxu0 0.0
        %4046 = vmatpush1.msra.mxu0 0.0
        %4047 = vmatprep.subr.mxu0 0.0
        %4048 = vmatpush1.msra.mxu0 0.0
        %4049 = vmatprep.subr.mxu0 0.0
        %4050 = vmatpush1.msra.mxu0 0.0
        %4051 = vmatprep.subr.mxu0 0.0
        %4052 = vmatpush1.msra.mxu0 0.0
        %4053 = vmatprep.subr.mxu0 0.0
        %4054 = vmatpush1.msra.mxu0 0.0
        %4055 = vmatprep.subr.mxu0 0.0
        %4056 = vmatpush1.msra.mxu0 0.0
        %4057 = vmatprep.subr.mxu0 0.0
        %4058 = vmatpush1.msra.mxu0 0.0
        %4059 = vmatprep.subr.mxu0 0.0
        %4060 = vmatpush1.msra.mxu0 0.0
        %4061 = vmatprep.subr.mxu0 0.0
        %4062 = vmatpush1.msra.mxu0 0.0
        %4063 = vmatprep.subr.mxu0 0.0
        %4064 = vmatpush1.msra.mxu0 0.0
        %4065 = vmatprep.subr.mxu0 0.0
        %4066 = vmatpush1.msra.mxu0 0.0
        %4067 = vmatprep.subr.mxu0 0.0
        %4068 = vmatpush1.msra.mxu0 0.0
        %4069 = vmatprep.subr.mxu0 0.0
        %4070 = vmatpush1.msra.mxu0 0.0
        %4071 = vmatprep.subr.mxu0 0.0
        %4072 = vmatpush1.msra.mxu0 0.0
        %4073 = vmatprep.subr.mxu0 0.0
        %4074 = vmatpush1.msra.mxu0 %v4038
        %4075 = vmatprep.subr.mxu0 0.0
        %4076 = vmatpush2.msra.mxu0 0.0
        %4077 = vmatprep.subr.mxu0 0.0
        %4078 = vmatpush2.msra.mxu0 0.0
        %4079 = vmatprep.subr.mxu0 0.0
        %4080 = vmatpush2.msra.mxu0 0.0
        %4081 = vmatprep.subr.mxu0 0.0
        %4082 = vmatpush2.msra.mxu0 0.0
        %4083 = vmatprep.subr.mxu0 0.0
        %4084 = vmatpush2.msra.mxu0 0.0
        %4085 = vmatprep.subr.mxu0 0.0
        %4086 = vmatpush2.msra.mxu0 0.0
        %4087 = vmatprep.subr.mxu0 0.0
        %4088 = vmatpush2.msra.mxu0 0.0
        %4089 = vmatprep.subr.mxu0 0.0
        %4090 = vmatpush2.msra.mxu0 0.0
        %4091 = vmatprep.subr.mxu0 0.0
        %4092 = vmatpush2.msra.mxu0 0.0
        %4093 = vmatprep.subr.mxu0 0.0
        %4094 = vmatpush2.msra.mxu0 0.0
        %4095 = vmatprep.subr.mxu0 0.0
        %4096 = vmatpush2.msra.mxu0 0.0
        %4097 = vmatprep.subr.mxu0 0.0
        %4098 = vmatpush2.msra.mxu0 0.0
        %4099 = vmatprep.subr.mxu0 0.0
        %4100 = vmatpush2.msra.mxu0 0.0
        %4101 = vmatprep.subr.mxu0 0.0
        %4102 = vmatpush2.msra.mxu0 0.0
        %4103 = vmatprep.subr.mxu0 0.0
        %4104 = vmatpush2.msra.mxu0 0.0
        %4105 = vmatprep.subr.mxu0 0.0
        %4106 = vmatpush2.msra.mxu0 0.0
        %4107 = vmatprep.mubr.f32.mxu0 0.0
        %4108 = vmatmul.mubr.f32.gmra.mxu0 %v4041
        %v4109 = vpop.f32.mrf.mxu0
        %v4110 = vadd.f32 0.0, %v4109
        %v4111 = vpop.f32.mrf.mxu0
        %4112 = vdwg.mxu0
        %v4113 = vadd.f32 %v3940, %v4110
        %v4114 = vmul.f32 %v3598, %v1075
        %v4115 = vmul.f32 %v3598, %v1702
        %4117 = vrot.lane.b32.xlu0 %v4115, 96
        %v4118 = vpop.permute.xlu0 %4117
        %v4120 = vsel %vm1047, %v4114, 0
        %v4122 = vsel %vm1047, %v4118, 0
        %4124 = vmatprep.subr.mxu0 0.0
        %4125 = vmatpush1.xpose.msra.mxu0 0.0
        %4126 = vmatprep.subr.mxu0 0.0
        %4127 = vmatpush1.xpose.msra.mxu0 0.0
        %4128 = vmatprep.subr.mxu0 0.0
        %4129 = vmatpush1.xpose.msra.mxu0 0.0
        %4130 = vmatprep.subr.mxu0 0.0
        %4131 = vmatpush1.xpose.msra.mxu0 0.0
        %4132 = vmatprep.subr.mxu0 0.0
        %4133 = vmatpush1.xpose.msra.mxu0 0.0
        %4134 = vmatprep.subr.mxu0 0.0
        %4135 = vmatpush1.xpose.msra.mxu0 0.0
        %4136 = vmatprep.subr.mxu0 0.0
        %4137 = vmatpush1.xpose.msra.mxu0 0.0
        %4138 = vmatprep.subr.mxu0 0.0
        %4139 = vmatpush1.xpose.msra.mxu0 0.0
        %4140 = vmatprep.subr.mxu0 0.0
        %4141 = vmatpush1.xpose.msra.mxu0 0.0
        %4142 = vmatprep.subr.mxu0 0.0
        %4143 = vmatpush1.xpose.msra.mxu0 0.0
        %4144 = vmatprep.subr.mxu0 0.0
        %4145 = vmatpush1.xpose.msra.mxu0 0.0
        %4146 = vmatprep.subr.mxu0 0.0
        %4147 = vmatpush1.xpose.msra.mxu0 0.0
        %4148 = vmatprep.subr.mxu0 0.0
        %4149 = vmatpush1.xpose.msra.mxu0 0.0
        %4150 = vmatprep.subr.mxu0 0.0
        %4151 = vmatpush1.xpose.msra.mxu0 0.0
        %4152 = vmatprep.subr.mxu0 0.0
        %4153 = vmatpush1.xpose.msra.mxu0 0.0
        %4154 = vmatprep.subr.mxu0 0.0
        %4155 = vmatpush1.xpose.msra.mxu0 %v4122
        %4156 = vmatprep.subr.mxu0 0.0
        %4157 = vmatpush2.xpose.msra.mxu0 0.0
        %4158 = vmatprep.subr.mxu0 0.0
        %4159 = vmatpush2.xpose.msra.mxu0 0.0
        %4160 = vmatprep.subr.mxu0 0.0
        %4161 = vmatpush2.xpose.msra.mxu0 0.0
        %4162 = vmatprep.subr.mxu0 0.0
        %4163 = vmatpush2.xpose.msra.mxu0 0.0
        %4164 = vmatprep.subr.mxu0 0.0
        %4165 = vmatpush2.xpose.msra.mxu0 0.0
        %4166 = vmatprep.subr.mxu0 0.0
        %4167 = vmatpush2.xpose.msra.mxu0 0.0
        %4168 = vmatprep.subr.mxu0 0.0
        %4169 = vmatpush2.xpose.msra.mxu0 0.0
        %4170 = vmatprep.subr.mxu0 0.0
        %4171 = vmatpush2.xpose.msra.mxu0 0.0
        %4172 = vmatprep.subr.mxu0 0.0
        %4173 = vmatpush2.xpose.msra.mxu0 0.0
        %4174 = vmatprep.subr.mxu0 0.0
        %4175 = vmatpush2.xpose.msra.mxu0 0.0
        %4176 = vmatprep.subr.mxu0 0.0
        %4177 = vmatpush2.xpose.msra.mxu0 0.0
        %4178 = vmatprep.subr.mxu0 0.0
        %4179 = vmatpush2.xpose.msra.mxu0 0.0
        %4180 = vmatprep.subr.mxu0 0.0
        %4181 = vmatpush2.xpose.msra.mxu0 0.0
        %4182 = vmatprep.subr.mxu0 0.0
        %4183 = vmatpush2.xpose.msra.mxu0 0.0
        %4184 = vmatprep.subr.mxu0 0.0
        %4185 = vmatpush2.xpose.msra.mxu0 0.0
        %4186 = vmatprep.subr.mxu0 0.0
        %4187 = vmatpush2.xpose.msra.mxu0 0.0
        %4188 = vmatprep.mubr.f32.mxu0 0.0
        %4189 = vmatmul.mubr.f32.gmra.mxu0 %v4120
        %v4190 = vpop.f32.mrf.mxu0
        %v4191 = vadd.f32 0.0, %v4190
        %v4192 = vpop.f32.mrf.mxu0
        %4193 = vdwg.mxu0
        %v4194 = vmul.f32 %v4191, 0.35355338
        %v4195 = vsel %vm1251, %v4194, -inf
        %4196 = vmax.xlane.f32.xlu0 %v4195
        %v4197 = vpop.xlane.xlu0 %4196
        %v4198 = vsub.f32 %v4194, %v4197
        %v4199 = vmul.f32 %v4198, 1.442695
        %v4200 = vpow.pop %v4199
        %v4201 = vsel %vm1251, %v4200, 0.0
        %4202 = vadd.xlane.f32.xlu0 %v4201
        %v4203 = vpop.xlane.xlu0 %4202
        %v4204 = vrcp.pop %v4203
        %v4205 = vmul.f32 %v4200, %v4204
        %v4206 = vmul.f32 %v3598, %v1796
        %4208 = vrot.lane.b32.xlu0 %v4206, 64
        %v4209 = vpop.permute.xlu0 %4208
        %v4212 = vsel %vm1251, %v4205, 0
        %4214 = vmatprep.subr.mxu0 0.0
        %4215 = vmatpush1.msra.mxu0 0.0
        %4216 = vmatprep.subr.mxu0 0.0
        %4217 = vmatpush1.msra.mxu0 0.0
        %4218 = vmatprep.subr.mxu0 0.0
        %4219 = vmatpush1.msra.mxu0 0.0
        %4220 = vmatprep.subr.mxu0 0.0
        %4221 = vmatpush1.msra.mxu0 0.0
        %4222 = vmatprep.subr.mxu0 0.0
        %4223 = vmatpush1.msra.mxu0 0.0
        %4224 = vmatprep.subr.mxu0 0.0
        %4225 = vmatpush1.msra.mxu0 0.0
        %4226 = vmatprep.subr.mxu0 0.0
        %4227 = vmatpush1.msra.mxu0 0.0
        %4228 = vmatprep.subr.mxu0 0.0
        %4229 = vmatpush1.msra.mxu0 0.0
        %4230 = vmatprep.subr.mxu0 0.0
        %4231 = vmatpush1.msra.mxu0 0.0
        %4232 = vmatprep.subr.mxu0 0.0
        %4233 = vmatpush1.msra.mxu0 0.0
        %4234 = vmatprep.subr.mxu0 0.0
        %4235 = vmatpush1.msra.mxu0 0.0
        %4236 = vmatprep.subr.mxu0 0.0
        %4237 = vmatpush1.msra.mxu0 0.0
        %4238 = vmatprep.subr.mxu0 0.0
        %4239 = vmatpush1.msra.mxu0 0.0
        %4240 = vmatprep.subr.mxu0 0.0
        %4241 = vmatpush1.msra.mxu0 0.0
        %4242 = vmatprep.subr.mxu0 0.0
        %4243 = vmatpush1.msra.mxu0 0.0
        %4244 = vmatprep.subr.mxu0 0.0
        %4245 = vmatpush1.msra.mxu0 %v4209
        %4246 = vmatprep.subr.mxu0 0.0
        %4247 = vmatpush2.msra.mxu0 0.0
        %4248 = vmatprep.subr.mxu0 0.0
        %4249 = vmatpush2.msra.mxu0 0.0
        %4250 = vmatprep.subr.mxu0 0.0
        %4251 = vmatpush2.msra.mxu0 0.0
        %4252 = vmatprep.subr.mxu0 0.0
        %4253 = vmatpush2.msra.mxu0 0.0
        %4254 = vmatprep.subr.mxu0 0.0
        %4255 = vmatpush2.msra.mxu0 0.0
        %4256 = vmatprep.subr.mxu0 0.0
        %4257 = vmatpush2.msra.mxu0 0.0
        %4258 = vmatprep.subr.mxu0 0.0
        %4259 = vmatpush2.msra.mxu0 0.0
        %4260 = vmatprep.subr.mxu0 0.0
        %4261 = vmatpush2.msra.mxu0 0.0
        %4262 = vmatprep.subr.mxu0 0.0
        %4263 = vmatpush2.msra.mxu0 0.0
        %4264 = vmatprep.subr.mxu0 0.0
        %4265 = vmatpush2.msra.mxu0 0.0
        %4266 = vmatprep.subr.mxu0 0.0
        %4267 = vmatpush2.msra.mxu0 0.0
        %4268 = vmatprep.subr.mxu0 0.0
        %4269 = vmatpush2.msra.mxu0 0.0
        %4270 = vmatprep.subr.mxu0 0.0
        %4271 = vmatpush2.msra.mxu0 0.0
        %4272 = vmatprep.subr.mxu0 0.0
        %4273 = vmatpush2.msra.mxu0 0.0
        %4274 = vmatprep.subr.mxu0 0.0
        %4275 = vmatpush2.msra.mxu0 0.0
        %4276 = vmatprep.subr.mxu0 0.0
        %4277 = vmatpush2.msra.mxu0 0.0
        %4278 = vmatprep.mubr.f32.mxu0 0.0
        %4279 = vmatmul.mubr.f32.gmra.mxu0 %v4212
        %v4280 = vpop.f32.mrf.mxu0
        %v4281 = vadd.f32 0.0, %v4280
        %v4282 = vpop.f32.mrf.mxu0
        %4283 = vdwg.mxu0
        %v4284 = vadd.f32 %v4113, %v4281
        %v4285 = vpack.c.bf16 %v4284, %v4284
        %v4287 = vlaneseq
        %v4288 = vshrl.u32 %v4287, 7
        %v4289 = vsub.s32 0, %v4288
        %v4290 = vrot.slane %v3514, %v4289
        %v4296 = vunpack.c.l.b16 %v3509
        %v4297 = vunpack.c.l.b16 %v3510
        %v4298 = vunpack.c.l.b16 %v3511
        %v4299 = vunpack.c.l.b16 %v3512
        %v4300 = vpack.c.b16 %v4297, %v4296
        %v4301 = vpack.c.b16 %v4299, %v4298
        %v4305 = vsel %vm1047, %v4285, 0
        %4307 = vmatprep.subr.bf16.mxu0 0
        %4308 = vmatpush1.bf16.msra.mxu0 0
        %4309 = vmatprep.subr.bf16.mxu0 0
        %4310 = vmatpush1.bf16.msra.mxu0 0
        %4311 = vmatprep.subr.bf16.mxu0 0
        %4312 = vmatpush1.bf16.msra.mxu0 0
        %4313 = vmatprep.subr.bf16.mxu0 0
        %4314 = vmatpush1.bf16.msra.mxu0 0
        %4315 = vmatprep.subr.bf16.mxu0 0
        %4316 = vmatpush1.bf16.msra.mxu0 0
        %4317 = vmatprep.subr.bf16.mxu0 0
        %4318 = vmatpush1.bf16.msra.mxu0 0
        %4319 = vmatprep.subr.bf16.mxu0 0
        %4320 = vmatpush1.bf16.msra.mxu0 %v4301
        %4321 = vmatprep.subr.bf16.mxu0 0
        %4322 = vmatpush1.bf16.msra.mxu0 %v4300
        %4323 = vmatprep.subr.bf16.mxu0 0
        %4324 = vmatpush2.bf16.msra.mxu0 0
        %4325 = vmatprep.subr.bf16.mxu0 0
        %4326 = vmatpush2.bf16.msra.mxu0 0
        %4327 = vmatprep.subr.bf16.mxu0 0
        %4328 = vmatpush2.bf16.msra.mxu0 0
        %4329 = vmatprep.subr.bf16.mxu0 0
        %4330 = vmatpush2.bf16.msra.mxu0 0
        %4331 = vmatprep.subr.bf16.mxu0 0
        %4332 = vmatpush2.bf16.msra.mxu0 0
        %4333 = vmatprep.subr.bf16.mxu0 0
        %4334 = vmatpush2.bf16.msra.mxu0 0
        %4335 = vmatprep.subr.bf16.mxu0 0
        %4336 = vmatpush2.bf16.msra.mxu0 0
        %4337 = vmatprep.subr.bf16.mxu0 0
        %4338 = vmatpush2.bf16.msra.mxu0 0
        %4339 = vmatprep.mubr.bf16.mxu0 0
        %4340 = vmatmul.mubr.bf16.gmra.mxu0 %v4305
        %v4341 = vpop.f32.mrf.mxu0
        %v4342 = vadd.f32 %v4290, %v4341
        %v4343 = vpop.f32.mrf.mxu0
        %v4344 = vpop.f32.mrf.mxu0
        %v4345 = vpop.f32.mrf.mxu0
        %4346 = vdwg.mxu0
        %v4347 = vadd.f32 %v3250, %v4342
        %v4348 = vsel %vm1047, %v4347, 0.0
        %4349 = vadd.xlane.f32.xlu0 %v4348
        %v4350 = vpop.xlane.xlu0 %4349
        %v4351 = vmul.f32 %v4350, %v1943
        %v4352 = vsub.f32 %v4347, %v4351
        %v4353 = vmul.f32 %v4352, %v4352
        %v4354 = vsel %vm1047, %v4353, 0.0
        %4355 = vadd.xlane.f32.xlu0 %v4354
        %v4356 = vpop.xlane.xlu0 %4355
        %v4357 = vmul.f32 %v4356, %v1943
        %v4358 = vadd.f32 %v4357, 1e-05
        %v4359 = vrsqrt.pop %v4358
        %v4360 = vmul.f32 %v4352, %v4359
        %v4362 = vlaneseq
        %v4363 = vshrl.u32 %v4362, 7
        %v4364 = vsub.s32 0, %v4363
        %v4365 = vrot.slane %v3516, %v4364
        %v4367 = vmul.f32 %v4360, %v4365
        %v4369 = vlaneseq
        %v4370 = vshrl.u32 %v4369, 7
        %v4371 = vsub.s32 0, %v4370
        %v4372 = vrot.slane %v3518, %v4371
        %v4374 = vadd.f32 %v4367, %v4372
        %v4375 = vpack.c.bf16 %v4374, %v4374
        %v4377 = vlaneseq
        %v4378 = vshrl.u32 %v4377, 7
        %v4379 = vsub.s32 0, %v4378
        %v4380 = vrot.slane %v3525, %v4379
        %v4386 = vunpack.c.l.b16 %v3520
        %v4387 = vunpack.c.l.b16 %v3521
        %v4388 = vunpack.c.l.b16 %v3522
        %v4389 = vunpack.c.l.b16 %v3523
        %v4390 = vpack.c.b16 %v4387, %v4386
        %v4391 = vpack.c.b16 %v4389, %v4388
        %v4395 = vsel %vm1047, %v4375, 0
        %4397 = vmatprep.subr.bf16.mxu0 0
        %4398 = vmatpush1.bf16.msra.mxu0 0
        %4399 = vmatprep.subr.bf16.mxu0 0
        %4400 = vmatpush1.bf16.msra.mxu0 0
        %4401 = vmatprep.subr.bf16.mxu0 0
        %4402 = vmatpush1.bf16.msra.mxu0 0
        %4403 = vmatprep.subr.bf16.mxu0 0
        %4404 = vmatpush1.bf16.msra.mxu0 0
        %4405 = vmatprep.subr.bf16.mxu0 0
        %4406 = vmatpush1.bf16.msra.mxu0 0
        %4407 = vmatprep.subr.bf16.mxu0 0
        %4408 = vmatpush1.bf16.msra.mxu0 0
        %4409 = vmatprep.subr.bf16.mxu0 0
        %4410 = vmatpush1.bf16.msra.mxu0 %v4391
        %4411 = vmatprep.subr.bf16.mxu0 0
        %4412 = vmatpush1.bf16.msra.mxu0 %v4390
        %4413 = vmatprep.subr.bf16.mxu0 0
        %4414 = vmatpush2.bf16.msra.mxu0 0
        %4415 = vmatprep.subr.bf16.mxu0 0
        %4416 = vmatpush2.bf16.msra.mxu0 0
        %4417 = vmatprep.subr.bf16.mxu0 0
        %4418 = vmatpush2.bf16.msra.mxu0 0
        %4419 = vmatprep.subr.bf16.mxu0 0
        %4420 = vmatpush2.bf16.msra.mxu0 0
        %4421 = vmatprep.subr.bf16.mxu0 0
        %4422 = vmatpush2.bf16.msra.mxu0 0
        %4423 = vmatprep.subr.bf16.mxu0 0
        %4424 = vmatpush2.bf16.msra.mxu0 0
        %4425 = vmatprep.subr.bf16.mxu0 0
        %4426 = vmatpush2.bf16.msra.mxu0 0
        %4427 = vmatprep.subr.bf16.mxu0 0
        %4428 = vmatpush2.bf16.msra.mxu0 0
        %4429 = vmatprep.mubr.bf16.mxu0 0
        %4430 = vmatmul.mubr.bf16.gmra.mxu0 %v4395
        %v4431 = vpop.f32.mrf.mxu0
        %v4432 = vadd.f32 %v4380, %v4431
        %v4433 = vpop.f32.mrf.mxu0
        %v4434 = vpop.f32.mrf.mxu0
        %v4435 = vpop.f32.mrf.mxu0
        %4436 = vdwg.mxu0
        %v4437 = vmax.f32 %v4432, 0.0
        %v4438 = vpack.c.bf16 %v4437, %v4437
        %v4440 = vlaneseq
        %v4441 = vshrl.u32 %v4440, 7
        %v4442 = vsub.s32 0, %v4441
        %v4443 = vrot.slane %v3536, %v4442
        %v4453 = vunpack.c.l.b16 %v3527
        %v4454 = vunpack.c.l.b16 %v3528
        %v4455 = vunpack.c.l.b16 %v3529
        %v4456 = vunpack.c.l.b16 %v3530
        %v4457 = vunpack.c.l.b16 %v3531
        %v4458 = vunpack.c.l.b16 %v3532
        %v4459 = vunpack.c.l.b16 %v3533
        %v4460 = vunpack.c.l.b16 %v3534
        %v4461 = vpack.c.b16 %v4454, %v4453
        %v4462 = vpack.c.b16 %v4456, %v4455
        %v4463 = vpack.c.b16 %v4458, %v4457
        %v4464 = vpack.c.b16 %v4460, %v4459
        %v4470 = vsel %vm2062, %v4438, 0
        %4472 = vmatprep.subr.bf16.mxu0 0
        %4473 = vmatpush1.bf16.msra.mxu0 0
        %4474 = vmatprep.subr.bf16.mxu0 0
        %4475 = vmatpush1.bf16.msra.mxu0 0
        %4476 = vmatprep.subr.bf16.mxu0 0
        %4477 = vmatpush1.bf16.msra.mxu0 0
        %4478 = vmatprep.subr.bf16.mxu0 0
        %4479 = vmatpush1.bf16.msra.mxu0 0
        %4480 = vmatprep.subr.bf16.mxu0 0
        %4481 = vmatpush1.bf16.msra.mxu0 %v4464
        %4482 = vmatprep.subr.bf16.mxu0 0
        %4483 = vmatpush1.bf16.msra.mxu0 %v4463
        %4484 = vmatprep.subr.bf16.mxu0 0
        %4485 = vmatpush1.bf16.msra.mxu0 %v4462
        %4486 = vmatprep.subr.bf16.mxu0 0
        %4487 = vmatpush1.bf16.msra.mxu0 %v4461
        %4488 = vmatprep.subr.bf16.mxu0 0
        %4489 = vmatpush2.bf16.msra.mxu0 0
        %4490 = vmatprep.subr.bf16.mxu0 0
        %4491 = vmatpush2.bf16.msra.mxu0 0
        %4492 = vmatprep.subr.bf16.mxu0 0
        %4493 = vmatpush2.bf16.msra.mxu0 0
        %4494 = vmatprep.subr.bf16.mxu0 0
        %4495 = vmatpush2.bf16.msra.mxu0 0
        %4496 = vmatprep.subr.bf16.mxu0 0
        %4497 = vmatpush2.bf16.msra.mxu0 0
        %4498 = vmatprep.subr.bf16.mxu0 0
        %4499 = vmatpush2.bf16.msra.mxu0 0
        %4500 = vmatprep.subr.bf16.mxu0 0
        %4501 = vmatpush2.bf16.msra.mxu0 0
        %4502 = vmatprep.subr.bf16.mxu0 0
        %4503 = vmatpush2.bf16.msra.mxu0 0
        %4504 = vmatprep.mubr.bf16.mxu0 0
        %4505 = vmatmul.mubr.bf16.gmra.mxu0 %v4470
        %v4506 = vpop.f32.mrf.mxu0
        %v4507 = vadd.f32 %v4443, %v4506
        %v4508 = vpop.f32.mrf.mxu0
        %v4509 = vpop.f32.mrf.mxu0
        %v4510 = vpop.f32.mrf.mxu0
        %4511 = vdwg.mxu0
        %v4512 = vadd.f32 %v4374, %v4507
        %v4513 = vsel %vm1047, %v4512, 0.0
        %4514 = vadd.xlane.f32.xlu0 %v4513
        %v4515 = vpop.xlane.xlu0 %4514
        %v4516 = vmul.f32 %v4515, %v1943
        %v4517 = vsub.f32 %v4512, %v4516
        %v4518 = vmul.f32 %v4517, %v4517
        %v4519 = vsel %vm1047, %v4518, 0.0
        %4520 = vadd.xlane.f32.xlu0 %v4519
        %v4521 = vpop.xlane.xlu0 %4520
        %v4522 = vmul.f32 %v4521, %v1943
        %v4523 = vadd.f32 %v4522, 1e-05
        %v4524 = vrsqrt.pop %v4523
        %v4525 = vmul.f32 %v4517, %v4524
        %v4527 = vlaneseq
        %v4528 = vshrl.u32 %v4527, 7
        %v4529 = vsub.s32 0, %v4528
        %v4530 = vrot.slane %v3538, %v4529
        %v4532 = vmul.f32 %v4525, %v4530
        %v4534 = vlaneseq
        %v4535 = vshrl.u32 %v4534, 7
        %v4536 = vsub.s32 0, %v4535
        %v4537 = vrot.slane %v3540, %v4536
        %v4539 = vadd.f32 %v4532, %v4537
        %v4540 = vmul.f32 %v4539, %v1053
        %s4541 = scalar_lea.vmem %s3, 48
        %v4542 = vld [vmem:[%s4541] sm:$0xf]
        %v4543 = vld [vmem:[%s4541 + $0x4] sm:$0xf]
        %v4544 = vld [vmem:[%s4541 + $0x8] sm:$0xf]
        %v4545 = vld [vmem:[%s4541 + $0xc] sm:$0xf]
        %s4546 = scalar_lea.vmem [#allocation4], 3
        %v4547 = vld [vmem:[%s4546] sm:$0x1]
        %s4548 = scalar_lea.vmem %s7, 48
        %v4549 = vld [vmem:[%s4548] sm:$0xf]
        %v4550 = vld [vmem:[%s4548 + $0x4] sm:$0xf]
        %v4551 = vld [vmem:[%s4548 + $0x8] sm:$0xf]
        %v4552 = vld [vmem:[%s4548 + $0xc] sm:$0xf]
        %s4553 = scalar_lea.vmem [#allocation7], 3
        %v4554 = vld [vmem:[%s4553] sm:$0x1]
        %s4555 = scalar_lea.vmem %s11, 3
        %v4556 = vld [vmem:[%s4555] sm:$0x1]
        %s4557 = scalar_lea.vmem %s13, 3
        %v4558 = vld [vmem:[%s4557] sm:$0x1]
        %s4559 = scalar_lea.vmem %s15, 48
        %v4560 = vld [vmem:[%s4559] sm:$0xf]
        %v4561 = vld [vmem:[%s4559 + $0x4] sm:$0xf]
        %v4562 = vld [vmem:[%s4559 + $0x8] sm:$0xf]
        %v4563 = vld [vmem:[%s4559 + $0xc] sm:$0xf]
        %s4564 = scalar_lea.vmem [#allocation9], 3
        %v4565 = vld [vmem:[%s4564] sm:$0x1]
        %s4566 = scalar_lea.vmem %s19, 96
        %v4567 = vld [vmem:[%s4566] sm:$0xf]
        %v4568 = vld [vmem:[%s4566 + $0x4] sm:$0xf]
        %v4569 = vld [vmem:[%s4566 + $0x8] sm:$0xf]
        %v4570 = vld [vmem:[%s4566 + $0xc] sm:$0xf]
        %v4571 = vld [vmem:[%s4566 + $0x10] sm:$0xf]
        %v4572 = vld [vmem:[%s4566 + $0x14] sm:$0xf]
        %v4573 = vld [vmem:[%s4566 + $0x18] sm:$0xf]
        %v4574 = vld [vmem:[%s4566 + $0x1c] sm:$0xf]
        %s4575 = scalar_lea.vmem [#allocation10], 3
        %v4576 = vld [vmem:[%s4575] sm:$0x1]
        %s4577 = scalar_lea.vmem %s23, 3
        %v4578 = vld [vmem:[%s4577] sm:$0x1]
        %s4579 = scalar_lea.vmem %s25, 3
        %v4580 = vld [vmem:[%s4579] sm:$0x1]
        %v4581 = vpack.c.bf16 %v4540, %v4540
        %v4583 = vlaneseq
        %v4584 = vshrl.u32 %v4583, 7
        %v4585 = vsub.s32 0, %v4584
        %v4586 = vrot.slane %v4547, %v4585
        %v4592 = vunpack.c.l.b16 %v4542
        %v4593 = vunpack.c.l.b16 %v4543
        %v4594 = vunpack.c.l.b16 %v4544
        %v4595 = vunpack.c.l.b16 %v4545
        %v4596 = vpack.c.b16 %v4593, %v4592
        %v4597 = vpack.c.b16 %v4595, %v4594
        %v4601 = vsel %vm1047, %v4581, 0
        %4603 = vmatprep.subr.bf16.mxu0 0
        %4604 = vmatpush1.bf16.msra.mxu0 0
        %4605 = vmatprep.subr.bf16.mxu0 0
        %4606 = vmatpush1.bf16.msra.mxu0 0
        %4607 = vmatprep.subr.bf16.mxu0 0
        %4608 = vmatpush1.bf16.msra.mxu0 0
        %4609 = vmatprep.subr.bf16.mxu0 0
        %4610 = vmatpush1.bf16.msra.mxu0 0
        %4611 = vmatprep.subr.bf16.mxu0 0
        %4612 = vmatpush1.bf16.msra.mxu0 0
        %4613 = vmatprep.subr.bf16.mxu0 0
        %4614 = vmatpush1.bf16.msra.mxu0 0
        %4615 = vmatprep.subr.bf16.mxu0 0
        %4616 = vmatpush1.bf16.msra.mxu0 %v4597
        %4617 = vmatprep.subr.bf16.mxu0 0
        %4618 = vmatpush1.bf16.msra.mxu0 %v4596
        %4619 = vmatprep.subr.bf16.mxu0 0
        %4620 = vmatpush2.bf16.msra.mxu0 0
        %4621 = vmatprep.subr.bf16.mxu0 0
        %4622 = vmatpush2.bf16.msra.mxu0 0
        %4623 = vmatprep.subr.bf16.mxu0 0
        %4624 = vmatpush2.bf16.msra.mxu0 0
        %4625 = vmatprep.subr.bf16.mxu0 0
        %4626 = vmatpush2.bf16.msra.mxu0 0
        %4627 = vmatprep.subr.bf16.mxu0 0
        %4628 = vmatpush2.bf16.msra.mxu0 0
        %4629 = vmatprep.subr.bf16.mxu0 0
        %4630 = vmatpush2.bf16.msra.mxu0 0
        %4631 = vmatprep.subr.bf16.mxu0 0
        %4632 = vmatpush2.bf16.msra.mxu0 0
        %4633 = vmatprep.subr.bf16.mxu0 0
        %4634 = vmatpush2.bf16.msra.mxu0 0
        %4635 = vmatprep.mubr.bf16.mxu0 0
        %4636 = vmatmul.mubr.bf16.gmra.mxu0 %v4601
        %v4637 = vpop.f32.mrf.mxu0
        %v4638 = vadd.f32 %v4586, %v4637
        %v4639 = vpop.f32.mrf.mxu0
        %v4640 = vpop.f32.mrf.mxu0
        %v4641 = vpop.f32.mrf.mxu0
        %4642 = vdwg.mxu0
        %v4643 = vmul.f32 %v4638, %v1060
        %v4644 = vmul.f32 %v4638, %v1169
        %4646 = vrot.lane.b32.xlu0 %v4644, 96
        %v4647 = vpop.permute.xlu0 %4646
        %v4649 = vsel %vm1047, %v4643, 0
        %v4651 = vsel %vm1047, %v4647, 0
        %4653 = vmatprep.subr.mxu0 0.0
        %4654 = vmatpush1.xpose.msra.mxu0 0.0
        %4655 = vmatprep.subr.mxu0 0.0
        %4656 = vmatpush1.xpose.msra.mxu0 0.0
        %4657 = vmatprep.subr.mxu0 0.0
        %4658 = vmatpush1.xpose.msra.mxu0 0.0
        %4659 = vmatprep.subr.mxu0 0.0
        %4660 = vmatpush1.xpose.msra.mxu0 0.0
        %4661 = vmatprep.subr.mxu0 0.0
        %4662 = vmatpush1.xpose.msra.mxu0 0.0
        %4663 = vmatprep.subr.mxu0 0.0
        %4664 = vmatpush1.xpose.msra.mxu0 0.0
        %4665 = vmatprep.subr.mxu0 0.0
        %4666 = vmatpush1.xpose.msra.mxu0 0.0
        %4667 = vmatprep.subr.mxu0 0.0
        %4668 = vmatpush1.xpose.msra.mxu0 0.0
        %4669 = vmatprep.subr.mxu0 0.0
        %4670 = vmatpush1.xpose.msra.mxu0 0.0
        %4671 = vmatprep.subr.mxu0 0.0
        %4672 = vmatpush1.xpose.msra.mxu0 0.0
        %4673 = vmatprep.subr.mxu0 0.0
        %4674 = vmatpush1.xpose.msra.mxu0 0.0
        %4675 = vmatprep.subr.mxu0 0.0
        %4676 = vmatpush1.xpose.msra.mxu0 0.0
        %4677 = vmatprep.subr.mxu0 0.0
        %4678 = vmatpush1.xpose.msra.mxu0 0.0
        %4679 = vmatprep.subr.mxu0 0.0
        %4680 = vmatpush1.xpose.msra.mxu0 0.0
        %4681 = vmatprep.subr.mxu0 0.0
        %4682 = vmatpush1.xpose.msra.mxu0 0.0
        %4683 = vmatprep.subr.mxu0 0.0
        %4684 = vmatpush1.xpose.msra.mxu0 %v4651
        %4685 = vmatprep.subr.mxu0 0.0
        %4686 = vmatpush2.xpose.msra.mxu0 0.0
        %4687 = vmatprep.subr.mxu0 0.0
        %4688 = vmatpush2.xpose.msra.mxu0 0.0
        %4689 = vmatprep.subr.mxu0 0.0
        %4690 = vmatpush2.xpose.msra.mxu0 0.0
        %4691 = vmatprep.subr.mxu0 0.0
        %4692 = vmatpush2.xpose.msra.mxu0 0.0
        %4693 = vmatprep.subr.mxu0 0.0
        %4694 = vmatpush2.xpose.msra.mxu0 0.0
        %4695 = vmatprep.subr.mxu0 0.0
        %4696 = vmatpush2.xpose.msra.mxu0 0.0
        %4697 = vmatprep.subr.mxu0 0.0
        %4698 = vmatpush2.xpose.msra.mxu0 0.0
        %4699 = vmatprep.subr.mxu0 0.0
        %4700 = vmatpush2.xpose.msra.mxu0 0.0
        %4701 = vmatprep.subr.mxu0 0.0
        %4702 = vmatpush2.xpose.msra.mxu0 0.0
        %4703 = vmatprep.subr.mxu0 0.0
        %4704 = vmatpush2.xpose.msra.mxu0 0.0
        %4705 = vmatprep.subr.mxu0 0.0
        %4706 = vmatpush2.xpose.msra.mxu0 0.0
        %4707 = vmatprep.subr.mxu0 0.0
        %4708 = vmatpush2.xpose.msra.mxu0 0.0
        %4709 = vmatprep.subr.mxu0 0.0
        %4710 = vmatpush2.xpose.msra.mxu0 0.0
        %4711 = vmatprep.subr.mxu0 0.0
        %4712 = vmatpush2.xpose.msra.mxu0 0.0
        %4713 = vmatprep.subr.mxu0 0.0
        %4714 = vmatpush2.xpose.msra.mxu0 0.0
        %4715 = vmatprep.subr.mxu0 0.0
        %4716 = vmatpush2.xpose.msra.mxu0 0.0
        %4717 = vmatprep.mubr.f32.mxu0 0.0
        %4718 = vmatmul.mubr.f32.gmra.mxu0 %v4649
        %v4719 = vpop.f32.mrf.mxu0
        %v4720 = vadd.f32 0.0, %v4719
        %v4721 = vpop.f32.mrf.mxu0
        %4722 = vdwg.mxu0
        %v4723 = vmul.f32 %v4720, 0.35355338
        %v4724 = vsel %vm1251, %v4723, -inf
        %4725 = vmax.xlane.f32.xlu0 %v4724
        %v4726 = vpop.xlane.xlu0 %4725
        %v4727 = vsub.f32 %v4723, %v4726
        %v4728 = vmul.f32 %v4727, 1.442695
        %v4729 = vpow.pop %v4728
        %v4730 = vsel %vm1251, %v4729, 0.0
        %4731 = vadd.xlane.f32.xlu0 %v4730
        %v4732 = vpop.xlane.xlu0 %4731
        %v4733 = vrcp.pop %v4732
        %v4734 = vmul.f32 %v4729, %v4733
        %v4735 = vmul.f32 %v4638, %v1264
        %v4736 = vmul.f32 %v4638, %v1065
        %v4737 = vmul.f32 %v4638, %v1270
        %4739 = vrot.lane.b32.xlu0 %v4737, 96
        %v4740 = vpop.permute.xlu0 %4739
        %v4742 = vsel %vm1047, %v4736, 0
        %v4744 = vsel %vm1047, %v4740, 0
        %4746 = vmatprep.subr.mxu0 0.0
        %4747 = vmatpush1.xpose.msra.mxu0 0.0
        %4748 = vmatprep.subr.mxu0 0.0
        %4749 = vmatpush1.xpose.msra.mxu0 0.0
        %4750 = vmatprep.subr.mxu0 0.0
        %4751 = vmatpush1.xpose.msra.mxu0 0.0
        %4752 = vmatprep.subr.mxu0 0.0
        %4753 = vmatpush1.xpose.msra.mxu0 0.0
        %4754 = vmatprep.subr.mxu0 0.0
        %4755 = vmatpush1.xpose.msra.mxu0 0.0
        %4756 = vmatprep.subr.mxu0 0.0
        %4757 = vmatpush1.xpose.msra.mxu0 0.0
        %4758 = vmatprep.subr.mxu0 0.0
        %4759 = vmatpush1.xpose.msra.mxu0 0.0
        %4760 = vmatprep.subr.mxu0 0.0
        %4761 = vmatpush1.xpose.msra.mxu0 0.0
        %4762 = vmatprep.subr.mxu0 0.0
        %4763 = vmatpush1.xpose.msra.mxu0 0.0
        %4764 = vmatprep.subr.mxu0 0.0
        %4765 = vmatpush1.xpose.msra.mxu0 0.0
        %4766 = vmatprep.subr.mxu0 0.0
        %4767 = vmatpush1.xpose.msra.mxu0 0.0
        %4768 = vmatprep.subr.mxu0 0.0
        %4769 = vmatpush1.xpose.msra.mxu0 0.0
        %4770 = vmatprep.subr.mxu0 0.0
        %4771 = vmatpush1.xpose.msra.mxu0 0.0
        %4772 = vmatprep.subr.mxu0 0.0
        %4773 = vmatpush1.xpose.msra.mxu0 0.0
        %4774 = vmatprep.subr.mxu0 0.0
        %4775 = vmatpush1.xpose.msra.mxu0 0.0
        %4776 = vmatprep.subr.mxu0 0.0
        %4777 = vmatpush1.xpose.msra.mxu0 %v4744
        %4778 = vmatprep.subr.mxu0 0.0
        %4779 = vmatpush2.xpose.msra.mxu0 0.0
        %4780 = vmatprep.subr.mxu0 0.0
        %4781 = vmatpush2.xpose.msra.mxu0 0.0
        %4782 = vmatprep.subr.mxu0 0.0
        %4783 = vmatpush2.xpose.msra.mxu0 0.0
        %4784 = vmatprep.subr.mxu0 0.0
        %4785 = vmatpush2.xpose.msra.mxu0 0.0
        %4786 = vmatprep.subr.mxu0 0.0
        %4787 = vmatpush2.xpose.msra.mxu0 0.0
        %4788 = vmatprep.subr.mxu0 0.0
        %4789 = vmatpush2.xpose.msra.mxu0 0.0
        %4790 = vmatprep.subr.mxu0 0.0
        %4791 = vmatpush2.xpose.msra.mxu0 0.0
        %4792 = vmatprep.subr.mxu0 0.0
        %4793 = vmatpush2.xpose.msra.mxu0 0.0
        %4794 = vmatprep.subr.mxu0 0.0
        %4795 = vmatpush2.xpose.msra.mxu0 0.0
        %4796 = vmatprep.subr.mxu0 0.0
        %4797 = vmatpush2.xpose.msra.mxu0 0.0
        %4798 = vmatprep.subr.mxu0 0.0
        %4799 = vmatpush2.xpose.msra.mxu0 0.0
        %4800 = vmatprep.subr.mxu0 0.0
        %4801 = vmatpush2.xpose.msra.mxu0 0.0
        %4802 = vmatprep.subr.mxu0 0.0
        %4803 = vmatpush2.xpose.msra.mxu0 0.0
        %4804 = vmatprep.subr.mxu0 0.0
        %4805 = vmatpush2.xpose.msra.mxu0 0.0
        %4806 = vmatprep.subr.mxu0 0.0
        %4807 = vmatpush2.xpose.msra.mxu0 0.0
        %4808 = vmatprep.subr.mxu0 0.0
        %4809 = vmatpush2.xpose.msra.mxu0 0.0
        %4810 = vmatprep.mubr.f32.mxu0 0.0
        %4811 = vmatmul.mubr.f32.gmra.mxu0 %v4742
        %v4812 = vpop.f32.mrf.mxu0
        %v4813 = vadd.f32 0.0, %v4812
        %v4814 = vpop.f32.mrf.mxu0
        %4815 = vdwg.mxu0
        %v4816 = vmul.f32 %v4813, 0.35355338
        %v4817 = vsel %vm1251, %v4816, -inf
        %4818 = vmax.xlane.f32.xlu0 %v4817
        %v4819 = vpop.xlane.xlu0 %4818
        %v4820 = vsub.f32 %v4816, %v4819
        %v4821 = vmul.f32 %v4820, 1.442695
        %v4822 = vpow.pop %v4821
        %v4823 = vsel %vm1251, %v4822, 0.0
        %4824 = vadd.xlane.f32.xlu0 %v4823
        %v4825 = vpop.xlane.xlu0 %4824
        %v4826 = vrcp.pop %v4825
        %v4827 = vmul.f32 %v4822, %v4826
        %v4828 = vmul.f32 %v4638, %v1364
        %4830 = vrot.lane.b32.xlu0 %v4828, 64
        %v4831 = vpop.permute.xlu0 %4830
        %v4834 = vsel %vm1251, %v4827, 0
        %4836 = vmatprep.subr.mxu0 0.0
        %4837 = vmatpush1.msra.mxu0 0.0
        %4838 = vmatprep.subr.mxu0 0.0
        %4839 = vmatpush1.msra.mxu0 0.0
        %4840 = vmatprep.subr.mxu0 0.0
        %4841 = vmatpush1.msra.mxu0 0.0
        %4842 = vmatprep.subr.mxu0 0.0
        %4843 = vmatpush1.msra.mxu0 0.0
        %4844 = vmatprep.subr.mxu0 0.0
        %4845 = vmatpush1.msra.mxu0 0.0
        %4846 = vmatprep.subr.mxu0 0.0
        %4847 = vmatpush1.msra.mxu0 0.0
        %4848 = vmatprep.subr.mxu0 0.0
        %4849 = vmatpush1.msra.mxu0 0.0
        %4850 = vmatprep.subr.mxu0 0.0
        %4851 = vmatpush1.msra.mxu0 0.0
        %4852 = vmatprep.subr.mxu0 0.0
        %4853 = vmatpush1.msra.mxu0 0.0
        %4854 = vmatprep.subr.mxu0 0.0
        %4855 = vmatpush1.msra.mxu0 0.0
        %4856 = vmatprep.subr.mxu0 0.0
        %4857 = vmatpush1.msra.mxu0 0.0
        %4858 = vmatprep.subr.mxu0 0.0
        %4859 = vmatpush1.msra.mxu0 0.0
        %4860 = vmatprep.subr.mxu0 0.0
        %4861 = vmatpush1.msra.mxu0 0.0
        %4862 = vmatprep.subr.mxu0 0.0
        %4863 = vmatpush1.msra.mxu0 0.0
        %4864 = vmatprep.subr.mxu0 0.0
        %4865 = vmatpush1.msra.mxu0 0.0
        %4866 = vmatprep.subr.mxu0 0.0
        %4867 = vmatpush1.msra.mxu0 %v4831
        %4868 = vmatprep.subr.mxu0 0.0
        %4869 = vmatpush2.msra.mxu0 0.0
        %4870 = vmatprep.subr.mxu0 0.0
        %4871 = vmatpush2.msra.mxu0 0.0
        %4872 = vmatprep.subr.mxu0 0.0
        %4873 = vmatpush2.msra.mxu0 0.0
        %4874 = vmatprep.subr.mxu0 0.0
        %4875 = vmatpush2.msra.mxu0 0.0
        %4876 = vmatprep.subr.mxu0 0.0
        %4877 = vmatpush2.msra.mxu0 0.0
        %4878 = vmatprep.subr.mxu0 0.0
        %4879 = vmatpush2.msra.mxu0 0.0
        %4880 = vmatprep.subr.mxu0 0.0
        %4881 = vmatpush2.msra.mxu0 0.0
        %4882 = vmatprep.subr.mxu0 0.0
        %4883 = vmatpush2.msra.mxu0 0.0
        %4884 = vmatprep.subr.mxu0 0.0
        %4885 = vmatpush2.msra.mxu0 0.0
        %4886 = vmatprep.subr.mxu0 0.0
        %4887 = vmatpush2.msra.mxu0 0.0
        %4888 = vmatprep.subr.mxu0 0.0
        %4889 = vmatpush2.msra.mxu0 0.0
        %4890 = vmatprep.subr.mxu0 0.0
        %4891 = vmatpush2.msra.mxu0 0.0
        %4892 = vmatprep.subr.mxu0 0.0
        %4893 = vmatpush2.msra.mxu0 0.0
        %4894 = vmatprep.subr.mxu0 0.0
        %4895 = vmatpush2.msra.mxu0 0.0
        %4896 = vmatprep.subr.mxu0 0.0
        %4897 = vmatpush2.msra.mxu0 0.0
        %4898 = vmatprep.subr.mxu0 0.0
        %4899 = vmatpush2.msra.mxu0 0.0
        %4900 = vmatprep.mubr.f32.mxu0 0.0
        %4901 = vmatmul.mubr.f32.gmra.mxu0 %v4834
        %v4902 = vpop.f32.mrf.mxu0
        %v4903 = vadd.f32 0.0, %v4902
        %v4904 = vpop.f32.mrf.mxu0
        %4905 = vdwg.mxu0
        %4907 = vrot.lane.b32.xlu0 %v4735, 64
        %v4908 = vpop.permute.xlu0 %4907
        %v4911 = vsel %vm1251, %v4734, 0
        %4913 = vmatprep.subr.mxu0 0.0
        %4914 = vmatpush1.msra.mxu0 0.0
        %4915 = vmatprep.subr.mxu0 0.0
        %4916 = vmatpush1.msra.mxu0 0.0
        %4917 = vmatprep.subr.mxu0 0.0
        %4918 = vmatpush1.msra.mxu0 0.0
        %4919 = vmatprep.subr.mxu0 0.0
        %4920 = vmatpush1.msra.mxu0 0.0
        %4921 = vmatprep.subr.mxu0 0.0
        %4922 = vmatpush1.msra.mxu0 0.0
        %4923 = vmatprep.subr.mxu0 0.0
        %4924 = vmatpush1.msra.mxu0 0.0
        %4925 = vmatprep.subr.mxu0 0.0
        %4926 = vmatpush1.msra.mxu0 0.0
        %4927 = vmatprep.subr.mxu0 0.0
        %4928 = vmatpush1.msra.mxu0 0.0
        %4929 = vmatprep.subr.mxu0 0.0
        %4930 = vmatpush1.msra.mxu0 0.0
        %4931 = vmatprep.subr.mxu0 0.0
        %4932 = vmatpush1.msra.mxu0 0.0
        %4933 = vmatprep.subr.mxu0 0.0
        %4934 = vmatpush1.msra.mxu0 0.0
        %4935 = vmatprep.subr.mxu0 0.0
        %4936 = vmatpush1.msra.mxu0 0.0
        %4937 = vmatprep.subr.mxu0 0.0
        %4938 = vmatpush1.msra.mxu0 0.0
        %4939 = vmatprep.subr.mxu0 0.0
        %4940 = vmatpush1.msra.mxu0 0.0
        %4941 = vmatprep.subr.mxu0 0.0
        %4942 = vmatpush1.msra.mxu0 0.0
        %4943 = vmatprep.subr.mxu0 0.0
        %4944 = vmatpush1.msra.mxu0 %v4908
        %4945 = vmatprep.subr.mxu0 0.0
        %4946 = vmatpush2.msra.mxu0 0.0
        %4947 = vmatprep.subr.mxu0 0.0
        %4948 = vmatpush2.msra.mxu0 0.0
        %4949 = vmatprep.subr.mxu0 0.0
        %4950 = vmatpush2.msra.mxu0 0.0
        %4951 = vmatprep.subr.mxu0 0.0
        %4952 = vmatpush2.msra.mxu0 0.0
        %4953 = vmatprep.subr.mxu0 0.0
        %4954 = vmatpush2.msra.mxu0 0.0
        %4955 = vmatprep.subr.mxu0 0.0
        %4956 = vmatpush2.msra.mxu0 0.0
        %4957 = vmatprep.subr.mxu0 0.0
        %4958 = vmatpush2.msra.mxu0 0.0
        %4959 = vmatprep.subr.mxu0 0.0
        %4960 = vmatpush2.msra.mxu0 0.0
        %4961 = vmatprep.subr.mxu0 0.0
        %4962 = vmatpush2.msra.mxu0 0.0
        %4963 = vmatprep.subr.mxu0 0.0
        %4964 = vmatpush2.msra.mxu0 0.0
        %4965 = vmatprep.subr.mxu0 0.0
        %4966 = vmatpush2.msra.mxu0 0.0
        %4967 = vmatprep.subr.mxu0 0.0
        %4968 = vmatpush2.msra.mxu0 0.0
        %4969 = vmatprep.subr.mxu0 0.0
        %4970 = vmatpush2.msra.mxu0 0.0
        %4971 = vmatprep.subr.mxu0 0.0
        %4972 = vmatpush2.msra.mxu0 0.0
        %4973 = vmatprep.subr.mxu0 0.0
        %4974 = vmatpush2.msra.mxu0 0.0
        %4975 = vmatprep.subr.mxu0 0.0
        %4976 = vmatpush2.msra.mxu0 0.0
        %4977 = vmatprep.mubr.f32.mxu0 0.0
        %4978 = vmatmul.mubr.f32.gmra.mxu0 %v4911
        %v4979 = vpop.f32.mrf.mxu0
        %v4980 = vadd.f32 %v4903, %v4979
        %v4981 = vpop.f32.mrf.mxu0
        %4982 = vdwg.mxu0
        %v4983 = vmul.f32 %v4638, %v1070
        %v4984 = vmul.f32 %v4638, %v1524
        %4986 = vrot.lane.b32.xlu0 %v4984, 96
        %v4987 = vpop.permute.xlu0 %4986
        %v4989 = vsel %vm1047, %v4983, 0
        %v4991 = vsel %vm1047, %v4987, 0
        %4993 = vmatprep.subr.mxu0 0.0
        %4994 = vmatpush1.xpose.msra.mxu0 0.0
        %4995 = vmatprep.subr.mxu0 0.0
        %4996 = vmatpush1.xpose.msra.mxu0 0.0
        %4997 = vmatprep.subr.mxu0 0.0
        %4998 = vmatpush1.xpose.msra.mxu0 0.0
        %4999 = vmatprep.subr.mxu0 0.0
        %5000 = vmatpush1.xpose.msra.mxu0 0.0
        %5001 = vmatprep.subr.mxu0 0.0
        %5002 = vmatpush1.xpose.msra.mxu0 0.0
        %5003 = vmatprep.subr.mxu0 0.0
        %5004 = vmatpush1.xpose.msra.mxu0 0.0
        %5005 = vmatprep.subr.mxu0 0.0
        %5006 = vmatpush1.xpose.msra.mxu0 0.0
        %5007 = vmatprep.subr.mxu0 0.0
        %5008 = vmatpush1.xpose.msra.mxu0 0.0
        %5009 = vmatprep.subr.mxu0 0.0
        %5010 = vmatpush1.xpose.msra.mxu0 0.0
        %5011 = vmatprep.subr.mxu0 0.0
        %5012 = vmatpush1.xpose.msra.mxu0 0.0
        %5013 = vmatprep.subr.mxu0 0.0
        %5014 = vmatpush1.xpose.msra.mxu0 0.0
        %5015 = vmatprep.subr.mxu0 0.0
        %5016 = vmatpush1.xpose.msra.mxu0 0.0
        %5017 = vmatprep.subr.mxu0 0.0
        %5018 = vmatpush1.xpose.msra.mxu0 0.0
        %5019 = vmatprep.subr.mxu0 0.0
        %5020 = vmatpush1.xpose.msra.mxu0 0.0
        %5021 = vmatprep.subr.mxu0 0.0
        %5022 = vmatpush1.xpose.msra.mxu0 0.0
        %5023 = vmatprep.subr.mxu0 0.0
        %5024 = vmatpush1.xpose.msra.mxu0 %v4991
        %5025 = vmatprep.subr.mxu0 0.0
        %5026 = vmatpush2.xpose.msra.mxu0 0.0
        %5027 = vmatprep.subr.mxu0 0.0
        %5028 = vmatpush2.xpose.msra.mxu0 0.0
        %5029 = vmatprep.subr.mxu0 0.0
        %5030 = vmatpush2.xpose.msra.mxu0 0.0
        %5031 = vmatprep.subr.mxu0 0.0
        %5032 = vmatpush2.xpose.msra.mxu0 0.0
        %5033 = vmatprep.subr.mxu0 0.0
        %5034 = vmatpush2.xpose.msra.mxu0 0.0
        %5035 = vmatprep.subr.mxu0 0.0
        %5036 = vmatpush2.xpose.msra.mxu0 0.0
        %5037 = vmatprep.subr.mxu0 0.0
        %5038 = vmatpush2.xpose.msra.mxu0 0.0
        %5039 = vmatprep.subr.mxu0 0.0
        %5040 = vmatpush2.xpose.msra.mxu0 0.0
        %5041 = vmatprep.subr.mxu0 0.0
        %5042 = vmatpush2.xpose.msra.mxu0 0.0
        %5043 = vmatprep.subr.mxu0 0.0
        %5044 = vmatpush2.xpose.msra.mxu0 0.0
        %5045 = vmatprep.subr.mxu0 0.0
        %5046 = vmatpush2.xpose.msra.mxu0 0.0
        %5047 = vmatprep.subr.mxu0 0.0
        %5048 = vmatpush2.xpose.msra.mxu0 0.0
        %5049 = vmatprep.subr.mxu0 0.0
        %5050 = vmatpush2.xpose.msra.mxu0 0.0
        %5051 = vmatprep.subr.mxu0 0.0
        %5052 = vmatpush2.xpose.msra.mxu0 0.0
        %5053 = vmatprep.subr.mxu0 0.0
        %5054 = vmatpush2.xpose.msra.mxu0 0.0
        %5055 = vmatprep.subr.mxu0 0.0
        %5056 = vmatpush2.xpose.msra.mxu0 0.0
        %5057 = vmatprep.mubr.f32.mxu0 0.0
        %5058 = vmatmul.mubr.f32.gmra.mxu0 %v4989
        %v5059 = vpop.f32.mrf.mxu0
        %v5060 = vadd.f32 0.0, %v5059
        %v5061 = vpop.f32.mrf.mxu0
        %5062 = vdwg.mxu0
        %v5063 = vmul.f32 %v5060, 0.35355338
        %v5064 = vsel %vm1251, %v5063, -inf
        %5065 = vmax.xlane.f32.xlu0 %v5064
        %v5066 = vpop.xlane.xlu0 %5065
        %v5067 = vsub.f32 %v5063, %v5066
        %v5068 = vmul.f32 %v5067, 1.442695
        %v5069 = vpow.pop %v5068
        %v5070 = vsel %vm1251, %v5069, 0.0
        %5071 = vadd.xlane.f32.xlu0 %v5070
        %v5072 = vpop.xlane.xlu0 %5071
        %v5073 = vrcp.pop %v5072
        %v5074 = vmul.f32 %v5069, %v5073
        %v5075 = vmul.f32 %v4638, %v1618
        %5077 = vrot.lane.b32.xlu0 %v5075, 64
        %v5078 = vpop.permute.xlu0 %5077
        %v5081 = vsel %vm1251, %v5074, 0
        %5083 = vmatprep.subr.mxu0 0.0
        %5084 = vmatpush1.msra.mxu0 0.0
        %5085 = vmatprep.subr.mxu0 0.0
        %5086 = vmatpush1.msra.mxu0 0.0
        %5087 = vmatprep.subr.mxu0 0.0
        %5088 = vmatpush1.msra.mxu0 0.0
        %5089 = vmatprep.subr.mxu0 0.0
        %5090 = vmatpush1.msra.mxu0 0.0
        %5091 = vmatprep.subr.mxu0 0.0
        %5092 = vmatpush1.msra.mxu0 0.0
        %5093 = vmatprep.subr.mxu0 0.0
        %5094 = vmatpush1.msra.mxu0 0.0
        %5095 = vmatprep.subr.mxu0 0.0
        %5096 = vmatpush1.msra.mxu0 0.0
        %5097 = vmatprep.subr.mxu0 0.0
        %5098 = vmatpush1.msra.mxu0 0.0
        %5099 = vmatprep.subr.mxu0 0.0
        %5100 = vmatpush1.msra.mxu0 0.0
        %5101 = vmatprep.subr.mxu0 0.0
        %5102 = vmatpush1.msra.mxu0 0.0
        %5103 = vmatprep.subr.mxu0 0.0
        %5104 = vmatpush1.msra.mxu0 0.0
        %5105 = vmatprep.subr.mxu0 0.0
        %5106 = vmatpush1.msra.mxu0 0.0
        %5107 = vmatprep.subr.mxu0 0.0
        %5108 = vmatpush1.msra.mxu0 0.0
        %5109 = vmatprep.subr.mxu0 0.0
        %5110 = vmatpush1.msra.mxu0 0.0
        %5111 = vmatprep.subr.mxu0 0.0
        %5112 = vmatpush1.msra.mxu0 0.0
        %5113 = vmatprep.subr.mxu0 0.0
        %5114 = vmatpush1.msra.mxu0 %v5078
        %5115 = vmatprep.subr.mxu0 0.0
        %5116 = vmatpush2.msra.mxu0 0.0
        %5117 = vmatprep.subr.mxu0 0.0
        %5118 = vmatpush2.msra.mxu0 0.0
        %5119 = vmatprep.subr.mxu0 0.0
        %5120 = vmatpush2.msra.mxu0 0.0
        %5121 = vmatprep.subr.mxu0 0.0
        %5122 = vmatpush2.msra.mxu0 0.0
        %5123 = vmatprep.subr.mxu0 0.0
        %5124 = vmatpush2.msra.mxu0 0.0
        %5125 = vmatprep.subr.mxu0 0.0
        %5126 = vmatpush2.msra.mxu0 0.0
        %5127 = vmatprep.subr.mxu0 0.0
        %5128 = vmatpush2.msra.mxu0 0.0
        %5129 = vmatprep.subr.mxu0 0.0
        %5130 = vmatpush2.msra.mxu0 0.0
        %5131 = vmatprep.subr.mxu0 0.0
        %5132 = vmatpush2.msra.mxu0 0.0
        %5133 = vmatprep.subr.mxu0 0.0
        %5134 = vmatpush2.msra.mxu0 0.0
        %5135 = vmatprep.subr.mxu0 0.0
        %5136 = vmatpush2.msra.mxu0 0.0
        %5137 = vmatprep.subr.mxu0 0.0
        %5138 = vmatpush2.msra.mxu0 0.0
        %5139 = vmatprep.subr.mxu0 0.0
        %5140 = vmatpush2.msra.mxu0 0.0
        %5141 = vmatprep.subr.mxu0 0.0
        %5142 = vmatpush2.msra.mxu0 0.0
        %5143 = vmatprep.subr.mxu0 0.0
        %5144 = vmatpush2.msra.mxu0 0.0
        %5145 = vmatprep.subr.mxu0 0.0
        %5146 = vmatpush2.msra.mxu0 0.0
        %5147 = vmatprep.mubr.f32.mxu0 0.0
        %5148 = vmatmul.mubr.f32.gmra.mxu0 %v5081
        %v5149 = vpop.f32.mrf.mxu0
        %v5150 = vadd.f32 0.0, %v5149
        %v5151 = vpop.f32.mrf.mxu0
        %5152 = vdwg.mxu0
        %v5153 = vadd.f32 %v4980, %v5150
        %v5154 = vmul.f32 %v4638, %v1075
        %v5155 = vmul.f32 %v4638, %v1702
        %5157 = vrot.lane.b32.xlu0 %v5155, 96
        %v5158 = vpop.permute.xlu0 %5157
        %v5160 = vsel %vm1047, %v5154, 0
        %v5162 = vsel %vm1047, %v5158, 0
        %5164 = vmatprep.subr.mxu0 0.0
        %5165 = vmatpush1.xpose.msra.mxu0 0.0
        %5166 = vmatprep.subr.mxu0 0.0
        %5167 = vmatpush1.xpose.msra.mxu0 0.0
        %5168 = vmatprep.subr.mxu0 0.0
        %5169 = vmatpush1.xpose.msra.mxu0 0.0
        %5170 = vmatprep.subr.mxu0 0.0
        %5171 = vmatpush1.xpose.msra.mxu0 0.0
        %5172 = vmatprep.subr.mxu0 0.0
        %5173 = vmatpush1.xpose.msra.mxu0 0.0
        %5174 = vmatprep.subr.mxu0 0.0
        %5175 = vmatpush1.xpose.msra.mxu0 0.0
        %5176 = vmatprep.subr.mxu0 0.0
        %5177 = vmatpush1.xpose.msra.mxu0 0.0
        %5178 = vmatprep.subr.mxu0 0.0
        %5179 = vmatpush1.xpose.msra.mxu0 0.0
        %5180 = vmatprep.subr.mxu0 0.0
        %5181 = vmatpush1.xpose.msra.mxu0 0.0
        %5182 = vmatprep.subr.mxu0 0.0
        %5183 = vmatpush1.xpose.msra.mxu0 0.0
        %5184 = vmatprep.subr.mxu0 0.0
        %5185 = vmatpush1.xpose.msra.mxu0 0.0
        %5186 = vmatprep.subr.mxu0 0.0
        %5187 = vmatpush1.xpose.msra.mxu0 0.0
        %5188 = vmatprep.subr.mxu0 0.0
        %5189 = vmatpush1.xpose.msra.mxu0 0.0
        %5190 = vmatprep.subr.mxu0 0.0
        %5191 = vmatpush1.xpose.msra.mxu0 0.0
        %5192 = vmatprep.subr.mxu0 0.0
        %5193 = vmatpush1.xpose.msra.mxu0 0.0
        %5194 = vmatprep.subr.mxu0 0.0
        %5195 = vmatpush1.xpose.msra.mxu0 %v5162
        %5196 = vmatprep.subr.mxu0 0.0
        %5197 = vmatpush2.xpose.msra.mxu0 0.0
        %5198 = vmatprep.subr.mxu0 0.0
        %5199 = vmatpush2.xpose.msra.mxu0 0.0
        %5200 = vmatprep.subr.mxu0 0.0
        %5201 = vmatpush2.xpose.msra.mxu0 0.0
        %5202 = vmatprep.subr.mxu0 0.0
        %5203 = vmatpush2.xpose.msra.mxu0 0.0
        %5204 = vmatprep.subr.mxu0 0.0
        %5205 = vmatpush2.xpose.msra.mxu0 0.0
        %5206 = vmatprep.subr.mxu0 0.0
        %5207 = vmatpush2.xpose.msra.mxu0 0.0
        %5208 = vmatprep.subr.mxu0 0.0
        %5209 = vmatpush2.xpose.msra.mxu0 0.0
        %5210 = vmatprep.subr.mxu0 0.0
        %5211 = vmatpush2.xpose.msra.mxu0 0.0
        %5212 = vmatprep.subr.mxu0 0.0
        %5213 = vmatpush2.xpose.msra.mxu0 0.0
        %5214 = vmatprep.subr.mxu0 0.0
        %5215 = vmatpush2.xpose.msra.mxu0 0.0
        %5216 = vmatprep.subr.mxu0 0.0
        %5217 = vmatpush2.xpose.msra.mxu0 0.0
        %5218 = vmatprep.subr.mxu0 0.0
        %5219 = vmatpush2.xpose.msra.mxu0 0.0
        %5220 = vmatprep.subr.mxu0 0.0
        %5221 = vmatpush2.xpose.msra.mxu0 0.0
        %5222 = vmatprep.subr.mxu0 0.0
        %5223 = vmatpush2.xpose.msra.mxu0 0.0
        %5224 = vmatprep.subr.mxu0 0.0
        %5225 = vmatpush2.xpose.msra.mxu0 0.0
        %5226 = vmatprep.subr.mxu0 0.0
        %5227 = vmatpush2.xpose.msra.mxu0 0.0
        %5228 = vmatprep.mubr.f32.mxu0 0.0
        %5229 = vmatmul.mubr.f32.gmra.mxu0 %v5160
        %v5230 = vpop.f32.mrf.mxu0
        %v5231 = vadd.f32 0.0, %v5230
        %v5232 = vpop.f32.mrf.mxu0
        %5233 = vdwg.mxu0
        %v5234 = vmul.f32 %v5231, 0.35355338
        %v5235 = vsel %vm1251, %v5234, -inf
        %5236 = vmax.xlane.f32.xlu0 %v5235
        %v5237 = vpop.xlane.xlu0 %5236
        %v5238 = vsub.f32 %v5234, %v5237
        %v5239 = vmul.f32 %v5238, 1.442695
        %v5240 = vpow.pop %v5239
        %v5241 = vsel %vm1251, %v5240, 0.0
        %5242 = vadd.xlane.f32.xlu0 %v5241
        %v5243 = vpop.xlane.xlu0 %5242
        %v5244 = vrcp.pop %v5243
        %v5245 = vmul.f32 %v5240, %v5244
        %v5246 = vmul.f32 %v4638, %v1796
        %5248 = vrot.lane.b32.xlu0 %v5246, 64
        %v5249 = vpop.permute.xlu0 %5248
        %v5252 = vsel %vm1251, %v5245, 0
        %5254 = vmatprep.subr.mxu0 0.0
        %5255 = vmatpush1.msra.mxu0 0.0
        %5256 = vmatprep.subr.mxu0 0.0
        %5257 = vmatpush1.msra.mxu0 0.0
        %5258 = vmatprep.subr.mxu0 0.0
        %5259 = vmatpush1.msra.mxu0 0.0
        %5260 = vmatprep.subr.mxu0 0.0
        %5261 = vmatpush1.msra.mxu0 0.0
        %5262 = vmatprep.subr.mxu0 0.0
        %5263 = vmatpush1.msra.mxu0 0.0
        %5264 = vmatprep.subr.mxu0 0.0
        %5265 = vmatpush1.msra.mxu0 0.0
        %5266 = vmatprep.subr.mxu0 0.0
        %5267 = vmatpush1.msra.mxu0 0.0
        %5268 = vmatprep.subr.mxu0 0.0
        %5269 = vmatpush1.msra.mxu0 0.0
        %5270 = vmatprep.subr.mxu0 0.0
        %5271 = vmatpush1.msra.mxu0 0.0
        %5272 = vmatprep.subr.mxu0 0.0
        %5273 = vmatpush1.msra.mxu0 0.0
        %5274 = vmatprep.subr.mxu0 0.0
        %5275 = vmatpush1.msra.mxu0 0.0
        %5276 = vmatprep.subr.mxu0 0.0
        %5277 = vmatpush1.msra.mxu0 0.0
        %5278 = vmatprep.subr.mxu0 0.0
        %5279 = vmatpush1.msra.mxu0 0.0
        %5280 = vmatprep.subr.mxu0 0.0
        %5281 = vmatpush1.msra.mxu0 0.0
        %5282 = vmatprep.subr.mxu0 0.0
        %5283 = vmatpush1.msra.mxu0 0.0
        %5284 = vmatprep.subr.mxu0 0.0
        %5285 = vmatpush1.msra.mxu0 %v5249
        %5286 = vmatprep.subr.mxu0 0.0
        %5287 = vmatpush2.msra.mxu0 0.0
        %5288 = vmatprep.subr.mxu0 0.0
        %5289 = vmatpush2.msra.mxu0 0.0
        %5290 = vmatprep.subr.mxu0 0.0
        %5291 = vmatpush2.msra.mxu0 0.0
        %5292 = vmatprep.subr.mxu0 0.0
        %5293 = vmatpush2.msra.mxu0 0.0
        %5294 = vmatprep.subr.mxu0 0.0
        %5295 = vmatpush2.msra.mxu0 0.0
        %5296 = vmatprep.subr.mxu0 0.0
        %5297 = vmatpush2.msra.mxu0 0.0
        %5298 = vmatprep.subr.mxu0 0.0
        %5299 = vmatpush2.msra.mxu0 0.0
        %5300 = vmatprep.subr.mxu0 0.0
        %5301 = vmatpush2.msra.mxu0 0.0
        %5302 = vmatprep.subr.mxu0 0.0
        %5303 = vmatpush2.msra.mxu0 0.0
        %5304 = vmatprep.subr.mxu0 0.0
        %5305 = vmatpush2.msra.mxu0 0.0
        %5306 = vmatprep.subr.mxu0 0.0
        %5307 = vmatpush2.msra.mxu0 0.0
        %5308 = vmatprep.subr.mxu0 0.0
        %5309 = vmatpush2.msra.mxu0 0.0
        %5310 = vmatprep.subr.mxu0 0.0
        %5311 = vmatpush2.msra.mxu0 0.0
        %5312 = vmatprep.subr.mxu0 0.0
        %5313 = vmatpush2.msra.mxu0 0.0
        %5314 = vmatprep.subr.mxu0 0.0
        %5315 = vmatpush2.msra.mxu0 0.0
        %5316 = vmatprep.subr.mxu0 0.0
        %5317 = vmatpush2.msra.mxu0 0.0
        %5318 = vmatprep.mubr.f32.mxu0 0.0
        %5319 = vmatmul.mubr.f32.gmra.mxu0 %v5252
        %v5320 = vpop.f32.mrf.mxu0
        %v5321 = vadd.f32 0.0, %v5320
        %v5322 = vpop.f32.mrf.mxu0
        %5323 = vdwg.mxu0
        %v5324 = vadd.f32 %v5153, %v5321
        %v5325 = vpack.c.bf16 %v5324, %v5324
        %v5327 = vlaneseq
        %v5328 = vshrl.u32 %v5327, 7
        %v5329 = vsub.s32 0, %v5328
        %v5330 = vrot.slane %v4554, %v5329
        %v5336 = vunpack.c.l.b16 %v4549
        %v5337 = vunpack.c.l.b16 %v4550
        %v5338 = vunpack.c.l.b16 %v4551
        %v5339 = vunpack.c.l.b16 %v4552
        %v5340 = vpack.c.b16 %v5337, %v5336
        %v5341 = vpack.c.b16 %v5339, %v5338
        %v5345 = vsel %vm1047, %v5325, 0
        %5347 = vmatprep.subr.bf16.mxu0 0
        %5348 = vmatpush1.bf16.msra.mxu0 0
        %5349 = vmatprep.subr.bf16.mxu0 0
        %5350 = vmatpush1.bf16.msra.mxu0 0
        %5351 = vmatprep.subr.bf16.mxu0 0
        %5352 = vmatpush1.bf16.msra.mxu0 0
        %5353 = vmatprep.subr.bf16.mxu0 0
        %5354 = vmatpush1.bf16.msra.mxu0 0
        %5355 = vmatprep.subr.bf16.mxu0 0
        %5356 = vmatpush1.bf16.msra.mxu0 0
        %5357 = vmatprep.subr.bf16.mxu0 0
        %5358 = vmatpush1.bf16.msra.mxu0 0
        %5359 = vmatprep.subr.bf16.mxu0 0
        %5360 = vmatpush1.bf16.msra.mxu0 %v5341
        %5361 = vmatprep.subr.bf16.mxu0 0
        %5362 = vmatpush1.bf16.msra.mxu0 %v5340
        %5363 = vmatprep.subr.bf16.mxu0 0
        %5364 = vmatpush2.bf16.msra.mxu0 0
        %5365 = vmatprep.subr.bf16.mxu0 0
        %5366 = vmatpush2.bf16.msra.mxu0 0
        %5367 = vmatprep.subr.bf16.mxu0 0
        %5368 = vmatpush2.bf16.msra.mxu0 0
        %5369 = vmatprep.subr.bf16.mxu0 0
        %5370 = vmatpush2.bf16.msra.mxu0 0
        %5371 = vmatprep.subr.bf16.mxu0 0
        %5372 = vmatpush2.bf16.msra.mxu0 0
        %5373 = vmatprep.subr.bf16.mxu0 0
        %5374 = vmatpush2.bf16.msra.mxu0 0
        %5375 = vmatprep.subr.bf16.mxu0 0
        %5376 = vmatpush2.bf16.msra.mxu0 0
        %5377 = vmatprep.subr.bf16.mxu0 0
        %5378 = vmatpush2.bf16.msra.mxu0 0
        %5379 = vmatprep.mubr.bf16.mxu0 0
        %5380 = vmatmul.mubr.bf16.gmra.mxu0 %v5345
        %v5381 = vpop.f32.mrf.mxu0
        %v5382 = vadd.f32 %v5330, %v5381
        %v5383 = vpop.f32.mrf.mxu0
        %v5384 = vpop.f32.mrf.mxu0
        %v5385 = vpop.f32.mrf.mxu0
        %5386 = vdwg.mxu0
        %v5387 = vadd.f32 %v4540, %v5382
        %v5388 = vsel %vm1047, %v5387, 0.0
        %5389 = vadd.xlane.f32.xlu0 %v5388
        %v5390 = vpop.xlane.xlu0 %5389
        %v5391 = vmul.f32 %v5390, %v1943
        %v5392 = vsub.f32 %v5387, %v5391
        %v5393 = vmul.f32 %v5392, %v5392
        %v5394 = vsel %vm1047, %v5393, 0.0
        %5395 = vadd.xlane.f32.xlu0 %v5394
        %v5396 = vpop.xlane.xlu0 %5395
        %v5397 = vmul.f32 %v5396, %v1943
        %v5398 = vadd.f32 %v5397, 1e-05
        %v5399 = vrsqrt.pop %v5398
        %v5400 = vmul.f32 %v5392, %v5399
        %v5402 = vlaneseq
        %v5403 = vshrl.u32 %v5402, 7
        %v5404 = vsub.s32 0, %v5403
        %v5405 = vrot.slane %v4556, %v5404
        %v5407 = vmul.f32 %v5400, %v5405
        %v5409 = vlaneseq
        %v5410 = vshrl.u32 %v5409, 7
        %v5411 = vsub.s32 0, %v5410
        %v5412 = vrot.slane %v4558, %v5411
        %v5414 = vadd.f32 %v5407, %v5412
        %v5415 = vpack.c.bf16 %v5414, %v5414
        %v5417 = vlaneseq
        %v5418 = vshrl.u32 %v5417, 7
        %v5419 = vsub.s32 0, %v5418
        %v5420 = vrot.slane %v4565, %v5419
        %v5426 = vunpack.c.l.b16 %v4560
        %v5427 = vunpack.c.l.b16 %v4561
        %v5428 = vunpack.c.l.b16 %v4562
        %v5429 = vunpack.c.l.b16 %v4563
        %v5430 = vpack.c.b16 %v5427, %v5426
        %v5431 = vpack.c.b16 %v5429, %v5428
        %v5435 = vsel %vm1047, %v5415, 0
        %5437 = vmatprep.subr.bf16.mxu0 0
        %5438 = vmatpush1.bf16.msra.mxu0 0
        %5439 = vmatprep.subr.bf16.mxu0 0
        %5440 = vmatpush1.bf16.msra.mxu0 0
        %5441 = vmatprep.subr.bf16.mxu0 0
        %5442 = vmatpush1.bf16.msra.mxu0 0
        %5443 = vmatprep.subr.bf16.mxu0 0
        %5444 = vmatpush1.bf16.msra.mxu0 0
        %5445 = vmatprep.subr.bf16.mxu0 0
        %5446 = vmatpush1.bf16.msra.mxu0 0
        %5447 = vmatprep.subr.bf16.mxu0 0
        %5448 = vmatpush1.bf16.msra.mxu0 0
        %5449 = vmatprep.subr.bf16.mxu0 0
        %5450 = vmatpush1.bf16.msra.mxu0 %v5431
        %5451 = vmatprep.subr.bf16.mxu0 0
        %5452 = vmatpush1.bf16.msra.mxu0 %v5430
        %5453 = vmatprep.subr.bf16.mxu0 0
        %5454 = vmatpush2.bf16.msra.mxu0 0
        %5455 = vmatprep.subr.bf16.mxu0 0
        %5456 = vmatpush2.bf16.msra.mxu0 0
        %5457 = vmatprep.subr.bf16.mxu0 0
        %5458 = vmatpush2.bf16.msra.mxu0 0
        %5459 = vmatprep.subr.bf16.mxu0 0
        %5460 = vmatpush2.bf16.msra.mxu0 0
        %5461 = vmatprep.subr.bf16.mxu0 0
        %5462 = vmatpush2.bf16.msra.mxu0 0
        %5463 = vmatprep.subr.bf16.mxu0 0
        %5464 = vmatpush2.bf16.msra.mxu0 0
        %5465 = vmatprep.subr.bf16.mxu0 0
        %5466 = vmatpush2.bf16.msra.mxu0 0
        %5467 = vmatprep.subr.bf16.mxu0 0
        %5468 = vmatpush2.bf16.msra.mxu0 0
        %5469 = vmatprep.mubr.bf16.mxu0 0
        %5470 = vmatmul.mubr.bf16.gmra.mxu0 %v5435
        %v5471 = vpop.f32.mrf.mxu0
        %v5472 = vadd.f32 %v5420, %v5471
        %v5473 = vpop.f32.mrf.mxu0
        %v5474 = vpop.f32.mrf.mxu0
        %v5475 = vpop.f32.mrf.mxu0
        %5476 = vdwg.mxu0
        %v5477 = vmax.f32 %v5472, 0.0
        %v5478 = vpack.c.bf16 %v5477, %v5477
        %v5480 = vlaneseq
        %v5481 = vshrl.u32 %v5480, 7
        %v5482 = vsub.s32 0, %v5481
        %v5483 = vrot.slane %v4576, %v5482
        %v5493 = vunpack.c.l.b16 %v4567
        %v5494 = vunpack.c.l.b16 %v4568
        %v5495 = vunpack.c.l.b16 %v4569
        %v5496 = vunpack.c.l.b16 %v4570
        %v5497 = vunpack.c.l.b16 %v4571
        %v5498 = vunpack.c.l.b16 %v4572
        %v5499 = vunpack.c.l.b16 %v4573
        %v5500 = vunpack.c.l.b16 %v4574
        %v5501 = vpack.c.b16 %v5494, %v5493
        %v5502 = vpack.c.b16 %v5496, %v5495
        %v5503 = vpack.c.b16 %v5498, %v5497
        %v5504 = vpack.c.b16 %v5500, %v5499
        %v5510 = vsel %vm2062, %v5478, 0
        %5512 = vmatprep.subr.bf16.mxu0 0
        %5513 = vmatpush1.bf16.msra.mxu0 0
        %5514 = vmatprep.subr.bf16.mxu0 0
        %5515 = vmatpush1.bf16.msra.mxu0 0
        %5516 = vmatprep.subr.bf16.mxu0 0
        %5517 = vmatpush1.bf16.msra.mxu0 0
        %5518 = vmatprep.subr.bf16.mxu0 0
        %5519 = vmatpush1.bf16.msra.mxu0 0
        %5520 = vmatprep.subr.bf16.mxu0 0
        %5521 = vmatpush1.bf16.msra.mxu0 %v5504
        %5522 = vmatprep.subr.bf16.mxu0 0
        %5523 = vmatpush1.bf16.msra.mxu0 %v5503
        %5524 = vmatprep.subr.bf16.mxu0 0
        %5525 = vmatpush1.bf16.msra.mxu0 %v5502
        %5526 = vmatprep.subr.bf16.mxu0 0
        %5527 = vmatpush1.bf16.msra.mxu0 %v5501
        %5528 = vmatprep.subr.bf16.mxu0 0
        %5529 = vmatpush2.bf16.msra.mxu0 0
        %5530 = vmatprep.subr.bf16.mxu0 0
        %5531 = vmatpush2.bf16.msra.mxu0 0
        %5532 = vmatprep.subr.bf16.mxu0 0
        %5533 = vmatpush2.bf16.msra.mxu0 0
        %5534 = vmatprep.subr.bf16.mxu0 0
        %5535 = vmatpush2.bf16.msra.mxu0 0
        %5536 = vmatprep.subr.bf16.mxu0 0
        %5537 = vmatpush2.bf16.msra.mxu0 0
        %5538 = vmatprep.subr.bf16.mxu0 0
        %5539 = vmatpush2.bf16.msra.mxu0 0
        %5540 = vmatprep.subr.bf16.mxu0 0
        %5541 = vmatpush2.bf16.msra.mxu0 0
        %5542 = vmatprep.subr.bf16.mxu0 0
        %5543 = vmatpush2.bf16.msra.mxu0 0
        %5544 = vmatprep.mubr.bf16.mxu0 0
        %5545 = vmatmul.mubr.bf16.gmra.mxu0 %v5510
        %v5546 = vpop.f32.mrf.mxu0
        %v5547 = vadd.f32 %v5483, %v5546
        %v5548 = vpop.f32.mrf.mxu0
        %v5549 = vpop.f32.mrf.mxu0
        %v5550 = vpop.f32.mrf.mxu0
        %5551 = vdwg.mxu0
        %v5552 = vadd.f32 %v5414, %v5547
        %v5553 = vsel %vm1047, %v5552, 0.0
        %5554 = vadd.xlane.f32.xlu0 %v5553
        %v5555 = vpop.xlane.xlu0 %5554
        %v5556 = vmul.f32 %v5555, %v1943
        %v5557 = vsub.f32 %v5552, %v5556
        %v5558 = vmul.f32 %v5557, %v5557
        %v5559 = vsel %vm1047, %v5558, 0.0
        %5560 = vadd.xlane.f32.xlu0 %v5559
        %v5561 = vpop.xlane.xlu0 %5560
        %v5562 = vmul.f32 %v5561, %v1943
        %v5563 = vadd.f32 %v5562, 1e-05
        %v5564 = vrsqrt.pop %v5563
        %v5565 = vmul.f32 %v5557, %v5564
        %v5567 = vlaneseq
        %v5568 = vshrl.u32 %v5567, 7
        %v5569 = vsub.s32 0, %v5568
        %v5570 = vrot.slane %v4578, %v5569
        %v5572 = vmul.f32 %v5565, %v5570
        %v5574 = vlaneseq
        %v5575 = vshrl.u32 %v5574, 7
        %v5576 = vsub.s32 0, %v5575
        %v5577 = vrot.slane %v4580, %v5576
        %v5579 = vadd.f32 %v5572, %v5577
        %v5580 = vmul.f32 %v5579, %v1053
        %v5581 = vpack.c.bf16 %v5580, %v5580
        %v5582 = vld [vmem:[%s47] sm:$0xf]
        %v5583 = vld [vmem:[%s47 + $0x4] sm:$0xf]
        %v5584 = vld [vmem:[%s47 + $0x8] sm:$0xf]
        %v5585 = vld [vmem:[%s47 + $0xc] sm:$0xf]
        %v5586 = vld [vmem:[#allocation16] sm:$0x1]
        %v5588 = vlaneseq
        %v5589 = vshrl.u32 %v5588, 7
        %v5590 = vsub.s32 0, %v5589
        %v5591 = vrot.slane %v5586, %v5590
        %v5597 = vunpack.c.l.b16 %v5582
        %v5598 = vunpack.c.l.b16 %v5583
        %v5599 = vunpack.c.l.b16 %v5584
        %v5600 = vunpack.c.l.b16 %v5585
        %v5601 = vpack.c.b16 %v5598, %v5597
        %v5602 = vpack.c.b16 %v5600, %v5599
        %v5606 = vsel %vm1047, %v5581, 0
        %5608 = vmatprep.subr.bf16.mxu0 0
        %5609 = vmatpush1.bf16.msra.mxu0 0
        %5610 = vmatprep.subr.bf16.mxu0 0
        %5611 = vmatpush1.bf16.msra.mxu0 0
        %5612 = vmatprep.subr.bf16.mxu0 0
        %5613 = vmatpush1.bf16.msra.mxu0 0
        %5614 = vmatprep.subr.bf16.mxu0 0
        %5615 = vmatpush1.bf16.msra.mxu0 0
        %5616 = vmatprep.subr.bf16.mxu0 0
        %5617 = vmatpush1.bf16.msra.mxu0 0
        %5618 = vmatprep.subr.bf16.mxu0 0
        %5619 = vmatpush1.bf16.msra.mxu0 0
        %5620 = vmatprep.subr.bf16.mxu0 0
        %5621 = vmatpush1.bf16.msra.mxu0 %v5602
        %5622 = vmatprep.subr.bf16.mxu0 0
        %5623 = vmatpush1.bf16.msra.mxu0 %v5601
        %5624 = vmatprep.subr.bf16.mxu0 0
        %5625 = vmatpush2.bf16.msra.mxu0 0
        %5626 = vmatprep.subr.bf16.mxu0 0
        %5627 = vmatpush2.bf16.msra.mxu0 0
        %5628 = vmatprep.subr.bf16.mxu0 0
        %5629 = vmatpush2.bf16.msra.mxu0 0
        %5630 = vmatprep.subr.bf16.mxu0 0
        %5631 = vmatpush2.bf16.msra.mxu0 0
        %5632 = vmatprep.subr.bf16.mxu0 0
        %5633 = vmatpush2.bf16.msra.mxu0 0
        %5634 = vmatprep.subr.bf16.mxu0 0
        %5635 = vmatpush2.bf16.msra.mxu0 0
        %5636 = vmatprep.subr.bf16.mxu0 0
        %5637 = vmatpush2.bf16.msra.mxu0 0
        %5638 = vmatprep.subr.bf16.mxu0 0
        %5639 = vmatpush2.bf16.msra.mxu0 0
        %5640 = vmatprep.mubr.bf16.mxu0 0
        %5641 = vmatmul.mubr.bf16.gmra.mxu0 %v5606
        %v5642 = vpop.f32.mrf.mxu0
        %v5643 = vadd.f32 %v5591, %v5642
        %v5644 = vpop.f32.mrf.mxu0
        %v5645 = vpop.f32.mrf.mxu0
        %v5646 = vpop.f32.mrf.mxu0
        %5647 = vdwg.mxu0
        %vm5648 = vcmp.gt.f32.partialorder %v5643, 0.0
        %v5649 = vmul.f32 %v5643, 0.01
        %v5650 = vsel %vm5648, %v5643, %v5649
        %v5651 = vmul.f32 %v5650, %v1053
        %5652 = vst.msk [vmem:[%s1034] sm:$0xff] %vm1047, %v5651
        %s5653 = sand.u32 %s624, 1
        %s5654 = scalar_lea.sflag [#allocation6], %s5653
        %s5655 = sand.u32 %s624, 1
        %s5656 = smul.addr %s5655, 8
        %s5657 = scalar_lea.vmem [#allocation18], %s5656
        %s5658 = sand.u32 %s86, 1
        %s5659 = scalar_lea.sflag [#allocation20], %s5658
        %s5660 = sand.u32 %s650, 1
        %s5661 = smul.addr %s5660, 8
        %s5662 = scalar_lea.vmem [#allocation19], %s5661
        %p5663 = scmp.lt.s32.totalorder %s86, 1
        %s5664 = scalar_select %p5663, %s86, 1
        %s5665 = scalar_lea.vmem %s55, %s5664
        %p5666 = scmp.lt.s32.totalorder %s86, 1
        %s5667 = scalar_select %p5666, %s86, 1
        %s5668 = scalar_lea.vmem %s57, %s5667
        %s5669 = sand.u32 %s86, 1
        %s5670 = scalar_lea.sflag [#allocation20], %s5669
        %s5671 = sand.u32 %s728, 1
        %s5672 = smul.addr %s5671, 8
        %s5673 = scalar_lea.vmem [#allocation21], %s5672
        // Predicated region
        $region153: #{transe_stymix_forward.1} parent=119 // pred_check
          %p5674 = pneg %p634
        $region154: #{transe_stymix_forward.1} parent=119 // pred_check_branch
          %5676 = sbr.rel (%p5674) target = $region156
        $region155: #{transe_stymix_forward.1} parent=119 // pred_region
          %s5678 = ssub.s32 128, 128
          %5679 = vsyncadd %s5654, %s5678
          %s5680 = smul.addr %s86, 128
          %s5681 = scalar_lea.hbm %s51, %s5680
          %s5683 = sshll.u32 %s5657, 4
          %s5684 = int_to_ptr.vmem [resolvable:$true] %s5683
          %5686 = dma.vmem_to_hbm [thread:$0]  %s5684, 128, %s5681, %s5654
        $region156: #{transe_stymix_forward.1} parent=119 // pred_fallthru
          _
        // Predicated region
        $region157: #{transe_stymix_forward.1} parent=119 // pred_check
          %p5687 = pneg %p660
        $region158: #{transe_stymix_forward.1} parent=119 // pred_check_branch
          %5689 = sbr.rel (%p5687) target = $region160
        $region159: #{transe_stymix_forward.1} parent=119 // pred_region
          %s5691 = ssub.s32 128, 128
          %5692 = vsyncadd %s5659, %s5691
          %s5693 = smul.addr %s86, 128
          %s5694 = scalar_lea.hbm %s53, %s5693
          %s5696 = sshll.u32 %s5662, 4
          %s5697 = int_to_ptr.vmem [resolvable:$true] %s5696
          %5699 = dma.vmem_to_hbm [thread:$0]  %s5697, 128, %s5694, %s5659
        $region160: #{transe_stymix_forward.1} parent=119 // pred_fallthru
          _
        // Predicated region
        $region161: #{transe_stymix_forward.1} parent=119 // pred_check
          %p5700 = pneg %p686
        $region162: #{transe_stymix_forward.1} parent=119 // pred_check_branch
          %5702 = sbr.rel (%p5700) target = $region164
        $region163: #{transe_stymix_forward.1} parent=119 // pred_region
          _
        $region164: #{transe_stymix_forward.1} parent=119 // pred_fallthru
          _
        // Predicated region
        $region165: #{transe_stymix_forward.1} parent=119 // pred_check
          %p5703 = pneg %p712
        $region166: #{transe_stymix_forward.1} parent=119 // pred_check_branch
          %5705 = sbr.rel (%p5703) target = $region168
        $region167: #{transe_stymix_forward.1} parent=119 // pred_region
          _
        $region168: #{transe_stymix_forward.1} parent=119 // pred_fallthru
          _
        // Predicated region
        $region169: #{transe_stymix_forward.1} parent=119 // pred_check
          %p5706 = pneg %p738
        $region170: #{transe_stymix_forward.1} parent=119 // pred_check_branch
          %5708 = sbr.rel (%p5706) target = $region172
        $region171: #{transe_stymix_forward.1} parent=119 // pred_region
          %s5710 = ssub.s32 128, 128
          %5711 = vsyncadd %s5670, %s5710
          %s5712 = smul.addr %s86, 128
          %s5713 = scalar_lea.hbm %s59, %s5712
          %s5715 = sshll.u32 %s5673, 4
          %s5716 = int_to_ptr.vmem [resolvable:$true] %s5715
          %5718 = dma.vmem_to_hbm [thread:$0]  %s5716, 128, %s5713, %s5670
        $region172: #{transe_stymix_forward.1} parent=119 // pred_fallthru
          _
      $region120: #{transe_stymix_forward.1} parent=5 // pred_fallthru
        _
      %p5719 = scmp.le.s32.totalorder 2, %s81
      // Predicated region
      $region173: #{transe_stymix_forward.1} parent=5 // pred_check
        %p5720 = pneg %p5719
      $region174: #{transe_stymix_forward.1} parent=5 // pred_check_branch
        %5722 = sbr.rel (%p5720) target = $region176
      $region175: #{transe_stymix_forward.1} parent=5 // pred_region
        %s5723 = ssub.s32 %s81, 2
        // Predicated region
        $region177: #{transe_stymix_forward.1} parent=175 // pred_check
          %p5724 = pneg %p640
        $region178: #{transe_stymix_forward.1} parent=175 // pred_check_branch
          %5726 = sbr.rel (%p5724) target = $region180
        $region179: #{transe_stymix_forward.1} parent=175 // pred_region
          %s5727 = sand.u32 %s625, 1
          %s5728 = scalar_lea.sflag [#allocation6], %s5727
          %s5729 = sand.u32 %s625, 1
          %s5730 = smul.addr %s5729, 8
          %s5731 = scalar_lea.vmem [#allocation18], %s5730
          %5732 = dma.done %s5728, 128
        $region180: #{transe_stymix_forward.1} parent=175 // pred_fallthru
          _
        // Predicated region
        $region181: #{transe_stymix_forward.1} parent=175 // pred_check
          %p5733 = pneg %p666
        $region182: #{transe_stymix_forward.1} parent=175 // pred_check_branch
          %5735 = sbr.rel (%p5733) target = $region184
        $region183: #{transe_stymix_forward.1} parent=175 // pred_region
          %s5736 = sand.u32 %s87, 1
          %s5737 = scalar_lea.sflag [#allocation20], %s5736
          %s5738 = sand.u32 %s651, 1
          %s5739 = smul.addr %s5738, 8
          %s5740 = scalar_lea.vmem [#allocation19], %s5739
          %5741 = dma.done %s5737, 128
        $region184: #{transe_stymix_forward.1} parent=175 // pred_fallthru
          _
        // Predicated region
        $region185: #{transe_stymix_forward.1} parent=175 // pred_check
          %p5742 = pneg %p692
        $region186: #{transe_stymix_forward.1} parent=175 // pred_check_branch
          %5744 = sbr.rel (%p5742) target = $region188
        $region187: #{transe_stymix_forward.1} parent=175 // pred_region
          %p5745 = scmp.lt.s32.totalorder %s87, 1
          %s5746 = scalar_select %p5745, %s87, 1
          %s5747 = scalar_lea.vmem %s55, %s5746
        $region188: #{transe_stymix_forward.1} parent=175 // pred_fallthru
          _
        // Predicated region
        $region189: #{transe_stymix_forward.1} parent=175 // pred_check
          %p5748 = pneg %p718
        $region190: #{transe_stymix_forward.1} parent=175 // pred_check_branch
          %5750 = sbr.rel (%p5748) target = $region192
        $region191: #{transe_stymix_forward.1} parent=175 // pred_region
          %p5751 = scmp.lt.s32.totalorder %s87, 1
          %s5752 = scalar_select %p5751, %s87, 1
          %s5753 = scalar_lea.vmem %s57, %s5752
        $region192: #{transe_stymix_forward.1} parent=175 // pred_fallthru
          _
        // Predicated region
        $region193: #{transe_stymix_forward.1} parent=175 // pred_check
          %p5754 = pneg %p744
        $region194: #{transe_stymix_forward.1} parent=175 // pred_check_branch
          %5756 = sbr.rel (%p5754) target = $region196
        $region195: #{transe_stymix_forward.1} parent=175 // pred_region
          %s5757 = sand.u32 %s87, 1
          %s5758 = scalar_lea.sflag [#allocation20], %s5757
          %s5759 = sand.u32 %s729, 1
          %s5760 = smul.addr %s5759, 8
          %s5761 = scalar_lea.vmem [#allocation21], %s5760
          %5762 = dma.done %s5758, 128
        $region196: #{transe_stymix_forward.1} parent=175 // pred_fallthru
          _
      $region176: #{transe_stymix_forward.1} parent=5 // pred_fallthru
        _
    $region6: #{transe_stymix_forward.1} parent=1 // loop_footer
      %s85 = sadd.s32 1, %s81
    $region7: #{transe_stymix_forward.1} parent=1 // loop_footer_branch
      %80 = sbr.rel target = $region3
    $region8: #{transe_stymix_forward.1} parent=1 // loop_exit
      _
    %5763 = vsyncpa [#allocation5], 1
    %s5764 = scalar_lea.sflag [#allocation5], 1
    %5765 = vsyncpa %s5764, 1
    %5766 = vsyncpa [#allocation8], 1
    %5767 = vsyncpa [#allocation11], 1
    %5768 = vsyncpa [#allocation14], 1
    %5769 = vsyncpa [#allocation17], 1
    %5770 = vsyncpa [#allocation6], 1
    %s5771 = scalar_lea.sflag [#allocation6], 1
    %5772 = vsyncpa %s5771, 1
    %5773 = vsyncpa [#allocation20], 1
    %s5774 = scalar_lea.sflag [#allocation20], 1
    %5775 = vsyncpa %s5774, 1

</llo_original>
